<compile_context>
chip_gen: v7x
topology: tpu7x:2x2x1
jax: 0.10.0
libtpu: 0.0.40
codegen_flags: <defaults>
</compile_context>

<pallas_src>
import jax
import jax.numpy as jnp
from jax.experimental import pallas as pl
from jax.experimental.pallas import tpu as pltpu


# ----------------------------- fused Pallas kernel ------------------------- #

def _make_fused_decoder_kernel(num_layer, T, Bp, Sp, D, Vp):
    NL = num_layer
    # Row indices inside the packed bias slab.
    R_QB, R_KB, R_VB = NL - 1, NL, NL + 1
    R_WW, R_WB, R_FB = NL + 2, NL + 3, NL + 4

    def kernel(*refs):
        it = iter(refs)
        emb_ref = next(it)      # (T*Bp, D)   embedded decoder inputs (T-major)
        enc_ref = next(it)      # (Bp*Sp, D)  encoder outputs (batch-major)
        mask_ref = next(it)     # (T, Bp, Sp) additive mask (0 / -1e6)
        h0_ref = next(it)       # (NL, Bp, D)
        c0_ref = next(it)       # (NL, Bp, D)
        bias_ref = next(it)     # (NL+5, W)   packed small params
        layer_w = [(next(it), next(it)) for _ in range(NL - 1)]  # wih_t, whh_t
        q_wt = next(it)         # (D, D)
        k_wt = next(it)         # (D, D)
        v_wt = next(it)         # (D, D)
        f_wih_a = next(it)      # (D, 4D)  rows acting on `tensor`
        f_wih_b = next(it)      # (D, 4D)  rows acting on `context`
        f_whh = next(it)        # (D, 4D)
        fc_wt = next(it)        # (D, Vp)  bf16
        fc_b = next(it)         # (1, Vp)  f32
        logits_ref = next(it)   # (T*Bp, Vp)
        hf_ref = next(it)       # (NL, Bp, D)
        cf_ref = next(it)       # (NL, Bp, D)
        x_scr = next(it)        # (2, T*Bp, D) ping-pong LSTM output slabs
        ctx_scr = next(it)      # (T*Bp, D)    attention context slab

        # Loop-invariant gate-select mask, hoisted out of all loops
        # (two full-tile EUP passes + one select instead of 4 quarter passes).
        lane = jax.lax.broadcasted_iota(jnp.int32, (Bp, 4 * D), 1)
        is_g = jnp.logical_and(lane >= 2 * D, lane < 3 * D)

        def lstm_cell(gates, c):
            act = jnp.where(is_g, jnp.tanh(gates), jax.nn.sigmoid(gates))
            i_g = act[:, 0 * D:1 * D]
            f_g = act[:, 1 * D:2 * D]
            g_g = act[:, 2 * D:3 * D]
            o_g = act[:, 3 * D:4 * D]
            c_new = f_g * c + i_g * g_g
            h_new = o_g * jnp.tanh(c_new)
            return h_new, c_new

        def run_lstm(gx, whh, h, c, slot, skip=None):
            # gx: (T*Bp, 4D) hoisted input projection (+ bias). Recurrence is
            # fully unrolled; only h @ Whh and gate math stay serial.
            # Per-step outputs go straight to the VMEM scratch slab (no
            # concatenate relayout, bounded live ranges).
            for t in range(T):
                g = gx[t * Bp:(t + 1) * Bp, :] + jnp.dot(
                    h, whh, preferred_element_type=jnp.float32)
                h, c = lstm_cell(g, c)
                if skip is not None:     # residual folded into the epilogue
                    x_scr[slot, t * Bp:(t + 1) * Bp, :] = (
                        h + skip[t * Bp:(t + 1) * Bp, :])
                else:
                    x_scr[slot, t * Bp:(t + 1) * Bp, :] = h
            return h, c

        x = emb_ref[...]                                     # (T*Bp, D)

        # ---- residual LSTM stack -------------------------------------------
        for li in range(NL - 1):
            wih, whh = layer_w[li]
            bb = bias_ref[li:li + 1, 0:4 * D]                # (1, 4D)
            gx = jnp.dot(x, wih[...],
                         preferred_element_type=jnp.float32) + bb
            slot = li % 2
            h, c = run_lstm(gx, whh[...], h0_ref[li], c0_ref[li], slot, skip=x)
            hf_ref[li] = h
            cf_ref[li] = c
            x = x_scr[slot]                                  # (T*Bp, D)

        # ---- additive attention (no T-replicated K/V, T-chunked) ------------
        q_b = bias_ref[R_QB:R_QB + 1, 0:D]
        k_b = bias_ref[R_KB:R_KB + 1, 0:D]
        v_b = bias_ref[R_VB:R_VB + 1, 0:D]
        w_w = bias_ref[R_WW:R_WW + 1, 0:D]
        w_b = bias_ref[R_WB:R_WB + 1, 0:1]

        q = jnp.dot(x, q_wt[...],
                    preferred_element_type=jnp.float32) + q_b    # (T*Bp, D)
        enc = enc_ref[...]                                       # (Bp*Sp, D)
        k = (jnp.dot(enc, k_wt[...], preferred_element_type=jnp.float32)
             + k_b).reshape(Bp, Sp, D)
        v = (jnp.dot(enc, v_wt[...], preferred_element_type=jnp.float32)
             + v_b).reshape(Bp, Sp, D)
        w_row = w_w.reshape(1, 1, D)

        for t in range(T):
            q_t = q[t * Bp:(t + 1) * Bp, :]                      # (Bp, D)
            e_t = jnp.tanh(q_t[:, None, :] + k)                  # (Bp, Sp, D)
            s_t = jnp.sum(e_t * w_row, axis=-1) + w_b + mask_ref[t]  # (Bp, Sp)
            s_t = s_t - jnp.max(s_t, axis=-1, keepdims=True)
            p_t = jnp.exp(s_t)
            p_t = p_t * pl.reciprocal(jnp.sum(p_t, axis=-1, keepdims=True))
            # TODO(synk): at production S/D do this contraction as a batched
            # MXU dot_general (and run it on the 2nd TensorCore on v7x).
            ctx_scr[t * Bp:(t + 1) * Bp, :] = jnp.sum(p_t[:, :, None] * v,
                                                      axis=1)    # (Bp, D)
        context = ctx_scr[...]                                   # (T*Bp, D)

        # ---- final LSTM on [x ; context] (split weights, no concat) ---------
        f_b = bias_ref[R_FB:R_FB + 1, 0:4 * D]
        gx = (jnp.dot(x, f_wih_a[...], preferred_element_type=jnp.float32)
              + jnp.dot(context, f_wih_b[...],
                        preferred_element_type=jnp.float32)
              + f_b)
        fslot = (NL - 1) % 2
        h, c = run_lstm(gx, f_whh[...], h0_ref[NL - 1], c0_ref[NL - 1], fslot)
        hf_ref[NL - 1] = h
        cf_ref[NL - 1] = c
        out = x_scr[fslot]                                       # (T*Bp, D)

        # ---- fc projection: bf16 MXU feeds, lane-dense padded vocab ---------
        logits_ref[...] = (
            jnp.dot(out.astype(jnp.bfloat16), fc_wt[...],
                    preferred_element_type=jnp.float32) + fc_b[...])

    return kernel


# ----------------------------- Decoder forward ----------------------------- #

def decoder_forward(params, inputs, l_states, enc, mask, num_layer):
    """Pallas implementation of Decoder.forward (eval mode; dropout is a no-op
    inside forward)."""
    # Embedding lookup is a data-dependent gather -> kept as XLA glue.
    emb = params['embedding'][inputs]                       # (T, B, D)
    T, B, D = emb.shape
    S = enc.shape[0]
    V = params['fc_wt'].shape[1]
    NL = num_layer

    Bp = ((max(B, 1) + 7) // 8) * 8                         # sublane tile
    Sp = ((S + 7) // 8) * 8
    Vp = ((V + 127) // 128) * 128                           # lane-dense vocab

    # ---- pad batch / S once in the wrapper (vreg-aligned kernel tiles) ------
    emb_flat = jnp.pad(emb, ((0, 0), (0, Bp - B), (0, 0))).reshape(T * Bp, D)

    enc_bm = jnp.transpose(enc, (1, 0, 2))                  # (B, S, D)
    enc_flat = jnp.pad(enc_bm, ((0, Bp - B), (0, Sp - S), (0, 0))
                       ).reshape(Bp * Sp, D)

    # Additive mask (0 keep / -1e6 masked); pad positions masked out.
    mask_add = jnp.where(mask > 0.5, 0.0, -1e6).astype(jnp.float32)  # (T,S,B)
    mask_tbs = jnp.transpose(mask_add, (0, 2, 1))           # (T, B, S)
    mask_p = jnp.pad(mask_tbs, ((0, 0), (0, Bp - B), (0, Sp - S)),
                     constant_values=-1e6)                  # (T, Bp, Sp)

    h0 = jnp.concatenate([s[0] for s in l_states], axis=0)  # (NL, B, D)
    c0 = jnp.concatenate([s[1] for s in l_states], axis=0)
    h0 = jnp.pad(h0, ((0, 0), (0, Bp - B), (0, 0)))
    c0 = jnp.pad(c0, ((0, 0), (0, Bp - B), (0, 0)))

    pa = params['attn']
    pf = params['lstm']
    f_wih_a = pf['wih_t'][:D]      # rows acting on `tensor`
    f_wih_b = pf['wih_t'][D:]      # rows acting on `context`

    # ---- pack all small (1, x) params into one lane-dense slab (one DMA) ----
    W = ((max(4 * D, 1) + 127) // 128) * 128

    def _row(a):
        return jnp.pad(a.astype(jnp.float32), ((0, 0), (0, W - a.shape[1])))

    rows = [_row(params['layer_{}'.format(i)]['b']) for i in range(NL - 1)]
    rows += [_row(pa['q_b']), _row(pa['k_b']), _row(pa['v_b']),
             _row(pa['w_w']), _row(pa['w_b']), _row(pf['b'])]
    bias_slab = jnp.concatenate(rows, axis=0)               # (NL+5, W)

    fc_wt = params['fc_wt']
    fc_b = params['fc_b']
    if Vp != V:
        fc_wt = jnp.pad(fc_wt, ((0, 0), (0, Vp - V)))
        fc_b = jnp.pad(fc_b, ((0, 0), (0, Vp - V)))
    fc_wt_bf16 = fc_wt.astype(jnp.bfloat16)   # bf16 MXU feed, half the VMEM

    args = [emb_flat, enc_flat, mask_p, h0, c0, bias_slab]
    for i in range(NL - 1):
        p = params['layer_{}'.format(i)]
        args += [p['wih_t'], p['whh_t']]
    args += [pa['q_wt'], pa['k_wt'], pa['v_wt'],
             f_wih_a, f_wih_b, pf['whh_t'], fc_wt_bf16, fc_b]

    kernel = _make_fused_decoder_kernel(NL, T, Bp, Sp, D, Vp)
    vmem = pl.BlockSpec(memory_space=pltpu.MemorySpace.VMEM)

    # Right-size the VMEM limit from the actual buffer sizes (+ headroom for
    # per-chunk attention temporaries), capped to stay v7x-friendly (<=48 MiB).
    def _nbytes(a):
        return int(a.size) * jnp.dtype(a.dtype).itemsize

    in_bytes = sum(_nbytes(a) for a in args)
    out_bytes = (T * Bp * Vp + 2 * NL * Bp * D) * 4
    scratch_bytes = (2 * T * Bp * D + T * Bp * D) * 4
    tmp_bytes = (4 * Bp * Sp * D + 4 * Bp * Sp          # e/p chunk, k, v
                 + 4 * T * Bp * D + 2 * T * Bp * 4 * D  # q, gx slabs
                 + T * Bp * Vp) * 4                     # fc accumulator
    vmem_limit = int(min(48 * 1024 * 1024,
                         max(16 * 1024 * 1024,
                             4 * (in_bytes + out_bytes + scratch_bytes
                                  + tmp_bytes))))

    logits_p, hf, cf = pl.pallas_call(
        kernel,
        out_shape=(
            jax.ShapeDtypeStruct((T * Bp, Vp), jnp.float32),
            jax.ShapeDtypeStruct((NL, Bp, D), jnp.float32),
            jax.ShapeDtypeStruct((NL, Bp, D), jnp.float32),
        ),
        in_specs=[vmem] * len(args),
        out_specs=(vmem, vmem, vmem),
        scratch_shapes=[
            pltpu.VMEM((2, T * Bp, D), jnp.float32),   # LSTM output slabs
            pltpu.VMEM((T * Bp, D), jnp.float32),      # attention context
        ],
        compiler_params=pltpu.CompilerParams(vmem_limit_bytes=vmem_limit),
    )(*args)

    logits = logits_p.reshape(T, Bp, Vp)[:, :B, :V]
    new_states = [(hf[i, :B][None], cf[i, :B][None]) for i in range(NL)]
    return logits, new_states


# --------------------------- pure-JAX reference ---------------------------- #

def _lstm_ref(x, h0, c0, wih_t, whh_t, b):
    d = whh_t.shape[0]

    def step(carry, xt):
        h, c = carry
        gates = xt @ wih_t + h @ whh_t + b
        i = jax.nn.sigmoid(gates[:, 0 * d:1 * d])
        f = jax.nn.sigmoid(gates[:, 1 * d:2 * d])
        g = jnp.tanh(gates[:, 2 * d:3 * d])
        o = jax.nn.sigmoid(gates[:, 3 * d:4 * d])
        c = f * c + i * g
        h = o * jnp.tanh(c)
        return (h, c), h

    (hf, cf), out = jax.lax.scan(step, (h0, c0), x)
    return out, hf, cf


def decoder_forward_ref(params, inputs, l_states, enc, mask, num_layer):
    tensor = params['embedding'][inputs]
    new_states = []
    for i in range(num_layer - 1):
        p = params['layer_{}'.format(i)]
        skip = tensor
        out, hf, cf = _lstm_ref(tensor, l_states[i][0][0], l_states[i][1][0],
                                p['wih_t'], p['whh_t'], p['b'])
        new_states.append((hf[None], cf[None]))
        tensor = out + skip
    pa = params['attn']
    q = tensor @ pa['q_wt'] + pa['q_b'][0]
    k = enc @ pa['k_wt'] + pa['k_b'][0]
    v = enc @ pa['v_wt'] + pa['v_b'][0]
    e = jnp.tanh(q[:, None] + k[None])                      # (T, S, B, D)
    scores = jnp.einsum('tsbd,d->tsb', e, pa['w_w'][0]) + pa['w_b'][0, 0]
    scores = jnp.where(mask == 1, scores, -1000000.0)
    w = jax.nn.softmax(scores, axis=1)
    context = jnp.einsum('tsb,sbd->tbd', w, v)
    x2 = jnp.concatenate([tensor, context], -1)
    p = params['lstm']
    out, hf, cf = _lstm_ref(x2, l_states[-1][0][0], l_states[-1][1][0],
                            p['wih_t'], p['whh_t'], p['b'])
    new_states.append((hf[None], cf[None]))
    logits = out @ params['fc_wt'] + params['fc_b'][0]
    return logits, new_states


# --------------------------------- main ------------------------------------ #

if __name__ == "__main__":
    # config
    MODEL_SIZE = 32      # D
    DICT_SIZE_1 = 64     # vocab
    NUM_LAYER = 2
    T, B, S = 8, 2, 16   # decoder steps, batch, encoder length

    key = jax.random.PRNGKey(0)
    ks = iter(jax.random.split(key, 32))

    def nrm(shape, scale=0.1):
        return scale * jax.random.normal(next(ks), shape, jnp.float32)

    D, V = MODEL_SIZE, DICT_SIZE_1
    params = {
        'embedding': nrm((V, D)),
        'attn': {
            'q_wt': nrm((D, D)), 'q_b': nrm((1, D)),
            'k_wt': nrm((D, D)), 'k_b': nrm((1, D)),
            'v_wt': nrm((D, D)), 'v_b': nrm((1, D)),
            'w_w': nrm((1, D)), 'w_b': nrm((1, 1)),
        },
        'fc_wt': nrm((D, V)), 'fc_b': nrm((1, V)),
        'lstm': {'wih_t': nrm((2 * D, 4 * D)), 'whh_t': nrm((D, 4 * D)),
                 'b': nrm((1, 4 * D))},
    }
    for i in range(NUM_LAYER - 1):
        params['layer_{}'.format(i)] = {
            'wih_t': nrm((D, 4 * D)), 'whh_t': nrm((D, 4 * D)),
            'b': nrm((1, 4 * D)),
        }

    # inputs (mirrors what Decoder.get_loss would feed to forward)
    inputs = jax.random.randint(next(ks), (T, B), 0, V, jnp.int32)
    enc = 0.5 * jax.random.normal(next(ks), (S, B, D), jnp.float32)
    lengths = [S, S - 4]
    mask2d = (jnp.arange(S)[:, None] < jnp.array(lengths)[None, :]).astype(jnp.float32)
    mask = jnp.broadcast_to(mask2d[None], (T, S, B)).astype(jnp.float32)

    dec_hidden = enc.mean(0, keepdims=True)                  # (1, B, D)
    dec_cell = enc.mean(0, keepdims=True)
    l_states = [(dec_hidden, dec_cell) for _ in range(NUM_LAYER)]

    fwd = jax.jit(decoder_forward, static_argnames=('num_layer',))
    logits, states = fwd(params, inputs, l_states, enc, mask,
                         num_layer=NUM_LAYER)
    jax.block_until_ready(logits)

    ref_logits, ref_states = decoder_forward_ref(params, inputs, l_states, enc,
                                                 mask, NUM_LAYER)
    assert logits.shape == (T, B, V)
    assert jnp.allclose(logits, ref_logits, rtol=1e-2, atol=1e-2), (
        float(jnp.max(jnp.abs(logits - ref_logits))))
    for (h, c), (hr, cr) in zip(states, ref_states):
        assert jnp.allclose(h, hr, rtol=1e-2, atol=1e-2)
        assert jnp.allclose(c, cr, rtol=1e-2, atol=1e-2)

    print("KERNEL_OK")
</pallas_src>

<mosaic_0001>
module attributes {stable_mosaic.version = 11 : i64} {
  func.func @kernel(%arg0: memref<64x32xf32, #tpu.memory_space<vmem>>, %arg1: memref<128x32xf32, #tpu.memory_space<vmem>>, %arg2: memref<8x8x16xf32, #tpu.memory_space<vmem>>, %arg3: memref<2x8x32xf32, #tpu.memory_space<vmem>>, %arg4: memref<2x8x32xf32, #tpu.memory_space<vmem>>, %arg5: memref<7x128xf32, #tpu.memory_space<vmem>>, %arg6: memref<32x128xf32, #tpu.memory_space<vmem>>, %arg7: memref<32x128xf32, #tpu.memory_space<vmem>>, %arg8: memref<32x32xf32, #tpu.memory_space<vmem>>, %arg9: memref<32x32xf32, #tpu.memory_space<vmem>>, %arg10: memref<32x32xf32, #tpu.memory_space<vmem>>, %arg11: memref<32x128xf32, #tpu.memory_space<vmem>>, %arg12: memref<32x128xf32, #tpu.memory_space<vmem>>, %arg13: memref<32x128xf32, #tpu.memory_space<vmem>>, %arg14: memref<32x128xbf16, #tpu.memory_space<vmem>>, %arg15: memref<1x128xf32, #tpu.memory_space<vmem>>, %arg16: memref<64x128xf32, #tpu.memory_space<vmem>>, %arg17: memref<2x8x32xf32, #tpu.memory_space<vmem>>, %arg18: memref<2x8x32xf32, #tpu.memory_space<vmem>>, %arg19: memref<2x64x32xf32, #tpu.memory_space<vmem>>, %arg20: memref<64x32xf32, #tpu.memory_space<vmem>>) attributes {dimension_semantics = [], scalar_prefetch = 0 : i64, scratch_operands = 2 : i64, tpu.core_type = #tpu.core_type<tc>} {
    %0 = tpu.iota {dimensions = array<i32: 1>} : vector<8x128xi32>
    %c64_i32 = arith.constant 64 : i32
    %1 = vector.broadcast %c64_i32 : i32 to vector<8x128xi32>
    %2 = arith.cmpi sge, %0, %1 : vector<8x128xi32>
    %c96_i32 = arith.constant 96 : i32
    %3 = vector.broadcast %c96_i32 : i32 to vector<8x128xi32>
    %4 = arith.cmpi slt, %0, %3 : vector<8x128xi32>
    %5 = arith.andi %2, %4 : vector<8x128xi1>
    %c0 = arith.constant 0 : index
    %c0_0 = arith.constant 0 : index
    %6 = vector.load %arg0[%c0, %c0_0] : memref<64x32xf32, #tpu.memory_space<vmem>>, vector<64x32xf32>
    %c0_1 = arith.constant 0 : index
    %c0_2 = arith.constant 0 : index
    %7 = vector.load %arg5[%c0_1, %c0_2] : memref<7x128xf32, #tpu.memory_space<vmem>>, vector<1x128xf32>
    %c0_3 = arith.constant 0 : index
    %c0_4 = arith.constant 0 : index
    %8 = vector.load %arg6[%c0_3, %c0_4] : memref<32x128xf32, #tpu.memory_space<vmem>>, vector<32x128xf32>
    %cst = arith.constant dense<0.000000e+00> : vector<64x128xf32>
    %9 = tpu.matmul %6, %8, %cst {dimension_numbers = #tpu.dot_dimension_numbers<[1], [0], [0], [1], [0, 0, 1, 1], [], []>} : vector<64x32xf32>, vector<32x128xf32>, vector<64x128xf32> -> vector<64x128xf32>
    %10 = vector.broadcast %7 : vector<1x128xf32> to vector<64x128xf32>
    %11 = arith.addf %9, %10 : vector<64x128xf32>
    %c0_5 = arith.constant 0 : index
    %c0_6 = arith.constant 0 : index
    %12 = vector.load %arg7[%c0_5, %c0_6] : memref<32x128xf32, #tpu.memory_space<vmem>>, vector<32x128xf32>
    %c0_7 = arith.constant 0 : index
    %c0_8 = arith.constant 0 : index
    %c0_9 = arith.constant 0 : index
    %13 = vector.load %arg3[%c0_7, %c0_8, %c0_9] : memref<2x8x32xf32, #tpu.memory_space<vmem>>, vector<1x8x32xf32>
    %14 = vector.shape_cast %13 : vector<1x8x32xf32> to vector<8x32xf32>
    %c0_10 = arith.constant 0 : index
    %c0_11 = arith.constant 0 : index
    %c0_12 = arith.constant 0 : index
    %15 = vector.load %arg4[%c0_10, %c0_11, %c0_12] : memref<2x8x32xf32, #tpu.memory_space<vmem>>, vector<1x8x32xf32>
    %16 = vector.shape_cast %15 : vector<1x8x32xf32> to vector<8x32xf32>
    %17 = vector.extract_strided_slice %11 {offsets = [0, 0], sizes = [8, 128], strides = [1, 1]} : vector<64x128xf32> to vector<8x128xf32>
    %cst_13 = arith.constant dense<0.000000e+00> : vector<8x128xf32>
    %18 = tpu.matmul %14, %12, %cst_13 {dimension_numbers = #tpu.dot_dimension_numbers<[1], [0], [0], [1], [0, 0, 1, 1], [], []>} : vector<8x32xf32>, vector<32x128xf32>, vector<8x128xf32> -> vector<8x128xf32>
    %19 = arith.addf %17, %18 : vector<8x128xf32>
    %20 = math.tanh %19 : vector<8x128xf32>
    %21 = arith.negf %19 : vector<8x128xf32>
    %22 = math.exp %21 : vector<8x128xf32>
    %cst_14 = arith.constant 1.000000e+00 : f32
    %23 = vector.broadcast %cst_14 : f32 to vector<8x128xf32>
    %24 = arith.addf %23, %22 : vector<8x128xf32>
    %25 = arith.divf %23, %24 : vector<8x128xf32>
    %26 = arith.select %5, %20, %25 : vector<8x128xi1>, vector<8x128xf32>
    %27 = vector.extract_strided_slice %26 {offsets = [0, 0], sizes = [8, 32], strides = [1, 1]} : vector<8x128xf32> to vector<8x32xf32>
    %28 = vector.extract_strided_slice %26 {offsets = [0, 32], sizes = [8, 32], strides = [1, 1]} : vector<8x128xf32> to vector<8x32xf32>
    %29 = vector.extract_strided_slice %26 {offsets = [0, 64], sizes = [8, 32], strides = [1, 1]} : vector<8x128xf32> to vector<8x32xf32>
    %30 = vector.extract_strided_slice %26 {offsets = [0, 96], sizes = [8, 32], strides = [1, 1]} : vector<8x128xf32> to vector<8x32xf32>
    %31 = arith.mulf %28, %16 : vector<8x32xf32>
    %32 = arith.mulf %27, %29 : vector<8x32xf32>
    %33 = arith.addf %31, %32 : vector<8x32xf32>
    %34 = math.tanh %33 : vector<8x32xf32>
    %35 = arith.mulf %30, %34 : vector<8x32xf32>
    %36 = vector.extract_strided_slice %6 {offsets = [0, 0], sizes = [8, 32], strides = [1, 1]} : vector<64x32xf32> to vector<8x32xf32>
    %37 = arith.addf %35, %36 : vector<8x32xf32>
    %c0_15 = arith.constant 0 : index
    %c0_16 = arith.constant 0 : index
    %c0_17 = arith.constant 0 : index
    %38 = vector.load %arg19[%c0_15, %c0_16, %c0_17] : memref<2x64x32xf32, #tpu.memory_space<vmem>>, vector<1x8x32xf32>
    %39 = vector.shape_cast %38 : vector<1x8x32xf32> to vector<8x32xf32>
    %40 = vector.shape_cast %37 : vector<8x32xf32> to vector<1x8x32xf32>
    tpu.vector_store %arg19[%c0_15, %c0_16, %c0_17], %40 {strides = array<i32>} : memref<2x64x32xf32, #tpu.memory_space<vmem>>, vector<1x8x32xf32>,
    %41 = vector.extract_strided_slice %11 {offsets = [8, 0], sizes = [8, 128], strides = [1, 1]} : vector<64x128xf32> to vector<8x128xf32>
    %cst_18 = arith.constant dense<0.000000e+00> : vector<8x128xf32>
    %42 = tpu.matmul %35, %12, %cst_18 {dimension_numbers = #tpu.dot_dimension_numbers<[1], [0], [0], [1], [0, 0, 1, 1], [], []>} : vector<8x32xf32>, vector<32x128xf32>, vector<8x128xf32> -> vector<8x128xf32>
    %43 = arith.addf %41, %42 : vector<8x128xf32>
    %44 = math.tanh %43 : vector<8x128xf32>
    %45 = arith.negf %43 : vector<8x128xf32>
    %46 = math.exp %45 : vector<8x128xf32>
    %cst_19 = arith.constant 1.000000e+00 : f32
    %47 = vector.broadcast %cst_19 : f32 to vector<8x128xf32>
    %48 = arith.addf %47, %46 : vector<8x128xf32>
    %49 = arith.divf %47, %48 : vector<8x128xf32>
    %50 = arith.select %5, %44, %49 : vector<8x128xi1>, vector<8x128xf32>
    %51 = vector.extract_strided_slice %50 {offsets = [0, 0], sizes = [8, 32], strides = [1, 1]} : vector<8x128xf32> to vector<8x32xf32>
    %52 = vector.extract_strided_slice %50 {offsets = [0, 32], sizes = [8, 32], strides = [1, 1]} : vector<8x128xf32> to vector<8x32xf32>
    %53 = vector.extract_strided_slice %50 {offsets = [0, 64], sizes = [8, 32], strides = [1, 1]} : vector<8x128xf32> to vector<8x32xf32>
    %54 = vector.extract_strided_slice %50 {offsets = [0, 96], sizes = [8, 32], strides = [1, 1]} : vector<8x128xf32> to vector<8x32xf32>
    %55 = arith.mulf %52, %33 : vector<8x32xf32>
    %56 = arith.mulf %51, %53 : vector<8x32xf32>
    %57 = arith.addf %55, %56 : vector<8x32xf32>
    %58 = math.tanh %57 : vector<8x32xf32>
    %59 = arith.mulf %54, %58 : vector<8x32xf32>
    %60 = vector.extract_strided_slice %6 {offsets = [8, 0], sizes = [8, 32], strides = [1, 1]} : vector<64x32xf32> to vector<8x32xf32>
    %61 = arith.addf %59, %60 : vector<8x32xf32>
    %c0_20 = arith.constant 0 : index
    %c8 = arith.constant 8 : index
    %c0_21 = arith.constant 0 : index
    %62 = vector.load %arg19[%c0_20, %c8, %c0_21] : memref<2x64x32xf32, #tpu.memory_space<vmem>>, vector<1x8x32xf32>
    %63 = vector.shape_cast %62 : vector<1x8x32xf32> to vector<8x32xf32>
    %64 = vector.shape_cast %61 : vector<8x32xf32> to vector<1x8x32xf32>
    tpu.vector_store %arg19[%c0_20, %c8, %c0_21], %64 {strides = array<i32>} : memref<2x64x32xf32, #tpu.memory_space<vmem>>, vector<1x8x32xf32>,
    %65 = vector.extract_strided_slice %11 {offsets = [16, 0], sizes = [8, 128], strides = [1, 1]} : vector<64x128xf32> to vector<8x128xf32>
    %cst_22 = arith.constant dense<0.000000e+00> : vector<8x128xf32>
    %66 = tpu.matmul %59, %12, %cst_22 {dimension_numbers = #tpu.dot_dimension_numbers<[1], [0], [0], [1], [0, 0, 1, 1], [], []>} : vector<8x32xf32>, vector<32x128xf32>, vector<8x128xf32> -> vector<8x128xf32>
    %67 = arith.addf %65, %66 : vector<8x128xf32>
    %68 = math.tanh %67 : vector<8x128xf32>
    %69 = arith.negf %67 : vector<8x128xf32>
    %70 = math.exp %69 : vector<8x128xf32>
    %cst_23 = arith.constant 1.000000e+00 : f32
    %71 = vector.broadcast %cst_23 : f32 to vector<8x128xf32>
    %72 = arith.addf %71, %70 : vector<8x128xf32>
    %73 = arith.divf %71, %72 : vector<8x128xf32>
    %74 = arith.select %5, %68, %73 : vector<8x128xi1>, vector<8x128xf32>
    %75 = vector.extract_strided_slice %74 {offsets = [0, 0], sizes = [8, 32], strides = [1, 1]} : vector<8x128xf32> to vector<8x32xf32>
    %76 = vector.extract_strided_slice %74 {offsets = [0, 32], sizes = [8, 32], strides = [1, 1]} : vector<8x128xf32> to vector<8x32xf32>
    %77 = vector.extract_strided_slice %74 {offsets = [0, 64], sizes = [8, 32], strides = [1, 1]} : vector<8x128xf32> to vector<8x32xf32>
    %78 = vector.extract_strided_slice %74 {offsets = [0, 96], sizes = [8, 32], strides = [1, 1]} : vector<8x128xf32> to vector<8x32xf32>
    %79 = arith.mulf %76, %57 : vector<8x32xf32>
    %80 = arith.mulf %75, %77 : vector<8x32xf32>
    %81 = arith.addf %79, %80 : vector<8x32xf32>
    %82 = math.tanh %81 : vector<8x32xf32>
    %83 = arith.mulf %78, %82 : vector<8x32xf32>
    %84 = vector.extract_strided_slice %6 {offsets = [16, 0], sizes = [8, 32], strides = [1, 1]} : vector<64x32xf32> to vector<8x32xf32>
    %85 = arith.addf %83, %84 : vector<8x32xf32>
    %c0_24 = arith.constant 0 : index
    %c16 = arith.constant 16 : index
    %c0_25 = arith.constant 0 : index
    %86 = vector.load %arg19[%c0_24, %c16, %c0_25] : memref<2x64x32xf32, #tpu.memory_space<vmem>>, vector<1x8x32xf32>
    %87 = vector.shape_cast %86 : vector<1x8x32xf32> to vector<8x32xf32>
    %88 = vector.shape_cast %85 : vector<8x32xf32> to vector<1x8x32xf32>
    tpu.vector_store %arg19[%c0_24, %c16, %c0_25], %88 {strides = array<i32>} : memref<2x64x32xf32, #tpu.memory_space<vmem>>, vector<1x8x32xf32>,
    %89 = vector.extract_strided_slice %11 {offsets = [24, 0], sizes = [8, 128], strides = [1, 1]} : vector<64x128xf32> to vector<8x128xf32>
    %cst_26 = arith.constant dense<0.000000e+00> : vector<8x128xf32>
    %90 = tpu.matmul %83, %12, %cst_26 {dimension_numbers = #tpu.dot_dimension_numbers<[1], [0], [0], [1], [0, 0, 1, 1], [], []>} : vector<8x32xf32>, vector<32x128xf32>, vector<8x128xf32> -> vector<8x128xf32>
    %91 = arith.addf %89, %90 : vector<8x128xf32>
    %92 = math.tanh %91 : vector<8x128xf32>
    %93 = arith.negf %91 : vector<8x128xf32>
    %94 = math.exp %93 : vector<8x128xf32>
    %cst_27 = arith.constant 1.000000e+00 : f32
    %95 = vector.broadcast %cst_27 : f32 to vector<8x128xf32>
    %96 = arith.addf %95, %94 : vector<8x128xf32>
    %97 = arith.divf %95, %96 : vector<8x128xf32>
    %98 = arith.select %5, %92, %97 : vector<8x128xi1>, vector<8x128xf32>
    %99 = vector.extract_strided_slice %98 {offsets = [0, 0], sizes = [8, 32], strides = [1, 1]} : vector<8x128xf32> to vector<8x32xf32>
    %100 = vector.extract_strided_slice %98 {offsets = [0, 32], sizes = [8, 32], strides = [1, 1]} : vector<8x128xf32> to vector<8x32xf32>
    %101 = vector.extract_strided_slice %98 {offsets = [0, 64], sizes = [8, 32], strides = [1, 1]} : vector<8x128xf32> to vector<8x32xf32>
    %102 = vector.extract_strided_slice %98 {offsets = [0, 96], sizes = [8, 32], strides = [1, 1]} : vector<8x128xf32> to vector<8x32xf32>
    %103 = arith.mulf %100, %81 : vector<8x32xf32>
    %104 = arith.mulf %99, %101 : vector<8x32xf32>
    %105 = arith.addf %103, %104 : vector<8x32xf32>
    %106 = math.tanh %105 : vector<8x32xf32>
    %107 = arith.mulf %102, %106 : vector<8x32xf32>
    %108 = vector.extract_strided_slice %6 {offsets = [24, 0], sizes = [8, 32], strides = [1, 1]} : vector<64x32xf32> to vector<8x32xf32>
    %109 = arith.addf %107, %108 : vector<8x32xf32>
    %c0_28 = arith.constant 0 : index
    %c24 = arith.constant 24 : index
    %c0_29 = arith.constant 0 : index
    %110 = vector.load %arg19[%c0_28, %c24, %c0_29] : memref<2x64x32xf32, #tpu.memory_space<vmem>>, vector<1x8x32xf32>
    %111 = vector.shape_cast %110 : vector<1x8x32xf32> to vector<8x32xf32>
    %112 = vector.shape_cast %109 : vector<8x32xf32> to vector<1x8x32xf32>
    tpu.vector_store %arg19[%c0_28, %c24, %c0_29], %112 {strides = array<i32>} : memref<2x64x32xf32, #tpu.memory_space<vmem>>, vector<1x8x32xf32>,
    %113 = vector.extract_strided_slice %11 {offsets = [32, 0], sizes = [8, 128], strides = [1, 1]} : vector<64x128xf32> to vector<8x128xf32>
    %cst_30 = arith.constant dense<0.000000e+00> : vector<8x128xf32>
    %114 = tpu.matmul %107, %12, %cst_30 {dimension_numbers = #tpu.dot_dimension_numbers<[1], [0], [0], [1], [0, 0, 1, 1], [], []>} : vector<8x32xf32>, vector<32x128xf32>, vector<8x128xf32> -> vector<8x128xf32>
    %115 = arith.addf %113, %114 : vector<8x128xf32>
    %116 = math.tanh %115 : vector<8x128xf32>
    %117 = arith.negf %115 : vector<8x128xf32>
    %118 = math.exp %117 : vector<8x128xf32>
    %cst_31 = arith.constant 1.000000e+00 : f32
    %119 = vector.broadcast %cst_31 : f32 to vector<8x128xf32>
    %120 = arith.addf %119, %118 : vector<8x128xf32>
    %121 = arith.divf %119, %120 : vector<8x128xf32>
    %122 = arith.select %5, %116, %121 : vector<8x128xi1>, vector<8x128xf32>
    %123 = vector.extract_strided_slice %122 {offsets = [0, 0], sizes = [8, 32], strides = [1, 1]} : vector<8x128xf32> to vector<8x32xf32>
    %124 = vector.extract_strided_slice %122 {offsets = [0, 32], sizes = [8, 32], strides = [1, 1]} : vector<8x128xf32> to vector<8x32xf32>
    %125 = vector.extract_strided_slice %122 {offsets = [0, 64], sizes = [8, 32], strides = [1, 1]} : vector<8x128xf32> to vector<8x32xf32>
    %126 = vector.extract_strided_slice %122 {offsets = [0, 96], sizes = [8, 32], strides = [1, 1]} : vector<8x128xf32> to vector<8x32xf32>
    %127 = arith.mulf %124, %105 : vector<8x32xf32>
    %128 = arith.mulf %123, %125 : vector<8x32xf32>
    %129 = arith.addf %127, %128 : vector<8x32xf32>
    %130 = math.tanh %129 : vector<8x32xf32>
    %131 = arith.mulf %126, %130 : vector<8x32xf32>
    %132 = vector.extract_strided_slice %6 {offsets = [32, 0], sizes = [8, 32], strides = [1, 1]} : vector<64x32xf32> to vector<8x32xf32>
    %133 = arith.addf %131, %132 : vector<8x32xf32>
    %c0_32 = arith.constant 0 : index
    %c32 = arith.constant 32 : index
    %c0_33 = arith.constant 0 : index
    %134 = vector.load %arg19[%c0_32, %c32, %c0_33] : memref<2x64x32xf32, #tpu.memory_space<vmem>>, vector<1x8x32xf32>
    %135 = vector.shape_cast %134 : vector<1x8x32xf32> to vector<8x32xf32>
    %136 = vector.shape_cast %133 : vector<8x32xf32> to vector<1x8x32xf32>
    tpu.vector_store %arg19[%c0_32, %c32, %c0_33], %136 {strides = array<i32>} : memref<2x64x32xf32, #tpu.memory_space<vmem>>, vector<1x8x32xf32>,
    %137 = vector.extract_strided_slice %11 {offsets = [40, 0], sizes = [8, 128], strides = [1, 1]} : vector<64x128xf32> to vector<8x128xf32>
    %cst_34 = arith.constant dense<0.000000e+00> : vector<8x128xf32>
    %138 = tpu.matmul %131, %12, %cst_34 {dimension_numbers = #tpu.dot_dimension_numbers<[1], [0], [0], [1], [0, 0, 1, 1], [], []>} : vector<8x32xf32>, vector<32x128xf32>, vector<8x128xf32> -> vector<8x128xf32>
    %139 = arith.addf %137, %138 : vector<8x128xf32>
    %140 = math.tanh %139 : vector<8x128xf32>
    %141 = arith.negf %139 : vector<8x128xf32>
    %142 = math.exp %141 : vector<8x128xf32>
    %cst_35 = arith.constant 1.000000e+00 : f32
    %143 = vector.broadcast %cst_35 : f32 to vector<8x128xf32>
    %144 = arith.addf %143, %142 : vector<8x128xf32>
    %145 = arith.divf %143, %144 : vector<8x128xf32>
    %146 = arith.select %5, %140, %145 : vector<8x128xi1>, vector<8x128xf32>
    %147 = vector.extract_strided_slice %146 {offsets = [0, 0], sizes = [8, 32], strides = [1, 1]} : vector<8x128xf32> to vector<8x32xf32>
    %148 = vector.extract_strided_slice %146 {offsets = [0, 32], sizes = [8, 32], strides = [1, 1]} : vector<8x128xf32> to vector<8x32xf32>
    %149 = vector.extract_strided_slice %146 {offsets = [0, 64], sizes = [8, 32], strides = [1, 1]} : vector<8x128xf32> to vector<8x32xf32>
    %150 = vector.extract_strided_slice %146 {offsets = [0, 96], sizes = [8, 32], strides = [1, 1]} : vector<8x128xf32> to vector<8x32xf32>
    %151 = arith.mulf %148, %129 : vector<8x32xf32>
    %152 = arith.mulf %147, %149 : vector<8x32xf32>
    %153 = arith.addf %151, %152 : vector<8x32xf32>
    %154 = math.tanh %153 : vector<8x32xf32>
    %155 = arith.mulf %150, %154 : vector<8x32xf32>
    %156 = vector.extract_strided_slice %6 {offsets = [40, 0], sizes = [8, 32], strides = [1, 1]} : vector<64x32xf32> to vector<8x32xf32>
    %157 = arith.addf %155, %156 : vector<8x32xf32>
    %c0_36 = arith.constant 0 : index
    %c40 = arith.constant 40 : index
    %c0_37 = arith.constant 0 : index
    %158 = vector.load %arg19[%c0_36, %c40, %c0_37] : memref<2x64x32xf32, #tpu.memory_space<vmem>>, vector<1x8x32xf32>
    %159 = vector.shape_cast %158 : vector<1x8x32xf32> to vector<8x32xf32>
    %160 = vector.shape_cast %157 : vector<8x32xf32> to vector<1x8x32xf32>
    tpu.vector_store %arg19[%c0_36, %c40, %c0_37], %160 {strides = array<i32>} : memref<2x64x32xf32, #tpu.memory_space<vmem>>, vector<1x8x32xf32>,
    %161 = vector.extract_strided_slice %11 {offsets = [48, 0], sizes = [8, 128], strides = [1, 1]} : vector<64x128xf32> to vector<8x128xf32>
    %cst_38 = arith.constant dense<0.000000e+00> : vector<8x128xf32>
    %162 = tpu.matmul %155, %12, %cst_38 {dimension_numbers = #tpu.dot_dimension_numbers<[1], [0], [0], [1], [0, 0, 1, 1], [], []>} : vector<8x32xf32>, vector<32x128xf32>, vector<8x128xf32> -> vector<8x128xf32>
    %163 = arith.addf %161, %162 : vector<8x128xf32>
    %164 = math.tanh %163 : vector<8x128xf32>
    %165 = arith.negf %163 : vector<8x128xf32>
    %166 = math.exp %165 : vector<8x128xf32>
    %cst_39 = arith.constant 1.000000e+00 : f32
    %167 = vector.broadcast %cst_39 : f32 to vector<8x128xf32>
    %168 = arith.addf %167, %166 : vector<8x128xf32>
    %169 = arith.divf %167, %168 : vector<8x128xf32>
    %170 = arith.select %5, %164, %169 : vector<8x128xi1>, vector<8x128xf32>
    %171 = vector.extract_strided_slice %170 {offsets = [0, 0], sizes = [8, 32], strides = [1, 1]} : vector<8x128xf32> to vector<8x32xf32>
    %172 = vector.extract_strided_slice %170 {offsets = [0, 32], sizes = [8, 32], strides = [1, 1]} : vector<8x128xf32> to vector<8x32xf32>
    %173 = vector.extract_strided_slice %170 {offsets = [0, 64], sizes = [8, 32], strides = [1, 1]} : vector<8x128xf32> to vector<8x32xf32>
    %174 = vector.extract_strided_slice %170 {offsets = [0, 96], sizes = [8, 32], strides = [1, 1]} : vector<8x128xf32> to vector<8x32xf32>
    %175 = arith.mulf %172, %153 : vector<8x32xf32>
    %176 = arith.mulf %171, %173 : vector<8x32xf32>
    %177 = arith.addf %175, %176 : vector<8x32xf32>
    %178 = math.tanh %177 : vector<8x32xf32>
    %179 = arith.mulf %174, %178 : vector<8x32xf32>
    %180 = vector.extract_strided_slice %6 {offsets = [48, 0], sizes = [8, 32], strides = [1, 1]} : vector<64x32xf32> to vector<8x32xf32>
    %181 = arith.addf %179, %180 : vector<8x32xf32>
    %c0_40 = arith.constant 0 : index
    %c48 = arith.constant 48 : index
    %c0_41 = arith.constant 0 : index
    %182 = vector.load %arg19[%c0_40, %c48, %c0_41] : memref<2x64x32xf32, #tpu.memory_space<vmem>>, vector<1x8x32xf32>
    %183 = vector.shape_cast %182 : vector<1x8x32xf32> to vector<8x32xf32>
    %184 = vector.shape_cast %181 : vector<8x32xf32> to vector<1x8x32xf32>
    tpu.vector_store %arg19[%c0_40, %c48, %c0_41], %184 {strides = array<i32>} : memref<2x64x32xf32, #tpu.memory_space<vmem>>, vector<1x8x32xf32>,
    %185 = vector.extract_strided_slice %11 {offsets = [56, 0], sizes = [8, 128], strides = [1, 1]} : vector<64x128xf32> to vector<8x128xf32>
    %cst_42 = arith.constant dense<0.000000e+00> : vector<8x128xf32>
    %186 = tpu.matmul %179, %12, %cst_42 {dimension_numbers = #tpu.dot_dimension_numbers<[1], [0], [0], [1], [0, 0, 1, 1], [], []>} : vector<8x32xf32>, vector<32x128xf32>, vector<8x128xf32> -> vector<8x128xf32>
    %187 = arith.addf %185, %186 : vector<8x128xf32>
    %188 = math.tanh %187 : vector<8x128xf32>
    %189 = arith.negf %187 : vector<8x128xf32>
    %190 = math.exp %189 : vector<8x128xf32>
    %cst_43 = arith.constant 1.000000e+00 : f32
    %191 = vector.broadcast %cst_43 : f32 to vector<8x128xf32>
    %192 = arith.addf %191, %190 : vector<8x128xf32>
    %193 = arith.divf %191, %192 : vector<8x128xf32>
    %194 = arith.select %5, %188, %193 : vector<8x128xi1>, vector<8x128xf32>
    %195 = vector.extract_strided_slice %194 {offsets = [0, 0], sizes = [8, 32], strides = [1, 1]} : vector<8x128xf32> to vector<8x32xf32>
    %196 = vector.extract_strided_slice %194 {offsets = [0, 32], sizes = [8, 32], strides = [1, 1]} : vector<8x128xf32> to vector<8x32xf32>
    %197 = vector.extract_strided_slice %194 {offsets = [0, 64], sizes = [8, 32], strides = [1, 1]} : vector<8x128xf32> to vector<8x32xf32>
    %198 = vector.extract_strided_slice %194 {offsets = [0, 96], sizes = [8, 32], strides = [1, 1]} : vector<8x128xf32> to vector<8x32xf32>
    %199 = arith.mulf %196, %177 : vector<8x32xf32>
    %200 = arith.mulf %195, %197 : vector<8x32xf32>
    %201 = arith.addf %199, %200 : vector<8x32xf32>
    %202 = math.tanh %201 : vector<8x32xf32>
    %203 = arith.mulf %198, %202 : vector<8x32xf32>
    %204 = vector.extract_strided_slice %6 {offsets = [56, 0], sizes = [8, 32], strides = [1, 1]} : vector<64x32xf32> to vector<8x32xf32>
    %205 = arith.addf %203, %204 : vector<8x32xf32>
    %c0_44 = arith.constant 0 : index
    %c56 = arith.constant 56 : index
    %c0_45 = arith.constant 0 : index
    %206 = vector.load %arg19[%c0_44, %c56, %c0_45] : memref<2x64x32xf32, #tpu.memory_space<vmem>>, vector<1x8x32xf32>
    %207 = vector.shape_cast %206 : vector<1x8x32xf32> to vector<8x32xf32>
    %208 = vector.shape_cast %205 : vector<8x32xf32> to vector<1x8x32xf32>
    tpu.vector_store %arg19[%c0_44, %c56, %c0_45], %208 {strides = array<i32>} : memref<2x64x32xf32, #tpu.memory_space<vmem>>, vector<1x8x32xf32>,
    %c0_46 = arith.constant 0 : index
    %c0_47 = arith.constant 0 : index
    %c0_48 = arith.constant 0 : index
    %209 = vector.load %arg17[%c0_46, %c0_47, %c0_48] : memref<2x8x32xf32, #tpu.memory_space<vmem>>, vector<1x8x32xf32>
    %210 = vector.shape_cast %209 : vector<1x8x32xf32> to vector<8x32xf32>
    %211 = vector.shape_cast %203 : vector<8x32xf32> to vector<1x8x32xf32>
    tpu.vector_store %arg17[%c0_46, %c0_47, %c0_48], %211 {strides = array<i32>} : memref<2x8x32xf32, #tpu.memory_space<vmem>>, vector<1x8x32xf32>,
    %c0_49 = arith.constant 0 : index
    %c0_50 = arith.constant 0 : index
    %c0_51 = arith.constant 0 : index
    %212 = vector.load %arg18[%c0_49, %c0_50, %c0_51] : memref<2x8x32xf32, #tpu.memory_space<vmem>>, vector<1x8x32xf32>
    %213 = vector.shape_cast %212 : vector<1x8x32xf32> to vector<8x32xf32>
    %214 = vector.shape_cast %201 : vector<8x32xf32> to vector<1x8x32xf32>
    tpu.vector_store %arg18[%c0_49, %c0_50, %c0_51], %214 {strides = array<i32>} : memref<2x8x32xf32, #tpu.memory_space<vmem>>, vector<1x8x32xf32>,
    %c0_52 = arith.constant 0 : index
    %c0_53 = arith.constant 0 : index
    %c0_54 = arith.constant 0 : index
    %215 = vector.load %arg19[%c0_52, %c0_53, %c0_54] : memref<2x64x32xf32, #tpu.memory_space<vmem>>, vector<1x64x32xf32>
    %216 = vector.shape_cast %215 : vector<1x64x32xf32> to vector<64x32xf32>
    %c1 = arith.constant 1 : index
    %c0_55 = arith.constant 0 : index
    %217 = vector.load %arg5[%c1, %c0_55] : memref<7x128xf32, #tpu.memory_space<vmem>>, vector<1x32xf32>
    %c2 = arith.constant 2 : index
    %c0_56 = arith.constant 0 : index
    %218 = vector.load %arg5[%c2, %c0_56] : memref<7x128xf32, #tpu.memory_space<vmem>>, vector<1x32xf32>
    %c3 = arith.constant 3 : index
    %c0_57 = arith.constant 0 : index
    %219 = vector.load %arg5[%c3, %c0_57] : memref<7x128xf32, #tpu.memory_space<vmem>>, vector<1x32xf32>
    %c4 = arith.constant 4 : index
    %c0_58 = arith.constant 0 : index
    %220 = vector.load %arg5[%c4, %c0_58] : memref<7x128xf32, #tpu.memory_space<vmem>>, vector<1x32xf32>
    %c5 = arith.constant 5 : index
    %c0_59 = arith.constant 0 : index
    %221 = vector.load %arg5[%c5, %c0_59] : memref<7x128xf32, #tpu.memory_space<vmem>>, vector<1x1xf32>
    %c0_60 = arith.constant 0 : index
    %c0_61 = arith.constant 0 : index
    %222 = vector.load %arg8[%c0_60, %c0_61] : memref<32x32xf32, #tpu.memory_space<vmem>>, vector<32x32xf32>
    %cst_62 = arith.constant dense<0.000000e+00> : vector<64x32xf32>
    %223 = tpu.matmul %216, %222, %cst_62 {dimension_numbers = #tpu.dot_dimension_numbers<[1], [0], [0], [1], [0, 0, 1, 1], [], []>} : vector<64x32xf32>, vector<32x32xf32>, vector<64x32xf32> -> vector<64x32xf32>
    %224 = vector.broadcast %217 : vector<1x32xf32> to vector<64x32xf32>
    %225 = arith.addf %223, %224 : vector<64x32xf32>
    %c0_63 = arith.constant 0 : index
    %c0_64 = arith.constant 0 : index
    %226 = vector.load %arg1[%c0_63, %c0_64] : memref<128x32xf32, #tpu.memory_space<vmem>>, vector<128x32xf32>
    %c0_65 = arith.constant 0 : index
    %c0_66 = arith.constant 0 : index
    %227 = vector.load %arg9[%c0_65, %c0_66] : memref<32x32xf32, #tpu.memory_space<vmem>>, vector<32x32xf32>
    %cst_67 = arith.constant dense<0.000000e+00> : vector<128x32xf32>
    %228 = tpu.matmul %226, %227, %cst_67 {dimension_numbers = #tpu.dot_dimension_numbers<[1], [0], [0], [1], [0, 0, 1, 1], [], []>} : vector<128x32xf32>, vector<32x32xf32>, vector<128x32xf32> -> vector<128x32xf32>
    %229 = vector.broadcast %218 : vector<1x32xf32> to vector<128x32xf32>
    %230 = arith.addf %228, %229 : vector<128x32xf32>
    %231 = vector.shape_cast %230 : vector<128x32xf32> to vector<8x16x32xf32>
    %c0_68 = arith.constant 0 : index
    %c0_69 = arith.constant 0 : index
    %232 = vector.load %arg10[%c0_68, %c0_69] : memref<32x32xf32, #tpu.memory_space<vmem>>, vector<32x32xf32>
    %cst_70 = arith.constant dense<0.000000e+00> : vector<128x32xf32>
    %233 = tpu.matmul %226, %232, %cst_70 {dimension_numbers = #tpu.dot_dimension_numbers<[1], [0], [0], [1], [0, 0, 1, 1], [], []>} : vector<128x32xf32>, vector<32x32xf32>, vector<128x32xf32> -> vector<128x32xf32>
    %234 = vector.broadcast %219 : vector<1x32xf32> to vector<128x32xf32>
    %235 = arith.addf %233, %234 : vector<128x32xf32>
    %236 = vector.shape_cast %235 : vector<128x32xf32> to vector<8x16x32xf32>
    %237 = vector.shape_cast %220 : vector<1x32xf32> to vector<1x1x32xf32>
    %238 = vector.extract_strided_slice %225 {offsets = [0, 0], sizes = [8, 32], strides = [1, 1]} : vector<64x32xf32> to vector<8x32xf32>
    %239 = vector.shape_cast %238 : vector<8x32xf32> to vector<8x1x32xf32>
    %240 = vector.broadcast %239 : vector<8x1x32xf32> to vector<8x16x32xf32>
    %241 = arith.addf %240, %231 : vector<8x16x32xf32>
    %242 = math.tanh %241 : vector<8x16x32xf32>
    %243 = vector.broadcast %237 : vector<1x1x32xf32> to vector<8x16x32xf32>
    %244 = arith.mulf %242, %243 : vector<8x16x32xf32>
    %cst_71 = arith.constant dense<0.000000e+00> : vector<8x16xf32>
    %245 = vector.multi_reduction <add>, %244, %cst_71 [2] : vector<8x16x32xf32> to vector<8x16xf32>
    %246 = vector.broadcast %221 : vector<1x1xf32> to vector<8x16xf32>
    %247 = arith.addf %245, %246 : vector<8x16xf32>
    %c0_72 = arith.constant 0 : index
    %c0_73 = arith.constant 0 : index
    %c0_74 = arith.constant 0 : index
    %248 = vector.load %arg2[%c0_72, %c0_73, %c0_74] : memref<8x8x16xf32, #tpu.memory_space<vmem>>, vector<1x8x16xf32>
    %249 = vector.shape_cast %248 : vector<1x8x16xf32> to vector<8x16xf32>
    %250 = arith.addf %247, %249 : vector<8x16xf32>
    %cst_75 = arith.constant dense<0xFF800000> : vector<8xf32>
    %251 = vector.multi_reduction <maximumf>, %250, %cst_75 [1] : vector<8x16xf32> to vector<8xf32>
    %252 = vector.shape_cast %251 : vector<8xf32> to vector<8x1xf32>
    %253 = vector.broadcast %252 : vector<8x1xf32> to vector<8x16xf32>
    %254 = arith.subf %250, %253 : vector<8x16xf32>
    %255 = math.exp %254 : vector<8x16xf32>
    %cst_76 = arith.constant dense<0.000000e+00> : vector<8xf32>
    %256 = vector.multi_reduction <add>, %255, %cst_76 [1] : vector<8x16xf32> to vector<8xf32>
    %257 = vector.shape_cast %256 : vector<8xf32> to vector<8x1xf32>
    %258 = tpu.reciprocal %257 : vector<8x1xf32> -> vector<8x1xf32>
    %259 = vector.broadcast %258 : vector<8x1xf32> to vector<8x16xf32>
    %260 = arith.mulf %255, %259 : vector<8x16xf32>
    %261 = vector.shape_cast %260 : vector<8x16xf32> to vector<8x16x1xf32>
    %262 = vector.broadcast %261 : vector<8x16x1xf32> to vector<8x16x32xf32>
    %263 = arith.mulf %262, %236 : vector<8x16x32xf32>
    %cst_77 = arith.constant dense<0.000000e+00> : vector<8x32xf32>
    %264 = vector.multi_reduction <add>, %263, %cst_77 [1] : vector<8x16x32xf32> to vector<8x32xf32>
    %c0_78 = arith.constant 0 : index
    %c0_79 = arith.constant 0 : index
    %265 = vector.load %arg20[%c0_78, %c0_79] : memref<64x32xf32, #tpu.memory_space<vmem>>, vector<8x32xf32>
    tpu.vector_store %arg20[%c0_78, %c0_79], %264 {strides = array<i32>} : memref<64x32xf32, #tpu.memory_space<vmem>>, vector<8x32xf32>,
    %266 = vector.extract_strided_slice %225 {offsets = [8, 0], sizes = [8, 32], strides = [1, 1]} : vector<64x32xf32> to vector<8x32xf32>
    %267 = vector.shape_cast %266 : vector<8x32xf32> to vector<8x1x32xf32>
    %268 = vector.broadcast %267 : vector<8x1x32xf32> to vector<8x16x32xf32>
    %269 = arith.addf %268, %231 : vector<8x16x32xf32>
    %270 = math.tanh %269 : vector<8x16x32xf32>
    %271 = vector.broadcast %237 : vector<1x1x32xf32> to vector<8x16x32xf32>
    %272 = arith.mulf %270, %271 : vector<8x16x32xf32>
    %cst_80 = arith.constant dense<0.000000e+00> : vector<8x16xf32>
    %273 = vector.multi_reduction <add>, %272, %cst_80 [2] : vector<8x16x32xf32> to vector<8x16xf32>
    %274 = vector.broadcast %221 : vector<1x1xf32> to vector<8x16xf32>
    %275 = arith.addf %273, %274 : vector<8x16xf32>
    %c1_81 = arith.constant 1 : index
    %c0_82 = arith.constant 0 : index
    %c0_83 = arith.constant 0 : index
    %276 = vector.load %arg2[%c1_81, %c0_82, %c0_83] : memref<8x8x16xf32, #tpu.memory_space<vmem>>, vector<1x8x16xf32>
    %277 = vector.shape_cast %276 : vector<1x8x16xf32> to vector<8x16xf32>
    %278 = arith.addf %275, %277 : vector<8x16xf32>
    %cst_84 = arith.constant dense<0xFF800000> : vector<8xf32>
    %279 = vector.multi_reduction <maximumf>, %278, %cst_84 [1] : vector<8x16xf32> to vector<8xf32>
    %280 = vector.shape_cast %279 : vector<8xf32> to vector<8x1xf32>
    %281 = vector.broadcast %280 : vector<8x1xf32> to vector<8x16xf32>
    %282 = arith.subf %278, %281 : vector<8x16xf32>
    %283 = math.exp %282 : vector<8x16xf32>
    %cst_85 = arith.constant dense<0.000000e+00> : vector<8xf32>
    %284 = vector.multi_reduction <add>, %283, %cst_85 [1] : vector<8x16xf32> to vector<8xf32>
    %285 = vector.shape_cast %284 : vector<8xf32> to vector<8x1xf32>
    %286 = tpu.reciprocal %285 : vector<8x1xf32> -> vector<8x1xf32>
    %287 = vector.broadcast %286 : vector<8x1xf32> to vector<8x16xf32>
    %288 = arith.mulf %283, %287 : vector<8x16xf32>
    %289 = vector.shape_cast %288 : vector<8x16xf32> to vector<8x16x1xf32>
    %290 = vector.broadcast %289 : vector<8x16x1xf32> to vector<8x16x32xf32>
    %291 = arith.mulf %290, %236 : vector<8x16x32xf32>
    %cst_86 = arith.constant dense<0.000000e+00> : vector<8x32xf32>
    %292 = vector.multi_reduction <add>, %291, %cst_86 [1] : vector<8x16x32xf32> to vector<8x32xf32>
    %c8_87 = arith.constant 8 : index
    %c0_88 = arith.constant 0 : index
    %293 = vector.load %arg20[%c8_87, %c0_88] : memref<64x32xf32, #tpu.memory_space<vmem>>, vector<8x32xf32>
    tpu.vector_store %arg20[%c8_87, %c0_88], %292 {strides = array<i32>} : memref<64x32xf32, #tpu.memory_space<vmem>>, vector<8x32xf32>,
    %294 = vector.extract_strided_slice %225 {offsets = [16, 0], sizes = [8, 32], strides = [1, 1]} : vector<64x32xf32> to vector<8x32xf32>
    %295 = vector.shape_cast %294 : vector<8x32xf32> to vector<8x1x32xf32>
    %296 = vector.broadcast %295 : vector<8x1x32xf32> to vector<8x16x32xf32>
    %297 = arith.addf %296, %231 : vector<8x16x32xf32>
    %298 = math.tanh %297 : vector<8x16x32xf32>
    %299 = vector.broadcast %237 : vector<1x1x32xf32> to vector<8x16x32xf32>
    %300 = arith.mulf %298, %299 : vector<8x16x32xf32>
    %cst_89 = arith.constant dense<0.000000e+00> : vector<8x16xf32>
    %301 = vector.multi_reduction <add>, %300, %cst_89 [2] : vector<8x16x32xf32> to vector<8x16xf32>
    %302 = vector.broadcast %221 : vector<1x1xf32> to vector<8x16xf32>
    %303 = arith.addf %301, %302 : vector<8x16xf32>
    %c2_90 = arith.constant 2 : index
    %c0_91 = arith.constant 0 : index
    %c0_92 = arith.constant 0 : index
    %304 = vector.load %arg2[%c2_90, %c0_91, %c0_92] : memref<8x8x16xf32, #tpu.memory_space<vmem>>, vector<1x8x16xf32>
    %305 = vector.shape_cast %304 : vector<1x8x16xf32> to vector<8x16xf32>
    %306 = arith.addf %303, %305 : vector<8x16xf32>
    %cst_93 = arith.constant dense<0xFF800000> : vector<8xf32>
    %307 = vector.multi_reduction <maximumf>, %306, %cst_93 [1] : vector<8x16xf32> to vector<8xf32>
    %308 = vector.shape_cast %307 : vector<8xf32> to vector<8x1xf32>
    %309 = vector.broadcast %308 : vector<8x1xf32> to vector<8x16xf32>
    %310 = arith.subf %306, %309 : vector<8x16xf32>
    %311 = math.exp %310 : vector<8x16xf32>
    %cst_94 = arith.constant dense<0.000000e+00> : vector<8xf32>
    %312 = vector.multi_reduction <add>, %311, %cst_94 [1] : vector<8x16xf32> to vector<8xf32>
    %313 = vector.shape_cast %312 : vector<8xf32> to vector<8x1xf32>
    %314 = tpu.reciprocal %313 : vector<8x1xf32> -> vector<8x1xf32>
    %315 = vector.broadcast %314 : vector<8x1xf32> to vector<8x16xf32>
    %316 = arith.mulf %311, %315 : vector<8x16xf32>
    %317 = vector.shape_cast %316 : vector<8x16xf32> to vector<8x16x1xf32>
    %318 = vector.broadcast %317 : vector<8x16x1xf32> to vector<8x16x32xf32>
    %319 = arith.mulf %318, %236 : vector<8x16x32xf32>
    %cst_95 = arith.constant dense<0.000000e+00> : vector<8x32xf32>
    %320 = vector.multi_reduction <add>, %319, %cst_95 [1] : vector<8x16x32xf32> to vector<8x32xf32>
    %c16_96 = arith.constant 16 : index
    %c0_97 = arith.constant 0 : index
    %321 = vector.load %arg20[%c16_96, %c0_97] : memref<64x32xf32, #tpu.memory_space<vmem>>, vector<8x32xf32>
    tpu.vector_store %arg20[%c16_96, %c0_97], %320 {strides = array<i32>} : memref<64x32xf32, #tpu.memory_space<vmem>>, vector<8x32xf32>,
    %322 = vector.extract_strided_slice %225 {offsets = [24, 0], sizes = [8, 32], strides = [1, 1]} : vector<64x32xf32> to vector<8x32xf32>
    %323 = vector.shape_cast %322 : vector<8x32xf32> to vector<8x1x32xf32>
    %324 = vector.broadcast %323 : vector<8x1x32xf32> to vector<8x16x32xf32>
    %325 = arith.addf %324, %231 : vector<8x16x32xf32>
    %326 = math.tanh %325 : vector<8x16x32xf32>
    %327 = vector.broadcast %237 : vector<1x1x32xf32> to vector<8x16x32xf32>
    %328 = arith.mulf %326, %327 : vector<8x16x32xf32>
    %cst_98 = arith.constant dense<0.000000e+00> : vector<8x16xf32>
    %329 = vector.multi_reduction <add>, %328, %cst_98 [2] : vector<8x16x32xf32> to vector<8x16xf32>
    %330 = vector.broadcast %221 : vector<1x1xf32> to vector<8x16xf32>
    %331 = arith.addf %329, %330 : vector<8x16xf32>
    %c3_99 = arith.constant 3 : index
    %c0_100 = arith.constant 0 : index
    %c0_101 = arith.constant 0 : index
    %332 = vector.load %arg2[%c3_99, %c0_100, %c0_101] : memref<8x8x16xf32, #tpu.memory_space<vmem>>, vector<1x8x16xf32>
    %333 = vector.shape_cast %332 : vector<1x8x16xf32> to vector<8x16xf32>
    %334 = arith.addf %331, %333 : vector<8x16xf32>
    %cst_102 = arith.constant dense<0xFF800000> : vector<8xf32>
    %335 = vector.multi_reduction <maximumf>, %334, %cst_102 [1] : vector<8x16xf32> to vector<8xf32>
    %336 = vector.shape_cast %335 : vector<8xf32> to vector<8x1xf32>
    %337 = vector.broadcast %336 : vector<8x1xf32> to vector<8x16xf32>
    %338 = arith.subf %334, %337 : vector<8x16xf32>
    %339 = math.exp %338 : vector<8x16xf32>
    %cst_103 = arith.constant dense<0.000000e+00> : vector<8xf32>
    %340 = vector.multi_reduction <add>, %339, %cst_103 [1] : vector<8x16xf32> to vector<8xf32>
    %341 = vector.shape_cast %340 : vector<8xf32> to vector<8x1xf32>
    %342 = tpu.reciprocal %341 : vector<8x1xf32> -> vector<8x1xf32>
    %343 = vector.broadcast %342 : vector<8x1xf32> to vector<8x16xf32>
    %344 = arith.mulf %339, %343 : vector<8x16xf32>
    %345 = vector.shape_cast %344 : vector<8x16xf32> to vector<8x16x1xf32>
    %346 = vector.broadcast %345 : vector<8x16x1xf32> to vector<8x16x32xf32>
    %347 = arith.mulf %346, %236 : vector<8x16x32xf32>
    %cst_104 = arith.constant dense<0.000000e+00> : vector<8x32xf32>
    %348 = vector.multi_reduction <add>, %347, %cst_104 [1] : vector<8x16x32xf32> to vector<8x32xf32>
    %c24_105 = arith.constant 24 : index
    %c0_106 = arith.constant 0 : index
    %349 = vector.load %arg20[%c24_105, %c0_106] : memref<64x32xf32, #tpu.memory_space<vmem>>, vector<8x32xf32>
    tpu.vector_store %arg20[%c24_105, %c0_106], %348 {strides = array<i32>} : memref<64x32xf32, #tpu.memory_space<vmem>>, vector<8x32xf32>,
    %350 = vector.extract_strided_slice %225 {offsets = [32, 0], sizes = [8, 32], strides = [1, 1]} : vector<64x32xf32> to vector<8x32xf32>
    %351 = vector.shape_cast %350 : vector<8x32xf32> to vector<8x1x32xf32>
    %352 = vector.broadcast %351 : vector<8x1x32xf32> to vector<8x16x32xf32>
    %353 = arith.addf %352, %231 : vector<8x16x32xf32>
    %354 = math.tanh %353 : vector<8x16x32xf32>
    %355 = vector.broadcast %237 : vector<1x1x32xf32> to vector<8x16x32xf32>
    %356 = arith.mulf %354, %355 : vector<8x16x32xf32>
    %cst_107 = arith.constant dense<0.000000e+00> : vector<8x16xf32>
    %357 = vector.multi_reduction <add>, %356, %cst_107 [2] : vector<8x16x32xf32> to vector<8x16xf32>
    %358 = vector.broadcast %221 : vector<1x1xf32> to vector<8x16xf32>
    %359 = arith.addf %357, %358 : vector<8x16xf32>
    %c4_108 = arith.constant 4 : index
    %c0_109 = arith.constant 0 : index
    %c0_110 = arith.constant 0 : index
    %360 = vector.load %arg2[%c4_108, %c0_109, %c0_110] : memref<8x8x16xf32, #tpu.memory_space<vmem>>, vector<1x8x16xf32>
    %361 = vector.shape_cast %360 : vector<1x8x16xf32> to vector<8x16xf32>
    %362 = arith.addf %359, %361 : vector<8x16xf32>
    %cst_111 = arith.constant dense<0xFF800000> : vector<8xf32>
    %363 = vector.multi_reduction <maximumf>, %362, %cst_111 [1] : vector<8x16xf32> to vector<8xf32>
    %364 = vector.shape_cast %363 : vector<8xf32> to vector<8x1xf32>
    %365 = vector.broadcast %364 : vector<8x1xf32> to vector<8x16xf32>
    %366 = arith.subf %362, %365 : vector<8x16xf32>
    %367 = math.exp %366 : vector<8x16xf32>
    %cst_112 = arith.constant dense<0.000000e+00> : vector<8xf32>
    %368 = vector.multi_reduction <add>, %367, %cst_112 [1] : vector<8x16xf32> to vector<8xf32>
    %369 = vector.shape_cast %368 : vector<8xf32> to vector<8x1xf32>
    %370 = tpu.reciprocal %369 : vector<8x1xf32> -> vector<8x1xf32>
    %371 = vector.broadcast %370 : vector<8x1xf32> to vector<8x16xf32>
    %372 = arith.mulf %367, %371 : vector<8x16xf32>
    %373 = vector.shape_cast %372 : vector<8x16xf32> to vector<8x16x1xf32>
    %374 = vector.broadcast %373 : vector<8x16x1xf32> to vector<8x16x32xf32>
    %375 = arith.mulf %374, %236 : vector<8x16x32xf32>
    %cst_113 = arith.constant dense<0.000000e+00> : vector<8x32xf32>
    %376 = vector.multi_reduction <add>, %375, %cst_113 [1] : vector<8x16x32xf32> to vector<8x32xf32>
    %c32_114 = arith.constant 32 : index
    %c0_115 = arith.constant 0 : index
    %377 = vector.load %arg20[%c32_114, %c0_115] : memref<64x32xf32, #tpu.memory_space<vmem>>, vector<8x32xf32>
    tpu.vector_store %arg20[%c32_114, %c0_115], %376 {strides = array<i32>} : memref<64x32xf32, #tpu.memory_space<vmem>>, vector<8x32xf32>,
    %378 = vector.extract_strided_slice %225 {offsets = [40, 0], sizes = [8, 32], strides = [1, 1]} : vector<64x32xf32> to vector<8x32xf32>
    %379 = vector.shape_cast %378 : vector<8x32xf32> to vector<8x1x32xf32>
    %380 = vector.broadcast %379 : vector<8x1x32xf32> to vector<8x16x32xf32>
    %381 = arith.addf %380, %231 : vector<8x16x32xf32>
    %382 = math.tanh %381 : vector<8x16x32xf32>
    %383 = vector.broadcast %237 : vector<1x1x32xf32> to vector<8x16x32xf32>
    %384 = arith.mulf %382, %383 : vector<8x16x32xf32>
    %cst_116 = arith.constant dense<0.000000e+00> : vector<8x16xf32>
    %385 = vector.multi_reduction <add>, %384, %cst_116 [2] : vector<8x16x32xf32> to vector<8x16xf32>
    %386 = vector.broadcast %221 : vector<1x1xf32> to vector<8x16xf32>
    %387 = arith.addf %385, %386 : vector<8x16xf32>
    %c5_117 = arith.constant 5 : index
    %c0_118 = arith.constant 0 : index
    %c0_119 = arith.constant 0 : index
    %388 = vector.load %arg2[%c5_117, %c0_118, %c0_119] : memref<8x8x16xf32, #tpu.memory_space<vmem>>, vector<1x8x16xf32>
    %389 = vector.shape_cast %388 : vector<1x8x16xf32> to vector<8x16xf32>
    %390 = arith.addf %387, %389 : vector<8x16xf32>
    %cst_120 = arith.constant dense<0xFF800000> : vector<8xf32>
    %391 = vector.multi_reduction <maximumf>, %390, %cst_120 [1] : vector<8x16xf32> to vector<8xf32>
    %392 = vector.shape_cast %391 : vector<8xf32> to vector<8x1xf32>
    %393 = vector.broadcast %392 : vector<8x1xf32> to vector<8x16xf32>
    %394 = arith.subf %390, %393 : vector<8x16xf32>
    %395 = math.exp %394 : vector<8x16xf32>
    %cst_121 = arith.constant dense<0.000000e+00> : vector<8xf32>
    %396 = vector.multi_reduction <add>, %395, %cst_121 [1] : vector<8x16xf32> to vector<8xf32>
    %397 = vector.shape_cast %396 : vector<8xf32> to vector<8x1xf32>
    %398 = tpu.reciprocal %397 : vector<8x1xf32> -> vector<8x1xf32>
    %399 = vector.broadcast %398 : vector<8x1xf32> to vector<8x16xf32>
    %400 = arith.mulf %395, %399 : vector<8x16xf32>
    %401 = vector.shape_cast %400 : vector<8x16xf32> to vector<8x16x1xf32>
    %402 = vector.broadcast %401 : vector<8x16x1xf32> to vector<8x16x32xf32>
    %403 = arith.mulf %402, %236 : vector<8x16x32xf32>
    %cst_122 = arith.constant dense<0.000000e+00> : vector<8x32xf32>
    %404 = vector.multi_reduction <add>, %403, %cst_122 [1] : vector<8x16x32xf32> to vector<8x32xf32>
    %c40_123 = arith.constant 40 : index
    %c0_124 = arith.constant 0 : index
    %405 = vector.load %arg20[%c40_123, %c0_124] : memref<64x32xf32, #tpu.memory_space<vmem>>, vector<8x32xf32>
    tpu.vector_store %arg20[%c40_123, %c0_124], %404 {strides = array<i32>} : memref<64x32xf32, #tpu.memory_space<vmem>>, vector<8x32xf32>,
    %406 = vector.extract_strided_slice %225 {offsets = [48, 0], sizes = [8, 32], strides = [1, 1]} : vector<64x32xf32> to vector<8x32xf32>
    %407 = vector.shape_cast %406 : vector<8x32xf32> to vector<8x1x32xf32>
    %408 = vector.broadcast %407 : vector<8x1x32xf32> to vector<8x16x32xf32>
    %409 = arith.addf %408, %231 : vector<8x16x32xf32>
    %410 = math.tanh %409 : vector<8x16x32xf32>
    %411 = vector.broadcast %237 : vector<1x1x32xf32> to vector<8x16x32xf32>
    %412 = arith.mulf %410, %411 : vector<8x16x32xf32>
    %cst_125 = arith.constant dense<0.000000e+00> : vector<8x16xf32>
    %413 = vector.multi_reduction <add>, %412, %cst_125 [2] : vector<8x16x32xf32> to vector<8x16xf32>
    %414 = vector.broadcast %221 : vector<1x1xf32> to vector<8x16xf32>
    %415 = arith.addf %413, %414 : vector<8x16xf32>
    %c6 = arith.constant 6 : index
    %c0_126 = arith.constant 0 : index
    %c0_127 = arith.constant 0 : index
    %416 = vector.load %arg2[%c6, %c0_126, %c0_127] : memref<8x8x16xf32, #tpu.memory_space<vmem>>, vector<1x8x16xf32>
    %417 = vector.shape_cast %416 : vector<1x8x16xf32> to vector<8x16xf32>
    %418 = arith.addf %415, %417 : vector<8x16xf32>
    %cst_128 = arith.constant dense<0xFF800000> : vector<8xf32>
    %419 = vector.multi_reduction <maximumf>, %418, %cst_128 [1] : vector<8x16xf32> to vector<8xf32>
    %420 = vector.shape_cast %419 : vector<8xf32> to vector<8x1xf32>
    %421 = vector.broadcast %420 : vector<8x1xf32> to vector<8x16xf32>
    %422 = arith.subf %418, %421 : vector<8x16xf32>
    %423 = math.exp %422 : vector<8x16xf32>
    %cst_129 = arith.constant dense<0.000000e+00> : vector<8xf32>
    %424 = vector.multi_reduction <add>, %423, %cst_129 [1] : vector<8x16xf32> to vector<8xf32>
    %425 = vector.shape_cast %424 : vector<8xf32> to vector<8x1xf32>
    %426 = tpu.reciprocal %425 : vector<8x1xf32> -> vector<8x1xf32>
    %427 = vector.broadcast %426 : vector<8x1xf32> to vector<8x16xf32>
    %428 = arith.mulf %423, %427 : vector<8x16xf32>
    %429 = vector.shape_cast %428 : vector<8x16xf32> to vector<8x16x1xf32>
    %430 = vector.broadcast %429 : vector<8x16x1xf32> to vector<8x16x32xf32>
    %431 = arith.mulf %430, %236 : vector<8x16x32xf32>
    %cst_130 = arith.constant dense<0.000000e+00> : vector<8x32xf32>
    %432 = vector.multi_reduction <add>, %431, %cst_130 [1] : vector<8x16x32xf32> to vector<8x32xf32>
    %c48_131 = arith.constant 48 : index
    %c0_132 = arith.constant 0 : index
    %433 = vector.load %arg20[%c48_131, %c0_132] : memref<64x32xf32, #tpu.memory_space<vmem>>, vector<8x32xf32>
    tpu.vector_store %arg20[%c48_131, %c0_132], %432 {strides = array<i32>} : memref<64x32xf32, #tpu.memory_space<vmem>>, vector<8x32xf32>,
    %434 = vector.extract_strided_slice %225 {offsets = [56, 0], sizes = [8, 32], strides = [1, 1]} : vector<64x32xf32> to vector<8x32xf32>
    %435 = vector.shape_cast %434 : vector<8x32xf32> to vector<8x1x32xf32>
    %436 = vector.broadcast %435 : vector<8x1x32xf32> to vector<8x16x32xf32>
    %437 = arith.addf %436, %231 : vector<8x16x32xf32>
    %438 = math.tanh %437 : vector<8x16x32xf32>
    %439 = vector.broadcast %237 : vector<1x1x32xf32> to vector<8x16x32xf32>
    %440 = arith.mulf %438, %439 : vector<8x16x32xf32>
    %cst_133 = arith.constant dense<0.000000e+00> : vector<8x16xf32>
    %441 = vector.multi_reduction <add>, %440, %cst_133 [2] : vector<8x16x32xf32> to vector<8x16xf32>
    %442 = vector.broadcast %221 : vector<1x1xf32> to vector<8x16xf32>
    %443 = arith.addf %441, %442 : vector<8x16xf32>
    %c7 = arith.constant 7 : index
    %c0_134 = arith.constant 0 : index
    %c0_135 = arith.constant 0 : index
    %444 = vector.load %arg2[%c7, %c0_134, %c0_135] : memref<8x8x16xf32, #tpu.memory_space<vmem>>, vector<1x8x16xf32>
    %445 = vector.shape_cast %444 : vector<1x8x16xf32> to vector<8x16xf32>
    %446 = arith.addf %443, %445 : vector<8x16xf32>
    %cst_136 = arith.constant dense<0xFF800000> : vector<8xf32>
    %447 = vector.multi_reduction <maximumf>, %446, %cst_136 [1] : vector<8x16xf32> to vector<8xf32>
    %448 = vector.shape_cast %447 : vector<8xf32> to vector<8x1xf32>
    %449 = vector.broadcast %448 : vector<8x1xf32> to vector<8x16xf32>
    %450 = arith.subf %446, %449 : vector<8x16xf32>
    %451 = math.exp %450 : vector<8x16xf32>
    %cst_137 = arith.constant dense<0.000000e+00> : vector<8xf32>
    %452 = vector.multi_reduction <add>, %451, %cst_137 [1] : vector<8x16xf32> to vector<8xf32>
    %453 = vector.shape_cast %452 : vector<8xf32> to vector<8x1xf32>
    %454 = tpu.reciprocal %453 : vector<8x1xf32> -> vector<8x1xf32>
    %455 = vector.broadcast %454 : vector<8x1xf32> to vector<8x16xf32>
    %456 = arith.mulf %451, %455 : vector<8x16xf32>
    %457 = vector.shape_cast %456 : vector<8x16xf32> to vector<8x16x1xf32>
    %458 = vector.broadcast %457 : vector<8x16x1xf32> to vector<8x16x32xf32>
    %459 = arith.mulf %458, %236 : vector<8x16x32xf32>
    %cst_138 = arith.constant dense<0.000000e+00> : vector<8x32xf32>
    %460 = vector.multi_reduction <add>, %459, %cst_138 [1] : vector<8x16x32xf32> to vector<8x32xf32>
    %c56_139 = arith.constant 56 : index
    %c0_140 = arith.constant 0 : index
    %461 = vector.load %arg20[%c56_139, %c0_140] : memref<64x32xf32, #tpu.memory_space<vmem>>, vector<8x32xf32>
    tpu.vector_store %arg20[%c56_139, %c0_140], %460 {strides = array<i32>} : memref<64x32xf32, #tpu.memory_space<vmem>>, vector<8x32xf32>,
    %c0_141 = arith.constant 0 : index
    %c0_142 = arith.constant 0 : index
    %462 = vector.load %arg20[%c0_141, %c0_142] : memref<64x32xf32, #tpu.memory_space<vmem>>, vector<64x32xf32>
    %c6_143 = arith.constant 6 : index
    %c0_144 = arith.constant 0 : index
    %463 = vector.load %arg5[%c6_143, %c0_144] : memref<7x128xf32, #tpu.memory_space<vmem>>, vector<1x128xf32>
    %c0_145 = arith.constant 0 : index
    %c0_146 = arith.constant 0 : index
    %464 = vector.load %arg11[%c0_145, %c0_146] : memref<32x128xf32, #tpu.memory_space<vmem>>, vector<32x128xf32>
    %cst_147 = arith.constant dense<0.000000e+00> : vector<64x128xf32>
    %465 = tpu.matmul %216, %464, %cst_147 {dimension_numbers = #tpu.dot_dimension_numbers<[1], [0], [0], [1], [0, 0, 1, 1], [], []>} : vector<64x32xf32>, vector<32x128xf32>, vector<64x128xf32> -> vector<64x128xf32>
    %c0_148 = arith.constant 0 : index
    %c0_149 = arith.constant 0 : index
    %466 = vector.load %arg12[%c0_148, %c0_149] : memref<32x128xf32, #tpu.memory_space<vmem>>, vector<32x128xf32>
    %cst_150 = arith.constant dense<0.000000e+00> : vector<64x128xf32>
    %467 = tpu.matmul %462, %466, %cst_150 {dimension_numbers = #tpu.dot_dimension_numbers<[1], [0], [0], [1], [0, 0, 1, 1], [], []>} : vector<64x32xf32>, vector<32x128xf32>, vector<64x128xf32> -> vector<64x128xf32>
    %468 = arith.addf %465, %467 : vector<64x128xf32>
    %469 = vector.broadcast %463 : vector<1x128xf32> to vector<64x128xf32>
    %470 = arith.addf %468, %469 : vector<64x128xf32>
    %c0_151 = arith.constant 0 : index
    %c0_152 = arith.constant 0 : index
    %471 = vector.load %arg13[%c0_151, %c0_152] : memref<32x128xf32, #tpu.memory_space<vmem>>, vector<32x128xf32>
    %c1_153 = arith.constant 1 : index
    %c0_154 = arith.constant 0 : index
    %c0_155 = arith.constant 0 : index
    %472 = vector.load %arg3[%c1_153, %c0_154, %c0_155] : memref<2x8x32xf32, #tpu.memory_space<vmem>>, vector<1x8x32xf32>
    %473 = vector.shape_cast %472 : vector<1x8x32xf32> to vector<8x32xf32>
    %c1_156 = arith.constant 1 : index
    %c0_157 = arith.constant 0 : index
    %c0_158 = arith.constant 0 : index
    %474 = vector.load %arg4[%c1_156, %c0_157, %c0_158] : memref<2x8x32xf32, #tpu.memory_space<vmem>>, vector<1x8x32xf32>
    %475 = vector.shape_cast %474 : vector<1x8x32xf32> to vector<8x32xf32>
    %476 = vector.extract_strided_slice %470 {offsets = [0, 0], sizes = [8, 128], strides = [1, 1]} : vector<64x128xf32> to vector<8x128xf32>
    %cst_159 = arith.constant dense<0.000000e+00> : vector<8x128xf32>
    %477 = tpu.matmul %473, %471, %cst_159 {dimension_numbers = #tpu.dot_dimension_numbers<[1], [0], [0], [1], [0, 0, 1, 1], [], []>} : vector<8x32xf32>, vector<32x128xf32>, vector<8x128xf32> -> vector<8x128xf32>
    %478 = arith.addf %476, %477 : vector<8x128xf32>
    %479 = math.tanh %478 : vector<8x128xf32>
    %480 = arith.negf %478 : vector<8x128xf32>
    %481 = math.exp %480 : vector<8x128xf32>
    %cst_160 = arith.constant 1.000000e+00 : f32
    %482 = vector.broadcast %cst_160 : f32 to vector<8x128xf32>
    %483 = arith.addf %482, %481 : vector<8x128xf32>
    %484 = arith.divf %482, %483 : vector<8x128xf32>
    %485 = arith.select %5, %479, %484 : vector<8x128xi1>, vector<8x128xf32>
    %486 = vector.extract_strided_slice %485 {offsets = [0, 0], sizes = [8, 32], strides = [1, 1]} : vector<8x128xf32> to vector<8x32xf32>
    %487 = vector.extract_strided_slice %485 {offsets = [0, 32], sizes = [8, 32], strides = [1, 1]} : vector<8x128xf32> to vector<8x32xf32>
    %488 = vector.extract_strided_slice %485 {offsets = [0, 64], sizes = [8, 32], strides = [1, 1]} : vector<8x128xf32> to vector<8x32xf32>
    %489 = vector.extract_strided_slice %485 {offsets = [0, 96], sizes = [8, 32], strides = [1, 1]} : vector<8x128xf32> to vector<8x32xf32>
    %490 = arith.mulf %487, %475 : vector<8x32xf32>
    %491 = arith.mulf %486, %488 : vector<8x32xf32>
    %492 = arith.addf %490, %491 : vector<8x32xf32>
    %493 = math.tanh %492 : vector<8x32xf32>
    %494 = arith.mulf %489, %493 : vector<8x32xf32>
    %c1_161 = arith.constant 1 : index
    %c0_162 = arith.constant 0 : index
    %c0_163 = arith.constant 0 : index
    %495 = vector.load %arg19[%c1_161, %c0_162, %c0_163] : memref<2x64x32xf32, #tpu.memory_space<vmem>>, vector<1x8x32xf32>
    %496 = vector.shape_cast %495 : vector<1x8x32xf32> to vector<8x32xf32>
    %497 = vector.shape_cast %494 : vector<8x32xf32> to vector<1x8x32xf32>
    tpu.vector_store %arg19[%c1_161, %c0_162, %c0_163], %497 {strides = array<i32>} : memref<2x64x32xf32, #tpu.memory_space<vmem>>, vector<1x8x32xf32>,
    %498 = vector.extract_strided_slice %470 {offsets = [8, 0], sizes = [8, 128], strides = [1, 1]} : vector<64x128xf32> to vector<8x128xf32>
    %cst_164 = arith.constant dense<0.000000e+00> : vector<8x128xf32>
    %499 = tpu.matmul %494, %471, %cst_164 {dimension_numbers = #tpu.dot_dimension_numbers<[1], [0], [0], [1], [0, 0, 1, 1], [], []>} : vector<8x32xf32>, vector<32x128xf32>, vector<8x128xf32> -> vector<8x128xf32>
    %500 = arith.addf %498, %499 : vector<8x128xf32>
    %501 = math.tanh %500 : vector<8x128xf32>
    %502 = arith.negf %500 : vector<8x128xf32>
    %503 = math.exp %502 : vector<8x128xf32>
    %cst_165 = arith.constant 1.000000e+00 : f32
    %504 = vector.broadcast %cst_165 : f32 to vector<8x128xf32>
    %505 = arith.addf %504, %503 : vector<8x128xf32>
    %506 = arith.divf %504, %505 : vector<8x128xf32>
    %507 = arith.select %5, %501, %506 : vector<8x128xi1>, vector<8x128xf32>
    %508 = vector.extract_strided_slice %507 {offsets = [0, 0], sizes = [8, 32], strides = [1, 1]} : vector<8x128xf32> to vector<8x32xf32>
    %509 = vector.extract_strided_slice %507 {offsets = [0, 32], sizes = [8, 32], strides = [1, 1]} : vector<8x128xf32> to vector<8x32xf32>
    %510 = vector.extract_strided_slice %507 {offsets = [0, 64], sizes = [8, 32], strides = [1, 1]} : vector<8x128xf32> to vector<8x32xf32>
    %511 = vector.extract_strided_slice %507 {offsets = [0, 96], sizes = [8, 32], strides = [1, 1]} : vector<8x128xf32> to vector<8x32xf32>
    %512 = arith.mulf %509, %492 : vector<8x32xf32>
    %513 = arith.mulf %508, %510 : vector<8x32xf32>
    %514 = arith.addf %512, %513 : vector<8x32xf32>
    %515 = math.tanh %514 : vector<8x32xf32>
    %516 = arith.mulf %511, %515 : vector<8x32xf32>
    %c1_166 = arith.constant 1 : index
    %c8_167 = arith.constant 8 : index
    %c0_168 = arith.constant 0 : index
    %517 = vector.load %arg19[%c1_166, %c8_167, %c0_168] : memref<2x64x32xf32, #tpu.memory_space<vmem>>, vector<1x8x32xf32>
    %518 = vector.shape_cast %517 : vector<1x8x32xf32> to vector<8x32xf32>
    %519 = vector.shape_cast %516 : vector<8x32xf32> to vector<1x8x32xf32>
    tpu.vector_store %arg19[%c1_166, %c8_167, %c0_168], %519 {strides = array<i32>} : memref<2x64x32xf32, #tpu.memory_space<vmem>>, vector<1x8x32xf32>,
    %520 = vector.extract_strided_slice %470 {offsets = [16, 0], sizes = [8, 128], strides = [1, 1]} : vector<64x128xf32> to vector<8x128xf32>
    %cst_169 = arith.constant dense<0.000000e+00> : vector<8x128xf32>
    %521 = tpu.matmul %516, %471, %cst_169 {dimension_numbers = #tpu.dot_dimension_numbers<[1], [0], [0], [1], [0, 0, 1, 1], [], []>} : vector<8x32xf32>, vector<32x128xf32>, vector<8x128xf32> -> vector<8x128xf32>
    %522 = arith.addf %520, %521 : vector<8x128xf32>
    %523 = math.tanh %522 : vector<8x128xf32>
    %524 = arith.negf %522 : vector<8x128xf32>
    %525 = math.exp %524 : vector<8x128xf32>
    %cst_170 = arith.constant 1.000000e+00 : f32
    %526 = vector.broadcast %cst_170 : f32 to vector<8x128xf32>
    %527 = arith.addf %526, %525 : vector<8x128xf32>
    %528 = arith.divf %526, %527 : vector<8x128xf32>
    %529 = arith.select %5, %523, %528 : vector<8x128xi1>, vector<8x128xf32>
    %530 = vector.extract_strided_slice %529 {offsets = [0, 0], sizes = [8, 32], strides = [1, 1]} : vector<8x128xf32> to vector<8x32xf32>
    %531 = vector.extract_strided_slice %529 {offsets = [0, 32], sizes = [8, 32], strides = [1, 1]} : vector<8x128xf32> to vector<8x32xf32>
    %532 = vector.extract_strided_slice %529 {offsets = [0, 64], sizes = [8, 32], strides = [1, 1]} : vector<8x128xf32> to vector<8x32xf32>
    %533 = vector.extract_strided_slice %529 {offsets = [0, 96], sizes = [8, 32], strides = [1, 1]} : vector<8x128xf32> to vector<8x32xf32>
    %534 = arith.mulf %531, %514 : vector<8x32xf32>
    %535 = arith.mulf %530, %532 : vector<8x32xf32>
    %536 = arith.addf %534, %535 : vector<8x32xf32>
    %537 = math.tanh %536 : vector<8x32xf32>
    %538 = arith.mulf %533, %537 : vector<8x32xf32>
    %c1_171 = arith.constant 1 : index
    %c16_172 = arith.constant 16 : index
    %c0_173 = arith.constant 0 : index
    %539 = vector.load %arg19[%c1_171, %c16_172, %c0_173] : memref<2x64x32xf32, #tpu.memory_space<vmem>>, vector<1x8x32xf32>
    %540 = vector.shape_cast %539 : vector<1x8x32xf32> to vector<8x32xf32>
    %541 = vector.shape_cast %538 : vector<8x32xf32> to vector<1x8x32xf32>
    tpu.vector_store %arg19[%c1_171, %c16_172, %c0_173], %541 {strides = array<i32>} : memref<2x64x32xf32, #tpu.memory_space<vmem>>, vector<1x8x32xf32>,
    %542 = vector.extract_strided_slice %470 {offsets = [24, 0], sizes = [8, 128], strides = [1, 1]} : vector<64x128xf32> to vector<8x128xf32>
    %cst_174 = arith.constant dense<0.000000e+00> : vector<8x128xf32>
    %543 = tpu.matmul %538, %471, %cst_174 {dimension_numbers = #tpu.dot_dimension_numbers<[1], [0], [0], [1], [0, 0, 1, 1], [], []>} : vector<8x32xf32>, vector<32x128xf32>, vector<8x128xf32> -> vector<8x128xf32>
    %544 = arith.addf %542, %543 : vector<8x128xf32>
    %545 = math.tanh %544 : vector<8x128xf32>
    %546 = arith.negf %544 : vector<8x128xf32>
    %547 = math.exp %546 : vector<8x128xf32>
    %cst_175 = arith.constant 1.000000e+00 : f32
    %548 = vector.broadcast %cst_175 : f32 to vector<8x128xf32>
    %549 = arith.addf %548, %547 : vector<8x128xf32>
    %550 = arith.divf %548, %549 : vector<8x128xf32>
    %551 = arith.select %5, %545, %550 : vector<8x128xi1>, vector<8x128xf32>
    %552 = vector.extract_strided_slice %551 {offsets = [0, 0], sizes = [8, 32], strides = [1, 1]} : vector<8x128xf32> to vector<8x32xf32>
    %553 = vector.extract_strided_slice %551 {offsets = [0, 32], sizes = [8, 32], strides = [1, 1]} : vector<8x128xf32> to vector<8x32xf32>
    %554 = vector.extract_strided_slice %551 {offsets = [0, 64], sizes = [8, 32], strides = [1, 1]} : vector<8x128xf32> to vector<8x32xf32>
    %555 = vector.extract_strided_slice %551 {offsets = [0, 96], sizes = [8, 32], strides = [1, 1]} : vector<8x128xf32> to vector<8x32xf32>
    %556 = arith.mulf %553, %536 : vector<8x32xf32>
    %557 = arith.mulf %552, %554 : vector<8x32xf32>
    %558 = arith.addf %556, %557 : vector<8x32xf32>
    %559 = math.tanh %558 : vector<8x32xf32>
    %560 = arith.mulf %555, %559 : vector<8x32xf32>
    %c1_176 = arith.constant 1 : index
    %c24_177 = arith.constant 24 : index
    %c0_178 = arith.constant 0 : index
    %561 = vector.load %arg19[%c1_176, %c24_177, %c0_178] : memref<2x64x32xf32, #tpu.memory_space<vmem>>, vector<1x8x32xf32>
    %562 = vector.shape_cast %561 : vector<1x8x32xf32> to vector<8x32xf32>
    %563 = vector.shape_cast %560 : vector<8x32xf32> to vector<1x8x32xf32>
    tpu.vector_store %arg19[%c1_176, %c24_177, %c0_178], %563 {strides = array<i32>} : memref<2x64x32xf32, #tpu.memory_space<vmem>>, vector<1x8x32xf32>,
    %564 = vector.extract_strided_slice %470 {offsets = [32, 0], sizes = [8, 128], strides = [1, 1]} : vector<64x128xf32> to vector<8x128xf32>
    %cst_179 = arith.constant dense<0.000000e+00> : vector<8x128xf32>
    %565 = tpu.matmul %560, %471, %cst_179 {dimension_numbers = #tpu.dot_dimension_numbers<[1], [0], [0], [1], [0, 0, 1, 1], [], []>} : vector<8x32xf32>, vector<32x128xf32>, vector<8x128xf32> -> vector<8x128xf32>
    %566 = arith.addf %564, %565 : vector<8x128xf32>
    %567 = math.tanh %566 : vector<8x128xf32>
    %568 = arith.negf %566 : vector<8x128xf32>
    %569 = math.exp %568 : vector<8x128xf32>
    %cst_180 = arith.constant 1.000000e+00 : f32
    %570 = vector.broadcast %cst_180 : f32 to vector<8x128xf32>
    %571 = arith.addf %570, %569 : vector<8x128xf32>
    %572 = arith.divf %570, %571 : vector<8x128xf32>
    %573 = arith.select %5, %567, %572 : vector<8x128xi1>, vector<8x128xf32>
    %574 = vector.extract_strided_slice %573 {offsets = [0, 0], sizes = [8, 32], strides = [1, 1]} : vector<8x128xf32> to vector<8x32xf32>
    %575 = vector.extract_strided_slice %573 {offsets = [0, 32], sizes = [8, 32], strides = [1, 1]} : vector<8x128xf32> to vector<8x32xf32>
    %576 = vector.extract_strided_slice %573 {offsets = [0, 64], sizes = [8, 32], strides = [1, 1]} : vector<8x128xf32> to vector<8x32xf32>
    %577 = vector.extract_strided_slice %573 {offsets = [0, 96], sizes = [8, 32], strides = [1, 1]} : vector<8x128xf32> to vector<8x32xf32>
    %578 = arith.mulf %575, %558 : vector<8x32xf32>
    %579 = arith.mulf %574, %576 : vector<8x32xf32>
    %580 = arith.addf %578, %579 : vector<8x32xf32>
    %581 = math.tanh %580 : vector<8x32xf32>
    %582 = arith.mulf %577, %581 : vector<8x32xf32>
    %c1_181 = arith.constant 1 : index
    %c32_182 = arith.constant 32 : index
    %c0_183 = arith.constant 0 : index
    %583 = vector.load %arg19[%c1_181, %c32_182, %c0_183] : memref<2x64x32xf32, #tpu.memory_space<vmem>>, vector<1x8x32xf32>
    %584 = vector.shape_cast %583 : vector<1x8x32xf32> to vector<8x32xf32>
    %585 = vector.shape_cast %582 : vector<8x32xf32> to vector<1x8x32xf32>
    tpu.vector_store %arg19[%c1_181, %c32_182, %c0_183], %585 {strides = array<i32>} : memref<2x64x32xf32, #tpu.memory_space<vmem>>, vector<1x8x32xf32>,
    %586 = vector.extract_strided_slice %470 {offsets = [40, 0], sizes = [8, 128], strides = [1, 1]} : vector<64x128xf32> to vector<8x128xf32>
    %cst_184 = arith.constant dense<0.000000e+00> : vector<8x128xf32>
    %587 = tpu.matmul %582, %471, %cst_184 {dimension_numbers = #tpu.dot_dimension_numbers<[1], [0], [0], [1], [0, 0, 1, 1], [], []>} : vector<8x32xf32>, vector<32x128xf32>, vector<8x128xf32> -> vector<8x128xf32>
    %588 = arith.addf %586, %587 : vector<8x128xf32>
    %589 = math.tanh %588 : vector<8x128xf32>
    %590 = arith.negf %588 : vector<8x128xf32>
    %591 = math.exp %590 : vector<8x128xf32>
    %cst_185 = arith.constant 1.000000e+00 : f32
    %592 = vector.broadcast %cst_185 : f32 to vector<8x128xf32>
    %593 = arith.addf %592, %591 : vector<8x128xf32>
    %594 = arith.divf %592, %593 : vector<8x128xf32>
    %595 = arith.select %5, %589, %594 : vector<8x128xi1>, vector<8x128xf32>
    %596 = vector.extract_strided_slice %595 {offsets = [0, 0], sizes = [8, 32], strides = [1, 1]} : vector<8x128xf32> to vector<8x32xf32>
    %597 = vector.extract_strided_slice %595 {offsets = [0, 32], sizes = [8, 32], strides = [1, 1]} : vector<8x128xf32> to vector<8x32xf32>
    %598 = vector.extract_strided_slice %595 {offsets = [0, 64], sizes = [8, 32], strides = [1, 1]} : vector<8x128xf32> to vector<8x32xf32>
    %599 = vector.extract_strided_slice %595 {offsets = [0, 96], sizes = [8, 32], strides = [1, 1]} : vector<8x128xf32> to vector<8x32xf32>
    %600 = arith.mulf %597, %580 : vector<8x32xf32>
    %601 = arith.mulf %596, %598 : vector<8x32xf32>
    %602 = arith.addf %600, %601 : vector<8x32xf32>
    %603 = math.tanh %602 : vector<8x32xf32>
    %604 = arith.mulf %599, %603 : vector<8x32xf32>
    %c1_186 = arith.constant 1 : index
    %c40_187 = arith.constant 40 : index
    %c0_188 = arith.constant 0 : index
    %605 = vector.load %arg19[%c1_186, %c40_187, %c0_188] : memref<2x64x32xf32, #tpu.memory_space<vmem>>, vector<1x8x32xf32>
    %606 = vector.shape_cast %605 : vector<1x8x32xf32> to vector<8x32xf32>
    %607 = vector.shape_cast %604 : vector<8x32xf32> to vector<1x8x32xf32>
    tpu.vector_store %arg19[%c1_186, %c40_187, %c0_188], %607 {strides = array<i32>} : memref<2x64x32xf32, #tpu.memory_space<vmem>>, vector<1x8x32xf32>,
    %608 = vector.extract_strided_slice %470 {offsets = [48, 0], sizes = [8, 128], strides = [1, 1]} : vector<64x128xf32> to vector<8x128xf32>
    %cst_189 = arith.constant dense<0.000000e+00> : vector<8x128xf32>
    %609 = tpu.matmul %604, %471, %cst_189 {dimension_numbers = #tpu.dot_dimension_numbers<[1], [0], [0], [1], [0, 0, 1, 1], [], []>} : vector<8x32xf32>, vector<32x128xf32>, vector<8x128xf32> -> vector<8x128xf32>
    %610 = arith.addf %608, %609 : vector<8x128xf32>
    %611 = math.tanh %610 : vector<8x128xf32>
    %612 = arith.negf %610 : vector<8x128xf32>
    %613 = math.exp %612 : vector<8x128xf32>
    %cst_190 = arith.constant 1.000000e+00 : f32
    %614 = vector.broadcast %cst_190 : f32 to vector<8x128xf32>
    %615 = arith.addf %614, %613 : vector<8x128xf32>
    %616 = arith.divf %614, %615 : vector<8x128xf32>
    %617 = arith.select %5, %611, %616 : vector<8x128xi1>, vector<8x128xf32>
    %618 = vector.extract_strided_slice %617 {offsets = [0, 0], sizes = [8, 32], strides = [1, 1]} : vector<8x128xf32> to vector<8x32xf32>
    %619 = vector.extract_strided_slice %617 {offsets = [0, 32], sizes = [8, 32], strides = [1, 1]} : vector<8x128xf32> to vector<8x32xf32>
    %620 = vector.extract_strided_slice %617 {offsets = [0, 64], sizes = [8, 32], strides = [1, 1]} : vector<8x128xf32> to vector<8x32xf32>
    %621 = vector.extract_strided_slice %617 {offsets = [0, 96], sizes = [8, 32], strides = [1, 1]} : vector<8x128xf32> to vector<8x32xf32>
    %622 = arith.mulf %619, %602 : vector<8x32xf32>
    %623 = arith.mulf %618, %620 : vector<8x32xf32>
    %624 = arith.addf %622, %623 : vector<8x32xf32>
    %625 = math.tanh %624 : vector<8x32xf32>
    %626 = arith.mulf %621, %625 : vector<8x32xf32>
    %c1_191 = arith.constant 1 : index
    %c48_192 = arith.constant 48 : index
    %c0_193 = arith.constant 0 : index
    %627 = vector.load %arg19[%c1_191, %c48_192, %c0_193] : memref<2x64x32xf32, #tpu.memory_space<vmem>>, vector<1x8x32xf32>
    %628 = vector.shape_cast %627 : vector<1x8x32xf32> to vector<8x32xf32>
    %629 = vector.shape_cast %626 : vector<8x32xf32> to vector<1x8x32xf32>
    tpu.vector_store %arg19[%c1_191, %c48_192, %c0_193], %629 {strides = array<i32>} : memref<2x64x32xf32, #tpu.memory_space<vmem>>, vector<1x8x32xf32>,
    %630 = vector.extract_strided_slice %470 {offsets = [56, 0], sizes = [8, 128], strides = [1, 1]} : vector<64x128xf32> to vector<8x128xf32>
    %cst_194 = arith.constant dense<0.000000e+00> : vector<8x128xf32>
    %631 = tpu.matmul %626, %471, %cst_194 {dimension_numbers = #tpu.dot_dimension_numbers<[1], [0], [0], [1], [0, 0, 1, 1], [], []>} : vector<8x32xf32>, vector<32x128xf32>, vector<8x128xf32> -> vector<8x128xf32>
    %632 = arith.addf %630, %631 : vector<8x128xf32>
    %633 = math.tanh %632 : vector<8x128xf32>
    %634 = arith.negf %632 : vector<8x128xf32>
    %635 = math.exp %634 : vector<8x128xf32>
    %cst_195 = arith.constant 1.000000e+00 : f32
    %636 = vector.broadcast %cst_195 : f32 to vector<8x128xf32>
    %637 = arith.addf %636, %635 : vector<8x128xf32>
    %638 = arith.divf %636, %637 : vector<8x128xf32>
    %639 = arith.select %5, %633, %638 : vector<8x128xi1>, vector<8x128xf32>
    %640 = vector.extract_strided_slice %639 {offsets = [0, 0], sizes = [8, 32], strides = [1, 1]} : vector<8x128xf32> to vector<8x32xf32>
    %641 = vector.extract_strided_slice %639 {offsets = [0, 32], sizes = [8, 32], strides = [1, 1]} : vector<8x128xf32> to vector<8x32xf32>
    %642 = vector.extract_strided_slice %639 {offsets = [0, 64], sizes = [8, 32], strides = [1, 1]} : vector<8x128xf32> to vector<8x32xf32>
    %643 = vector.extract_strided_slice %639 {offsets = [0, 96], sizes = [8, 32], strides = [1, 1]} : vector<8x128xf32> to vector<8x32xf32>
    %644 = arith.mulf %641, %624 : vector<8x32xf32>
    %645 = arith.mulf %640, %642 : vector<8x32xf32>
    %646 = arith.addf %644, %645 : vector<8x32xf32>
    %647 = math.tanh %646 : vector<8x32xf32>
    %648 = arith.mulf %643, %647 : vector<8x32xf32>
    %c1_196 = arith.constant 1 : index
    %c56_197 = arith.constant 56 : index
    %c0_198 = arith.constant 0 : index
    %649 = vector.load %arg19[%c1_196, %c56_197, %c0_198] : memref<2x64x32xf32, #tpu.memory_space<vmem>>, vector<1x8x32xf32>
    %650 = vector.shape_cast %649 : vector<1x8x32xf32> to vector<8x32xf32>
    %651 = vector.shape_cast %648 : vector<8x32xf32> to vector<1x8x32xf32>
    tpu.vector_store %arg19[%c1_196, %c56_197, %c0_198], %651 {strides = array<i32>} : memref<2x64x32xf32, #tpu.memory_space<vmem>>, vector<1x8x32xf32>,
    %c1_199 = arith.constant 1 : index
    %c0_200 = arith.constant 0 : index
    %c0_201 = arith.constant 0 : index
    %652 = vector.load %arg17[%c1_199, %c0_200, %c0_201] : memref<2x8x32xf32, #tpu.memory_space<vmem>>, vector<1x8x32xf32>
    %653 = vector.shape_cast %652 : vector<1x8x32xf32> to vector<8x32xf32>
    %654 = vector.shape_cast %648 : vector<8x32xf32> to vector<1x8x32xf32>
    tpu.vector_store %arg17[%c1_199, %c0_200, %c0_201], %654 {strides = array<i32>} : memref<2x8x32xf32, #tpu.memory_space<vmem>>, vector<1x8x32xf32>,
    %c1_202 = arith.constant 1 : index
    %c0_203 = arith.constant 0 : index
    %c0_204 = arith.constant 0 : index
    %655 = vector.load %arg18[%c1_202, %c0_203, %c0_204] : memref<2x8x32xf32, #tpu.memory_space<vmem>>, vector<1x8x32xf32>
    %656 = vector.shape_cast %655 : vector<1x8x32xf32> to vector<8x32xf32>
    %657 = vector.shape_cast %646 : vector<8x32xf32> to vector<1x8x32xf32>
    tpu.vector_store %arg18[%c1_202, %c0_203, %c0_204], %657 {strides = array<i32>} : memref<2x8x32xf32, #tpu.memory_space<vmem>>, vector<1x8x32xf32>,
    %c1_205 = arith.constant 1 : index
    %c0_206 = arith.constant 0 : index
    %c0_207 = arith.constant 0 : index
    %658 = vector.load %arg19[%c1_205, %c0_206, %c0_207] : memref<2x64x32xf32, #tpu.memory_space<vmem>>, vector<1x64x32xf32>
    %659 = vector.shape_cast %658 : vector<1x64x32xf32> to vector<64x32xf32>
    %660 = arith.truncf %659 : vector<64x32xf32> to vector<64x32xbf16>
    %c0_208 = arith.constant 0 : index
    %c0_209 = arith.constant 0 : index
    %661 = vector.load %arg14[%c0_208, %c0_209] : memref<32x128xbf16, #tpu.memory_space<vmem>>, vector<32x128xbf16>
    %cst_210 = arith.constant dense<0.000000e+00> : vector<64x128xf32>
    %662 = tpu.matmul %660, %661, %cst_210 {dimension_numbers = #tpu.dot_dimension_numbers<[1], [0], [0], [1], [0, 0, 1, 1], [], []>} : vector<64x32xbf16>, vector<32x128xbf16>, vector<64x128xf32> -> vector<64x128xf32>
    %c0_211 = arith.constant 0 : index
    %c0_212 = arith.constant 0 : index
    %663 = vector.load %arg15[%c0_211, %c0_212] : memref<1x128xf32, #tpu.memory_space<vmem>>, vector<1x128xf32>
    %664 = vector.broadcast %663 : vector<1x128xf32> to vector<64x128xf32>
    %665 = arith.addf %662, %664 : vector<64x128xf32>
    %c0_213 = arith.constant 0 : index
    %c0_214 = arith.constant 0 : index
    %666 = vector.load %arg16[%c0_213, %c0_214] : memref<64x128xf32, #tpu.memory_space<vmem>>, vector<64x128xf32>
    tpu.vector_store %arg16[%c0_213, %c0_214], %665 {strides = array<i32>} : memref<64x128xf32, #tpu.memory_space<vmem>>, vector<64x128xf32>,
    return
  }
}

</mosaic_0001>

<llo_original>
// kernel: decoder_forward.1
$region0: #{decoder_forward.1}
  #allocation0 [shape = 'u32[]', space=smem, size = 0x4, offset = 0x4, fixed_abs, tag = 'smem constant byte address 0x4 - core index']
  #allocation1 [shape = 'u32[144,128]{1,0:T(1,128)}', space=vmem, size = 0x12000, scoped, tag = 'internal scratch']
  #allocation2 [shape = 'f32[2,64,32]{2,1,0:T(8,128)}', space=vmem, size = 0x10000, scoped, tag = 'scratch operand']
  #allocation3 [shape = 'f32[64,32]{1,0:T(8,128)}', space=vmem, size = 0x8000, scoped, tag = 'scratch operand']
  %s0 = inlined_call_operand.vmem [shape: f32[64,32], index: 0, kind: input, shape index: {}]
  %s1 = inlined_call_operand.vmem [shape: f32[128,32], index: 1, kind: input, shape index: {}]
  %s2 = inlined_call_operand.vmem [shape: f32[8,8,16], index: 2, kind: input, shape index: {}]
  %s3 = inlined_call_operand.vmem [shape: f32[2,8,32], index: 3, kind: input, shape index: {}]
  %s4 = inlined_call_operand.vmem [shape: f32[2,8,32], index: 4, kind: input, shape index: {}]
  %s5 = inlined_call_operand.vmem [shape: f32[7,128], index: 5, kind: input, shape index: {}]
  %s6 = inlined_call_operand.vmem [shape: f32[32,128], index: 6, kind: input, shape index: {}]
  %s7 = inlined_call_operand.vmem [shape: f32[32,128], index: 7, kind: input, shape index: {}]
  %s8 = inlined_call_operand.vmem [shape: f32[32,32], index: 8, kind: input, shape index: {}]
  %s9 = inlined_call_operand.vmem [shape: f32[32,32], index: 9, kind: input, shape index: {}]
  %s10 = inlined_call_operand.vmem [shape: f32[32,32], index: 10, kind: input, shape index: {}]
  %s11 = inlined_call_operand.vmem [shape: f32[32,128], index: 11, kind: input, shape index: {}]
  %s12 = inlined_call_operand.vmem [shape: f32[32,128], index: 12, kind: input, shape index: {}]
  %s13 = inlined_call_operand.vmem [shape: f32[32,128], index: 13, kind: input, shape index: {}]
  %s14 = inlined_call_operand.vmem [shape: bf16[32,128], index: 14, kind: input, shape index: {}]
  %s15 = inlined_call_operand.vmem [shape: f32[1,128], index: 15, kind: input, shape index: {}]
  %s16 = inlined_call_operand.vmem [shape: f32[64,128], index: 16, kind: output, shape index: {0}]
  %s17 = inlined_call_operand.vmem [shape: f32[2,8,32], index: 17, kind: output, shape index: {1}]
  %s18 = inlined_call_operand.vmem [shape: f32[2,8,32], index: 18, kind: output, shape index: {2}]
  %19 = xla_tuple %s16, %s17, %s18
  %s20 = sld [smem:[#allocation0]]
  $region90: #{decoder_forward.1} parent=0
    _
  %s22 = ssub.s32 1, %s20
  %s23 = scalar_select 0, %s22, %s20
  // Predicated region
  $region2: #{decoder_forward.1} parent=0 // pred_check
    _
  $region3: #{decoder_forward.1} parent=0 // pred_check_branch
    %25 = sbr.rel (0) target = $region5
  $region4: #{decoder_forward.1} parent=0 // pred_region
    _
  $region5: #{decoder_forward.1} parent=0 // pred_fallthru
    _
  // Predicated region
  $region6: #{decoder_forward.1} parent=0 // pred_check
    _
  $region7: #{decoder_forward.1} parent=0 // pred_check_branch
    %27 = sbr.rel (0) target = $region9
  $region8: #{decoder_forward.1} parent=0 // pred_region
    _
  $region9: #{decoder_forward.1} parent=0 // pred_fallthru
    _
  // Predicated region
  $region10: #{decoder_forward.1} parent=0 // pred_check
    _
  $region11: #{decoder_forward.1} parent=0 // pred_check_branch
    %29 = sbr.rel (0) target = $region13
  $region12: #{decoder_forward.1} parent=0 // pred_region
    _
  $region13: #{decoder_forward.1} parent=0 // pred_fallthru
    _
  // Predicated region
  $region14: #{decoder_forward.1} parent=0 // pred_check
    _
  $region15: #{decoder_forward.1} parent=0 // pred_check_branch
    %31 = sbr.rel (0) target = $region17
  $region16: #{decoder_forward.1} parent=0 // pred_region
    _
  $region17: #{decoder_forward.1} parent=0 // pred_fallthru
    _
  // Predicated region
  $region18: #{decoder_forward.1} parent=0 // pred_check
    _
  $region19: #{decoder_forward.1} parent=0 // pred_check_branch
    %33 = sbr.rel (0) target = $region21
  $region20: #{decoder_forward.1} parent=0 // pred_region
    _
  $region21: #{decoder_forward.1} parent=0 // pred_fallthru
    _
  // Predicated region
  $region22: #{decoder_forward.1} parent=0 // pred_check
    _
  $region23: #{decoder_forward.1} parent=0 // pred_check_branch
    %35 = sbr.rel (0) target = $region25
  $region24: #{decoder_forward.1} parent=0 // pred_region
    _
  $region25: #{decoder_forward.1} parent=0 // pred_fallthru
    _
  // Predicated region
  $region26: #{decoder_forward.1} parent=0 // pred_check
    _
  $region27: #{decoder_forward.1} parent=0 // pred_check_branch
    %37 = sbr.rel (0) target = $region29
  $region28: #{decoder_forward.1} parent=0 // pred_region
    _
  $region29: #{decoder_forward.1} parent=0 // pred_fallthru
    _
  // Predicated region
  $region30: #{decoder_forward.1} parent=0 // pred_check
    _
  $region31: #{decoder_forward.1} parent=0 // pred_check_branch
    %39 = sbr.rel (0) target = $region33
  $region32: #{decoder_forward.1} parent=0 // pred_region
    _
  $region33: #{decoder_forward.1} parent=0 // pred_fallthru
    _
  // Predicated region
  $region34: #{decoder_forward.1} parent=0 // pred_check
    _
  $region35: #{decoder_forward.1} parent=0 // pred_check_branch
    %41 = sbr.rel (0) target = $region37
  $region36: #{decoder_forward.1} parent=0 // pred_region
    _
  $region37: #{decoder_forward.1} parent=0 // pred_fallthru
    _
  // Predicated region
  $region38: #{decoder_forward.1} parent=0 // pred_check
    _
  $region39: #{decoder_forward.1} parent=0 // pred_check_branch
    %43 = sbr.rel (0) target = $region41
  $region40: #{decoder_forward.1} parent=0 // pred_region
    _
  $region41: #{decoder_forward.1} parent=0 // pred_fallthru
    _
  // Predicated region
  $region42: #{decoder_forward.1} parent=0 // pred_check
    _
  $region43: #{decoder_forward.1} parent=0 // pred_check_branch
    %45 = sbr.rel (0) target = $region45
  $region44: #{decoder_forward.1} parent=0 // pred_region
    _
  $region45: #{decoder_forward.1} parent=0 // pred_fallthru
    _
  // Predicated region
  $region46: #{decoder_forward.1} parent=0 // pred_check
    _
  $region47: #{decoder_forward.1} parent=0 // pred_check_branch
    %47 = sbr.rel (0) target = $region49
  $region48: #{decoder_forward.1} parent=0 // pred_region
    _
  $region49: #{decoder_forward.1} parent=0 // pred_fallthru
    _
  // Predicated region
  $region50: #{decoder_forward.1} parent=0 // pred_check
    _
  $region51: #{decoder_forward.1} parent=0 // pred_check_branch
    %49 = sbr.rel (0) target = $region53
  $region52: #{decoder_forward.1} parent=0 // pred_region
    _
  $region53: #{decoder_forward.1} parent=0 // pred_fallthru
    _
  // Predicated region
  $region54: #{decoder_forward.1} parent=0 // pred_check
    _
  $region55: #{decoder_forward.1} parent=0 // pred_check_branch
    %51 = sbr.rel (0) target = $region57
  $region56: #{decoder_forward.1} parent=0 // pred_region
    _
  $region57: #{decoder_forward.1} parent=0 // pred_fallthru
    _
  // Predicated region
  $region58: #{decoder_forward.1} parent=0 // pred_check
    _
  $region59: #{decoder_forward.1} parent=0 // pred_check_branch
    %53 = sbr.rel (0) target = $region61
  $region60: #{decoder_forward.1} parent=0 // pred_region
    _
  $region61: #{decoder_forward.1} parent=0 // pred_fallthru
    _
  // Predicated region
  $region62: #{decoder_forward.1} parent=0 // pred_check
    _
  $region63: #{decoder_forward.1} parent=0 // pred_check_branch
    %55 = sbr.rel (0) target = $region65
  $region64: #{decoder_forward.1} parent=0 // pred_region
    _
  $region65: #{decoder_forward.1} parent=0 // pred_fallthru
    _
  %v57 = vlaneseq
  %v58 = vand.u32 %v57, 127
  %vm59 = vcmp.ge.s32.totalorder %v58, 64
  %vm60 = vcmp.lt.s32.totalorder %v58, 96
  %vm61 = vmand %vm59, %vm60
  %v62 = vld [vmem:[%s0] sm:$0xff]
  %v63 = vld [vmem:[%s0 + $0x8] sm:$0xff]
  %v64 = vld [vmem:[%s0 + $0x10] sm:$0xff]
  %v65 = vld [vmem:[%s0 + $0x18] sm:$0xff]
  %v66 = vld [vmem:[%s0 + $0x20] sm:$0xff]
  %v67 = vld [vmem:[%s0 + $0x28] sm:$0xff]
  %v68 = vld [vmem:[%s0 + $0x30] sm:$0xff]
  %v69 = vld [vmem:[%s0 + $0x38] sm:$0xff]
  %v70 = vld [vmem:[%s5] sm:$0x1]
  %v71 = vld [vmem:[%s6] sm:$0xff]
  %v72 = vld [vmem:[%s6 + $0x8] sm:$0xff]
  %v73 = vld [vmem:[%s6 + $0x10] sm:$0xff]
  %v74 = vld [vmem:[%s6 + $0x18] sm:$0xff]
  %v75 = vlaneseq
  %v76 = vshrl.u32 %v75, 7
  %v77 = vsub.s32 0, %v76
  %v78 = vrot.slane %v70, %v77
  %vm79 = vcmask 261120
  %v81 = vsel %vm79, %v62, 0
  %v84 = vsel %vm79, %v63, 0
  %v87 = vsel %vm79, %v64, 0
  %v90 = vsel %vm79, %v65, 0
  %v93 = vsel %vm79, %v66, 0
  %v96 = vsel %vm79, %v67, 0
  %v99 = vsel %vm79, %v68, 0
  %v102 = vsel %vm79, %v69, 0
  %104 = vmatprep.subr.mxu0 0.0
  %105 = vmatpush1.msra.mxu0 %v71
  %106 = vmatprep.subr.mxu0 0.0
  %107 = vmatpush1.msra.mxu0 %v72
  %108 = vmatprep.subr.mxu0 0.0
  %109 = vmatpush1.msra.mxu0 %v73
  %110 = vmatprep.subr.mxu0 0.0
  %111 = vmatpush1.msra.mxu0 %v74
  %112 = vmatprep.subr.mxu0 0.0
  %113 = vmatpush1.msra.mxu0 0.0
  %114 = vmatprep.subr.mxu0 0.0
  %115 = vmatpush1.msra.mxu0 0.0
  %116 = vmatprep.subr.mxu0 0.0
  %117 = vmatpush1.msra.mxu0 0.0
  %118 = vmatprep.subr.mxu0 0.0
  %119 = vmatpush1.msra.mxu0 0.0
  %120 = vmatprep.subr.mxu0 0.0
  %121 = vmatpush1.msra.mxu0 0.0
  %122 = vmatprep.subr.mxu0 0.0
  %123 = vmatpush1.msra.mxu0 0.0
  %124 = vmatprep.subr.mxu0 0.0
  %125 = vmatpush1.msra.mxu0 0.0
  %126 = vmatprep.subr.mxu0 0.0
  %127 = vmatpush1.msra.mxu0 0.0
  %128 = vmatprep.subr.mxu0 0.0
  %129 = vmatpush1.msra.mxu0 0.0
  %130 = vmatprep.subr.mxu0 0.0
  %131 = vmatpush1.msra.mxu0 0.0
  %132 = vmatprep.subr.mxu0 0.0
  %133 = vmatpush1.msra.mxu0 0.0
  %134 = vmatprep.subr.mxu0 0.0
  %135 = vmatpush1.msra.mxu0 0.0
  %136 = vmatprep.subr.mxu0 0.0
  %137 = vmatpush1.msra.mxu0 0.0
  %138 = vmatprep.subr.mxu0 0.0
  %139 = vmatpush1.msra.mxu0 0.0
  %140 = vmatprep.subr.mxu0 0.0
  %141 = vmatpush1.msra.mxu0 0.0
  %142 = vmatprep.subr.mxu0 0.0
  %143 = vmatpush1.msra.mxu0 0.0
  %144 = vmatprep.subr.mxu0 0.0
  %145 = vmatpush1.msra.mxu0 0.0
  %146 = vmatprep.subr.mxu0 0.0
  %147 = vmatpush1.msra.mxu0 0.0
  %148 = vmatprep.subr.mxu0 0.0
  %149 = vmatpush1.msra.mxu0 0.0
  %150 = vmatprep.subr.mxu0 0.0
  %151 = vmatpush1.msra.mxu0 0.0
  %152 = vmatprep.subr.mxu0 0.0
  %153 = vmatpush1.msra.mxu0 0.0
  %154 = vmatprep.subr.mxu0 0.0
  %155 = vmatpush1.msra.mxu0 0.0
  %156 = vmatprep.subr.mxu0 0.0
  %157 = vmatpush1.msra.mxu0 0.0
  %158 = vmatprep.subr.mxu0 0.0
  %159 = vmatpush1.msra.mxu0 0.0
  %160 = vmatprep.subr.mxu0 0.0
  %161 = vmatpush1.msra.mxu0 0.0
  %162 = vmatprep.subr.mxu0 0.0
  %163 = vmatpush1.msra.mxu0 0.0
  %164 = vmatprep.subr.mxu0 0.0
  %165 = vmatpush1.msra.mxu0 0.0
  %166 = vmatprep.subr.mxu0 0.0
  %167 = vmatpush1.msra.mxu0 0.0
  %168 = vmatprep.mubr.f32.mxu0 0.0
  %169 = vmatmul.mubr.f32.gmra.mrb[0].mxu0 %v81
  %v170 = vpop.f32.mrb[0].mxu0
  %v171 = vadd.f32 %v78, %v170
  %v172 = vpop.f32.mrb[0].mxu0
  %173 = vmatprep.mubr.f32.mxu0 0.0
  %174 = vmatmul.mubr.f32.gmra.mrb[0].mxu0 %v84
  %v175 = vpop.f32.mrb[0].mxu0
  %v176 = vadd.f32 %v78, %v175
  %v177 = vpop.f32.mrb[0].mxu0
  %178 = vmatprep.mubr.f32.mxu0 0.0
  %179 = vmatmul.mubr.f32.gmra.mrb[0].mxu0 %v87
  %v180 = vpop.f32.mrb[0].mxu0
  %v181 = vadd.f32 %v78, %v180
  %v182 = vpop.f32.mrb[0].mxu0
  %183 = vmatprep.mubr.f32.mxu0 0.0
  %184 = vmatmul.mubr.f32.gmra.mrb[0].mxu0 %v90
  %v185 = vpop.f32.mrb[0].mxu0
  %v186 = vadd.f32 %v78, %v185
  %v187 = vpop.f32.mrb[0].mxu0
  %188 = vmatprep.mubr.f32.mxu0 0.0
  %189 = vmatmul.mubr.f32.gmra.mrb[0].mxu0 %v93
  %v190 = vpop.f32.mrb[0].mxu0
  %v191 = vadd.f32 %v78, %v190
  %v192 = vpop.f32.mrb[0].mxu0
  %193 = vmatprep.mubr.f32.mxu0 0.0
  %194 = vmatmul.mubr.f32.gmra.mrb[0].mxu0 %v96
  %v195 = vpop.f32.mrb[0].mxu0
  %v196 = vadd.f32 %v78, %v195
  %v197 = vpop.f32.mrb[0].mxu0
  %198 = vmatprep.mubr.f32.mxu0 0.0
  %199 = vmatmul.mubr.f32.gmra.mrb[0].mxu0 %v99
  %v200 = vpop.f32.mrb[0].mxu0
  %v201 = vadd.f32 %v78, %v200
  %v202 = vpop.f32.mrb[0].mxu0
  %203 = vmatprep.mubr.f32.mxu0 0.0
  %204 = vmatmul.mubr.f32.gmra.mrb[0].mxu0 %v102
  %v205 = vpop.f32.mrb[0].mxu0
  %v206 = vadd.f32 %v78, %v205
  %v207 = vpop.f32.mrb[0].mxu0
  %208 = vdwg.mxu0
  %v209 = vld [vmem:[%s7] sm:$0xff]
  %v210 = vld [vmem:[%s7 + $0x8] sm:$0xff]
  %v211 = vld [vmem:[%s7 + $0x10] sm:$0xff]
  %v212 = vld [vmem:[%s7 + $0x18] sm:$0xff]
  %v213 = vld [vmem:[%s3] sm:$0xff]
  %v214 = vld [vmem:[%s4] sm:$0xff]
  %v216 = vsel %vm79, %v213, 0
  %218 = vmatprep.subr.mxu0 0.0
  %219 = vmatpush1.msra.mxu0 %v209
  %220 = vmatprep.subr.mxu0 0.0
  %221 = vmatpush1.msra.mxu0 %v210
  %222 = vmatprep.subr.mxu0 0.0
  %223 = vmatpush1.msra.mxu0 %v211
  %224 = vmatprep.subr.mxu0 0.0
  %225 = vmatpush1.msra.mxu0 %v212
  %226 = vmatprep.subr.mxu0 0.0
  %227 = vmatpush1.msra.mxu0 0.0
  %228 = vmatprep.subr.mxu0 0.0
  %229 = vmatpush1.msra.mxu0 0.0
  %230 = vmatprep.subr.mxu0 0.0
  %231 = vmatpush1.msra.mxu0 0.0
  %232 = vmatprep.subr.mxu0 0.0
  %233 = vmatpush1.msra.mxu0 0.0
  %234 = vmatprep.subr.mxu0 0.0
  %235 = vmatpush1.msra.mxu0 0.0
  %236 = vmatprep.subr.mxu0 0.0
  %237 = vmatpush1.msra.mxu0 0.0
  %238 = vmatprep.subr.mxu0 0.0
  %239 = vmatpush1.msra.mxu0 0.0
  %240 = vmatprep.subr.mxu0 0.0
  %241 = vmatpush1.msra.mxu0 0.0
  %242 = vmatprep.subr.mxu0 0.0
  %243 = vmatpush1.msra.mxu0 0.0
  %244 = vmatprep.subr.mxu0 0.0
  %245 = vmatpush1.msra.mxu0 0.0
  %246 = vmatprep.subr.mxu0 0.0
  %247 = vmatpush1.msra.mxu0 0.0
  %248 = vmatprep.subr.mxu0 0.0
  %249 = vmatpush1.msra.mxu0 0.0
  %250 = vmatprep.subr.mxu0 0.0
  %251 = vmatpush1.msra.mxu0 0.0
  %252 = vmatprep.subr.mxu0 0.0
  %253 = vmatpush1.msra.mxu0 0.0
  %254 = vmatprep.subr.mxu0 0.0
  %255 = vmatpush1.msra.mxu0 0.0
  %256 = vmatprep.subr.mxu0 0.0
  %257 = vmatpush1.msra.mxu0 0.0
  %258 = vmatprep.subr.mxu0 0.0
  %259 = vmatpush1.msra.mxu0 0.0
  %260 = vmatprep.subr.mxu0 0.0
  %261 = vmatpush1.msra.mxu0 0.0
  %262 = vmatprep.subr.mxu0 0.0
  %263 = vmatpush1.msra.mxu0 0.0
  %264 = vmatprep.subr.mxu0 0.0
  %265 = vmatpush1.msra.mxu0 0.0
  %266 = vmatprep.subr.mxu0 0.0
  %267 = vmatpush1.msra.mxu0 0.0
  %268 = vmatprep.subr.mxu0 0.0
  %269 = vmatpush1.msra.mxu0 0.0
  %270 = vmatprep.subr.mxu0 0.0
  %271 = vmatpush1.msra.mxu0 0.0
  %272 = vmatprep.subr.mxu0 0.0
  %273 = vmatpush1.msra.mxu0 0.0
  %274 = vmatprep.subr.mxu0 0.0
  %275 = vmatpush1.msra.mxu0 0.0
  %276 = vmatprep.subr.mxu0 0.0
  %277 = vmatpush1.msra.mxu0 0.0
  %278 = vmatprep.subr.mxu0 0.0
  %279 = vmatpush1.msra.mxu0 0.0
  %280 = vmatprep.subr.mxu0 0.0
  %281 = vmatpush1.msra.mxu0 0.0
  %282 = vmatprep.mubr.f32.mxu0 0.0
  %283 = vmatmul.mubr.f32.gmra.mrb[0].mxu0 %v216
  %v284 = vpop.f32.mrb[0].mxu0
  %v285 = vadd.f32 0.0, %v284
  %v286 = vpop.f32.mrb[0].mxu0
  %287 = vdwg.mxu0
  %v288 = vadd.f32 %v171, %v285
  %v289 = vtanh.pop %v288
  %v290 = vxor.u32 %v288, 2147483648
  %v291 = vmul.f32 %v290, 1.442695
  %v292 = vpow.pop %v291
  %v293 = vadd.f32 %v292, 1.0
  %v294 = vrcp.pop %v293
  %v295 = vmul.f32 1.0, %v294
  %v296 = vsel %vm61, %v289, %v295
  %298 = vrot.lane.b32.xlu0 %v214, 32
  %v299 = vpop.permute.xlu0 %298
  %v301 = vmul.f32 %v296, %v299
  %303 = vrot.lane.b32.xlu0 %v296, 64
  %v304 = vpop.permute.xlu0 %303
  %v306 = vmul.f32 %v296, %v304
  %308 = vrot.lane.b32.xlu0 %v306, 32
  %v309 = vpop.permute.xlu0 %308
  %v311 = vadd.f32 %v301, %v309
  %v312 = vtanh.pop %v311
  %314 = vrot.lane.b32.xlu0 %v312, 64
  %v315 = vpop.permute.xlu0 %314
  %v317 = vmul.f32 %v296, %v315
  %318 = vrot.lane.b32.xlu0 %v62, 96
  %v319 = vpop.permute.xlu0 %318
  %v321 = vadd.f32 %v317, %v319
  %323 = vrot.lane.b32.xlu0 %v321, 32
  %v324 = vpop.permute.xlu0 %323
  %326 = vst.msk [vmem:[#allocation2] sm:$0xff] %vm79, %v324
  %328 = vrot.lane.b32.xlu0 %v317, 32
  %v329 = vpop.permute.xlu0 %328
  %v330 = vsel %vm79, %v329, 0
  %332 = vmatprep.subr.mxu0 0.0
  %333 = vmatpush1.msra.mxu0 %v209
  %334 = vmatprep.subr.mxu0 0.0
  %335 = vmatpush1.msra.mxu0 %v210
  %336 = vmatprep.subr.mxu0 0.0
  %337 = vmatpush1.msra.mxu0 %v211
  %338 = vmatprep.subr.mxu0 0.0
  %339 = vmatpush1.msra.mxu0 %v212
  %340 = vmatprep.subr.mxu0 0.0
  %341 = vmatpush1.msra.mxu0 0.0
  %342 = vmatprep.subr.mxu0 0.0
  %343 = vmatpush1.msra.mxu0 0.0
  %344 = vmatprep.subr.mxu0 0.0
  %345 = vmatpush1.msra.mxu0 0.0
  %346 = vmatprep.subr.mxu0 0.0
  %347 = vmatpush1.msra.mxu0 0.0
  %348 = vmatprep.subr.mxu0 0.0
  %349 = vmatpush1.msra.mxu0 0.0
  %350 = vmatprep.subr.mxu0 0.0
  %351 = vmatpush1.msra.mxu0 0.0
  %352 = vmatprep.subr.mxu0 0.0
  %353 = vmatpush1.msra.mxu0 0.0
  %354 = vmatprep.subr.mxu0 0.0
  %355 = vmatpush1.msra.mxu0 0.0
  %356 = vmatprep.subr.mxu0 0.0
  %357 = vmatpush1.msra.mxu0 0.0
  %358 = vmatprep.subr.mxu0 0.0
  %359 = vmatpush1.msra.mxu0 0.0
  %360 = vmatprep.subr.mxu0 0.0
  %361 = vmatpush1.msra.mxu0 0.0
  %362 = vmatprep.subr.mxu0 0.0
  %363 = vmatpush1.msra.mxu0 0.0
  %364 = vmatprep.subr.mxu0 0.0
  %365 = vmatpush1.msra.mxu0 0.0
  %366 = vmatprep.subr.mxu0 0.0
  %367 = vmatpush1.msra.mxu0 0.0
  %368 = vmatprep.subr.mxu0 0.0
  %369 = vmatpush1.msra.mxu0 0.0
  %370 = vmatprep.subr.mxu0 0.0
  %371 = vmatpush1.msra.mxu0 0.0
  %372 = vmatprep.subr.mxu0 0.0
  %373 = vmatpush1.msra.mxu0 0.0
  %374 = vmatprep.subr.mxu0 0.0
  %375 = vmatpush1.msra.mxu0 0.0
  %376 = vmatprep.subr.mxu0 0.0
  %377 = vmatpush1.msra.mxu0 0.0
  %378 = vmatprep.subr.mxu0 0.0
  %379 = vmatpush1.msra.mxu0 0.0
  %380 = vmatprep.subr.mxu0 0.0
  %381 = vmatpush1.msra.mxu0 0.0
  %382 = vmatprep.subr.mxu0 0.0
  %383 = vmatpush1.msra.mxu0 0.0
  %384 = vmatprep.subr.mxu0 0.0
  %385 = vmatpush1.msra.mxu0 0.0
  %386 = vmatprep.subr.mxu0 0.0
  %387 = vmatpush1.msra.mxu0 0.0
  %388 = vmatprep.subr.mxu0 0.0
  %389 = vmatpush1.msra.mxu0 0.0
  %390 = vmatprep.subr.mxu0 0.0
  %391 = vmatpush1.msra.mxu0 0.0
  %392 = vmatprep.subr.mxu0 0.0
  %393 = vmatpush1.msra.mxu0 0.0
  %394 = vmatprep.subr.mxu0 0.0
  %395 = vmatpush1.msra.mxu0 0.0
  %396 = vmatprep.mubr.f32.mxu0 0.0
  %397 = vmatmul.mubr.f32.gmra.mrb[0].mxu0 %v330
  %v398 = vpop.f32.mrb[0].mxu0
  %v399 = vadd.f32 0.0, %v398
  %v400 = vpop.f32.mrb[0].mxu0
  %401 = vdwg.mxu0
  %v402 = vadd.f32 %v176, %v399
  %v403 = vtanh.pop %v402
  %v404 = vxor.u32 %v402, 2147483648
  %v405 = vmul.f32 %v404, 1.442695
  %v406 = vpow.pop %v405
  %v407 = vadd.f32 %v406, 1.0
  %v408 = vrcp.pop %v407
  %v409 = vmul.f32 1.0, %v408
  %v410 = vsel %vm61, %v403, %v409
  %v411 = vmul.f32 %v410, %v311
  %413 = vrot.lane.b32.xlu0 %v410, 64
  %v414 = vpop.permute.xlu0 %413
  %v416 = vmul.f32 %v410, %v414
  %418 = vrot.lane.b32.xlu0 %v416, 32
  %v419 = vpop.permute.xlu0 %418
  %v421 = vadd.f32 %v411, %v419
  %v422 = vtanh.pop %v421
  %424 = vrot.lane.b32.xlu0 %v422, 64
  %v425 = vpop.permute.xlu0 %424
  %v427 = vmul.f32 %v410, %v425
  %428 = vrot.lane.b32.xlu0 %v63, 96
  %v429 = vpop.permute.xlu0 %428
  %v431 = vadd.f32 %v427, %v429
  %433 = vrot.lane.b32.xlu0 %v431, 32
  %v434 = vpop.permute.xlu0 %433
  %436 = vst.msk [vmem:[#allocation2 + $0x8] sm:$0xff] %vm79, %v434
  %438 = vrot.lane.b32.xlu0 %v427, 32
  %v439 = vpop.permute.xlu0 %438
  %v440 = vsel %vm79, %v439, 0
  %442 = vmatprep.subr.mxu0 0.0
  %443 = vmatpush1.msra.mxu0 %v209
  %444 = vmatprep.subr.mxu0 0.0
  %445 = vmatpush1.msra.mxu0 %v210
  %446 = vmatprep.subr.mxu0 0.0
  %447 = vmatpush1.msra.mxu0 %v211
  %448 = vmatprep.subr.mxu0 0.0
  %449 = vmatpush1.msra.mxu0 %v212
  %450 = vmatprep.subr.mxu0 0.0
  %451 = vmatpush1.msra.mxu0 0.0
  %452 = vmatprep.subr.mxu0 0.0
  %453 = vmatpush1.msra.mxu0 0.0
  %454 = vmatprep.subr.mxu0 0.0
  %455 = vmatpush1.msra.mxu0 0.0
  %456 = vmatprep.subr.mxu0 0.0
  %457 = vmatpush1.msra.mxu0 0.0
  %458 = vmatprep.subr.mxu0 0.0
  %459 = vmatpush1.msra.mxu0 0.0
  %460 = vmatprep.subr.mxu0 0.0
  %461 = vmatpush1.msra.mxu0 0.0
  %462 = vmatprep.subr.mxu0 0.0
  %463 = vmatpush1.msra.mxu0 0.0
  %464 = vmatprep.subr.mxu0 0.0
  %465 = vmatpush1.msra.mxu0 0.0
  %466 = vmatprep.subr.mxu0 0.0
  %467 = vmatpush1.msra.mxu0 0.0
  %468 = vmatprep.subr.mxu0 0.0
  %469 = vmatpush1.msra.mxu0 0.0
  %470 = vmatprep.subr.mxu0 0.0
  %471 = vmatpush1.msra.mxu0 0.0
  %472 = vmatprep.subr.mxu0 0.0
  %473 = vmatpush1.msra.mxu0 0.0
  %474 = vmatprep.subr.mxu0 0.0
  %475 = vmatpush1.msra.mxu0 0.0
  %476 = vmatprep.subr.mxu0 0.0
  %477 = vmatpush1.msra.mxu0 0.0
  %478 = vmatprep.subr.mxu0 0.0
  %479 = vmatpush1.msra.mxu0 0.0
  %480 = vmatprep.subr.mxu0 0.0
  %481 = vmatpush1.msra.mxu0 0.0
  %482 = vmatprep.subr.mxu0 0.0
  %483 = vmatpush1.msra.mxu0 0.0
  %484 = vmatprep.subr.mxu0 0.0
  %485 = vmatpush1.msra.mxu0 0.0
  %486 = vmatprep.subr.mxu0 0.0
  %487 = vmatpush1.msra.mxu0 0.0
  %488 = vmatprep.subr.mxu0 0.0
  %489 = vmatpush1.msra.mxu0 0.0
  %490 = vmatprep.subr.mxu0 0.0
  %491 = vmatpush1.msra.mxu0 0.0
  %492 = vmatprep.subr.mxu0 0.0
  %493 = vmatpush1.msra.mxu0 0.0
  %494 = vmatprep.subr.mxu0 0.0
  %495 = vmatpush1.msra.mxu0 0.0
  %496 = vmatprep.subr.mxu0 0.0
  %497 = vmatpush1.msra.mxu0 0.0
  %498 = vmatprep.subr.mxu0 0.0
  %499 = vmatpush1.msra.mxu0 0.0
  %500 = vmatprep.subr.mxu0 0.0
  %501 = vmatpush1.msra.mxu0 0.0
  %502 = vmatprep.subr.mxu0 0.0
  %503 = vmatpush1.msra.mxu0 0.0
  %504 = vmatprep.subr.mxu0 0.0
  %505 = vmatpush1.msra.mxu0 0.0
  %506 = vmatprep.mubr.f32.mxu0 0.0
  %507 = vmatmul.mubr.f32.gmra.mrb[0].mxu0 %v440
  %v508 = vpop.f32.mrb[0].mxu0
  %v509 = vadd.f32 0.0, %v508
  %v510 = vpop.f32.mrb[0].mxu0
  %511 = vdwg.mxu0
  %v512 = vadd.f32 %v181, %v509
  %v513 = vtanh.pop %v512
  %v514 = vxor.u32 %v512, 2147483648
  %v515 = vmul.f32 %v514, 1.442695
  %v516 = vpow.pop %v515
  %v517 = vadd.f32 %v516, 1.0
  %v518 = vrcp.pop %v517
  %v519 = vmul.f32 1.0, %v518
  %v520 = vsel %vm61, %v513, %v519
  %v521 = vmul.f32 %v520, %v421
  %523 = vrot.lane.b32.xlu0 %v520, 64
  %v524 = vpop.permute.xlu0 %523
  %v526 = vmul.f32 %v520, %v524
  %528 = vrot.lane.b32.xlu0 %v526, 32
  %v529 = vpop.permute.xlu0 %528
  %v531 = vadd.f32 %v521, %v529
  %v532 = vtanh.pop %v531
  %534 = vrot.lane.b32.xlu0 %v532, 64
  %v535 = vpop.permute.xlu0 %534
  %v537 = vmul.f32 %v520, %v535
  %538 = vrot.lane.b32.xlu0 %v64, 96
  %v539 = vpop.permute.xlu0 %538
  %v541 = vadd.f32 %v537, %v539
  %543 = vrot.lane.b32.xlu0 %v541, 32
  %v544 = vpop.permute.xlu0 %543
  %546 = vst.msk [vmem:[#allocation2 + $0x10] sm:$0xff] %vm79, %v544
  %548 = vrot.lane.b32.xlu0 %v537, 32
  %v549 = vpop.permute.xlu0 %548
  %v550 = vsel %vm79, %v549, 0
  %552 = vmatprep.subr.mxu0 0.0
  %553 = vmatpush1.msra.mxu0 %v209
  %554 = vmatprep.subr.mxu0 0.0
  %555 = vmatpush1.msra.mxu0 %v210
  %556 = vmatprep.subr.mxu0 0.0
  %557 = vmatpush1.msra.mxu0 %v211
  %558 = vmatprep.subr.mxu0 0.0
  %559 = vmatpush1.msra.mxu0 %v212
  %560 = vmatprep.subr.mxu0 0.0
  %561 = vmatpush1.msra.mxu0 0.0
  %562 = vmatprep.subr.mxu0 0.0
  %563 = vmatpush1.msra.mxu0 0.0
  %564 = vmatprep.subr.mxu0 0.0
  %565 = vmatpush1.msra.mxu0 0.0
  %566 = vmatprep.subr.mxu0 0.0
  %567 = vmatpush1.msra.mxu0 0.0
  %568 = vmatprep.subr.mxu0 0.0
  %569 = vmatpush1.msra.mxu0 0.0
  %570 = vmatprep.subr.mxu0 0.0
  %571 = vmatpush1.msra.mxu0 0.0
  %572 = vmatprep.subr.mxu0 0.0
  %573 = vmatpush1.msra.mxu0 0.0
  %574 = vmatprep.subr.mxu0 0.0
  %575 = vmatpush1.msra.mxu0 0.0
  %576 = vmatprep.subr.mxu0 0.0
  %577 = vmatpush1.msra.mxu0 0.0
  %578 = vmatprep.subr.mxu0 0.0
  %579 = vmatpush1.msra.mxu0 0.0
  %580 = vmatprep.subr.mxu0 0.0
  %581 = vmatpush1.msra.mxu0 0.0
  %582 = vmatprep.subr.mxu0 0.0
  %583 = vmatpush1.msra.mxu0 0.0
  %584 = vmatprep.subr.mxu0 0.0
  %585 = vmatpush1.msra.mxu0 0.0
  %586 = vmatprep.subr.mxu0 0.0
  %587 = vmatpush1.msra.mxu0 0.0
  %588 = vmatprep.subr.mxu0 0.0
  %589 = vmatpush1.msra.mxu0 0.0
  %590 = vmatprep.subr.mxu0 0.0
  %591 = vmatpush1.msra.mxu0 0.0
  %592 = vmatprep.subr.mxu0 0.0
  %593 = vmatpush1.msra.mxu0 0.0
  %594 = vmatprep.subr.mxu0 0.0
  %595 = vmatpush1.msra.mxu0 0.0
  %596 = vmatprep.subr.mxu0 0.0
  %597 = vmatpush1.msra.mxu0 0.0
  %598 = vmatprep.subr.mxu0 0.0
  %599 = vmatpush1.msra.mxu0 0.0
  %600 = vmatprep.subr.mxu0 0.0
  %601 = vmatpush1.msra.mxu0 0.0
  %602 = vmatprep.subr.mxu0 0.0
  %603 = vmatpush1.msra.mxu0 0.0
  %604 = vmatprep.subr.mxu0 0.0
  %605 = vmatpush1.msra.mxu0 0.0
  %606 = vmatprep.subr.mxu0 0.0
  %607 = vmatpush1.msra.mxu0 0.0
  %608 = vmatprep.subr.mxu0 0.0
  %609 = vmatpush1.msra.mxu0 0.0
  %610 = vmatprep.subr.mxu0 0.0
  %611 = vmatpush1.msra.mxu0 0.0
  %612 = vmatprep.subr.mxu0 0.0
  %613 = vmatpush1.msra.mxu0 0.0
  %614 = vmatprep.subr.mxu0 0.0
  %615 = vmatpush1.msra.mxu0 0.0
  %616 = vmatprep.mubr.f32.mxu0 0.0
  %617 = vmatmul.mubr.f32.gmra.mrb[0].mxu0 %v550
  %v618 = vpop.f32.mrb[0].mxu0
  %v619 = vadd.f32 0.0, %v618
  %v620 = vpop.f32.mrb[0].mxu0
  %621 = vdwg.mxu0
  %v622 = vadd.f32 %v186, %v619
  %v623 = vtanh.pop %v622
  %v624 = vxor.u32 %v622, 2147483648
  %v625 = vmul.f32 %v624, 1.442695
  %v626 = vpow.pop %v625
  %v627 = vadd.f32 %v626, 1.0
  %v628 = vrcp.pop %v627
  %v629 = vmul.f32 1.0, %v628
  %v630 = vsel %vm61, %v623, %v629
  %v631 = vmul.f32 %v630, %v531
  %633 = vrot.lane.b32.xlu0 %v630, 64
  %v634 = vpop.permute.xlu0 %633
  %v636 = vmul.f32 %v630, %v634
  %638 = vrot.lane.b32.xlu0 %v636, 32
  %v639 = vpop.permute.xlu0 %638
  %v641 = vadd.f32 %v631, %v639
  %v642 = vtanh.pop %v641
  %644 = vrot.lane.b32.xlu0 %v642, 64
  %v645 = vpop.permute.xlu0 %644
  %v647 = vmul.f32 %v630, %v645
  %648 = vrot.lane.b32.xlu0 %v65, 96
  %v649 = vpop.permute.xlu0 %648
  %v651 = vadd.f32 %v647, %v649
  %653 = vrot.lane.b32.xlu0 %v651, 32
  %v654 = vpop.permute.xlu0 %653
  %656 = vst.msk [vmem:[#allocation2 + $0x18] sm:$0xff] %vm79, %v654
  %658 = vrot.lane.b32.xlu0 %v647, 32
  %v659 = vpop.permute.xlu0 %658
  %v660 = vsel %vm79, %v659, 0
  %662 = vmatprep.subr.mxu0 0.0
  %663 = vmatpush1.msra.mxu0 %v209
  %664 = vmatprep.subr.mxu0 0.0
  %665 = vmatpush1.msra.mxu0 %v210
  %666 = vmatprep.subr.mxu0 0.0
  %667 = vmatpush1.msra.mxu0 %v211
  %668 = vmatprep.subr.mxu0 0.0
  %669 = vmatpush1.msra.mxu0 %v212
  %670 = vmatprep.subr.mxu0 0.0
  %671 = vmatpush1.msra.mxu0 0.0
  %672 = vmatprep.subr.mxu0 0.0
  %673 = vmatpush1.msra.mxu0 0.0
  %674 = vmatprep.subr.mxu0 0.0
  %675 = vmatpush1.msra.mxu0 0.0
  %676 = vmatprep.subr.mxu0 0.0
  %677 = vmatpush1.msra.mxu0 0.0
  %678 = vmatprep.subr.mxu0 0.0
  %679 = vmatpush1.msra.mxu0 0.0
  %680 = vmatprep.subr.mxu0 0.0
  %681 = vmatpush1.msra.mxu0 0.0
  %682 = vmatprep.subr.mxu0 0.0
  %683 = vmatpush1.msra.mxu0 0.0
  %684 = vmatprep.subr.mxu0 0.0
  %685 = vmatpush1.msra.mxu0 0.0
  %686 = vmatprep.subr.mxu0 0.0
  %687 = vmatpush1.msra.mxu0 0.0
  %688 = vmatprep.subr.mxu0 0.0
  %689 = vmatpush1.msra.mxu0 0.0
  %690 = vmatprep.subr.mxu0 0.0
  %691 = vmatpush1.msra.mxu0 0.0
  %692 = vmatprep.subr.mxu0 0.0
  %693 = vmatpush1.msra.mxu0 0.0
  %694 = vmatprep.subr.mxu0 0.0
  %695 = vmatpush1.msra.mxu0 0.0
  %696 = vmatprep.subr.mxu0 0.0
  %697 = vmatpush1.msra.mxu0 0.0
  %698 = vmatprep.subr.mxu0 0.0
  %699 = vmatpush1.msra.mxu0 0.0
  %700 = vmatprep.subr.mxu0 0.0
  %701 = vmatpush1.msra.mxu0 0.0
  %702 = vmatprep.subr.mxu0 0.0
  %703 = vmatpush1.msra.mxu0 0.0
  %704 = vmatprep.subr.mxu0 0.0
  %705 = vmatpush1.msra.mxu0 0.0
  %706 = vmatprep.subr.mxu0 0.0
  %707 = vmatpush1.msra.mxu0 0.0
  %708 = vmatprep.subr.mxu0 0.0
  %709 = vmatpush1.msra.mxu0 0.0
  %710 = vmatprep.subr.mxu0 0.0
  %711 = vmatpush1.msra.mxu0 0.0
  %712 = vmatprep.subr.mxu0 0.0
  %713 = vmatpush1.msra.mxu0 0.0
  %714 = vmatprep.subr.mxu0 0.0
  %715 = vmatpush1.msra.mxu0 0.0
  %716 = vmatprep.subr.mxu0 0.0
  %717 = vmatpush1.msra.mxu0 0.0
  %718 = vmatprep.subr.mxu0 0.0
  %719 = vmatpush1.msra.mxu0 0.0
  %720 = vmatprep.subr.mxu0 0.0
  %721 = vmatpush1.msra.mxu0 0.0
  %722 = vmatprep.subr.mxu0 0.0
  %723 = vmatpush1.msra.mxu0 0.0
  %724 = vmatprep.subr.mxu0 0.0
  %725 = vmatpush1.msra.mxu0 0.0
  %726 = vmatprep.mubr.f32.mxu0 0.0
  %727 = vmatmul.mubr.f32.gmra.mrb[0].mxu0 %v660
  %v728 = vpop.f32.mrb[0].mxu0
  %v729 = vadd.f32 0.0, %v728
  %v730 = vpop.f32.mrb[0].mxu0
  %731 = vdwg.mxu0
  %v732 = vadd.f32 %v191, %v729
  %v733 = vtanh.pop %v732
  %v734 = vxor.u32 %v732, 2147483648
  %v735 = vmul.f32 %v734, 1.442695
  %v736 = vpow.pop %v735
  %v737 = vadd.f32 %v736, 1.0
  %v738 = vrcp.pop %v737
  %v739 = vmul.f32 1.0, %v738
  %v740 = vsel %vm61, %v733, %v739
  %v741 = vmul.f32 %v740, %v641
  %743 = vrot.lane.b32.xlu0 %v740, 64
  %v744 = vpop.permute.xlu0 %743
  %v746 = vmul.f32 %v740, %v744
  %748 = vrot.lane.b32.xlu0 %v746, 32
  %v749 = vpop.permute.xlu0 %748
  %v751 = vadd.f32 %v741, %v749
  %v752 = vtanh.pop %v751
  %754 = vrot.lane.b32.xlu0 %v752, 64
  %v755 = vpop.permute.xlu0 %754
  %v757 = vmul.f32 %v740, %v755
  %758 = vrot.lane.b32.xlu0 %v66, 96
  %v759 = vpop.permute.xlu0 %758
  %v761 = vadd.f32 %v757, %v759
  %763 = vrot.lane.b32.xlu0 %v761, 32
  %v764 = vpop.permute.xlu0 %763
  %766 = vst.msk [vmem:[#allocation2 + $0x20] sm:$0xff] %vm79, %v764
  %768 = vrot.lane.b32.xlu0 %v757, 32
  %v769 = vpop.permute.xlu0 %768
  %v770 = vsel %vm79, %v769, 0
  %772 = vmatprep.subr.mxu0 0.0
  %773 = vmatpush1.msra.mxu0 %v209
  %774 = vmatprep.subr.mxu0 0.0
  %775 = vmatpush1.msra.mxu0 %v210
  %776 = vmatprep.subr.mxu0 0.0
  %777 = vmatpush1.msra.mxu0 %v211
  %778 = vmatprep.subr.mxu0 0.0
  %779 = vmatpush1.msra.mxu0 %v212
  %780 = vmatprep.subr.mxu0 0.0
  %781 = vmatpush1.msra.mxu0 0.0
  %782 = vmatprep.subr.mxu0 0.0
  %783 = vmatpush1.msra.mxu0 0.0
  %784 = vmatprep.subr.mxu0 0.0
  %785 = vmatpush1.msra.mxu0 0.0
  %786 = vmatprep.subr.mxu0 0.0
  %787 = vmatpush1.msra.mxu0 0.0
  %788 = vmatprep.subr.mxu0 0.0
  %789 = vmatpush1.msra.mxu0 0.0
  %790 = vmatprep.subr.mxu0 0.0
  %791 = vmatpush1.msra.mxu0 0.0
  %792 = vmatprep.subr.mxu0 0.0
  %793 = vmatpush1.msra.mxu0 0.0
  %794 = vmatprep.subr.mxu0 0.0
  %795 = vmatpush1.msra.mxu0 0.0
  %796 = vmatprep.subr.mxu0 0.0
  %797 = vmatpush1.msra.mxu0 0.0
  %798 = vmatprep.subr.mxu0 0.0
  %799 = vmatpush1.msra.mxu0 0.0
  %800 = vmatprep.subr.mxu0 0.0
  %801 = vmatpush1.msra.mxu0 0.0
  %802 = vmatprep.subr.mxu0 0.0
  %803 = vmatpush1.msra.mxu0 0.0
  %804 = vmatprep.subr.mxu0 0.0
  %805 = vmatpush1.msra.mxu0 0.0
  %806 = vmatprep.subr.mxu0 0.0
  %807 = vmatpush1.msra.mxu0 0.0
  %808 = vmatprep.subr.mxu0 0.0
  %809 = vmatpush1.msra.mxu0 0.0
  %810 = vmatprep.subr.mxu0 0.0
  %811 = vmatpush1.msra.mxu0 0.0
  %812 = vmatprep.subr.mxu0 0.0
  %813 = vmatpush1.msra.mxu0 0.0
  %814 = vmatprep.subr.mxu0 0.0
  %815 = vmatpush1.msra.mxu0 0.0
  %816 = vmatprep.subr.mxu0 0.0
  %817 = vmatpush1.msra.mxu0 0.0
  %818 = vmatprep.subr.mxu0 0.0
  %819 = vmatpush1.msra.mxu0 0.0
  %820 = vmatprep.subr.mxu0 0.0
  %821 = vmatpush1.msra.mxu0 0.0
  %822 = vmatprep.subr.mxu0 0.0
  %823 = vmatpush1.msra.mxu0 0.0
  %824 = vmatprep.subr.mxu0 0.0
  %825 = vmatpush1.msra.mxu0 0.0
  %826 = vmatprep.subr.mxu0 0.0
  %827 = vmatpush1.msra.mxu0 0.0
  %828 = vmatprep.subr.mxu0 0.0
  %829 = vmatpush1.msra.mxu0 0.0
  %830 = vmatprep.subr.mxu0 0.0
  %831 = vmatpush1.msra.mxu0 0.0
  %832 = vmatprep.subr.mxu0 0.0
  %833 = vmatpush1.msra.mxu0 0.0
  %834 = vmatprep.subr.mxu0 0.0
  %835 = vmatpush1.msra.mxu0 0.0
  %836 = vmatprep.mubr.f32.mxu0 0.0
  %837 = vmatmul.mubr.f32.gmra.mrb[0].mxu0 %v770
  %v838 = vpop.f32.mrb[0].mxu0
  %v839 = vadd.f32 0.0, %v838
  %v840 = vpop.f32.mrb[0].mxu0
  %841 = vdwg.mxu0
  %v842 = vadd.f32 %v196, %v839
  %v843 = vtanh.pop %v842
  %v844 = vxor.u32 %v842, 2147483648
  %v845 = vmul.f32 %v844, 1.442695
  %v846 = vpow.pop %v845
  %v847 = vadd.f32 %v846, 1.0
  %v848 = vrcp.pop %v847
  %v849 = vmul.f32 1.0, %v848
  %v850 = vsel %vm61, %v843, %v849
  %v851 = vmul.f32 %v850, %v751
  %853 = vrot.lane.b32.xlu0 %v850, 64
  %v854 = vpop.permute.xlu0 %853
  %v856 = vmul.f32 %v850, %v854
  %858 = vrot.lane.b32.xlu0 %v856, 32
  %v859 = vpop.permute.xlu0 %858
  %v861 = vadd.f32 %v851, %v859
  %v862 = vtanh.pop %v861
  %864 = vrot.lane.b32.xlu0 %v862, 64
  %v865 = vpop.permute.xlu0 %864
  %v867 = vmul.f32 %v850, %v865
  %868 = vrot.lane.b32.xlu0 %v67, 96
  %v869 = vpop.permute.xlu0 %868
  %v871 = vadd.f32 %v867, %v869
  %873 = vrot.lane.b32.xlu0 %v871, 32
  %v874 = vpop.permute.xlu0 %873
  %876 = vst.msk [vmem:[#allocation2 + $0x28] sm:$0xff] %vm79, %v874
  %878 = vrot.lane.b32.xlu0 %v867, 32
  %v879 = vpop.permute.xlu0 %878
  %v880 = vsel %vm79, %v879, 0
  %882 = vmatprep.subr.mxu0 0.0
  %883 = vmatpush1.msra.mxu0 %v209
  %884 = vmatprep.subr.mxu0 0.0
  %885 = vmatpush1.msra.mxu0 %v210
  %886 = vmatprep.subr.mxu0 0.0
  %887 = vmatpush1.msra.mxu0 %v211
  %888 = vmatprep.subr.mxu0 0.0
  %889 = vmatpush1.msra.mxu0 %v212
  %890 = vmatprep.subr.mxu0 0.0
  %891 = vmatpush1.msra.mxu0 0.0
  %892 = vmatprep.subr.mxu0 0.0
  %893 = vmatpush1.msra.mxu0 0.0
  %894 = vmatprep.subr.mxu0 0.0
  %895 = vmatpush1.msra.mxu0 0.0
  %896 = vmatprep.subr.mxu0 0.0
  %897 = vmatpush1.msra.mxu0 0.0
  %898 = vmatprep.subr.mxu0 0.0
  %899 = vmatpush1.msra.mxu0 0.0
  %900 = vmatprep.subr.mxu0 0.0
  %901 = vmatpush1.msra.mxu0 0.0
  %902 = vmatprep.subr.mxu0 0.0
  %903 = vmatpush1.msra.mxu0 0.0
  %904 = vmatprep.subr.mxu0 0.0
  %905 = vmatpush1.msra.mxu0 0.0
  %906 = vmatprep.subr.mxu0 0.0
  %907 = vmatpush1.msra.mxu0 0.0
  %908 = vmatprep.subr.mxu0 0.0
  %909 = vmatpush1.msra.mxu0 0.0
  %910 = vmatprep.subr.mxu0 0.0
  %911 = vmatpush1.msra.mxu0 0.0
  %912 = vmatprep.subr.mxu0 0.0
  %913 = vmatpush1.msra.mxu0 0.0
  %914 = vmatprep.subr.mxu0 0.0
  %915 = vmatpush1.msra.mxu0 0.0
  %916 = vmatprep.subr.mxu0 0.0
  %917 = vmatpush1.msra.mxu0 0.0
  %918 = vmatprep.subr.mxu0 0.0
  %919 = vmatpush1.msra.mxu0 0.0
  %920 = vmatprep.subr.mxu0 0.0
  %921 = vmatpush1.msra.mxu0 0.0
  %922 = vmatprep.subr.mxu0 0.0
  %923 = vmatpush1.msra.mxu0 0.0
  %924 = vmatprep.subr.mxu0 0.0
  %925 = vmatpush1.msra.mxu0 0.0
  %926 = vmatprep.subr.mxu0 0.0
  %927 = vmatpush1.msra.mxu0 0.0
  %928 = vmatprep.subr.mxu0 0.0
  %929 = vmatpush1.msra.mxu0 0.0
  %930 = vmatprep.subr.mxu0 0.0
  %931 = vmatpush1.msra.mxu0 0.0
  %932 = vmatprep.subr.mxu0 0.0
  %933 = vmatpush1.msra.mxu0 0.0
  %934 = vmatprep.subr.mxu0 0.0
  %935 = vmatpush1.msra.mxu0 0.0
  %936 = vmatprep.subr.mxu0 0.0
  %937 = vmatpush1.msra.mxu0 0.0
  %938 = vmatprep.subr.mxu0 0.0
  %939 = vmatpush1.msra.mxu0 0.0
  %940 = vmatprep.subr.mxu0 0.0
  %941 = vmatpush1.msra.mxu0 0.0
  %942 = vmatprep.subr.mxu0 0.0
  %943 = vmatpush1.msra.mxu0 0.0
  %944 = vmatprep.subr.mxu0 0.0
  %945 = vmatpush1.msra.mxu0 0.0
  %946 = vmatprep.mubr.f32.mxu0 0.0
  %947 = vmatmul.mubr.f32.gmra.mrb[0].mxu0 %v880
  %v948 = vpop.f32.mrb[0].mxu0
  %v949 = vadd.f32 0.0, %v948
  %v950 = vpop.f32.mrb[0].mxu0
  %951 = vdwg.mxu0
  %v952 = vadd.f32 %v201, %v949
  %v953 = vtanh.pop %v952
  %v954 = vxor.u32 %v952, 2147483648
  %v955 = vmul.f32 %v954, 1.442695
  %v956 = vpow.pop %v955
  %v957 = vadd.f32 %v956, 1.0
  %v958 = vrcp.pop %v957
  %v959 = vmul.f32 1.0, %v958
  %v960 = vsel %vm61, %v953, %v959
  %v961 = vmul.f32 %v960, %v861
  %963 = vrot.lane.b32.xlu0 %v960, 64
  %v964 = vpop.permute.xlu0 %963
  %v966 = vmul.f32 %v960, %v964
  %968 = vrot.lane.b32.xlu0 %v966, 32
  %v969 = vpop.permute.xlu0 %968
  %v971 = vadd.f32 %v961, %v969
  %v972 = vtanh.pop %v971
  %974 = vrot.lane.b32.xlu0 %v972, 64
  %v975 = vpop.permute.xlu0 %974
  %v977 = vmul.f32 %v960, %v975
  %978 = vrot.lane.b32.xlu0 %v68, 96
  %v979 = vpop.permute.xlu0 %978
  %v981 = vadd.f32 %v977, %v979
  %983 = vrot.lane.b32.xlu0 %v981, 32
  %v984 = vpop.permute.xlu0 %983
  %986 = vst.msk [vmem:[#allocation2 + $0x30] sm:$0xff] %vm79, %v984
  %988 = vrot.lane.b32.xlu0 %v977, 32
  %v989 = vpop.permute.xlu0 %988
  %v990 = vsel %vm79, %v989, 0
  %992 = vmatprep.subr.mxu0 0.0
  %993 = vmatpush1.msra.mxu0 %v209
  %994 = vmatprep.subr.mxu0 0.0
  %995 = vmatpush1.msra.mxu0 %v210
  %996 = vmatprep.subr.mxu0 0.0
  %997 = vmatpush1.msra.mxu0 %v211
  %998 = vmatprep.subr.mxu0 0.0
  %999 = vmatpush1.msra.mxu0 %v212
  %1000 = vmatprep.subr.mxu0 0.0
  %1001 = vmatpush1.msra.mxu0 0.0
  %1002 = vmatprep.subr.mxu0 0.0
  %1003 = vmatpush1.msra.mxu0 0.0
  %1004 = vmatprep.subr.mxu0 0.0
  %1005 = vmatpush1.msra.mxu0 0.0
  %1006 = vmatprep.subr.mxu0 0.0
  %1007 = vmatpush1.msra.mxu0 0.0
  %1008 = vmatprep.subr.mxu0 0.0
  %1009 = vmatpush1.msra.mxu0 0.0
  %1010 = vmatprep.subr.mxu0 0.0
  %1011 = vmatpush1.msra.mxu0 0.0
  %1012 = vmatprep.subr.mxu0 0.0
  %1013 = vmatpush1.msra.mxu0 0.0
  %1014 = vmatprep.subr.mxu0 0.0
  %1015 = vmatpush1.msra.mxu0 0.0
  %1016 = vmatprep.subr.mxu0 0.0
  %1017 = vmatpush1.msra.mxu0 0.0
  %1018 = vmatprep.subr.mxu0 0.0
  %1019 = vmatpush1.msra.mxu0 0.0
  %1020 = vmatprep.subr.mxu0 0.0
  %1021 = vmatpush1.msra.mxu0 0.0
  %1022 = vmatprep.subr.mxu0 0.0
  %1023 = vmatpush1.msra.mxu0 0.0
  %1024 = vmatprep.subr.mxu0 0.0
  %1025 = vmatpush1.msra.mxu0 0.0
  %1026 = vmatprep.subr.mxu0 0.0
  %1027 = vmatpush1.msra.mxu0 0.0
  %1028 = vmatprep.subr.mxu0 0.0
  %1029 = vmatpush1.msra.mxu0 0.0
  %1030 = vmatprep.subr.mxu0 0.0
  %1031 = vmatpush1.msra.mxu0 0.0
  %1032 = vmatprep.subr.mxu0 0.0
  %1033 = vmatpush1.msra.mxu0 0.0
  %1034 = vmatprep.subr.mxu0 0.0
  %1035 = vmatpush1.msra.mxu0 0.0
  %1036 = vmatprep.subr.mxu0 0.0
  %1037 = vmatpush1.msra.mxu0 0.0
  %1038 = vmatprep.subr.mxu0 0.0
  %1039 = vmatpush1.msra.mxu0 0.0
  %1040 = vmatprep.subr.mxu0 0.0
  %1041 = vmatpush1.msra.mxu0 0.0
  %1042 = vmatprep.subr.mxu0 0.0
  %1043 = vmatpush1.msra.mxu0 0.0
  %1044 = vmatprep.subr.mxu0 0.0
  %1045 = vmatpush1.msra.mxu0 0.0
  %1046 = vmatprep.subr.mxu0 0.0
  %1047 = vmatpush1.msra.mxu0 0.0
  %1048 = vmatprep.subr.mxu0 0.0
  %1049 = vmatpush1.msra.mxu0 0.0
  %1050 = vmatprep.subr.mxu0 0.0
  %1051 = vmatpush1.msra.mxu0 0.0
  %1052 = vmatprep.subr.mxu0 0.0
  %1053 = vmatpush1.msra.mxu0 0.0
  %1054 = vmatprep.subr.mxu0 0.0
  %1055 = vmatpush1.msra.mxu0 0.0
  %1056 = vmatprep.mubr.f32.mxu0 0.0
  %1057 = vmatmul.mubr.f32.gmra.mrb[0].mxu0 %v990
  %v1058 = vpop.f32.mrb[0].mxu0
  %v1059 = vadd.f32 0.0, %v1058
  %v1060 = vpop.f32.mrb[0].mxu0
  %1061 = vdwg.mxu0
  %v1062 = vadd.f32 %v206, %v1059
  %v1063 = vtanh.pop %v1062
  %v1064 = vxor.u32 %v1062, 2147483648
  %v1065 = vmul.f32 %v1064, 1.442695
  %v1066 = vpow.pop %v1065
  %v1067 = vadd.f32 %v1066, 1.0
  %v1068 = vrcp.pop %v1067
  %v1069 = vmul.f32 1.0, %v1068
  %v1070 = vsel %vm61, %v1063, %v1069
  %v1071 = vmul.f32 %v1070, %v971
  %1073 = vrot.lane.b32.xlu0 %v1070, 64
  %v1074 = vpop.permute.xlu0 %1073
  %v1076 = vmul.f32 %v1070, %v1074
  %1078 = vrot.lane.b32.xlu0 %v1076, 32
  %v1079 = vpop.permute.xlu0 %1078
  %v1081 = vadd.f32 %v1071, %v1079
  %v1082 = vtanh.pop %v1081
  %1084 = vrot.lane.b32.xlu0 %v1082, 64
  %v1085 = vpop.permute.xlu0 %1084
  %v1087 = vmul.f32 %v1070, %v1085
  %1088 = vrot.lane.b32.xlu0 %v69, 96
  %v1089 = vpop.permute.xlu0 %1088
  %v1091 = vadd.f32 %v1087, %v1089
  %1093 = vrot.lane.b32.xlu0 %v1091, 32
  %v1094 = vpop.permute.xlu0 %1093
  %1096 = vst.msk [vmem:[#allocation2 + $0x38] sm:$0xff] %vm79, %v1094
  %1098 = vrot.lane.b32.xlu0 %v1087, 32
  %v1099 = vpop.permute.xlu0 %1098
  %1101 = vst.msk [vmem:[%s17] sm:$0xff] %vm79, %v1099
  %1103 = vrot.lane.b32.xlu0 %v1081, 96
  %v1104 = vpop.permute.xlu0 %1103
  %1106 = vst.msk [vmem:[%s18] sm:$0xff] %vm79, %v1104
  %v1107 = vld [vmem:[#allocation2] sm:$0xff]
  %v1108 = vld [vmem:[#allocation2 + $0x8] sm:$0xff]
  %v1109 = vld [vmem:[#allocation2 + $0x10] sm:$0xff]
  %v1110 = vld [vmem:[#allocation2 + $0x18] sm:$0xff]
  %v1111 = vld [vmem:[#allocation2 + $0x20] sm:$0xff]
  %v1112 = vld [vmem:[#allocation2 + $0x28] sm:$0xff]
  %v1113 = vld [vmem:[#allocation2 + $0x30] sm:$0xff]
  %v1114 = vld [vmem:[#allocation2 + $0x38] sm:$0xff]
  %v1115 = vld [vmem:[%s5 + $0x1] sm:$0x1]
  %v1116 = vld [vmem:[%s5 + $0x2] sm:$0x1]
  %v1117 = vld [vmem:[%s5 + $0x3] sm:$0x1]
  %v1118 = vld [vmem:[%s5 + $0x4] sm:$0x1]
  %v1119 = vld [vmem:[%s5 + $0x5] sm:$0x1]
  %v1120 = vld [vmem:[%s8] sm:$0xff]
  %v1121 = vld [vmem:[%s8 + $0x8] sm:$0xff]
  %v1122 = vld [vmem:[%s8 + $0x10] sm:$0xff]
  %v1123 = vld [vmem:[%s8 + $0x18] sm:$0xff]
  %v1124 = vlaneseq
  %v1125 = vshrl.u32 %v1124, 7
  %v1126 = vsub.s32 0, %v1125
  %v1127 = vrot.slane %v1115, %v1126
  %v1129 = vsel %vm79, %v1107, 0
  %v1132 = vsel %vm79, %v1108, 0
  %v1135 = vsel %vm79, %v1109, 0
  %v1138 = vsel %vm79, %v1110, 0
  %v1141 = vsel %vm79, %v1111, 0
  %v1144 = vsel %vm79, %v1112, 0
  %v1147 = vsel %vm79, %v1113, 0
  %v1150 = vsel %vm79, %v1114, 0
  %1152 = vmatprep.subr.mxu0 0.0
  %1153 = vmatpush1.msra.mxu0 %v1120
  %1154 = vmatprep.subr.mxu0 0.0
  %1155 = vmatpush1.msra.mxu0 %v1121
  %1156 = vmatprep.subr.mxu0 0.0
  %1157 = vmatpush1.msra.mxu0 %v1122
  %1158 = vmatprep.subr.mxu0 0.0
  %1159 = vmatpush1.msra.mxu0 %v1123
  %1160 = vmatprep.subr.mxu0 0.0
  %1161 = vmatpush1.msra.mxu0 0.0
  %1162 = vmatprep.subr.mxu0 0.0
  %1163 = vmatpush1.msra.mxu0 0.0
  %1164 = vmatprep.subr.mxu0 0.0
  %1165 = vmatpush1.msra.mxu0 0.0
  %1166 = vmatprep.subr.mxu0 0.0
  %1167 = vmatpush1.msra.mxu0 0.0
  %1168 = vmatprep.subr.mxu0 0.0
  %1169 = vmatpush1.msra.mxu0 0.0
  %1170 = vmatprep.subr.mxu0 0.0
  %1171 = vmatpush1.msra.mxu0 0.0
  %1172 = vmatprep.subr.mxu0 0.0
  %1173 = vmatpush1.msra.mxu0 0.0
  %1174 = vmatprep.subr.mxu0 0.0
  %1175 = vmatpush1.msra.mxu0 0.0
  %1176 = vmatprep.subr.mxu0 0.0
  %1177 = vmatpush1.msra.mxu0 0.0
  %1178 = vmatprep.subr.mxu0 0.0
  %1179 = vmatpush1.msra.mxu0 0.0
  %1180 = vmatprep.subr.mxu0 0.0
  %1181 = vmatpush1.msra.mxu0 0.0
  %1182 = vmatprep.subr.mxu0 0.0
  %1183 = vmatpush1.msra.mxu0 0.0
  %1184 = vmatprep.subr.mxu0 0.0
  %1185 = vmatpush1.msra.mxu0 0.0
  %1186 = vmatprep.subr.mxu0 0.0
  %1187 = vmatpush1.msra.mxu0 0.0
  %1188 = vmatprep.subr.mxu0 0.0
  %1189 = vmatpush1.msra.mxu0 0.0
  %1190 = vmatprep.subr.mxu0 0.0
  %1191 = vmatpush1.msra.mxu0 0.0
  %1192 = vmatprep.subr.mxu0 0.0
  %1193 = vmatpush1.msra.mxu0 0.0
  %1194 = vmatprep.subr.mxu0 0.0
  %1195 = vmatpush1.msra.mxu0 0.0
  %1196 = vmatprep.subr.mxu0 0.0
  %1197 = vmatpush1.msra.mxu0 0.0
  %1198 = vmatprep.subr.mxu0 0.0
  %1199 = vmatpush1.msra.mxu0 0.0
  %1200 = vmatprep.subr.mxu0 0.0
  %1201 = vmatpush1.msra.mxu0 0.0
  %1202 = vmatprep.subr.mxu0 0.0
  %1203 = vmatpush1.msra.mxu0 0.0
  %1204 = vmatprep.subr.mxu0 0.0
  %1205 = vmatpush1.msra.mxu0 0.0
  %1206 = vmatprep.subr.mxu0 0.0
  %1207 = vmatpush1.msra.mxu0 0.0
  %1208 = vmatprep.subr.mxu0 0.0
  %1209 = vmatpush1.msra.mxu0 0.0
  %1210 = vmatprep.subr.mxu0 0.0
  %1211 = vmatpush1.msra.mxu0 0.0
  %1212 = vmatprep.subr.mxu0 0.0
  %1213 = vmatpush1.msra.mxu0 0.0
  %1214 = vmatprep.subr.mxu0 0.0
  %1215 = vmatpush1.msra.mxu0 0.0
  %1216 = vmatprep.mubr.f32.mxu0 0.0
  %1217 = vmatmul.mubr.f32.gmra.mrb[0].mxu0 %v1129
  %v1218 = vpop.f32.mrb[0].mxu0
  %v1219 = vadd.f32 %v1127, %v1218
  %v1220 = vpop.f32.mrb[0].mxu0
  %1221 = vmatprep.mubr.f32.mxu0 0.0
  %1222 = vmatmul.mubr.f32.gmra.mrb[0].mxu0 %v1132
  %v1223 = vpop.f32.mrb[0].mxu0
  %v1224 = vadd.f32 %v1127, %v1223
  %v1225 = vpop.f32.mrb[0].mxu0
  %1226 = vmatprep.mubr.f32.mxu0 0.0
  %1227 = vmatmul.mubr.f32.gmra.mrb[0].mxu0 %v1135
  %v1228 = vpop.f32.mrb[0].mxu0
  %v1229 = vadd.f32 %v1127, %v1228
  %v1230 = vpop.f32.mrb[0].mxu0
  %1231 = vmatprep.mubr.f32.mxu0 0.0
  %1232 = vmatmul.mubr.f32.gmra.mrb[0].mxu0 %v1138
  %v1233 = vpop.f32.mrb[0].mxu0
  %v1234 = vadd.f32 %v1127, %v1233
  %v1235 = vpop.f32.mrb[0].mxu0
  %1236 = vmatprep.mubr.f32.mxu0 0.0
  %1237 = vmatmul.mubr.f32.gmra.mrb[0].mxu0 %v1141
  %v1238 = vpop.f32.mrb[0].mxu0
  %v1239 = vadd.f32 %v1127, %v1238
  %v1240 = vpop.f32.mrb[0].mxu0
  %1241 = vmatprep.mubr.f32.mxu0 0.0
  %1242 = vmatmul.mubr.f32.gmra.mrb[0].mxu0 %v1144
  %v1243 = vpop.f32.mrb[0].mxu0
  %v1244 = vadd.f32 %v1127, %v1243
  %v1245 = vpop.f32.mrb[0].mxu0
  %1246 = vmatprep.mubr.f32.mxu0 0.0
  %1247 = vmatmul.mubr.f32.gmra.mrb[0].mxu0 %v1147
  %v1248 = vpop.f32.mrb[0].mxu0
  %v1249 = vadd.f32 %v1127, %v1248
  %v1250 = vpop.f32.mrb[0].mxu0
  %1251 = vmatprep.mubr.f32.mxu0 0.0
  %1252 = vmatmul.mubr.f32.gmra.mrb[0].mxu0 %v1150
  %v1253 = vpop.f32.mrb[0].mxu0
  %v1254 = vadd.f32 %v1127, %v1253
  %v1255 = vpop.f32.mrb[0].mxu0
  %1256 = vdwg.mxu0
  %v1257 = vld [vmem:[%s1] sm:$0xff]
  %v1258 = vld [vmem:[%s1 + $0x8] sm:$0xff]
  %v1259 = vld [vmem:[%s1 + $0x10] sm:$0xff]
  %v1260 = vld [vmem:[%s1 + $0x18] sm:$0xff]
  %v1261 = vld [vmem:[%s1 + $0x20] sm:$0xff]
  %v1262 = vld [vmem:[%s1 + $0x28] sm:$0xff]
  %v1263 = vld [vmem:[%s1 + $0x30] sm:$0xff]
  %v1264 = vld [vmem:[%s1 + $0x38] sm:$0xff]
  %v1265 = vld [vmem:[%s1 + $0x40] sm:$0xff]
  %v1266 = vld [vmem:[%s1 + $0x48] sm:$0xff]
  %v1267 = vld [vmem:[%s1 + $0x50] sm:$0xff]
  %v1268 = vld [vmem:[%s1 + $0x58] sm:$0xff]
  %v1269 = vld [vmem:[%s1 + $0x60] sm:$0xff]
  %v1270 = vld [vmem:[%s1 + $0x68] sm:$0xff]
  %v1271 = vld [vmem:[%s1 + $0x70] sm:$0xff]
  %v1272 = vld [vmem:[%s1 + $0x78] sm:$0xff]
  %v1273 = vld [vmem:[%s9] sm:$0xff]
  %v1274 = vld [vmem:[%s9 + $0x8] sm:$0xff]
  %v1275 = vld [vmem:[%s9 + $0x10] sm:$0xff]
  %v1276 = vld [vmem:[%s9 + $0x18] sm:$0xff]
  %v1277 = vlaneseq
  %v1278 = vshrl.u32 %v1277, 7
  %v1279 = vsub.s32 0, %v1278
  %v1280 = vrot.slane %v1116, %v1279
  %v1282 = vsel %vm79, %v1257, 0
  %v1285 = vsel %vm79, %v1258, 0
  %v1288 = vsel %vm79, %v1259, 0
  %v1291 = vsel %vm79, %v1260, 0
  %v1294 = vsel %vm79, %v1261, 0
  %v1297 = vsel %vm79, %v1262, 0
  %v1300 = vsel %vm79, %v1263, 0
  %v1303 = vsel %vm79, %v1264, 0
  %v1306 = vsel %vm79, %v1265, 0
  %v1309 = vsel %vm79, %v1266, 0
  %v1312 = vsel %vm79, %v1267, 0
  %v1315 = vsel %vm79, %v1268, 0
  %v1318 = vsel %vm79, %v1269, 0
  %v1321 = vsel %vm79, %v1270, 0
  %v1324 = vsel %vm79, %v1271, 0
  %v1327 = vsel %vm79, %v1272, 0
  %1329 = vmatprep.subr.mxu0 0.0
  %1330 = vmatpush1.msra.mxu0 %v1273
  %1331 = vmatprep.subr.mxu0 0.0
  %1332 = vmatpush1.msra.mxu0 %v1274
  %1333 = vmatprep.subr.mxu0 0.0
  %1334 = vmatpush1.msra.mxu0 %v1275
  %1335 = vmatprep.subr.mxu0 0.0
  %1336 = vmatpush1.msra.mxu0 %v1276
  %1337 = vmatprep.subr.mxu0 0.0
  %1338 = vmatpush1.msra.mxu0 0.0
  %1339 = vmatprep.subr.mxu0 0.0
  %1340 = vmatpush1.msra.mxu0 0.0
  %1341 = vmatprep.subr.mxu0 0.0
  %1342 = vmatpush1.msra.mxu0 0.0
  %1343 = vmatprep.subr.mxu0 0.0
  %1344 = vmatpush1.msra.mxu0 0.0
  %1345 = vmatprep.subr.mxu0 0.0
  %1346 = vmatpush1.msra.mxu0 0.0
  %1347 = vmatprep.subr.mxu0 0.0
  %1348 = vmatpush1.msra.mxu0 0.0
  %1349 = vmatprep.subr.mxu0 0.0
  %1350 = vmatpush1.msra.mxu0 0.0
  %1351 = vmatprep.subr.mxu0 0.0
  %1352 = vmatpush1.msra.mxu0 0.0
  %1353 = vmatprep.subr.mxu0 0.0
  %1354 = vmatpush1.msra.mxu0 0.0
  %1355 = vmatprep.subr.mxu0 0.0
  %1356 = vmatpush1.msra.mxu0 0.0
  %1357 = vmatprep.subr.mxu0 0.0
  %1358 = vmatpush1.msra.mxu0 0.0
  %1359 = vmatprep.subr.mxu0 0.0
  %1360 = vmatpush1.msra.mxu0 0.0
  %1361 = vmatprep.subr.mxu0 0.0
  %1362 = vmatpush1.msra.mxu0 0.0
  %1363 = vmatprep.subr.mxu0 0.0
  %1364 = vmatpush1.msra.mxu0 0.0
  %1365 = vmatprep.subr.mxu0 0.0
  %1366 = vmatpush1.msra.mxu0 0.0
  %1367 = vmatprep.subr.mxu0 0.0
  %1368 = vmatpush1.msra.mxu0 0.0
  %1369 = vmatprep.subr.mxu0 0.0
  %1370 = vmatpush1.msra.mxu0 0.0
  %1371 = vmatprep.subr.mxu0 0.0
  %1372 = vmatpush1.msra.mxu0 0.0
  %1373 = vmatprep.subr.mxu0 0.0
  %1374 = vmatpush1.msra.mxu0 0.0
  %1375 = vmatprep.subr.mxu0 0.0
  %1376 = vmatpush1.msra.mxu0 0.0
  %1377 = vmatprep.subr.mxu0 0.0
  %1378 = vmatpush1.msra.mxu0 0.0
  %1379 = vmatprep.subr.mxu0 0.0
  %1380 = vmatpush1.msra.mxu0 0.0
  %1381 = vmatprep.subr.mxu0 0.0
  %1382 = vmatpush1.msra.mxu0 0.0
  %1383 = vmatprep.subr.mxu0 0.0
  %1384 = vmatpush1.msra.mxu0 0.0
  %1385 = vmatprep.subr.mxu0 0.0
  %1386 = vmatpush1.msra.mxu0 0.0
  %1387 = vmatprep.subr.mxu0 0.0
  %1388 = vmatpush1.msra.mxu0 0.0
  %1389 = vmatprep.subr.mxu0 0.0
  %1390 = vmatpush1.msra.mxu0 0.0
  %1391 = vmatprep.subr.mxu0 0.0
  %1392 = vmatpush1.msra.mxu0 0.0
  %1393 = vmatprep.mubr.f32.mxu0 0.0
  %1394 = vmatmul.mubr.f32.gmra.mrb[0].mxu0 %v1282
  %v1395 = vpop.f32.mrb[0].mxu0
  %v1396 = vadd.f32 %v1280, %v1395
  %v1397 = vpop.f32.mrb[0].mxu0
  %1398 = vmatprep.mubr.f32.mxu0 0.0
  %1399 = vmatmul.mubr.f32.gmra.mrb[0].mxu0 %v1285
  %v1400 = vpop.f32.mrb[0].mxu0
  %v1401 = vadd.f32 %v1280, %v1400
  %v1402 = vpop.f32.mrb[0].mxu0
  %1403 = vmatprep.mubr.f32.mxu0 0.0
  %1404 = vmatmul.mubr.f32.gmra.mrb[0].mxu0 %v1288
  %v1405 = vpop.f32.mrb[0].mxu0
  %v1406 = vadd.f32 %v1280, %v1405
  %v1407 = vpop.f32.mrb[0].mxu0
  %1408 = vmatprep.mubr.f32.mxu0 0.0
  %1409 = vmatmul.mubr.f32.gmra.mrb[0].mxu0 %v1291
  %v1410 = vpop.f32.mrb[0].mxu0
  %v1411 = vadd.f32 %v1280, %v1410
  %v1412 = vpop.f32.mrb[0].mxu0
  %1413 = vmatprep.mubr.f32.mxu0 0.0
  %1414 = vmatmul.mubr.f32.gmra.mrb[0].mxu0 %v1294
  %v1415 = vpop.f32.mrb[0].mxu0
  %v1416 = vadd.f32 %v1280, %v1415
  %v1417 = vpop.f32.mrb[0].mxu0
  %1418 = vmatprep.mubr.f32.mxu0 0.0
  %1419 = vmatmul.mubr.f32.gmra.mrb[0].mxu0 %v1297
  %v1420 = vpop.f32.mrb[0].mxu0
  %v1421 = vadd.f32 %v1280, %v1420
  %v1422 = vpop.f32.mrb[0].mxu0
  %1423 = vmatprep.mubr.f32.mxu0 0.0
  %1424 = vmatmul.mubr.f32.gmra.mrb[0].mxu0 %v1300
  %v1425 = vpop.f32.mrb[0].mxu0
  %v1426 = vadd.f32 %v1280, %v1425
  %v1427 = vpop.f32.mrb[0].mxu0
  %1428 = vmatprep.mubr.f32.mxu0 0.0
  %1429 = vmatmul.mubr.f32.gmra.mrb[0].mxu0 %v1303
  %v1430 = vpop.f32.mrb[0].mxu0
  %v1431 = vadd.f32 %v1280, %v1430
  %v1432 = vpop.f32.mrb[0].mxu0
  %1433 = vmatprep.mubr.f32.mxu0 0.0
  %1434 = vmatmul.mubr.f32.gmra.mrb[0].mxu0 %v1306
  %v1435 = vpop.f32.mrb[0].mxu0
  %v1436 = vadd.f32 %v1280, %v1435
  %v1437 = vpop.f32.mrb[0].mxu0
  %1438 = vmatprep.mubr.f32.mxu0 0.0
  %1439 = vmatmul.mubr.f32.gmra.mrb[0].mxu0 %v1309
  %v1440 = vpop.f32.mrb[0].mxu0
  %v1441 = vadd.f32 %v1280, %v1440
  %v1442 = vpop.f32.mrb[0].mxu0
  %1443 = vmatprep.mubr.f32.mxu0 0.0
  %1444 = vmatmul.mubr.f32.gmra.mrb[0].mxu0 %v1312
  %v1445 = vpop.f32.mrb[0].mxu0
  %v1446 = vadd.f32 %v1280, %v1445
  %v1447 = vpop.f32.mrb[0].mxu0
  %1448 = vmatprep.mubr.f32.mxu0 0.0
  %1449 = vmatmul.mubr.f32.gmra.mrb[0].mxu0 %v1315
  %v1450 = vpop.f32.mrb[0].mxu0
  %v1451 = vadd.f32 %v1280, %v1450
  %v1452 = vpop.f32.mrb[0].mxu0
  %1453 = vmatprep.mubr.f32.mxu0 0.0
  %1454 = vmatmul.mubr.f32.gmra.mrb[0].mxu0 %v1318
  %v1455 = vpop.f32.mrb[0].mxu0
  %v1456 = vadd.f32 %v1280, %v1455
  %v1457 = vpop.f32.mrb[0].mxu0
  %1458 = vmatprep.mubr.f32.mxu0 0.0
  %1459 = vmatmul.mubr.f32.gmra.mrb[0].mxu0 %v1321
  %v1460 = vpop.f32.mrb[0].mxu0
  %v1461 = vadd.f32 %v1280, %v1460
  %v1462 = vpop.f32.mrb[0].mxu0
  %1463 = vmatprep.mubr.f32.mxu0 0.0
  %1464 = vmatmul.mubr.f32.gmra.mrb[0].mxu0 %v1324
  %v1465 = vpop.f32.mrb[0].mxu0
  %v1466 = vadd.f32 %v1280, %v1465
  %v1467 = vpop.f32.mrb[0].mxu0
  %1468 = vmatprep.mubr.f32.mxu0 0.0
  %1469 = vmatmul.mubr.f32.gmra.mrb[0].mxu0 %v1327
  %v1470 = vpop.f32.mrb[0].mxu0
  %v1471 = vadd.f32 %v1280, %v1470
  %v1472 = vpop.f32.mrb[0].mxu0
  %1473 = vdwg.mxu0
  %v1474 = vld [vmem:[%s10] sm:$0xff]
  %v1475 = vld [vmem:[%s10 + $0x8] sm:$0xff]
  %v1476 = vld [vmem:[%s10 + $0x10] sm:$0xff]
  %v1477 = vld [vmem:[%s10 + $0x18] sm:$0xff]
  %v1478 = vlaneseq
  %v1479 = vshrl.u32 %v1478, 7
  %v1480 = vsub.s32 0, %v1479
  %v1481 = vrot.slane %v1117, %v1480
  %1482 = vmatprep.subr.mxu0 0.0
  %1483 = vmatpush1.msra.mxu0 %v1474
  %1484 = vmatprep.subr.mxu0 0.0
  %1485 = vmatpush1.msra.mxu0 %v1475
  %1486 = vmatprep.subr.mxu0 0.0
  %1487 = vmatpush1.msra.mxu0 %v1476
  %1488 = vmatprep.subr.mxu0 0.0
  %1489 = vmatpush1.msra.mxu0 %v1477
  %1490 = vmatprep.subr.mxu0 0.0
  %1491 = vmatpush1.msra.mxu0 0.0
  %1492 = vmatprep.subr.mxu0 0.0
  %1493 = vmatpush1.msra.mxu0 0.0
  %1494 = vmatprep.subr.mxu0 0.0
  %1495 = vmatpush1.msra.mxu0 0.0
  %1496 = vmatprep.subr.mxu0 0.0
  %1497 = vmatpush1.msra.mxu0 0.0
  %1498 = vmatprep.subr.mxu0 0.0
  %1499 = vmatpush1.msra.mxu0 0.0
  %1500 = vmatprep.subr.mxu0 0.0
  %1501 = vmatpush1.msra.mxu0 0.0
  %1502 = vmatprep.subr.mxu0 0.0
  %1503 = vmatpush1.msra.mxu0 0.0
  %1504 = vmatprep.subr.mxu0 0.0
  %1505 = vmatpush1.msra.mxu0 0.0
  %1506 = vmatprep.subr.mxu0 0.0
  %1507 = vmatpush1.msra.mxu0 0.0
  %1508 = vmatprep.subr.mxu0 0.0
  %1509 = vmatpush1.msra.mxu0 0.0
  %1510 = vmatprep.subr.mxu0 0.0
  %1511 = vmatpush1.msra.mxu0 0.0
  %1512 = vmatprep.subr.mxu0 0.0
  %1513 = vmatpush1.msra.mxu0 0.0
  %1514 = vmatprep.subr.mxu0 0.0
  %1515 = vmatpush1.msra.mxu0 0.0
  %1516 = vmatprep.subr.mxu0 0.0
  %1517 = vmatpush1.msra.mxu0 0.0
  %1518 = vmatprep.subr.mxu0 0.0
  %1519 = vmatpush1.msra.mxu0 0.0
  %1520 = vmatprep.subr.mxu0 0.0
  %1521 = vmatpush1.msra.mxu0 0.0
  %1522 = vmatprep.subr.mxu0 0.0
  %1523 = vmatpush1.msra.mxu0 0.0
  %1524 = vmatprep.subr.mxu0 0.0
  %1525 = vmatpush1.msra.mxu0 0.0
  %1526 = vmatprep.subr.mxu0 0.0
  %1527 = vmatpush1.msra.mxu0 0.0
  %1528 = vmatprep.subr.mxu0 0.0
  %1529 = vmatpush1.msra.mxu0 0.0
  %1530 = vmatprep.subr.mxu0 0.0
  %1531 = vmatpush1.msra.mxu0 0.0
  %1532 = vmatprep.subr.mxu0 0.0
  %1533 = vmatpush1.msra.mxu0 0.0
  %1534 = vmatprep.subr.mxu0 0.0
  %1535 = vmatpush1.msra.mxu0 0.0
  %1536 = vmatprep.subr.mxu0 0.0
  %1537 = vmatpush1.msra.mxu0 0.0
  %1538 = vmatprep.subr.mxu0 0.0
  %1539 = vmatpush1.msra.mxu0 0.0
  %1540 = vmatprep.subr.mxu0 0.0
  %1541 = vmatpush1.msra.mxu0 0.0
  %1542 = vmatprep.subr.mxu0 0.0
  %1543 = vmatpush1.msra.mxu0 0.0
  %1544 = vmatprep.subr.mxu0 0.0
  %1545 = vmatpush1.msra.mxu0 0.0
  %1546 = vmatprep.mubr.f32.mxu0 0.0
  %1547 = vmatmul.mubr.f32.gmra.mrb[0].mxu0 %v1282
  %v1548 = vpop.f32.mrb[0].mxu0
  %v1549 = vadd.f32 %v1481, %v1548
  %v1550 = vpop.f32.mrb[0].mxu0
  %1551 = vmatprep.mubr.f32.mxu0 0.0
  %1552 = vmatmul.mubr.f32.gmra.mrb[0].mxu0 %v1285
  %v1553 = vpop.f32.mrb[0].mxu0
  %v1554 = vadd.f32 %v1481, %v1553
  %v1555 = vpop.f32.mrb[0].mxu0
  %1556 = vmatprep.mubr.f32.mxu0 0.0
  %1557 = vmatmul.mubr.f32.gmra.mrb[0].mxu0 %v1288
  %v1558 = vpop.f32.mrb[0].mxu0
  %v1559 = vadd.f32 %v1481, %v1558
  %v1560 = vpop.f32.mrb[0].mxu0
  %1561 = vmatprep.mubr.f32.mxu0 0.0
  %1562 = vmatmul.mubr.f32.gmra.mrb[0].mxu0 %v1291
  %v1563 = vpop.f32.mrb[0].mxu0
  %v1564 = vadd.f32 %v1481, %v1563
  %v1565 = vpop.f32.mrb[0].mxu0
  %1566 = vmatprep.mubr.f32.mxu0 0.0
  %1567 = vmatmul.mubr.f32.gmra.mrb[0].mxu0 %v1294
  %v1568 = vpop.f32.mrb[0].mxu0
  %v1569 = vadd.f32 %v1481, %v1568
  %v1570 = vpop.f32.mrb[0].mxu0
  %1571 = vmatprep.mubr.f32.mxu0 0.0
  %1572 = vmatmul.mubr.f32.gmra.mrb[0].mxu0 %v1297
  %v1573 = vpop.f32.mrb[0].mxu0
  %v1574 = vadd.f32 %v1481, %v1573
  %v1575 = vpop.f32.mrb[0].mxu0
  %1576 = vmatprep.mubr.f32.mxu0 0.0
  %1577 = vmatmul.mubr.f32.gmra.mrb[0].mxu0 %v1300
  %v1578 = vpop.f32.mrb[0].mxu0
  %v1579 = vadd.f32 %v1481, %v1578
  %v1580 = vpop.f32.mrb[0].mxu0
  %1581 = vmatprep.mubr.f32.mxu0 0.0
  %1582 = vmatmul.mubr.f32.gmra.mrb[0].mxu0 %v1303
  %v1583 = vpop.f32.mrb[0].mxu0
  %v1584 = vadd.f32 %v1481, %v1583
  %v1585 = vpop.f32.mrb[0].mxu0
  %1586 = vmatprep.mubr.f32.mxu0 0.0
  %1587 = vmatmul.mubr.f32.gmra.mrb[0].mxu0 %v1306
  %v1588 = vpop.f32.mrb[0].mxu0
  %v1589 = vadd.f32 %v1481, %v1588
  %v1590 = vpop.f32.mrb[0].mxu0
  %1591 = vmatprep.mubr.f32.mxu0 0.0
  %1592 = vmatmul.mubr.f32.gmra.mrb[0].mxu0 %v1309
  %v1593 = vpop.f32.mrb[0].mxu0
  %v1594 = vadd.f32 %v1481, %v1593
  %v1595 = vpop.f32.mrb[0].mxu0
  %1596 = vmatprep.mubr.f32.mxu0 0.0
  %1597 = vmatmul.mubr.f32.gmra.mrb[0].mxu0 %v1312
  %v1598 = vpop.f32.mrb[0].mxu0
  %v1599 = vadd.f32 %v1481, %v1598
  %v1600 = vpop.f32.mrb[0].mxu0
  %1601 = vmatprep.mubr.f32.mxu0 0.0
  %1602 = vmatmul.mubr.f32.gmra.mrb[0].mxu0 %v1315
  %v1603 = vpop.f32.mrb[0].mxu0
  %v1604 = vadd.f32 %v1481, %v1603
  %v1605 = vpop.f32.mrb[0].mxu0
  %1606 = vmatprep.mubr.f32.mxu0 0.0
  %1607 = vmatmul.mubr.f32.gmra.mrb[0].mxu0 %v1318
  %v1608 = vpop.f32.mrb[0].mxu0
  %v1609 = vadd.f32 %v1481, %v1608
  %v1610 = vpop.f32.mrb[0].mxu0
  %1611 = vmatprep.mubr.f32.mxu0 0.0
  %1612 = vmatmul.mubr.f32.gmra.mrb[0].mxu0 %v1321
  %v1613 = vpop.f32.mrb[0].mxu0
  %v1614 = vadd.f32 %v1481, %v1613
  %v1615 = vpop.f32.mrb[0].mxu0
  %1616 = vmatprep.mubr.f32.mxu0 0.0
  %1617 = vmatmul.mubr.f32.gmra.mrb[0].mxu0 %v1324
  %v1618 = vpop.f32.mrb[0].mxu0
  %v1619 = vadd.f32 %v1481, %v1618
  %v1620 = vpop.f32.mrb[0].mxu0
  %1621 = vmatprep.mubr.f32.mxu0 0.0
  %1622 = vmatmul.mubr.f32.gmra.mrb[0].mxu0 %v1327
  %v1623 = vpop.f32.mrb[0].mxu0
  %v1624 = vadd.f32 %v1481, %v1623
  %v1625 = vpop.f32.mrb[0].mxu0
  %1626 = vdwg.mxu0
  %v1628 = vcombine.high %v1219, %v1219
  %v1630 = vunpack.c.l.s4 1966171168
  %v1631 = vunpack.c.0.s8 %v1630
  %v1632 = vlaneseq
  %v1633 = vshrl.u32 %v1632, 7
  %v1634 = vsub.s32 %v1631, %v1633
  %v1635 = vrot.slane %v1219, %v1634
  %v1637 = vunpack.c.l.s4 1966171168
  %v1638 = vunpack.c.0.s8 %v1637
  %v1639 = vlaneseq
  %v1640 = vshrl.u32 %v1639, 7
  %v1641 = vsub.s32 %v1638, %v1640
  %v1642 = vrot.slane %v1628, %v1641
  %v1643 = vcombine.high %v1635, %v1635
  %v1644 = vcombine.high %v1642, %v1642
  %v1646 = vunpack.c.l.s4 1966171168
  %v1647 = vunpack.c.0.s8 %v1646
  %v1648 = vlaneseq
  %v1649 = vshrl.u32 %v1648, 7
  %v1650 = vsub.s32 %v1647, %v1649
  %v1651 = vrot.slane %v1635, %v1650
  %v1653 = vunpack.c.l.s4 1966171168
  %v1654 = vunpack.c.0.s8 %v1653
  %v1655 = vlaneseq
  %v1656 = vshrl.u32 %v1655, 7
  %v1657 = vsub.s32 %v1654, %v1656
  %v1658 = vrot.slane %v1642, %v1657
  %v1660 = vunpack.c.l.s4 1966171168
  %v1661 = vunpack.c.0.s8 %v1660
  %v1662 = vlaneseq
  %v1663 = vshrl.u32 %v1662, 7
  %v1664 = vsub.s32 %v1661, %v1663
  %v1665 = vrot.slane %v1643, %v1664
  %v1667 = vunpack.c.l.s4 1966171168
  %v1668 = vunpack.c.0.s8 %v1667
  %v1669 = vlaneseq
  %v1670 = vshrl.u32 %v1669, 7
  %v1671 = vsub.s32 %v1668, %v1670
  %v1672 = vrot.slane %v1644, %v1671
  %v1673 = vcombine.high %v1651, %v1651
  %v1674 = vcombine.high %v1658, %v1658
  %v1675 = vcombine.high %v1665, %v1665
  %v1676 = vcombine.high %v1672, %v1672
  %v1677 = vlaneseq
  %v1678 = vshrl.u32 %v1677, 7
  %v1679 = vsub.s32 0, %v1678
  %v1680 = vrot.slane %v1651, %v1679
  %v1681 = vlaneseq
  %v1682 = vshrl.u32 %v1681, 7
  %v1683 = vsub.s32 0, %v1682
  %v1684 = vrot.slane %v1665, %v1683
  %v1685 = vlaneseq
  %v1686 = vshrl.u32 %v1685, 7
  %v1687 = vsub.s32 0, %v1686
  %v1688 = vrot.slane %v1673, %v1687
  %v1689 = vlaneseq
  %v1690 = vshrl.u32 %v1689, 7
  %v1691 = vsub.s32 0, %v1690
  %v1692 = vrot.slane %v1675, %v1691
  %v1693 = vlaneseq
  %v1694 = vshrl.u32 %v1693, 7
  %v1695 = vsub.s32 0, %v1694
  %v1696 = vrot.slane %v1658, %v1695
  %v1697 = vlaneseq
  %v1698 = vshrl.u32 %v1697, 7
  %v1699 = vsub.s32 0, %v1698
  %v1700 = vrot.slane %v1672, %v1699
  %v1701 = vlaneseq
  %v1702 = vshrl.u32 %v1701, 7
  %v1703 = vsub.s32 0, %v1702
  %v1704 = vrot.slane %v1674, %v1703
  %v1705 = vlaneseq
  %v1706 = vshrl.u32 %v1705, 7
  %v1707 = vsub.s32 0, %v1706
  %v1708 = vrot.slane %v1676, %v1707
  %v1717 = vadd.f32 %v1680, %v1396
  %v1718 = vadd.f32 %v1680, %v1401
  %v1719 = vadd.f32 %v1684, %v1406
  %v1720 = vadd.f32 %v1684, %v1411
  %v1721 = vadd.f32 %v1688, %v1416
  %v1722 = vadd.f32 %v1688, %v1421
  %v1723 = vadd.f32 %v1692, %v1426
  %v1724 = vadd.f32 %v1692, %v1431
  %v1725 = vadd.f32 %v1696, %v1436
  %v1726 = vadd.f32 %v1696, %v1441
  %v1727 = vadd.f32 %v1700, %v1446
  %v1728 = vadd.f32 %v1700, %v1451
  %v1729 = vadd.f32 %v1704, %v1456
  %v1730 = vadd.f32 %v1704, %v1461
  %v1731 = vadd.f32 %v1708, %v1466
  %v1732 = vadd.f32 %v1708, %v1471
  %v1733 = vtanh.pop %v1717
  %v1734 = vtanh.pop %v1718
  %v1735 = vtanh.pop %v1719
  %v1736 = vtanh.pop %v1720
  %v1737 = vtanh.pop %v1721
  %v1738 = vtanh.pop %v1722
  %v1739 = vtanh.pop %v1723
  %v1740 = vtanh.pop %v1724
  %v1741 = vtanh.pop %v1725
  %v1742 = vtanh.pop %v1726
  %v1743 = vtanh.pop %v1727
  %v1744 = vtanh.pop %v1728
  %v1745 = vtanh.pop %v1729
  %v1746 = vtanh.pop %v1730
  %v1747 = vtanh.pop %v1731
  %v1748 = vtanh.pop %v1732
  %v1749 = vlaneseq
  %v1750 = vshrl.u32 %v1749, 7
  %v1751 = vsub.s32 0, %v1750
  %v1752 = vrot.slane %v1118, %v1751
  %v1753 = vmul.f32 %v1733, %v1752
  %v1754 = vmul.f32 %v1734, %v1752
  %v1755 = vmul.f32 %v1735, %v1752
  %v1756 = vmul.f32 %v1736, %v1752
  %v1757 = vmul.f32 %v1737, %v1752
  %v1758 = vmul.f32 %v1738, %v1752
  %v1759 = vmul.f32 %v1739, %v1752
  %v1760 = vmul.f32 %v1740, %v1752
  %v1761 = vmul.f32 %v1741, %v1752
  %v1762 = vmul.f32 %v1742, %v1752
  %v1763 = vmul.f32 %v1743, %v1752
  %v1764 = vmul.f32 %v1744, %v1752
  %v1765 = vmul.f32 %v1745, %v1752
  %v1766 = vmul.f32 %v1746, %v1752
  %v1767 = vmul.f32 %v1747, %v1752
  %v1768 = vmul.f32 %v1748, %v1752
  %v1769 = vsel %vm79, %v1753, 0.0
  %1770 = vadd.xlane.f32.xlu0 %v1769
  %v1771 = vpop.xlane.xlu0 %1770
  %v1772 = vsel %vm79, %v1754, 0.0
  %1773 = vadd.xlane.f32.xlu0 %v1772
  %v1774 = vpop.xlane.xlu0 %1773
  %v1775 = vsel %vm79, %v1755, 0.0
  %1776 = vadd.xlane.f32.xlu0 %v1775
  %v1777 = vpop.xlane.xlu0 %1776
  %v1778 = vsel %vm79, %v1756, 0.0
  %1779 = vadd.xlane.f32.xlu0 %v1778
  %v1780 = vpop.xlane.xlu0 %1779
  %v1781 = vsel %vm79, %v1757, 0.0
  %1782 = vadd.xlane.f32.xlu0 %v1781
  %v1783 = vpop.xlane.xlu0 %1782
  %v1784 = vsel %vm79, %v1758, 0.0
  %1785 = vadd.xlane.f32.xlu0 %v1784
  %v1786 = vpop.xlane.xlu0 %1785
  %v1787 = vsel %vm79, %v1759, 0.0
  %1788 = vadd.xlane.f32.xlu0 %v1787
  %v1789 = vpop.xlane.xlu0 %1788
  %v1790 = vsel %vm79, %v1760, 0.0
  %1791 = vadd.xlane.f32.xlu0 %v1790
  %v1792 = vpop.xlane.xlu0 %1791
  %v1793 = vsel %vm79, %v1761, 0.0
  %1794 = vadd.xlane.f32.xlu0 %v1793
  %v1795 = vpop.xlane.xlu0 %1794
  %v1796 = vsel %vm79, %v1762, 0.0
  %1797 = vadd.xlane.f32.xlu0 %v1796
  %v1798 = vpop.xlane.xlu0 %1797
  %v1799 = vsel %vm79, %v1763, 0.0
  %1800 = vadd.xlane.f32.xlu0 %v1799
  %v1801 = vpop.xlane.xlu0 %1800
  %v1802 = vsel %vm79, %v1764, 0.0
  %1803 = vadd.xlane.f32.xlu0 %v1802
  %v1804 = vpop.xlane.xlu0 %1803
  %v1805 = vsel %vm79, %v1765, 0.0
  %1806 = vadd.xlane.f32.xlu0 %v1805
  %v1807 = vpop.xlane.xlu0 %1806
  %v1808 = vsel %vm79, %v1766, 0.0
  %1809 = vadd.xlane.f32.xlu0 %v1808
  %v1810 = vpop.xlane.xlu0 %1809
  %v1811 = vsel %vm79, %v1767, 0.0
  %1812 = vadd.xlane.f32.xlu0 %v1811
  %v1813 = vpop.xlane.xlu0 %1812
  %v1814 = vsel %vm79, %v1768, 0.0
  %1815 = vadd.xlane.f32.xlu0 %v1814
  %v1816 = vpop.xlane.xlu0 %1815
  %s1818 = vtos %v1119
  %v1819 = vstv %s1818
  %v1821 = vadd.f32 %v1771, %v1819
  %v1822 = vadd.f32 %v1774, %v1819
  %v1823 = vadd.f32 %v1777, %v1819
  %v1824 = vadd.f32 %v1780, %v1819
  %v1825 = vadd.f32 %v1783, %v1819
  %v1826 = vadd.f32 %v1786, %v1819
  %v1827 = vadd.f32 %v1789, %v1819
  %v1828 = vadd.f32 %v1792, %v1819
  %v1829 = vadd.f32 %v1795, %v1819
  %v1830 = vadd.f32 %v1798, %v1819
  %v1831 = vadd.f32 %v1801, %v1819
  %v1832 = vadd.f32 %v1804, %v1819
  %v1833 = vadd.f32 %v1807, %v1819
  %v1834 = vadd.f32 %v1810, %v1819
  %v1835 = vadd.f32 %v1813, %v1819
  %v1836 = vadd.f32 %v1816, %v1819
  %v1837 = vld [vmem:[%s2] sm:$0xff]
  %v1839 = vlaneseq
  %v1840 = vshrl.u32 %v1839, 7
  %v1841 = vsub.s32 0, %v1840
  %v1842 = vrot.slane %v1837, %v1841
  %1844 = vbcast.lane.b32.xlu0 %v1842, 256
  %v1845 = vpop.permute.xlu0 %1844
  %s1847 = sor.u32 256, 8
  %1848 = vbcast.lane.b32.xlu0 %v1842, %s1847
  %v1849 = vpop.permute.xlu0 %1848
  %v1850 = vlaneseq
  %v1851 = vshrl.u32 %v1850, 7
  %v1852 = vsub.s32 1, %v1851
  %v1853 = vrot.slane %v1837, %v1852
  %1855 = vbcast.lane.b32.xlu0 %v1853, 256
  %v1856 = vpop.permute.xlu0 %1855
  %s1858 = sor.u32 256, 8
  %1859 = vbcast.lane.b32.xlu0 %v1853, %s1858
  %v1860 = vpop.permute.xlu0 %1859
  %v1861 = vlaneseq
  %v1862 = vshrl.u32 %v1861, 7
  %v1863 = vsub.s32 2, %v1862
  %v1864 = vrot.slane %v1837, %v1863
  %1866 = vbcast.lane.b32.xlu0 %v1864, 256
  %v1867 = vpop.permute.xlu0 %1866
  %s1869 = sor.u32 256, 8
  %1870 = vbcast.lane.b32.xlu0 %v1864, %s1869
  %v1871 = vpop.permute.xlu0 %1870
  %v1872 = vlaneseq
  %v1873 = vshrl.u32 %v1872, 7
  %v1874 = vsub.s32 3, %v1873
  %v1875 = vrot.slane %v1837, %v1874
  %1877 = vbcast.lane.b32.xlu0 %v1875, 256
  %v1878 = vpop.permute.xlu0 %1877
  %s1880 = sor.u32 256, 8
  %1881 = vbcast.lane.b32.xlu0 %v1875, %s1880
  %v1882 = vpop.permute.xlu0 %1881
  %v1883 = vlaneseq
  %v1884 = vshrl.u32 %v1883, 7
  %v1885 = vsub.s32 4, %v1884
  %v1886 = vrot.slane %v1837, %v1885
  %1888 = vbcast.lane.b32.xlu0 %v1886, 256
  %v1889 = vpop.permute.xlu0 %1888
  %s1891 = sor.u32 256, 8
  %1892 = vbcast.lane.b32.xlu0 %v1886, %s1891
  %v1893 = vpop.permute.xlu0 %1892
  %v1894 = vlaneseq
  %v1895 = vshrl.u32 %v1894, 7
  %v1896 = vsub.s32 5, %v1895
  %v1897 = vrot.slane %v1837, %v1896
  %1899 = vbcast.lane.b32.xlu0 %v1897, 256
  %v1900 = vpop.permute.xlu0 %1899
  %s1902 = sor.u32 256, 8
  %1903 = vbcast.lane.b32.xlu0 %v1897, %s1902
  %v1904 = vpop.permute.xlu0 %1903
  %v1905 = vlaneseq
  %v1906 = vshrl.u32 %v1905, 7
  %v1907 = vsub.s32 6, %v1906
  %v1908 = vrot.slane %v1837, %v1907
  %1910 = vbcast.lane.b32.xlu0 %v1908, 256
  %v1911 = vpop.permute.xlu0 %1910
  %s1913 = sor.u32 256, 8
  %1914 = vbcast.lane.b32.xlu0 %v1908, %s1913
  %v1915 = vpop.permute.xlu0 %1914
  %v1916 = vlaneseq
  %v1917 = vshrl.u32 %v1916, 7
  %v1918 = vsub.s32 7, %v1917
  %v1919 = vrot.slane %v1837, %v1918
  %1921 = vbcast.lane.b32.xlu0 %v1919, 256
  %v1922 = vpop.permute.xlu0 %1921
  %s1924 = sor.u32 256, 8
  %1925 = vbcast.lane.b32.xlu0 %v1919, %s1924
  %v1926 = vpop.permute.xlu0 %1925
  %v1943 = vadd.f32 %v1821, %v1845
  %v1944 = vadd.f32 %v1822, %v1849
  %v1945 = vadd.f32 %v1823, %v1856
  %v1946 = vadd.f32 %v1824, %v1860
  %v1947 = vadd.f32 %v1825, %v1867
  %v1948 = vadd.f32 %v1826, %v1871
  %v1949 = vadd.f32 %v1827, %v1878
  %v1950 = vadd.f32 %v1828, %v1882
  %v1951 = vadd.f32 %v1829, %v1889
  %v1952 = vadd.f32 %v1830, %v1893
  %v1953 = vadd.f32 %v1831, %v1900
  %v1954 = vadd.f32 %v1832, %v1904
  %v1955 = vadd.f32 %v1833, %v1911
  %v1956 = vadd.f32 %v1834, %v1915
  %v1957 = vadd.f32 %v1835, %v1922
  %v1958 = vadd.f32 %v1836, %v1926
  %1975 = vset.pattern.permute.xlu0 0
  %1976 = vperm.xlu0 %1975, %v1943
  %v1977 = vpop.permute.xlu0 %1976
  %1978 = vset.pattern.permute.xlu0 0
  %1979 = vperm.xlu0 %1978, %v1944
  %v1980 = vpop.permute.xlu0 %1979
  %1981 = vset.pattern.permute.xlu0 0
  %1982 = vperm.xlu0 %1981, %v1945
  %v1983 = vpop.permute.xlu0 %1982
  %1984 = vset.pattern.permute.xlu0 0
  %1985 = vperm.xlu0 %1984, %v1946
  %v1986 = vpop.permute.xlu0 %1985
  %1987 = vset.pattern.permute.xlu0 0
  %1988 = vperm.xlu0 %1987, %v1947
  %v1989 = vpop.permute.xlu0 %1988
  %1990 = vset.pattern.permute.xlu0 0
  %1991 = vperm.xlu0 %1990, %v1948
  %v1992 = vpop.permute.xlu0 %1991
  %1993 = vset.pattern.permute.xlu0 0
  %1994 = vperm.xlu0 %1993, %v1949
  %v1995 = vpop.permute.xlu0 %1994
  %1996 = vset.pattern.permute.xlu0 0
  %1997 = vperm.xlu0 %1996, %v1950
  %v1998 = vpop.permute.xlu0 %1997
  %1999 = vset.pattern.permute.xlu0 0
  %2000 = vperm.xlu0 %1999, %v1951
  %v2001 = vpop.permute.xlu0 %2000
  %2002 = vset.pattern.permute.xlu0 0
  %2003 = vperm.xlu0 %2002, %v1952
  %v2004 = vpop.permute.xlu0 %2003
  %2005 = vset.pattern.permute.xlu0 0
  %2006 = vperm.xlu0 %2005, %v1953
  %v2007 = vpop.permute.xlu0 %2006
  %2008 = vset.pattern.permute.xlu0 0
  %2009 = vperm.xlu0 %2008, %v1954
  %v2010 = vpop.permute.xlu0 %2009
  %2011 = vset.pattern.permute.xlu0 0
  %2012 = vperm.xlu0 %2011, %v1955
  %v2013 = vpop.permute.xlu0 %2012
  %2014 = vset.pattern.permute.xlu0 0
  %2015 = vperm.xlu0 %2014, %v1956
  %v2016 = vpop.permute.xlu0 %2015
  %2017 = vset.pattern.permute.xlu0 0
  %2018 = vperm.xlu0 %2017, %v1957
  %v2019 = vpop.permute.xlu0 %2018
  %2020 = vset.pattern.permute.xlu0 0
  %2021 = vperm.xlu0 %2020, %v1958
  %v2022 = vpop.permute.xlu0 %2021
  %v2023 = vlaneseq
  %v2024 = vshrl.u32 %v2023, 7
  %v2025 = vsub.s32 %v58, %v2024
  %v2026 = vrot.slane %v1977, %v2025
  %v2027 = vadd.s32 %v58, 4294967288
  %v2028 = vlaneseq
  %v2029 = vshrl.u32 %v2028, 7
  %v2030 = vsub.s32 %v2027, %v2029
  %v2031 = vrot.slane %v1980, %v2030
  %vm2032 = vcmask 130112
  %v2033 = vsel %vm2032, %v2031, %v2026
  %v2034 = vlaneseq
  %v2035 = vshrl.u32 %v2034, 7
  %v2036 = vsub.s32 %v58, %v2035
  %v2037 = vrot.slane %v1983, %v2036
  %v2038 = vlaneseq
  %v2039 = vshrl.u32 %v2038, 7
  %v2040 = vsub.s32 %v2027, %v2039
  %v2041 = vrot.slane %v1986, %v2040
  %v2042 = vsel %vm2032, %v2041, %v2037
  %v2043 = vlaneseq
  %v2044 = vshrl.u32 %v2043, 7
  %v2045 = vsub.s32 %v58, %v2044
  %v2046 = vrot.slane %v1989, %v2045
  %v2047 = vlaneseq
  %v2048 = vshrl.u32 %v2047, 7
  %v2049 = vsub.s32 %v2027, %v2048
  %v2050 = vrot.slane %v1992, %v2049
  %v2051 = vsel %vm2032, %v2050, %v2046
  %v2052 = vlaneseq
  %v2053 = vshrl.u32 %v2052, 7
  %v2054 = vsub.s32 %v58, %v2053
  %v2055 = vrot.slane %v1995, %v2054
  %v2056 = vlaneseq
  %v2057 = vshrl.u32 %v2056, 7
  %v2058 = vsub.s32 %v2027, %v2057
  %v2059 = vrot.slane %v1998, %v2058
  %v2060 = vsel %vm2032, %v2059, %v2055
  %v2061 = vlaneseq
  %v2062 = vshrl.u32 %v2061, 7
  %v2063 = vsub.s32 %v58, %v2062
  %v2064 = vrot.slane %v2001, %v2063
  %v2065 = vlaneseq
  %v2066 = vshrl.u32 %v2065, 7
  %v2067 = vsub.s32 %v2027, %v2066
  %v2068 = vrot.slane %v2004, %v2067
  %v2069 = vsel %vm2032, %v2068, %v2064
  %v2070 = vlaneseq
  %v2071 = vshrl.u32 %v2070, 7
  %v2072 = vsub.s32 %v58, %v2071
  %v2073 = vrot.slane %v2007, %v2072
  %v2074 = vlaneseq
  %v2075 = vshrl.u32 %v2074, 7
  %v2076 = vsub.s32 %v2027, %v2075
  %v2077 = vrot.slane %v2010, %v2076
  %v2078 = vsel %vm2032, %v2077, %v2073
  %v2079 = vlaneseq
  %v2080 = vshrl.u32 %v2079, 7
  %v2081 = vsub.s32 %v58, %v2080
  %v2082 = vrot.slane %v2013, %v2081
  %v2083 = vlaneseq
  %v2084 = vshrl.u32 %v2083, 7
  %v2085 = vsub.s32 %v2027, %v2084
  %v2086 = vrot.slane %v2016, %v2085
  %v2087 = vsel %vm2032, %v2086, %v2082
  %v2088 = vlaneseq
  %v2089 = vshrl.u32 %v2088, 7
  %v2090 = vsub.s32 %v58, %v2089
  %v2091 = vrot.slane %v2019, %v2090
  %v2092 = vlaneseq
  %v2093 = vshrl.u32 %v2092, 7
  %v2094 = vsub.s32 %v2027, %v2093
  %v2095 = vrot.slane %v2022, %v2094
  %v2096 = vsel %vm2032, %v2095, %v2091
  %vm2097 = vcmask 1041409
  %v2098 = vsel %vm2097, %v2042, %v2033
  %vm2099 = vcmask 1042434
  %v2100 = vsel %vm2099, %v2051, %v2098
  %vm2101 = vcmask 1043459
  %v2102 = vsel %vm2101, %v2060, %v2100
  %vm2103 = vcmask 1044484
  %v2104 = vsel %vm2103, %v2069, %v2102
  %vm2105 = vcmask 1045509
  %v2106 = vsel %vm2105, %v2078, %v2104
  %vm2107 = vcmask 1046534
  %v2108 = vsel %vm2107, %v2087, %v2106
  %vm2109 = vcmask 1047559
  %v2110 = vsel %vm2109, %v2096, %v2108
  %vm2112 = vcmask 130048
  %v2113 = vsel %vm2112, %v2110, -inf
  %2114 = vmax.xlane.f32.xlu0 %v2113
  %v2115 = vpop.xlane.xlu0 %2114
  %v2117 = vlaneseq
  %v2118 = vshrl.u32 %v2117, 7
  %v2119 = vsub.s32 0, %v2118
  %v2120 = vrot.slane %v2115, %v2119
  %v2121 = vlaneseq
  %v2122 = vshrl.u32 %v2121, 7
  %v2123 = vsub.s32 1, %v2122
  %v2124 = vrot.slane %v2115, %v2123
  %v2125 = vlaneseq
  %v2126 = vshrl.u32 %v2125, 7
  %v2127 = vsub.s32 2, %v2126
  %v2128 = vrot.slane %v2115, %v2127
  %v2129 = vlaneseq
  %v2130 = vshrl.u32 %v2129, 7
  %v2131 = vsub.s32 3, %v2130
  %v2132 = vrot.slane %v2115, %v2131
  %v2133 = vlaneseq
  %v2134 = vshrl.u32 %v2133, 7
  %v2135 = vsub.s32 4, %v2134
  %v2136 = vrot.slane %v2115, %v2135
  %v2137 = vlaneseq
  %v2138 = vshrl.u32 %v2137, 7
  %v2139 = vsub.s32 5, %v2138
  %v2140 = vrot.slane %v2115, %v2139
  %v2141 = vlaneseq
  %v2142 = vshrl.u32 %v2141, 7
  %v2143 = vsub.s32 6, %v2142
  %v2144 = vrot.slane %v2115, %v2143
  %v2145 = vlaneseq
  %v2146 = vshrl.u32 %v2145, 7
  %v2147 = vsub.s32 7, %v2146
  %v2148 = vrot.slane %v2115, %v2147
  %v2157 = vsub.f32 %v1943, %v2120
  %v2158 = vsub.f32 %v1944, %v2120
  %v2159 = vsub.f32 %v1945, %v2124
  %v2160 = vsub.f32 %v1946, %v2124
  %v2161 = vsub.f32 %v1947, %v2128
  %v2162 = vsub.f32 %v1948, %v2128
  %v2163 = vsub.f32 %v1949, %v2132
  %v2164 = vsub.f32 %v1950, %v2132
  %v2165 = vsub.f32 %v1951, %v2136
  %v2166 = vsub.f32 %v1952, %v2136
  %v2167 = vsub.f32 %v1953, %v2140
  %v2168 = vsub.f32 %v1954, %v2140
  %v2169 = vsub.f32 %v1955, %v2144
  %v2170 = vsub.f32 %v1956, %v2144
  %v2171 = vsub.f32 %v1957, %v2148
  %v2172 = vsub.f32 %v1958, %v2148
  %v2173 = vmul.f32 %v2157, 1.442695
  %v2174 = vpow.pop %v2173
  %v2175 = vmul.f32 %v2158, 1.442695
  %v2176 = vpow.pop %v2175
  %v2177 = vmul.f32 %v2159, 1.442695
  %v2178 = vpow.pop %v2177
  %v2179 = vmul.f32 %v2160, 1.442695
  %v2180 = vpow.pop %v2179
  %v2181 = vmul.f32 %v2161, 1.442695
  %v2182 = vpow.pop %v2181
  %v2183 = vmul.f32 %v2162, 1.442695
  %v2184 = vpow.pop %v2183
  %v2185 = vmul.f32 %v2163, 1.442695
  %v2186 = vpow.pop %v2185
  %v2187 = vmul.f32 %v2164, 1.442695
  %v2188 = vpow.pop %v2187
  %v2189 = vmul.f32 %v2165, 1.442695
  %v2190 = vpow.pop %v2189
  %v2191 = vmul.f32 %v2166, 1.442695
  %v2192 = vpow.pop %v2191
  %v2193 = vmul.f32 %v2167, 1.442695
  %v2194 = vpow.pop %v2193
  %v2195 = vmul.f32 %v2168, 1.442695
  %v2196 = vpow.pop %v2195
  %v2197 = vmul.f32 %v2169, 1.442695
  %v2198 = vpow.pop %v2197
  %v2199 = vmul.f32 %v2170, 1.442695
  %v2200 = vpow.pop %v2199
  %v2201 = vmul.f32 %v2171, 1.442695
  %v2202 = vpow.pop %v2201
  %v2203 = vmul.f32 %v2172, 1.442695
  %v2204 = vpow.pop %v2203
  %2221 = vset.pattern.permute.xlu0 0
  %2222 = vperm.xlu0 %2221, %v2174
  %v2223 = vpop.permute.xlu0 %2222
  %2224 = vset.pattern.permute.xlu0 0
  %2225 = vperm.xlu0 %2224, %v2176
  %v2226 = vpop.permute.xlu0 %2225
  %2227 = vset.pattern.permute.xlu0 0
  %2228 = vperm.xlu0 %2227, %v2178
  %v2229 = vpop.permute.xlu0 %2228
  %2230 = vset.pattern.permute.xlu0 0
  %2231 = vperm.xlu0 %2230, %v2180
  %v2232 = vpop.permute.xlu0 %2231
  %2233 = vset.pattern.permute.xlu0 0
  %2234 = vperm.xlu0 %2233, %v2182
  %v2235 = vpop.permute.xlu0 %2234
  %2236 = vset.pattern.permute.xlu0 0
  %2237 = vperm.xlu0 %2236, %v2184
  %v2238 = vpop.permute.xlu0 %2237
  %2239 = vset.pattern.permute.xlu0 0
  %2240 = vperm.xlu0 %2239, %v2186
  %v2241 = vpop.permute.xlu0 %2240
  %2242 = vset.pattern.permute.xlu0 0
  %2243 = vperm.xlu0 %2242, %v2188
  %v2244 = vpop.permute.xlu0 %2243
  %2245 = vset.pattern.permute.xlu0 0
  %2246 = vperm.xlu0 %2245, %v2190
  %v2247 = vpop.permute.xlu0 %2246
  %2248 = vset.pattern.permute.xlu0 0
  %2249 = vperm.xlu0 %2248, %v2192
  %v2250 = vpop.permute.xlu0 %2249
  %2251 = vset.pattern.permute.xlu0 0
  %2252 = vperm.xlu0 %2251, %v2194
  %v2253 = vpop.permute.xlu0 %2252
  %2254 = vset.pattern.permute.xlu0 0
  %2255 = vperm.xlu0 %2254, %v2196
  %v2256 = vpop.permute.xlu0 %2255
  %2257 = vset.pattern.permute.xlu0 0
  %2258 = vperm.xlu0 %2257, %v2198
  %v2259 = vpop.permute.xlu0 %2258
  %2260 = vset.pattern.permute.xlu0 0
  %2261 = vperm.xlu0 %2260, %v2200
  %v2262 = vpop.permute.xlu0 %2261
  %2263 = vset.pattern.permute.xlu0 0
  %2264 = vperm.xlu0 %2263, %v2202
  %v2265 = vpop.permute.xlu0 %2264
  %2266 = vset.pattern.permute.xlu0 0
  %2267 = vperm.xlu0 %2266, %v2204
  %v2268 = vpop.permute.xlu0 %2267
  %v2269 = vlaneseq
  %v2270 = vshrl.u32 %v2269, 7
  %v2271 = vsub.s32 %v58, %v2270
  %v2272 = vrot.slane %v2223, %v2271
  %v2273 = vlaneseq
  %v2274 = vshrl.u32 %v2273, 7
  %v2275 = vsub.s32 %v2027, %v2274
  %v2276 = vrot.slane %v2226, %v2275
  %v2277 = vsel %vm2032, %v2276, %v2272
  %v2278 = vlaneseq
  %v2279 = vshrl.u32 %v2278, 7
  %v2280 = vsub.s32 %v58, %v2279
  %v2281 = vrot.slane %v2229, %v2280
  %v2282 = vlaneseq
  %v2283 = vshrl.u32 %v2282, 7
  %v2284 = vsub.s32 %v2027, %v2283
  %v2285 = vrot.slane %v2232, %v2284
  %v2286 = vsel %vm2032, %v2285, %v2281
  %v2287 = vlaneseq
  %v2288 = vshrl.u32 %v2287, 7
  %v2289 = vsub.s32 %v58, %v2288
  %v2290 = vrot.slane %v2235, %v2289
  %v2291 = vlaneseq
  %v2292 = vshrl.u32 %v2291, 7
  %v2293 = vsub.s32 %v2027, %v2292
  %v2294 = vrot.slane %v2238, %v2293
  %v2295 = vsel %vm2032, %v2294, %v2290
  %v2296 = vlaneseq
  %v2297 = vshrl.u32 %v2296, 7
  %v2298 = vsub.s32 %v58, %v2297
  %v2299 = vrot.slane %v2241, %v2298
  %v2300 = vlaneseq
  %v2301 = vshrl.u32 %v2300, 7
  %v2302 = vsub.s32 %v2027, %v2301
  %v2303 = vrot.slane %v2244, %v2302
  %v2304 = vsel %vm2032, %v2303, %v2299
  %v2305 = vlaneseq
  %v2306 = vshrl.u32 %v2305, 7
  %v2307 = vsub.s32 %v58, %v2306
  %v2308 = vrot.slane %v2247, %v2307
  %v2309 = vlaneseq
  %v2310 = vshrl.u32 %v2309, 7
  %v2311 = vsub.s32 %v2027, %v2310
  %v2312 = vrot.slane %v2250, %v2311
  %v2313 = vsel %vm2032, %v2312, %v2308
  %v2314 = vlaneseq
  %v2315 = vshrl.u32 %v2314, 7
  %v2316 = vsub.s32 %v58, %v2315
  %v2317 = vrot.slane %v2253, %v2316
  %v2318 = vlaneseq
  %v2319 = vshrl.u32 %v2318, 7
  %v2320 = vsub.s32 %v2027, %v2319
  %v2321 = vrot.slane %v2256, %v2320
  %v2322 = vsel %vm2032, %v2321, %v2317
  %v2323 = vlaneseq
  %v2324 = vshrl.u32 %v2323, 7
  %v2325 = vsub.s32 %v58, %v2324
  %v2326 = vrot.slane %v2259, %v2325
  %v2327 = vlaneseq
  %v2328 = vshrl.u32 %v2327, 7
  %v2329 = vsub.s32 %v2027, %v2328
  %v2330 = vrot.slane %v2262, %v2329
  %v2331 = vsel %vm2032, %v2330, %v2326
  %v2332 = vlaneseq
  %v2333 = vshrl.u32 %v2332, 7
  %v2334 = vsub.s32 %v58, %v2333
  %v2335 = vrot.slane %v2265, %v2334
  %v2336 = vlaneseq
  %v2337 = vshrl.u32 %v2336, 7
  %v2338 = vsub.s32 %v2027, %v2337
  %v2339 = vrot.slane %v2268, %v2338
  %v2340 = vsel %vm2032, %v2339, %v2335
  %v2341 = vsel %vm2097, %v2286, %v2277
  %v2342 = vsel %vm2099, %v2295, %v2341
  %v2343 = vsel %vm2101, %v2304, %v2342
  %v2344 = vsel %vm2103, %v2313, %v2343
  %v2345 = vsel %vm2105, %v2322, %v2344
  %v2346 = vsel %vm2107, %v2331, %v2345
  %v2347 = vsel %vm2109, %v2340, %v2346
  %v2349 = vsel %vm2112, %v2347, 0.0
  %2350 = vadd.xlane.f32.xlu0 %v2349
  %v2351 = vpop.xlane.xlu0 %2350
  %v2352 = vrcp.pop %v2351
  %v2354 = vlaneseq
  %v2355 = vshrl.u32 %v2354, 7
  %v2356 = vsub.s32 0, %v2355
  %v2357 = vrot.slane %v2352, %v2356
  %v2358 = vlaneseq
  %v2359 = vshrl.u32 %v2358, 7
  %v2360 = vsub.s32 1, %v2359
  %v2361 = vrot.slane %v2352, %v2360
  %v2362 = vlaneseq
  %v2363 = vshrl.u32 %v2362, 7
  %v2364 = vsub.s32 2, %v2363
  %v2365 = vrot.slane %v2352, %v2364
  %v2366 = vlaneseq
  %v2367 = vshrl.u32 %v2366, 7
  %v2368 = vsub.s32 3, %v2367
  %v2369 = vrot.slane %v2352, %v2368
  %v2370 = vlaneseq
  %v2371 = vshrl.u32 %v2370, 7
  %v2372 = vsub.s32 4, %v2371
  %v2373 = vrot.slane %v2352, %v2372
  %v2374 = vlaneseq
  %v2375 = vshrl.u32 %v2374, 7
  %v2376 = vsub.s32 5, %v2375
  %v2377 = vrot.slane %v2352, %v2376
  %v2378 = vlaneseq
  %v2379 = vshrl.u32 %v2378, 7
  %v2380 = vsub.s32 6, %v2379
  %v2381 = vrot.slane %v2352, %v2380
  %v2382 = vlaneseq
  %v2383 = vshrl.u32 %v2382, 7
  %v2384 = vsub.s32 7, %v2383
  %v2385 = vrot.slane %v2352, %v2384
  %v2394 = vmul.f32 %v2174, %v2357
  %v2395 = vmul.f32 %v2176, %v2357
  %v2396 = vmul.f32 %v2178, %v2361
  %v2397 = vmul.f32 %v2180, %v2361
  %v2398 = vmul.f32 %v2182, %v2365
  %v2399 = vmul.f32 %v2184, %v2365
  %v2400 = vmul.f32 %v2186, %v2369
  %v2401 = vmul.f32 %v2188, %v2369
  %v2402 = vmul.f32 %v2190, %v2373
  %v2403 = vmul.f32 %v2192, %v2373
  %v2404 = vmul.f32 %v2194, %v2377
  %v2405 = vmul.f32 %v2196, %v2377
  %v2406 = vmul.f32 %v2198, %v2381
  %v2407 = vmul.f32 %v2200, %v2381
  %v2408 = vmul.f32 %v2202, %v2385
  %v2409 = vmul.f32 %v2204, %v2385
  %2411 = vset.pattern.permute.xlu0 0
  %2412 = vperm.xlu0 %2411, %v2394
  %v2413 = vpop.permute.xlu0 %2412
  %2416 = vset.pattern.permute.xlu0 0
  %2417 = vperm.xlu0 %2416, %v2395
  %v2418 = vpop.permute.xlu0 %2417
  %2421 = vset.pattern.permute.xlu0 0
  %2422 = vperm.xlu0 %2421, %v2396
  %v2423 = vpop.permute.xlu0 %2422
  %2426 = vset.pattern.permute.xlu0 0
  %2427 = vperm.xlu0 %2426, %v2397
  %v2428 = vpop.permute.xlu0 %2427
  %2431 = vset.pattern.permute.xlu0 0
  %2432 = vperm.xlu0 %2431, %v2398
  %v2433 = vpop.permute.xlu0 %2432
  %2436 = vset.pattern.permute.xlu0 0
  %2437 = vperm.xlu0 %2436, %v2399
  %v2438 = vpop.permute.xlu0 %2437
  %2441 = vset.pattern.permute.xlu0 0
  %2442 = vperm.xlu0 %2441, %v2400
  %v2443 = vpop.permute.xlu0 %2442
  %2446 = vset.pattern.permute.xlu0 0
  %2447 = vperm.xlu0 %2446, %v2401
  %v2448 = vpop.permute.xlu0 %2447
  %2451 = vset.pattern.permute.xlu0 0
  %2452 = vperm.xlu0 %2451, %v2402
  %v2453 = vpop.permute.xlu0 %2452
  %2456 = vset.pattern.permute.xlu0 0
  %2457 = vperm.xlu0 %2456, %v2403
  %v2458 = vpop.permute.xlu0 %2457
  %2461 = vset.pattern.permute.xlu0 0
  %2462 = vperm.xlu0 %2461, %v2404
  %v2463 = vpop.permute.xlu0 %2462
  %2466 = vset.pattern.permute.xlu0 0
  %2467 = vperm.xlu0 %2466, %v2405
  %v2468 = vpop.permute.xlu0 %2467
  %2471 = vset.pattern.permute.xlu0 0
  %2472 = vperm.xlu0 %2471, %v2406
  %v2473 = vpop.permute.xlu0 %2472
  %2476 = vset.pattern.permute.xlu0 0
  %2477 = vperm.xlu0 %2476, %v2407
  %v2478 = vpop.permute.xlu0 %2477
  %2481 = vset.pattern.permute.xlu0 0
  %2482 = vperm.xlu0 %2481, %v2408
  %v2483 = vpop.permute.xlu0 %2482
  %2486 = vset.pattern.permute.xlu0 0
  %2487 = vperm.xlu0 %2486, %v2409
  %v2488 = vpop.permute.xlu0 %2487
  %v2490 = vmul.f32 %v2413, %v1549
  %v2491 = vmul.f32 %v2418, %v1554
  %v2492 = vmul.f32 %v2423, %v1559
  %v2493 = vmul.f32 %v2428, %v1564
  %v2494 = vmul.f32 %v2433, %v1569
  %v2495 = vmul.f32 %v2438, %v1574
  %v2496 = vmul.f32 %v2443, %v1579
  %v2497 = vmul.f32 %v2448, %v1584
  %v2498 = vmul.f32 %v2453, %v1589
  %v2499 = vmul.f32 %v2458, %v1594
  %v2500 = vmul.f32 %v2463, %v1599
  %v2501 = vmul.f32 %v2468, %v1604
  %v2502 = vmul.f32 %v2473, %v1609
  %v2503 = vmul.f32 %v2478, %v1614
  %v2504 = vmul.f32 %v2483, %v1619
  %v2505 = vmul.f32 %v2488, %v1624
  %v2506 = vsel %vm79, %v2490, 0.0
  %v2507 = vsel %vm79, %v2491, 0.0
  %v2508 = vadd.f32 %v2506, %v2507
  %v2509 = vrot.slane %v2508, 4
  %v2510 = vadd.f32 %v2508, %v2509
  %v2511 = vrot.slane %v2510, 2
  %v2512 = vadd.f32 %v2510, %v2511
  %v2513 = vrot.slane %v2512, 1
  %v2514 = vadd.f32 %v2512, %v2513
  %v2515 = vsel %vm79, %v2492, 0.0
  %v2516 = vsel %vm79, %v2493, 0.0
  %v2517 = vadd.f32 %v2515, %v2516
  %v2518 = vrot.slane %v2517, 4
  %v2519 = vadd.f32 %v2517, %v2518
  %v2520 = vrot.slane %v2519, 2
  %v2521 = vadd.f32 %v2519, %v2520
  %v2522 = vrot.slane %v2521, 1
  %v2523 = vadd.f32 %v2521, %v2522
  %v2524 = vsel %vm79, %v2494, 0.0
  %v2525 = vsel %vm79, %v2495, 0.0
  %v2526 = vadd.f32 %v2524, %v2525
  %v2527 = vrot.slane %v2526, 4
  %v2528 = vadd.f32 %v2526, %v2527
  %v2529 = vrot.slane %v2528, 2
  %v2530 = vadd.f32 %v2528, %v2529
  %v2531 = vrot.slane %v2530, 1
  %v2532 = vadd.f32 %v2530, %v2531
  %v2533 = vsel %vm79, %v2496, 0.0
  %v2534 = vsel %vm79, %v2497, 0.0
  %v2535 = vadd.f32 %v2533, %v2534
  %v2536 = vrot.slane %v2535, 4
  %v2537 = vadd.f32 %v2535, %v2536
  %v2538 = vrot.slane %v2537, 2
  %v2539 = vadd.f32 %v2537, %v2538
  %v2540 = vrot.slane %v2539, 1
  %v2541 = vadd.f32 %v2539, %v2540
  %v2542 = vsel %vm79, %v2498, 0.0
  %v2543 = vsel %vm79, %v2499, 0.0
  %v2544 = vadd.f32 %v2542, %v2543
  %v2545 = vrot.slane %v2544, 4
  %v2546 = vadd.f32 %v2544, %v2545
  %v2547 = vrot.slane %v2546, 2
  %v2548 = vadd.f32 %v2546, %v2547
  %v2549 = vrot.slane %v2548, 1
  %v2550 = vadd.f32 %v2548, %v2549
  %v2551 = vsel %vm79, %v2500, 0.0
  %v2552 = vsel %vm79, %v2501, 0.0
  %v2553 = vadd.f32 %v2551, %v2552
  %v2554 = vrot.slane %v2553, 4
  %v2555 = vadd.f32 %v2553, %v2554
  %v2556 = vrot.slane %v2555, 2
  %v2557 = vadd.f32 %v2555, %v2556
  %v2558 = vrot.slane %v2557, 1
  %v2559 = vadd.f32 %v2557, %v2558
  %v2560 = vsel %vm79, %v2502, 0.0
  %v2561 = vsel %vm79, %v2503, 0.0
  %v2562 = vadd.f32 %v2560, %v2561
  %v2563 = vrot.slane %v2562, 4
  %v2564 = vadd.f32 %v2562, %v2563
  %v2565 = vrot.slane %v2564, 2
  %v2566 = vadd.f32 %v2564, %v2565
  %v2567 = vrot.slane %v2566, 1
  %v2568 = vadd.f32 %v2566, %v2567
  %v2569 = vsel %vm79, %v2504, 0.0
  %v2570 = vsel %vm79, %v2505, 0.0
  %v2571 = vadd.f32 %v2569, %v2570
  %v2572 = vrot.slane %v2571, 4
  %v2573 = vadd.f32 %v2571, %v2572
  %v2574 = vrot.slane %v2573, 2
  %v2575 = vadd.f32 %v2573, %v2574
  %v2576 = vrot.slane %v2575, 1
  %v2577 = vadd.f32 %v2575, %v2576
  %v2586 = vsel %vm2097, %v2523, %v2514
  %v2587 = vsel %vm2099, %v2532, %v2586
  %v2588 = vsel %vm2101, %v2541, %v2587
  %v2589 = vsel %vm2103, %v2550, %v2588
  %v2590 = vsel %vm2105, %v2559, %v2589
  %v2591 = vsel %vm2107, %v2568, %v2590
  %v2592 = vsel %vm2109, %v2577, %v2591
  %2594 = vst.msk [vmem:[#allocation3] sm:$0xff] %vm79, %v2592
  %v2596 = vcombine.high %v1224, %v1224
  %v2598 = vunpack.c.l.s4 1966171168
  %v2599 = vunpack.c.0.s8 %v2598
  %v2600 = vlaneseq
  %v2601 = vshrl.u32 %v2600, 7
  %v2602 = vsub.s32 %v2599, %v2601
  %v2603 = vrot.slane %v1224, %v2602
  %v2605 = vunpack.c.l.s4 1966171168
  %v2606 = vunpack.c.0.s8 %v2605
  %v2607 = vlaneseq
  %v2608 = vshrl.u32 %v2607, 7
  %v2609 = vsub.s32 %v2606, %v2608
  %v2610 = vrot.slane %v2596, %v2609
  %v2611 = vcombine.high %v2603, %v2603
  %v2612 = vcombine.high %v2610, %v2610
  %v2614 = vunpack.c.l.s4 1966171168
  %v2615 = vunpack.c.0.s8 %v2614
  %v2616 = vlaneseq
  %v2617 = vshrl.u32 %v2616, 7
  %v2618 = vsub.s32 %v2615, %v2617
  %v2619 = vrot.slane %v2603, %v2618
  %v2621 = vunpack.c.l.s4 1966171168
  %v2622 = vunpack.c.0.s8 %v2621
  %v2623 = vlaneseq
  %v2624 = vshrl.u32 %v2623, 7
  %v2625 = vsub.s32 %v2622, %v2624
  %v2626 = vrot.slane %v2610, %v2625
  %v2628 = vunpack.c.l.s4 1966171168
  %v2629 = vunpack.c.0.s8 %v2628
  %v2630 = vlaneseq
  %v2631 = vshrl.u32 %v2630, 7
  %v2632 = vsub.s32 %v2629, %v2631
  %v2633 = vrot.slane %v2611, %v2632
  %v2635 = vunpack.c.l.s4 1966171168
  %v2636 = vunpack.c.0.s8 %v2635
  %v2637 = vlaneseq
  %v2638 = vshrl.u32 %v2637, 7
  %v2639 = vsub.s32 %v2636, %v2638
  %v2640 = vrot.slane %v2612, %v2639
  %v2641 = vcombine.high %v2619, %v2619
  %v2642 = vcombine.high %v2626, %v2626
  %v2643 = vcombine.high %v2633, %v2633
  %v2644 = vcombine.high %v2640, %v2640
  %v2645 = vlaneseq
  %v2646 = vshrl.u32 %v2645, 7
  %v2647 = vsub.s32 0, %v2646
  %v2648 = vrot.slane %v2619, %v2647
  %v2649 = vlaneseq
  %v2650 = vshrl.u32 %v2649, 7
  %v2651 = vsub.s32 0, %v2650
  %v2652 = vrot.slane %v2633, %v2651
  %v2653 = vlaneseq
  %v2654 = vshrl.u32 %v2653, 7
  %v2655 = vsub.s32 0, %v2654
  %v2656 = vrot.slane %v2641, %v2655
  %v2657 = vlaneseq
  %v2658 = vshrl.u32 %v2657, 7
  %v2659 = vsub.s32 0, %v2658
  %v2660 = vrot.slane %v2643, %v2659
  %v2661 = vlaneseq
  %v2662 = vshrl.u32 %v2661, 7
  %v2663 = vsub.s32 0, %v2662
  %v2664 = vrot.slane %v2626, %v2663
  %v2665 = vlaneseq
  %v2666 = vshrl.u32 %v2665, 7
  %v2667 = vsub.s32 0, %v2666
  %v2668 = vrot.slane %v2640, %v2667
  %v2669 = vlaneseq
  %v2670 = vshrl.u32 %v2669, 7
  %v2671 = vsub.s32 0, %v2670
  %v2672 = vrot.slane %v2642, %v2671
  %v2673 = vlaneseq
  %v2674 = vshrl.u32 %v2673, 7
  %v2675 = vsub.s32 0, %v2674
  %v2676 = vrot.slane %v2644, %v2675
  %v2685 = vadd.f32 %v2648, %v1396
  %v2686 = vadd.f32 %v2648, %v1401
  %v2687 = vadd.f32 %v2652, %v1406
  %v2688 = vadd.f32 %v2652, %v1411
  %v2689 = vadd.f32 %v2656, %v1416
  %v2690 = vadd.f32 %v2656, %v1421
  %v2691 = vadd.f32 %v2660, %v1426
  %v2692 = vadd.f32 %v2660, %v1431
  %v2693 = vadd.f32 %v2664, %v1436
  %v2694 = vadd.f32 %v2664, %v1441
  %v2695 = vadd.f32 %v2668, %v1446
  %v2696 = vadd.f32 %v2668, %v1451
  %v2697 = vadd.f32 %v2672, %v1456
  %v2698 = vadd.f32 %v2672, %v1461
  %v2699 = vadd.f32 %v2676, %v1466
  %v2700 = vadd.f32 %v2676, %v1471
  %v2701 = vtanh.pop %v2685
  %v2702 = vtanh.pop %v2686
  %v2703 = vtanh.pop %v2687
  %v2704 = vtanh.pop %v2688
  %v2705 = vtanh.pop %v2689
  %v2706 = vtanh.pop %v2690
  %v2707 = vtanh.pop %v2691
  %v2708 = vtanh.pop %v2692
  %v2709 = vtanh.pop %v2693
  %v2710 = vtanh.pop %v2694
  %v2711 = vtanh.pop %v2695
  %v2712 = vtanh.pop %v2696
  %v2713 = vtanh.pop %v2697
  %v2714 = vtanh.pop %v2698
  %v2715 = vtanh.pop %v2699
  %v2716 = vtanh.pop %v2700
  %v2717 = vmul.f32 %v2701, %v1752
  %v2718 = vmul.f32 %v2702, %v1752
  %v2719 = vmul.f32 %v2703, %v1752
  %v2720 = vmul.f32 %v2704, %v1752
  %v2721 = vmul.f32 %v2705, %v1752
  %v2722 = vmul.f32 %v2706, %v1752
  %v2723 = vmul.f32 %v2707, %v1752
  %v2724 = vmul.f32 %v2708, %v1752
  %v2725 = vmul.f32 %v2709, %v1752
  %v2726 = vmul.f32 %v2710, %v1752
  %v2727 = vmul.f32 %v2711, %v1752
  %v2728 = vmul.f32 %v2712, %v1752
  %v2729 = vmul.f32 %v2713, %v1752
  %v2730 = vmul.f32 %v2714, %v1752
  %v2731 = vmul.f32 %v2715, %v1752
  %v2732 = vmul.f32 %v2716, %v1752
  %v2733 = vsel %vm79, %v2717, 0.0
  %2734 = vadd.xlane.f32.xlu0 %v2733
  %v2735 = vpop.xlane.xlu0 %2734
  %v2736 = vsel %vm79, %v2718, 0.0
  %2737 = vadd.xlane.f32.xlu0 %v2736
  %v2738 = vpop.xlane.xlu0 %2737
  %v2739 = vsel %vm79, %v2719, 0.0
  %2740 = vadd.xlane.f32.xlu0 %v2739
  %v2741 = vpop.xlane.xlu0 %2740
  %v2742 = vsel %vm79, %v2720, 0.0
  %2743 = vadd.xlane.f32.xlu0 %v2742
  %v2744 = vpop.xlane.xlu0 %2743
  %v2745 = vsel %vm79, %v2721, 0.0
  %2746 = vadd.xlane.f32.xlu0 %v2745
  %v2747 = vpop.xlane.xlu0 %2746
  %v2748 = vsel %vm79, %v2722, 0.0
  %2749 = vadd.xlane.f32.xlu0 %v2748
  %v2750 = vpop.xlane.xlu0 %2749
  %v2751 = vsel %vm79, %v2723, 0.0
  %2752 = vadd.xlane.f32.xlu0 %v2751
  %v2753 = vpop.xlane.xlu0 %2752
  %v2754 = vsel %vm79, %v2724, 0.0
  %2755 = vadd.xlane.f32.xlu0 %v2754
  %v2756 = vpop.xlane.xlu0 %2755
  %v2757 = vsel %vm79, %v2725, 0.0
  %2758 = vadd.xlane.f32.xlu0 %v2757
  %v2759 = vpop.xlane.xlu0 %2758
  %v2760 = vsel %vm79, %v2726, 0.0
  %2761 = vadd.xlane.f32.xlu0 %v2760
  %v2762 = vpop.xlane.xlu0 %2761
  %v2763 = vsel %vm79, %v2727, 0.0
  %2764 = vadd.xlane.f32.xlu0 %v2763
  %v2765 = vpop.xlane.xlu0 %2764
  %v2766 = vsel %vm79, %v2728, 0.0
  %2767 = vadd.xlane.f32.xlu0 %v2766
  %v2768 = vpop.xlane.xlu0 %2767
  %v2769 = vsel %vm79, %v2729, 0.0
  %2770 = vadd.xlane.f32.xlu0 %v2769
  %v2771 = vpop.xlane.xlu0 %2770
  %v2772 = vsel %vm79, %v2730, 0.0
  %2773 = vadd.xlane.f32.xlu0 %v2772
  %v2774 = vpop.xlane.xlu0 %2773
  %v2775 = vsel %vm79, %v2731, 0.0
  %2776 = vadd.xlane.f32.xlu0 %v2775
  %v2777 = vpop.xlane.xlu0 %2776
  %v2778 = vsel %vm79, %v2732, 0.0
  %2779 = vadd.xlane.f32.xlu0 %v2778
  %v2780 = vpop.xlane.xlu0 %2779
  %v2781 = vadd.f32 %v2735, %v1819
  %v2782 = vadd.f32 %v2738, %v1819
  %v2783 = vadd.f32 %v2741, %v1819
  %v2784 = vadd.f32 %v2744, %v1819
  %v2785 = vadd.f32 %v2747, %v1819
  %v2786 = vadd.f32 %v2750, %v1819
  %v2787 = vadd.f32 %v2753, %v1819
  %v2788 = vadd.f32 %v2756, %v1819
  %v2789 = vadd.f32 %v2759, %v1819
  %v2790 = vadd.f32 %v2762, %v1819
  %v2791 = vadd.f32 %v2765, %v1819
  %v2792 = vadd.f32 %v2768, %v1819
  %v2793 = vadd.f32 %v2771, %v1819
  %v2794 = vadd.f32 %v2774, %v1819
  %v2795 = vadd.f32 %v2777, %v1819
  %v2796 = vadd.f32 %v2780, %v1819
  %s2797 = scalar_lea.vmem %s2, 8
  %v2798 = vld [vmem:[%s2797] sm:$0xff]
  %v2800 = vlaneseq
  %v2801 = vshrl.u32 %v2800, 7
  %v2802 = vsub.s32 0, %v2801
  %v2803 = vrot.slane %v2798, %v2802
  %2805 = vbcast.lane.b32.xlu0 %v2803, 256
  %v2806 = vpop.permute.xlu0 %2805
  %s2808 = sor.u32 256, 8
  %2809 = vbcast.lane.b32.xlu0 %v2803, %s2808
  %v2810 = vpop.permute.xlu0 %2809
  %v2811 = vlaneseq
  %v2812 = vshrl.u32 %v2811, 7
  %v2813 = vsub.s32 1, %v2812
  %v2814 = vrot.slane %v2798, %v2813
  %2816 = vbcast.lane.b32.xlu0 %v2814, 256
  %v2817 = vpop.permute.xlu0 %2816
  %s2819 = sor.u32 256, 8
  %2820 = vbcast.lane.b32.xlu0 %v2814, %s2819
  %v2821 = vpop.permute.xlu0 %2820
  %v2822 = vlaneseq
  %v2823 = vshrl.u32 %v2822, 7
  %v2824 = vsub.s32 2, %v2823
  %v2825 = vrot.slane %v2798, %v2824
  %2827 = vbcast.lane.b32.xlu0 %v2825, 256
  %v2828 = vpop.permute.xlu0 %2827
  %s2830 = sor.u32 256, 8
  %2831 = vbcast.lane.b32.xlu0 %v2825, %s2830
  %v2832 = vpop.permute.xlu0 %2831
  %v2833 = vlaneseq
  %v2834 = vshrl.u32 %v2833, 7
  %v2835 = vsub.s32 3, %v2834
  %v2836 = vrot.slane %v2798, %v2835
  %2838 = vbcast.lane.b32.xlu0 %v2836, 256
  %v2839 = vpop.permute.xlu0 %2838
  %s2841 = sor.u32 256, 8
  %2842 = vbcast.lane.b32.xlu0 %v2836, %s2841
  %v2843 = vpop.permute.xlu0 %2842
  %v2844 = vlaneseq
  %v2845 = vshrl.u32 %v2844, 7
  %v2846 = vsub.s32 4, %v2845
  %v2847 = vrot.slane %v2798, %v2846
  %2849 = vbcast.lane.b32.xlu0 %v2847, 256
  %v2850 = vpop.permute.xlu0 %2849
  %s2852 = sor.u32 256, 8
  %2853 = vbcast.lane.b32.xlu0 %v2847, %s2852
  %v2854 = vpop.permute.xlu0 %2853
  %v2855 = vlaneseq
  %v2856 = vshrl.u32 %v2855, 7
  %v2857 = vsub.s32 5, %v2856
  %v2858 = vrot.slane %v2798, %v2857
  %2860 = vbcast.lane.b32.xlu0 %v2858, 256
  %v2861 = vpop.permute.xlu0 %2860
  %s2863 = sor.u32 256, 8
  %2864 = vbcast.lane.b32.xlu0 %v2858, %s2863
  %v2865 = vpop.permute.xlu0 %2864
  %v2866 = vlaneseq
  %v2867 = vshrl.u32 %v2866, 7
  %v2868 = vsub.s32 6, %v2867
  %v2869 = vrot.slane %v2798, %v2868
  %2871 = vbcast.lane.b32.xlu0 %v2869, 256
  %v2872 = vpop.permute.xlu0 %2871
  %s2874 = sor.u32 256, 8
  %2875 = vbcast.lane.b32.xlu0 %v2869, %s2874
  %v2876 = vpop.permute.xlu0 %2875
  %v2877 = vlaneseq
  %v2878 = vshrl.u32 %v2877, 7
  %v2879 = vsub.s32 7, %v2878
  %v2880 = vrot.slane %v2798, %v2879
  %2882 = vbcast.lane.b32.xlu0 %v2880, 256
  %v2883 = vpop.permute.xlu0 %2882
  %s2885 = sor.u32 256, 8
  %2886 = vbcast.lane.b32.xlu0 %v2880, %s2885
  %v2887 = vpop.permute.xlu0 %2886
  %v2904 = vadd.f32 %v2781, %v2806
  %v2905 = vadd.f32 %v2782, %v2810
  %v2906 = vadd.f32 %v2783, %v2817
  %v2907 = vadd.f32 %v2784, %v2821
  %v2908 = vadd.f32 %v2785, %v2828
  %v2909 = vadd.f32 %v2786, %v2832
  %v2910 = vadd.f32 %v2787, %v2839
  %v2911 = vadd.f32 %v2788, %v2843
  %v2912 = vadd.f32 %v2789, %v2850
  %v2913 = vadd.f32 %v2790, %v2854
  %v2914 = vadd.f32 %v2791, %v2861
  %v2915 = vadd.f32 %v2792, %v2865
  %v2916 = vadd.f32 %v2793, %v2872
  %v2917 = vadd.f32 %v2794, %v2876
  %v2918 = vadd.f32 %v2795, %v2883
  %v2919 = vadd.f32 %v2796, %v2887
  %2936 = vset.pattern.permute.xlu0 0
  %2937 = vperm.xlu0 %2936, %v2904
  %v2938 = vpop.permute.xlu0 %2937
  %2939 = vset.pattern.permute.xlu0 0
  %2940 = vperm.xlu0 %2939, %v2905
  %v2941 = vpop.permute.xlu0 %2940
  %2942 = vset.pattern.permute.xlu0 0
  %2943 = vperm.xlu0 %2942, %v2906
  %v2944 = vpop.permute.xlu0 %2943
  %2945 = vset.pattern.permute.xlu0 0
  %2946 = vperm.xlu0 %2945, %v2907
  %v2947 = vpop.permute.xlu0 %2946
  %2948 = vset.pattern.permute.xlu0 0
  %2949 = vperm.xlu0 %2948, %v2908
  %v2950 = vpop.permute.xlu0 %2949
  %2951 = vset.pattern.permute.xlu0 0
  %2952 = vperm.xlu0 %2951, %v2909
  %v2953 = vpop.permute.xlu0 %2952
  %2954 = vset.pattern.permute.xlu0 0
  %2955 = vperm.xlu0 %2954, %v2910
  %v2956 = vpop.permute.xlu0 %2955
  %2957 = vset.pattern.permute.xlu0 0
  %2958 = vperm.xlu0 %2957, %v2911
  %v2959 = vpop.permute.xlu0 %2958
  %2960 = vset.pattern.permute.xlu0 0
  %2961 = vperm.xlu0 %2960, %v2912
  %v2962 = vpop.permute.xlu0 %2961
  %2963 = vset.pattern.permute.xlu0 0
  %2964 = vperm.xlu0 %2963, %v2913
  %v2965 = vpop.permute.xlu0 %2964
  %2966 = vset.pattern.permute.xlu0 0
  %2967 = vperm.xlu0 %2966, %v2914
  %v2968 = vpop.permute.xlu0 %2967
  %2969 = vset.pattern.permute.xlu0 0
  %2970 = vperm.xlu0 %2969, %v2915
  %v2971 = vpop.permute.xlu0 %2970
  %2972 = vset.pattern.permute.xlu0 0
  %2973 = vperm.xlu0 %2972, %v2916
  %v2974 = vpop.permute.xlu0 %2973
  %2975 = vset.pattern.permute.xlu0 0
  %2976 = vperm.xlu0 %2975, %v2917
  %v2977 = vpop.permute.xlu0 %2976
  %2978 = vset.pattern.permute.xlu0 0
  %2979 = vperm.xlu0 %2978, %v2918
  %v2980 = vpop.permute.xlu0 %2979
  %2981 = vset.pattern.permute.xlu0 0
  %2982 = vperm.xlu0 %2981, %v2919
  %v2983 = vpop.permute.xlu0 %2982
  %v2984 = vlaneseq
  %v2985 = vshrl.u32 %v2984, 7
  %v2986 = vsub.s32 %v58, %v2985
  %v2987 = vrot.slane %v2938, %v2986
  %v2988 = vlaneseq
  %v2989 = vshrl.u32 %v2988, 7
  %v2990 = vsub.s32 %v2027, %v2989
  %v2991 = vrot.slane %v2941, %v2990
  %v2992 = vsel %vm2032, %v2991, %v2987
  %v2993 = vlaneseq
  %v2994 = vshrl.u32 %v2993, 7
  %v2995 = vsub.s32 %v58, %v2994
  %v2996 = vrot.slane %v2944, %v2995
  %v2997 = vlaneseq
  %v2998 = vshrl.u32 %v2997, 7
  %v2999 = vsub.s32 %v2027, %v2998
  %v3000 = vrot.slane %v2947, %v2999
  %v3001 = vsel %vm2032, %v3000, %v2996
  %v3002 = vlaneseq
  %v3003 = vshrl.u32 %v3002, 7
  %v3004 = vsub.s32 %v58, %v3003
  %v3005 = vrot.slane %v2950, %v3004
  %v3006 = vlaneseq
  %v3007 = vshrl.u32 %v3006, 7
  %v3008 = vsub.s32 %v2027, %v3007
  %v3009 = vrot.slane %v2953, %v3008
  %v3010 = vsel %vm2032, %v3009, %v3005
  %v3011 = vlaneseq
  %v3012 = vshrl.u32 %v3011, 7
  %v3013 = vsub.s32 %v58, %v3012
  %v3014 = vrot.slane %v2956, %v3013
  %v3015 = vlaneseq
  %v3016 = vshrl.u32 %v3015, 7
  %v3017 = vsub.s32 %v2027, %v3016
  %v3018 = vrot.slane %v2959, %v3017
  %v3019 = vsel %vm2032, %v3018, %v3014
  %v3020 = vlaneseq
  %v3021 = vshrl.u32 %v3020, 7
  %v3022 = vsub.s32 %v58, %v3021
  %v3023 = vrot.slane %v2962, %v3022
  %v3024 = vlaneseq
  %v3025 = vshrl.u32 %v3024, 7
  %v3026 = vsub.s32 %v2027, %v3025
  %v3027 = vrot.slane %v2965, %v3026
  %v3028 = vsel %vm2032, %v3027, %v3023
  %v3029 = vlaneseq
  %v3030 = vshrl.u32 %v3029, 7
  %v3031 = vsub.s32 %v58, %v3030
  %v3032 = vrot.slane %v2968, %v3031
  %v3033 = vlaneseq
  %v3034 = vshrl.u32 %v3033, 7
  %v3035 = vsub.s32 %v2027, %v3034
  %v3036 = vrot.slane %v2971, %v3035
  %v3037 = vsel %vm2032, %v3036, %v3032
  %v3038 = vlaneseq
  %v3039 = vshrl.u32 %v3038, 7
  %v3040 = vsub.s32 %v58, %v3039
  %v3041 = vrot.slane %v2974, %v3040
  %v3042 = vlaneseq
  %v3043 = vshrl.u32 %v3042, 7
  %v3044 = vsub.s32 %v2027, %v3043
  %v3045 = vrot.slane %v2977, %v3044
  %v3046 = vsel %vm2032, %v3045, %v3041
  %v3047 = vlaneseq
  %v3048 = vshrl.u32 %v3047, 7
  %v3049 = vsub.s32 %v58, %v3048
  %v3050 = vrot.slane %v2980, %v3049
  %v3051 = vlaneseq
  %v3052 = vshrl.u32 %v3051, 7
  %v3053 = vsub.s32 %v2027, %v3052
  %v3054 = vrot.slane %v2983, %v3053
  %v3055 = vsel %vm2032, %v3054, %v3050
  %v3056 = vsel %vm2097, %v3001, %v2992
  %v3057 = vsel %vm2099, %v3010, %v3056
  %v3058 = vsel %vm2101, %v3019, %v3057
  %v3059 = vsel %vm2103, %v3028, %v3058
  %v3060 = vsel %vm2105, %v3037, %v3059
  %v3061 = vsel %vm2107, %v3046, %v3060
  %v3062 = vsel %vm2109, %v3055, %v3061
  %v3064 = vsel %vm2112, %v3062, -inf
  %3065 = vmax.xlane.f32.xlu0 %v3064
  %v3066 = vpop.xlane.xlu0 %3065
  %v3068 = vlaneseq
  %v3069 = vshrl.u32 %v3068, 7
  %v3070 = vsub.s32 0, %v3069
  %v3071 = vrot.slane %v3066, %v3070
  %v3072 = vlaneseq
  %v3073 = vshrl.u32 %v3072, 7
  %v3074 = vsub.s32 1, %v3073
  %v3075 = vrot.slane %v3066, %v3074
  %v3076 = vlaneseq
  %v3077 = vshrl.u32 %v3076, 7
  %v3078 = vsub.s32 2, %v3077
  %v3079 = vrot.slane %v3066, %v3078
  %v3080 = vlaneseq
  %v3081 = vshrl.u32 %v3080, 7
  %v3082 = vsub.s32 3, %v3081
  %v3083 = vrot.slane %v3066, %v3082
  %v3084 = vlaneseq
  %v3085 = vshrl.u32 %v3084, 7
  %v3086 = vsub.s32 4, %v3085
  %v3087 = vrot.slane %v3066, %v3086
  %v3088 = vlaneseq
  %v3089 = vshrl.u32 %v3088, 7
  %v3090 = vsub.s32 5, %v3089
  %v3091 = vrot.slane %v3066, %v3090
  %v3092 = vlaneseq
  %v3093 = vshrl.u32 %v3092, 7
  %v3094 = vsub.s32 6, %v3093
  %v3095 = vrot.slane %v3066, %v3094
  %v3096 = vlaneseq
  %v3097 = vshrl.u32 %v3096, 7
  %v3098 = vsub.s32 7, %v3097
  %v3099 = vrot.slane %v3066, %v3098
  %v3108 = vsub.f32 %v2904, %v3071
  %v3109 = vsub.f32 %v2905, %v3071
  %v3110 = vsub.f32 %v2906, %v3075
  %v3111 = vsub.f32 %v2907, %v3075
  %v3112 = vsub.f32 %v2908, %v3079
  %v3113 = vsub.f32 %v2909, %v3079
  %v3114 = vsub.f32 %v2910, %v3083
  %v3115 = vsub.f32 %v2911, %v3083
  %v3116 = vsub.f32 %v2912, %v3087
  %v3117 = vsub.f32 %v2913, %v3087
  %v3118 = vsub.f32 %v2914, %v3091
  %v3119 = vsub.f32 %v2915, %v3091
  %v3120 = vsub.f32 %v2916, %v3095
  %v3121 = vsub.f32 %v2917, %v3095
  %v3122 = vsub.f32 %v2918, %v3099
  %v3123 = vsub.f32 %v2919, %v3099
  %v3124 = vmul.f32 %v3108, 1.442695
  %v3125 = vpow.pop %v3124
  %v3126 = vmul.f32 %v3109, 1.442695
  %v3127 = vpow.pop %v3126
  %v3128 = vmul.f32 %v3110, 1.442695
  %v3129 = vpow.pop %v3128
  %v3130 = vmul.f32 %v3111, 1.442695
  %v3131 = vpow.pop %v3130
  %v3132 = vmul.f32 %v3112, 1.442695
  %v3133 = vpow.pop %v3132
  %v3134 = vmul.f32 %v3113, 1.442695
  %v3135 = vpow.pop %v3134
  %v3136 = vmul.f32 %v3114, 1.442695
  %v3137 = vpow.pop %v3136
  %v3138 = vmul.f32 %v3115, 1.442695
  %v3139 = vpow.pop %v3138
  %v3140 = vmul.f32 %v3116, 1.442695
  %v3141 = vpow.pop %v3140
  %v3142 = vmul.f32 %v3117, 1.442695
  %v3143 = vpow.pop %v3142
  %v3144 = vmul.f32 %v3118, 1.442695
  %v3145 = vpow.pop %v3144
  %v3146 = vmul.f32 %v3119, 1.442695
  %v3147 = vpow.pop %v3146
  %v3148 = vmul.f32 %v3120, 1.442695
  %v3149 = vpow.pop %v3148
  %v3150 = vmul.f32 %v3121, 1.442695
  %v3151 = vpow.pop %v3150
  %v3152 = vmul.f32 %v3122, 1.442695
  %v3153 = vpow.pop %v3152
  %v3154 = vmul.f32 %v3123, 1.442695
  %v3155 = vpow.pop %v3154
  %3172 = vset.pattern.permute.xlu0 0
  %3173 = vperm.xlu0 %3172, %v3125
  %v3174 = vpop.permute.xlu0 %3173
  %3175 = vset.pattern.permute.xlu0 0
  %3176 = vperm.xlu0 %3175, %v3127
  %v3177 = vpop.permute.xlu0 %3176
  %3178 = vset.pattern.permute.xlu0 0
  %3179 = vperm.xlu0 %3178, %v3129
  %v3180 = vpop.permute.xlu0 %3179
  %3181 = vset.pattern.permute.xlu0 0
  %3182 = vperm.xlu0 %3181, %v3131
  %v3183 = vpop.permute.xlu0 %3182
  %3184 = vset.pattern.permute.xlu0 0
  %3185 = vperm.xlu0 %3184, %v3133
  %v3186 = vpop.permute.xlu0 %3185
  %3187 = vset.pattern.permute.xlu0 0
  %3188 = vperm.xlu0 %3187, %v3135
  %v3189 = vpop.permute.xlu0 %3188
  %3190 = vset.pattern.permute.xlu0 0
  %3191 = vperm.xlu0 %3190, %v3137
  %v3192 = vpop.permute.xlu0 %3191
  %3193 = vset.pattern.permute.xlu0 0
  %3194 = vperm.xlu0 %3193, %v3139
  %v3195 = vpop.permute.xlu0 %3194
  %3196 = vset.pattern.permute.xlu0 0
  %3197 = vperm.xlu0 %3196, %v3141
  %v3198 = vpop.permute.xlu0 %3197
  %3199 = vset.pattern.permute.xlu0 0
  %3200 = vperm.xlu0 %3199, %v3143
  %v3201 = vpop.permute.xlu0 %3200
  %3202 = vset.pattern.permute.xlu0 0
  %3203 = vperm.xlu0 %3202, %v3145
  %v3204 = vpop.permute.xlu0 %3203
  %3205 = vset.pattern.permute.xlu0 0
  %3206 = vperm.xlu0 %3205, %v3147
  %v3207 = vpop.permute.xlu0 %3206
  %3208 = vset.pattern.permute.xlu0 0
  %3209 = vperm.xlu0 %3208, %v3149
  %v3210 = vpop.permute.xlu0 %3209
  %3211 = vset.pattern.permute.xlu0 0
  %3212 = vperm.xlu0 %3211, %v3151
  %v3213 = vpop.permute.xlu0 %3212
  %3214 = vset.pattern.permute.xlu0 0
  %3215 = vperm.xlu0 %3214, %v3153
  %v3216 = vpop.permute.xlu0 %3215
  %3217 = vset.pattern.permute.xlu0 0
  %3218 = vperm.xlu0 %3217, %v3155
  %v3219 = vpop.permute.xlu0 %3218
  %v3220 = vlaneseq
  %v3221 = vshrl.u32 %v3220, 7
  %v3222 = vsub.s32 %v58, %v3221
  %v3223 = vrot.slane %v3174, %v3222
  %v3224 = vlaneseq
  %v3225 = vshrl.u32 %v3224, 7
  %v3226 = vsub.s32 %v2027, %v3225
  %v3227 = vrot.slane %v3177, %v3226
  %v3228 = vsel %vm2032, %v3227, %v3223
  %v3229 = vlaneseq
  %v3230 = vshrl.u32 %v3229, 7
  %v3231 = vsub.s32 %v58, %v3230
  %v3232 = vrot.slane %v3180, %v3231
  %v3233 = vlaneseq
  %v3234 = vshrl.u32 %v3233, 7
  %v3235 = vsub.s32 %v2027, %v3234
  %v3236 = vrot.slane %v3183, %v3235
  %v3237 = vsel %vm2032, %v3236, %v3232
  %v3238 = vlaneseq
  %v3239 = vshrl.u32 %v3238, 7
  %v3240 = vsub.s32 %v58, %v3239
  %v3241 = vrot.slane %v3186, %v3240
  %v3242 = vlaneseq
  %v3243 = vshrl.u32 %v3242, 7
  %v3244 = vsub.s32 %v2027, %v3243
  %v3245 = vrot.slane %v3189, %v3244
  %v3246 = vsel %vm2032, %v3245, %v3241
  %v3247 = vlaneseq
  %v3248 = vshrl.u32 %v3247, 7
  %v3249 = vsub.s32 %v58, %v3248
  %v3250 = vrot.slane %v3192, %v3249
  %v3251 = vlaneseq
  %v3252 = vshrl.u32 %v3251, 7
  %v3253 = vsub.s32 %v2027, %v3252
  %v3254 = vrot.slane %v3195, %v3253
  %v3255 = vsel %vm2032, %v3254, %v3250
  %v3256 = vlaneseq
  %v3257 = vshrl.u32 %v3256, 7
  %v3258 = vsub.s32 %v58, %v3257
  %v3259 = vrot.slane %v3198, %v3258
  %v3260 = vlaneseq
  %v3261 = vshrl.u32 %v3260, 7
  %v3262 = vsub.s32 %v2027, %v3261
  %v3263 = vrot.slane %v3201, %v3262
  %v3264 = vsel %vm2032, %v3263, %v3259
  %v3265 = vlaneseq
  %v3266 = vshrl.u32 %v3265, 7
  %v3267 = vsub.s32 %v58, %v3266
  %v3268 = vrot.slane %v3204, %v3267
  %v3269 = vlaneseq
  %v3270 = vshrl.u32 %v3269, 7
  %v3271 = vsub.s32 %v2027, %v3270
  %v3272 = vrot.slane %v3207, %v3271
  %v3273 = vsel %vm2032, %v3272, %v3268
  %v3274 = vlaneseq
  %v3275 = vshrl.u32 %v3274, 7
  %v3276 = vsub.s32 %v58, %v3275
  %v3277 = vrot.slane %v3210, %v3276
  %v3278 = vlaneseq
  %v3279 = vshrl.u32 %v3278, 7
  %v3280 = vsub.s32 %v2027, %v3279
  %v3281 = vrot.slane %v3213, %v3280
  %v3282 = vsel %vm2032, %v3281, %v3277
  %v3283 = vlaneseq
  %v3284 = vshrl.u32 %v3283, 7
  %v3285 = vsub.s32 %v58, %v3284
  %v3286 = vrot.slane %v3216, %v3285
  %v3287 = vlaneseq
  %v3288 = vshrl.u32 %v3287, 7
  %v3289 = vsub.s32 %v2027, %v3288
  %v3290 = vrot.slane %v3219, %v3289
  %v3291 = vsel %vm2032, %v3290, %v3286
  %v3292 = vsel %vm2097, %v3237, %v3228
  %v3293 = vsel %vm2099, %v3246, %v3292
  %v3294 = vsel %vm2101, %v3255, %v3293
  %v3295 = vsel %vm2103, %v3264, %v3294
  %v3296 = vsel %vm2105, %v3273, %v3295
  %v3297 = vsel %vm2107, %v3282, %v3296
  %v3298 = vsel %vm2109, %v3291, %v3297
  %v3300 = vsel %vm2112, %v3298, 0.0
  %3301 = vadd.xlane.f32.xlu0 %v3300
  %v3302 = vpop.xlane.xlu0 %3301
  %v3303 = vrcp.pop %v3302
  %v3305 = vlaneseq
  %v3306 = vshrl.u32 %v3305, 7
  %v3307 = vsub.s32 0, %v3306
  %v3308 = vrot.slane %v3303, %v3307
  %v3309 = vlaneseq
  %v3310 = vshrl.u32 %v3309, 7
  %v3311 = vsub.s32 1, %v3310
  %v3312 = vrot.slane %v3303, %v3311
  %v3313 = vlaneseq
  %v3314 = vshrl.u32 %v3313, 7
  %v3315 = vsub.s32 2, %v3314
  %v3316 = vrot.slane %v3303, %v3315
  %v3317 = vlaneseq
  %v3318 = vshrl.u32 %v3317, 7
  %v3319 = vsub.s32 3, %v3318
  %v3320 = vrot.slane %v3303, %v3319
  %v3321 = vlaneseq
  %v3322 = vshrl.u32 %v3321, 7
  %v3323 = vsub.s32 4, %v3322
  %v3324 = vrot.slane %v3303, %v3323
  %v3325 = vlaneseq
  %v3326 = vshrl.u32 %v3325, 7
  %v3327 = vsub.s32 5, %v3326
  %v3328 = vrot.slane %v3303, %v3327
  %v3329 = vlaneseq
  %v3330 = vshrl.u32 %v3329, 7
  %v3331 = vsub.s32 6, %v3330
  %v3332 = vrot.slane %v3303, %v3331
  %v3333 = vlaneseq
  %v3334 = vshrl.u32 %v3333, 7
  %v3335 = vsub.s32 7, %v3334
  %v3336 = vrot.slane %v3303, %v3335
  %v3345 = vmul.f32 %v3125, %v3308
  %v3346 = vmul.f32 %v3127, %v3308
  %v3347 = vmul.f32 %v3129, %v3312
  %v3348 = vmul.f32 %v3131, %v3312
  %v3349 = vmul.f32 %v3133, %v3316
  %v3350 = vmul.f32 %v3135, %v3316
  %v3351 = vmul.f32 %v3137, %v3320
  %v3352 = vmul.f32 %v3139, %v3320
  %v3353 = vmul.f32 %v3141, %v3324
  %v3354 = vmul.f32 %v3143, %v3324
  %v3355 = vmul.f32 %v3145, %v3328
  %v3356 = vmul.f32 %v3147, %v3328
  %v3357 = vmul.f32 %v3149, %v3332
  %v3358 = vmul.f32 %v3151, %v3332
  %v3359 = vmul.f32 %v3153, %v3336
  %v3360 = vmul.f32 %v3155, %v3336
  %3362 = vset.pattern.permute.xlu0 0
  %3363 = vperm.xlu0 %3362, %v3345
  %v3364 = vpop.permute.xlu0 %3363
  %3367 = vset.pattern.permute.xlu0 0
  %3368 = vperm.xlu0 %3367, %v3346
  %v3369 = vpop.permute.xlu0 %3368
  %3372 = vset.pattern.permute.xlu0 0
  %3373 = vperm.xlu0 %3372, %v3347
  %v3374 = vpop.permute.xlu0 %3373
  %3377 = vset.pattern.permute.xlu0 0
  %3378 = vperm.xlu0 %3377, %v3348
  %v3379 = vpop.permute.xlu0 %3378
  %3382 = vset.pattern.permute.xlu0 0
  %3383 = vperm.xlu0 %3382, %v3349
  %v3384 = vpop.permute.xlu0 %3383
  %3387 = vset.pattern.permute.xlu0 0
  %3388 = vperm.xlu0 %3387, %v3350
  %v3389 = vpop.permute.xlu0 %3388
  %3392 = vset.pattern.permute.xlu0 0
  %3393 = vperm.xlu0 %3392, %v3351
  %v3394 = vpop.permute.xlu0 %3393
  %3397 = vset.pattern.permute.xlu0 0
  %3398 = vperm.xlu0 %3397, %v3352
  %v3399 = vpop.permute.xlu0 %3398
  %3402 = vset.pattern.permute.xlu0 0
  %3403 = vperm.xlu0 %3402, %v3353
  %v3404 = vpop.permute.xlu0 %3403
  %3407 = vset.pattern.permute.xlu0 0
  %3408 = vperm.xlu0 %3407, %v3354
  %v3409 = vpop.permute.xlu0 %3408
  %3412 = vset.pattern.permute.xlu0 0
  %3413 = vperm.xlu0 %3412, %v3355
  %v3414 = vpop.permute.xlu0 %3413
  %3417 = vset.pattern.permute.xlu0 0
  %3418 = vperm.xlu0 %3417, %v3356
  %v3419 = vpop.permute.xlu0 %3418
  %3422 = vset.pattern.permute.xlu0 0
  %3423 = vperm.xlu0 %3422, %v3357
  %v3424 = vpop.permute.xlu0 %3423
  %3427 = vset.pattern.permute.xlu0 0
  %3428 = vperm.xlu0 %3427, %v3358
  %v3429 = vpop.permute.xlu0 %3428
  %3432 = vset.pattern.permute.xlu0 0
  %3433 = vperm.xlu0 %3432, %v3359
  %v3434 = vpop.permute.xlu0 %3433
  %3437 = vset.pattern.permute.xlu0 0
  %3438 = vperm.xlu0 %3437, %v3360
  %v3439 = vpop.permute.xlu0 %3438
  %v3441 = vmul.f32 %v3364, %v1549
  %v3442 = vmul.f32 %v3369, %v1554
  %v3443 = vmul.f32 %v3374, %v1559
  %v3444 = vmul.f32 %v3379, %v1564
  %v3445 = vmul.f32 %v3384, %v1569
  %v3446 = vmul.f32 %v3389, %v1574
  %v3447 = vmul.f32 %v3394, %v1579
  %v3448 = vmul.f32 %v3399, %v1584
  %v3449 = vmul.f32 %v3404, %v1589
  %v3450 = vmul.f32 %v3409, %v1594
  %v3451 = vmul.f32 %v3414, %v1599
  %v3452 = vmul.f32 %v3419, %v1604
  %v3453 = vmul.f32 %v3424, %v1609
  %v3454 = vmul.f32 %v3429, %v1614
  %v3455 = vmul.f32 %v3434, %v1619
  %v3456 = vmul.f32 %v3439, %v1624
  %v3457 = vsel %vm79, %v3441, 0.0
  %v3458 = vsel %vm79, %v3442, 0.0
  %v3459 = vadd.f32 %v3457, %v3458
  %v3460 = vrot.slane %v3459, 4
  %v3461 = vadd.f32 %v3459, %v3460
  %v3462 = vrot.slane %v3461, 2
  %v3463 = vadd.f32 %v3461, %v3462
  %v3464 = vrot.slane %v3463, 1
  %v3465 = vadd.f32 %v3463, %v3464
  %v3466 = vsel %vm79, %v3443, 0.0
  %v3467 = vsel %vm79, %v3444, 0.0
  %v3468 = vadd.f32 %v3466, %v3467
  %v3469 = vrot.slane %v3468, 4
  %v3470 = vadd.f32 %v3468, %v3469
  %v3471 = vrot.slane %v3470, 2
  %v3472 = vadd.f32 %v3470, %v3471
  %v3473 = vrot.slane %v3472, 1
  %v3474 = vadd.f32 %v3472, %v3473
  %v3475 = vsel %vm79, %v3445, 0.0
  %v3476 = vsel %vm79, %v3446, 0.0
  %v3477 = vadd.f32 %v3475, %v3476
  %v3478 = vrot.slane %v3477, 4
  %v3479 = vadd.f32 %v3477, %v3478
  %v3480 = vrot.slane %v3479, 2
  %v3481 = vadd.f32 %v3479, %v3480
  %v3482 = vrot.slane %v3481, 1
  %v3483 = vadd.f32 %v3481, %v3482
  %v3484 = vsel %vm79, %v3447, 0.0
  %v3485 = vsel %vm79, %v3448, 0.0
  %v3486 = vadd.f32 %v3484, %v3485
  %v3487 = vrot.slane %v3486, 4
  %v3488 = vadd.f32 %v3486, %v3487
  %v3489 = vrot.slane %v3488, 2
  %v3490 = vadd.f32 %v3488, %v3489
  %v3491 = vrot.slane %v3490, 1
  %v3492 = vadd.f32 %v3490, %v3491
  %v3493 = vsel %vm79, %v3449, 0.0
  %v3494 = vsel %vm79, %v3450, 0.0
  %v3495 = vadd.f32 %v3493, %v3494
  %v3496 = vrot.slane %v3495, 4
  %v3497 = vadd.f32 %v3495, %v3496
  %v3498 = vrot.slane %v3497, 2
  %v3499 = vadd.f32 %v3497, %v3498
  %v3500 = vrot.slane %v3499, 1
  %v3501 = vadd.f32 %v3499, %v3500
  %v3502 = vsel %vm79, %v3451, 0.0
  %v3503 = vsel %vm79, %v3452, 0.0
  %v3504 = vadd.f32 %v3502, %v3503
  %v3505 = vrot.slane %v3504, 4
  %v3506 = vadd.f32 %v3504, %v3505
  %v3507 = vrot.slane %v3506, 2
  %v3508 = vadd.f32 %v3506, %v3507
  %v3509 = vrot.slane %v3508, 1
  %v3510 = vadd.f32 %v3508, %v3509
  %v3511 = vsel %vm79, %v3453, 0.0
  %v3512 = vsel %vm79, %v3454, 0.0
  %v3513 = vadd.f32 %v3511, %v3512
  %v3514 = vrot.slane %v3513, 4
  %v3515 = vadd.f32 %v3513, %v3514
  %v3516 = vrot.slane %v3515, 2
  %v3517 = vadd.f32 %v3515, %v3516
  %v3518 = vrot.slane %v3517, 1
  %v3519 = vadd.f32 %v3517, %v3518
  %v3520 = vsel %vm79, %v3455, 0.0
  %v3521 = vsel %vm79, %v3456, 0.0
  %v3522 = vadd.f32 %v3520, %v3521
  %v3523 = vrot.slane %v3522, 4
  %v3524 = vadd.f32 %v3522, %v3523
  %v3525 = vrot.slane %v3524, 2
  %v3526 = vadd.f32 %v3524, %v3525
  %v3527 = vrot.slane %v3526, 1
  %v3528 = vadd.f32 %v3526, %v3527
  %v3537 = vsel %vm2097, %v3474, %v3465
  %v3538 = vsel %vm2099, %v3483, %v3537
  %v3539 = vsel %vm2101, %v3492, %v3538
  %v3540 = vsel %vm2103, %v3501, %v3539
  %v3541 = vsel %vm2105, %v3510, %v3540
  %v3542 = vsel %vm2107, %v3519, %v3541
  %v3543 = vsel %vm2109, %v3528, %v3542
  %3545 = vst.msk [vmem:[#allocation3 + $0x8] sm:$0xff] %vm79, %v3543
  %v3547 = vcombine.high %v1229, %v1229
  %v3549 = vunpack.c.l.s4 1966171168
  %v3550 = vunpack.c.0.s8 %v3549
  %v3551 = vlaneseq
  %v3552 = vshrl.u32 %v3551, 7
  %v3553 = vsub.s32 %v3550, %v3552
  %v3554 = vrot.slane %v1229, %v3553
  %v3556 = vunpack.c.l.s4 1966171168
  %v3557 = vunpack.c.0.s8 %v3556
  %v3558 = vlaneseq
  %v3559 = vshrl.u32 %v3558, 7
  %v3560 = vsub.s32 %v3557, %v3559
  %v3561 = vrot.slane %v3547, %v3560
  %v3562 = vcombine.high %v3554, %v3554
  %v3563 = vcombine.high %v3561, %v3561
  %v3565 = vunpack.c.l.s4 1966171168
  %v3566 = vunpack.c.0.s8 %v3565
  %v3567 = vlaneseq
  %v3568 = vshrl.u32 %v3567, 7
  %v3569 = vsub.s32 %v3566, %v3568
  %v3570 = vrot.slane %v3554, %v3569
  %v3572 = vunpack.c.l.s4 1966171168
  %v3573 = vunpack.c.0.s8 %v3572
  %v3574 = vlaneseq
  %v3575 = vshrl.u32 %v3574, 7
  %v3576 = vsub.s32 %v3573, %v3575
  %v3577 = vrot.slane %v3561, %v3576
  %v3579 = vunpack.c.l.s4 1966171168
  %v3580 = vunpack.c.0.s8 %v3579
  %v3581 = vlaneseq
  %v3582 = vshrl.u32 %v3581, 7
  %v3583 = vsub.s32 %v3580, %v3582
  %v3584 = vrot.slane %v3562, %v3583
  %v3586 = vunpack.c.l.s4 1966171168
  %v3587 = vunpack.c.0.s8 %v3586
  %v3588 = vlaneseq
  %v3589 = vshrl.u32 %v3588, 7
  %v3590 = vsub.s32 %v3587, %v3589
  %v3591 = vrot.slane %v3563, %v3590
  %v3592 = vcombine.high %v3570, %v3570
  %v3593 = vcombine.high %v3577, %v3577
  %v3594 = vcombine.high %v3584, %v3584
  %v3595 = vcombine.high %v3591, %v3591
  %v3596 = vlaneseq
  %v3597 = vshrl.u32 %v3596, 7
  %v3598 = vsub.s32 0, %v3597
  %v3599 = vrot.slane %v3570, %v3598
  %v3600 = vlaneseq
  %v3601 = vshrl.u32 %v3600, 7
  %v3602 = vsub.s32 0, %v3601
  %v3603 = vrot.slane %v3584, %v3602
  %v3604 = vlaneseq
  %v3605 = vshrl.u32 %v3604, 7
  %v3606 = vsub.s32 0, %v3605
  %v3607 = vrot.slane %v3592, %v3606
  %v3608 = vlaneseq
  %v3609 = vshrl.u32 %v3608, 7
  %v3610 = vsub.s32 0, %v3609
  %v3611 = vrot.slane %v3594, %v3610
  %v3612 = vlaneseq
  %v3613 = vshrl.u32 %v3612, 7
  %v3614 = vsub.s32 0, %v3613
  %v3615 = vrot.slane %v3577, %v3614
  %v3616 = vlaneseq
  %v3617 = vshrl.u32 %v3616, 7
  %v3618 = vsub.s32 0, %v3617
  %v3619 = vrot.slane %v3591, %v3618
  %v3620 = vlaneseq
  %v3621 = vshrl.u32 %v3620, 7
  %v3622 = vsub.s32 0, %v3621
  %v3623 = vrot.slane %v3593, %v3622
  %v3624 = vlaneseq
  %v3625 = vshrl.u32 %v3624, 7
  %v3626 = vsub.s32 0, %v3625
  %v3627 = vrot.slane %v3595, %v3626
  %v3636 = vadd.f32 %v3599, %v1396
  %v3637 = vadd.f32 %v3599, %v1401
  %v3638 = vadd.f32 %v3603, %v1406
  %v3639 = vadd.f32 %v3603, %v1411
  %v3640 = vadd.f32 %v3607, %v1416
  %v3641 = vadd.f32 %v3607, %v1421
  %v3642 = vadd.f32 %v3611, %v1426
  %v3643 = vadd.f32 %v3611, %v1431
  %v3644 = vadd.f32 %v3615, %v1436
  %v3645 = vadd.f32 %v3615, %v1441
  %v3646 = vadd.f32 %v3619, %v1446
  %v3647 = vadd.f32 %v3619, %v1451
  %v3648 = vadd.f32 %v3623, %v1456
  %v3649 = vadd.f32 %v3623, %v1461
  %v3650 = vadd.f32 %v3627, %v1466
  %v3651 = vadd.f32 %v3627, %v1471
  %v3652 = vtanh.pop %v3636
  %v3653 = vtanh.pop %v3637
  %v3654 = vtanh.pop %v3638
  %v3655 = vtanh.pop %v3639
  %v3656 = vtanh.pop %v3640
  %v3657 = vtanh.pop %v3641
  %v3658 = vtanh.pop %v3642
  %v3659 = vtanh.pop %v3643
  %v3660 = vtanh.pop %v3644
  %v3661 = vtanh.pop %v3645
  %v3662 = vtanh.pop %v3646
  %v3663 = vtanh.pop %v3647
  %v3664 = vtanh.pop %v3648
  %v3665 = vtanh.pop %v3649
  %v3666 = vtanh.pop %v3650
  %v3667 = vtanh.pop %v3651
  %v3668 = vmul.f32 %v3652, %v1752
  %v3669 = vmul.f32 %v3653, %v1752
  %v3670 = vmul.f32 %v3654, %v1752
  %v3671 = vmul.f32 %v3655, %v1752
  %v3672 = vmul.f32 %v3656, %v1752
  %v3673 = vmul.f32 %v3657, %v1752
  %v3674 = vmul.f32 %v3658, %v1752
  %v3675 = vmul.f32 %v3659, %v1752
  %v3676 = vmul.f32 %v3660, %v1752
  %v3677 = vmul.f32 %v3661, %v1752
  %v3678 = vmul.f32 %v3662, %v1752
  %v3679 = vmul.f32 %v3663, %v1752
  %v3680 = vmul.f32 %v3664, %v1752
  %v3681 = vmul.f32 %v3665, %v1752
  %v3682 = vmul.f32 %v3666, %v1752
  %v3683 = vmul.f32 %v3667, %v1752
  %v3684 = vsel %vm79, %v3668, 0.0
  %3685 = vadd.xlane.f32.xlu0 %v3684
  %v3686 = vpop.xlane.xlu0 %3685
  %v3687 = vsel %vm79, %v3669, 0.0
  %3688 = vadd.xlane.f32.xlu0 %v3687
  %v3689 = vpop.xlane.xlu0 %3688
  %v3690 = vsel %vm79, %v3670, 0.0
  %3691 = vadd.xlane.f32.xlu0 %v3690
  %v3692 = vpop.xlane.xlu0 %3691
  %v3693 = vsel %vm79, %v3671, 0.0
  %3694 = vadd.xlane.f32.xlu0 %v3693
  %v3695 = vpop.xlane.xlu0 %3694
  %v3696 = vsel %vm79, %v3672, 0.0
  %3697 = vadd.xlane.f32.xlu0 %v3696
  %v3698 = vpop.xlane.xlu0 %3697
  %v3699 = vsel %vm79, %v3673, 0.0
  %3700 = vadd.xlane.f32.xlu0 %v3699
  %v3701 = vpop.xlane.xlu0 %3700
  %v3702 = vsel %vm79, %v3674, 0.0
  %3703 = vadd.xlane.f32.xlu0 %v3702
  %v3704 = vpop.xlane.xlu0 %3703
  %v3705 = vsel %vm79, %v3675, 0.0
  %3706 = vadd.xlane.f32.xlu0 %v3705
  %v3707 = vpop.xlane.xlu0 %3706
  %v3708 = vsel %vm79, %v3676, 0.0
  %3709 = vadd.xlane.f32.xlu0 %v3708
  %v3710 = vpop.xlane.xlu0 %3709
  %v3711 = vsel %vm79, %v3677, 0.0
  %3712 = vadd.xlane.f32.xlu0 %v3711
  %v3713 = vpop.xlane.xlu0 %3712
  %v3714 = vsel %vm79, %v3678, 0.0
  %3715 = vadd.xlane.f32.xlu0 %v3714
  %v3716 = vpop.xlane.xlu0 %3715
  %v3717 = vsel %vm79, %v3679, 0.0
  %3718 = vadd.xlane.f32.xlu0 %v3717
  %v3719 = vpop.xlane.xlu0 %3718
  %v3720 = vsel %vm79, %v3680, 0.0
  %3721 = vadd.xlane.f32.xlu0 %v3720
  %v3722 = vpop.xlane.xlu0 %3721
  %v3723 = vsel %vm79, %v3681, 0.0
  %3724 = vadd.xlane.f32.xlu0 %v3723
  %v3725 = vpop.xlane.xlu0 %3724
  %v3726 = vsel %vm79, %v3682, 0.0
  %3727 = vadd.xlane.f32.xlu0 %v3726
  %v3728 = vpop.xlane.xlu0 %3727
  %v3729 = vsel %vm79, %v3683, 0.0
  %3730 = vadd.xlane.f32.xlu0 %v3729
  %v3731 = vpop.xlane.xlu0 %3730
  %v3732 = vadd.f32 %v3686, %v1819
  %v3733 = vadd.f32 %v3689, %v1819
  %v3734 = vadd.f32 %v3692, %v1819
  %v3735 = vadd.f32 %v3695, %v1819
  %v3736 = vadd.f32 %v3698, %v1819
  %v3737 = vadd.f32 %v3701, %v1819
  %v3738 = vadd.f32 %v3704, %v1819
  %v3739 = vadd.f32 %v3707, %v1819
  %v3740 = vadd.f32 %v3710, %v1819
  %v3741 = vadd.f32 %v3713, %v1819
  %v3742 = vadd.f32 %v3716, %v1819
  %v3743 = vadd.f32 %v3719, %v1819
  %v3744 = vadd.f32 %v3722, %v1819
  %v3745 = vadd.f32 %v3725, %v1819
  %v3746 = vadd.f32 %v3728, %v1819
  %v3747 = vadd.f32 %v3731, %v1819
  %s3748 = scalar_lea.vmem %s2, 16
  %v3749 = vld [vmem:[%s3748] sm:$0xff]
  %v3751 = vlaneseq
  %v3752 = vshrl.u32 %v3751, 7
  %v3753 = vsub.s32 0, %v3752
  %v3754 = vrot.slane %v3749, %v3753
  %3756 = vbcast.lane.b32.xlu0 %v3754, 256
  %v3757 = vpop.permute.xlu0 %3756
  %s3759 = sor.u32 256, 8
  %3760 = vbcast.lane.b32.xlu0 %v3754, %s3759
  %v3761 = vpop.permute.xlu0 %3760
  %v3762 = vlaneseq
  %v3763 = vshrl.u32 %v3762, 7
  %v3764 = vsub.s32 1, %v3763
  %v3765 = vrot.slane %v3749, %v3764
  %3767 = vbcast.lane.b32.xlu0 %v3765, 256
  %v3768 = vpop.permute.xlu0 %3767
  %s3770 = sor.u32 256, 8
  %3771 = vbcast.lane.b32.xlu0 %v3765, %s3770
  %v3772 = vpop.permute.xlu0 %3771
  %v3773 = vlaneseq
  %v3774 = vshrl.u32 %v3773, 7
  %v3775 = vsub.s32 2, %v3774
  %v3776 = vrot.slane %v3749, %v3775
  %3778 = vbcast.lane.b32.xlu0 %v3776, 256
  %v3779 = vpop.permute.xlu0 %3778
  %s3781 = sor.u32 256, 8
  %3782 = vbcast.lane.b32.xlu0 %v3776, %s3781
  %v3783 = vpop.permute.xlu0 %3782
  %v3784 = vlaneseq
  %v3785 = vshrl.u32 %v3784, 7
  %v3786 = vsub.s32 3, %v3785
  %v3787 = vrot.slane %v3749, %v3786
  %3789 = vbcast.lane.b32.xlu0 %v3787, 256
  %v3790 = vpop.permute.xlu0 %3789
  %s3792 = sor.u32 256, 8
  %3793 = vbcast.lane.b32.xlu0 %v3787, %s3792
  %v3794 = vpop.permute.xlu0 %3793
  %v3795 = vlaneseq
  %v3796 = vshrl.u32 %v3795, 7
  %v3797 = vsub.s32 4, %v3796
  %v3798 = vrot.slane %v3749, %v3797
  %3800 = vbcast.lane.b32.xlu0 %v3798, 256
  %v3801 = vpop.permute.xlu0 %3800
  %s3803 = sor.u32 256, 8
  %3804 = vbcast.lane.b32.xlu0 %v3798, %s3803
  %v3805 = vpop.permute.xlu0 %3804
  %v3806 = vlaneseq
  %v3807 = vshrl.u32 %v3806, 7
  %v3808 = vsub.s32 5, %v3807
  %v3809 = vrot.slane %v3749, %v3808
  %3811 = vbcast.lane.b32.xlu0 %v3809, 256
  %v3812 = vpop.permute.xlu0 %3811
  %s3814 = sor.u32 256, 8
  %3815 = vbcast.lane.b32.xlu0 %v3809, %s3814
  %v3816 = vpop.permute.xlu0 %3815
  %v3817 = vlaneseq
  %v3818 = vshrl.u32 %v3817, 7
  %v3819 = vsub.s32 6, %v3818
  %v3820 = vrot.slane %v3749, %v3819
  %3822 = vbcast.lane.b32.xlu0 %v3820, 256
  %v3823 = vpop.permute.xlu0 %3822
  %s3825 = sor.u32 256, 8
  %3826 = vbcast.lane.b32.xlu0 %v3820, %s3825
  %v3827 = vpop.permute.xlu0 %3826
  %v3828 = vlaneseq
  %v3829 = vshrl.u32 %v3828, 7
  %v3830 = vsub.s32 7, %v3829
  %v3831 = vrot.slane %v3749, %v3830
  %3833 = vbcast.lane.b32.xlu0 %v3831, 256
  %v3834 = vpop.permute.xlu0 %3833
  %s3836 = sor.u32 256, 8
  %3837 = vbcast.lane.b32.xlu0 %v3831, %s3836
  %v3838 = vpop.permute.xlu0 %3837
  %v3855 = vadd.f32 %v3732, %v3757
  %v3856 = vadd.f32 %v3733, %v3761
  %v3857 = vadd.f32 %v3734, %v3768
  %v3858 = vadd.f32 %v3735, %v3772
  %v3859 = vadd.f32 %v3736, %v3779
  %v3860 = vadd.f32 %v3737, %v3783
  %v3861 = vadd.f32 %v3738, %v3790
  %v3862 = vadd.f32 %v3739, %v3794
  %v3863 = vadd.f32 %v3740, %v3801
  %v3864 = vadd.f32 %v3741, %v3805
  %v3865 = vadd.f32 %v3742, %v3812
  %v3866 = vadd.f32 %v3743, %v3816
  %v3867 = vadd.f32 %v3744, %v3823
  %v3868 = vadd.f32 %v3745, %v3827
  %v3869 = vadd.f32 %v3746, %v3834
  %v3870 = vadd.f32 %v3747, %v3838
  %3887 = vset.pattern.permute.xlu0 0
  %3888 = vperm.xlu0 %3887, %v3855
  %v3889 = vpop.permute.xlu0 %3888
  %3890 = vset.pattern.permute.xlu0 0
  %3891 = vperm.xlu0 %3890, %v3856
  %v3892 = vpop.permute.xlu0 %3891
  %3893 = vset.pattern.permute.xlu0 0
  %3894 = vperm.xlu0 %3893, %v3857
  %v3895 = vpop.permute.xlu0 %3894
  %3896 = vset.pattern.permute.xlu0 0
  %3897 = vperm.xlu0 %3896, %v3858
  %v3898 = vpop.permute.xlu0 %3897
  %3899 = vset.pattern.permute.xlu0 0
  %3900 = vperm.xlu0 %3899, %v3859
  %v3901 = vpop.permute.xlu0 %3900
  %3902 = vset.pattern.permute.xlu0 0
  %3903 = vperm.xlu0 %3902, %v3860
  %v3904 = vpop.permute.xlu0 %3903
  %3905 = vset.pattern.permute.xlu0 0
  %3906 = vperm.xlu0 %3905, %v3861
  %v3907 = vpop.permute.xlu0 %3906
  %3908 = vset.pattern.permute.xlu0 0
  %3909 = vperm.xlu0 %3908, %v3862
  %v3910 = vpop.permute.xlu0 %3909
  %3911 = vset.pattern.permute.xlu0 0
  %3912 = vperm.xlu0 %3911, %v3863
  %v3913 = vpop.permute.xlu0 %3912
  %3914 = vset.pattern.permute.xlu0 0
  %3915 = vperm.xlu0 %3914, %v3864
  %v3916 = vpop.permute.xlu0 %3915
  %3917 = vset.pattern.permute.xlu0 0
  %3918 = vperm.xlu0 %3917, %v3865
  %v3919 = vpop.permute.xlu0 %3918
  %3920 = vset.pattern.permute.xlu0 0
  %3921 = vperm.xlu0 %3920, %v3866
  %v3922 = vpop.permute.xlu0 %3921
  %3923 = vset.pattern.permute.xlu0 0
  %3924 = vperm.xlu0 %3923, %v3867
  %v3925 = vpop.permute.xlu0 %3924
  %3926 = vset.pattern.permute.xlu0 0
  %3927 = vperm.xlu0 %3926, %v3868
  %v3928 = vpop.permute.xlu0 %3927
  %3929 = vset.pattern.permute.xlu0 0
  %3930 = vperm.xlu0 %3929, %v3869
  %v3931 = vpop.permute.xlu0 %3930
  %3932 = vset.pattern.permute.xlu0 0
  %3933 = vperm.xlu0 %3932, %v3870
  %v3934 = vpop.permute.xlu0 %3933
  %v3935 = vlaneseq
  %v3936 = vshrl.u32 %v3935, 7
  %v3937 = vsub.s32 %v58, %v3936
  %v3938 = vrot.slane %v3889, %v3937
  %v3939 = vlaneseq
  %v3940 = vshrl.u32 %v3939, 7
  %v3941 = vsub.s32 %v2027, %v3940
  %v3942 = vrot.slane %v3892, %v3941
  %v3943 = vsel %vm2032, %v3942, %v3938
  %v3944 = vlaneseq
  %v3945 = vshrl.u32 %v3944, 7
  %v3946 = vsub.s32 %v58, %v3945
  %v3947 = vrot.slane %v3895, %v3946
  %v3948 = vlaneseq
  %v3949 = vshrl.u32 %v3948, 7
  %v3950 = vsub.s32 %v2027, %v3949
  %v3951 = vrot.slane %v3898, %v3950
  %v3952 = vsel %vm2032, %v3951, %v3947
  %v3953 = vlaneseq
  %v3954 = vshrl.u32 %v3953, 7
  %v3955 = vsub.s32 %v58, %v3954
  %v3956 = vrot.slane %v3901, %v3955
  %v3957 = vlaneseq
  %v3958 = vshrl.u32 %v3957, 7
  %v3959 = vsub.s32 %v2027, %v3958
  %v3960 = vrot.slane %v3904, %v3959
  %v3961 = vsel %vm2032, %v3960, %v3956
  %v3962 = vlaneseq
  %v3963 = vshrl.u32 %v3962, 7
  %v3964 = vsub.s32 %v58, %v3963
  %v3965 = vrot.slane %v3907, %v3964
  %v3966 = vlaneseq
  %v3967 = vshrl.u32 %v3966, 7
  %v3968 = vsub.s32 %v2027, %v3967
  %v3969 = vrot.slane %v3910, %v3968
  %v3970 = vsel %vm2032, %v3969, %v3965
  %v3971 = vlaneseq
  %v3972 = vshrl.u32 %v3971, 7
  %v3973 = vsub.s32 %v58, %v3972
  %v3974 = vrot.slane %v3913, %v3973
  %v3975 = vlaneseq
  %v3976 = vshrl.u32 %v3975, 7
  %v3977 = vsub.s32 %v2027, %v3976
  %v3978 = vrot.slane %v3916, %v3977
  %v3979 = vsel %vm2032, %v3978, %v3974
  %v3980 = vlaneseq
  %v3981 = vshrl.u32 %v3980, 7
  %v3982 = vsub.s32 %v58, %v3981
  %v3983 = vrot.slane %v3919, %v3982
  %v3984 = vlaneseq
  %v3985 = vshrl.u32 %v3984, 7
  %v3986 = vsub.s32 %v2027, %v3985
  %v3987 = vrot.slane %v3922, %v3986
  %v3988 = vsel %vm2032, %v3987, %v3983
  %v3989 = vlaneseq
  %v3990 = vshrl.u32 %v3989, 7
  %v3991 = vsub.s32 %v58, %v3990
  %v3992 = vrot.slane %v3925, %v3991
  %v3993 = vlaneseq
  %v3994 = vshrl.u32 %v3993, 7
  %v3995 = vsub.s32 %v2027, %v3994
  %v3996 = vrot.slane %v3928, %v3995
  %v3997 = vsel %vm2032, %v3996, %v3992
  %v3998 = vlaneseq
  %v3999 = vshrl.u32 %v3998, 7
  %v4000 = vsub.s32 %v58, %v3999
  %v4001 = vrot.slane %v3931, %v4000
  %v4002 = vlaneseq
  %v4003 = vshrl.u32 %v4002, 7
  %v4004 = vsub.s32 %v2027, %v4003
  %v4005 = vrot.slane %v3934, %v4004
  %v4006 = vsel %vm2032, %v4005, %v4001
  %v4007 = vsel %vm2097, %v3952, %v3943
  %v4008 = vsel %vm2099, %v3961, %v4007
  %v4009 = vsel %vm2101, %v3970, %v4008
  %v4010 = vsel %vm2103, %v3979, %v4009
  %v4011 = vsel %vm2105, %v3988, %v4010
  %v4012 = vsel %vm2107, %v3997, %v4011
  %v4013 = vsel %vm2109, %v4006, %v4012
  %v4015 = vsel %vm2112, %v4013, -inf
  %4016 = vmax.xlane.f32.xlu0 %v4015
  %v4017 = vpop.xlane.xlu0 %4016
  %v4019 = vlaneseq
  %v4020 = vshrl.u32 %v4019, 7
  %v4021 = vsub.s32 0, %v4020
  %v4022 = vrot.slane %v4017, %v4021
  %v4023 = vlaneseq
  %v4024 = vshrl.u32 %v4023, 7
  %v4025 = vsub.s32 1, %v4024
  %v4026 = vrot.slane %v4017, %v4025
  %v4027 = vlaneseq
  %v4028 = vshrl.u32 %v4027, 7
  %v4029 = vsub.s32 2, %v4028
  %v4030 = vrot.slane %v4017, %v4029
  %v4031 = vlaneseq
  %v4032 = vshrl.u32 %v4031, 7
  %v4033 = vsub.s32 3, %v4032
  %v4034 = vrot.slane %v4017, %v4033
  %v4035 = vlaneseq
  %v4036 = vshrl.u32 %v4035, 7
  %v4037 = vsub.s32 4, %v4036
  %v4038 = vrot.slane %v4017, %v4037
  %v4039 = vlaneseq
  %v4040 = vshrl.u32 %v4039, 7
  %v4041 = vsub.s32 5, %v4040
  %v4042 = vrot.slane %v4017, %v4041
  %v4043 = vlaneseq
  %v4044 = vshrl.u32 %v4043, 7
  %v4045 = vsub.s32 6, %v4044
  %v4046 = vrot.slane %v4017, %v4045
  %v4047 = vlaneseq
  %v4048 = vshrl.u32 %v4047, 7
  %v4049 = vsub.s32 7, %v4048
  %v4050 = vrot.slane %v4017, %v4049
  %v4059 = vsub.f32 %v3855, %v4022
  %v4060 = vsub.f32 %v3856, %v4022
  %v4061 = vsub.f32 %v3857, %v4026
  %v4062 = vsub.f32 %v3858, %v4026
  %v4063 = vsub.f32 %v3859, %v4030
  %v4064 = vsub.f32 %v3860, %v4030
  %v4065 = vsub.f32 %v3861, %v4034
  %v4066 = vsub.f32 %v3862, %v4034
  %v4067 = vsub.f32 %v3863, %v4038
  %v4068 = vsub.f32 %v3864, %v4038
  %v4069 = vsub.f32 %v3865, %v4042
  %v4070 = vsub.f32 %v3866, %v4042
  %v4071 = vsub.f32 %v3867, %v4046
  %v4072 = vsub.f32 %v3868, %v4046
  %v4073 = vsub.f32 %v3869, %v4050
  %v4074 = vsub.f32 %v3870, %v4050
  %v4075 = vmul.f32 %v4059, 1.442695
  %v4076 = vpow.pop %v4075
  %v4077 = vmul.f32 %v4060, 1.442695
  %v4078 = vpow.pop %v4077
  %v4079 = vmul.f32 %v4061, 1.442695
  %v4080 = vpow.pop %v4079
  %v4081 = vmul.f32 %v4062, 1.442695
  %v4082 = vpow.pop %v4081
  %v4083 = vmul.f32 %v4063, 1.442695
  %v4084 = vpow.pop %v4083
  %v4085 = vmul.f32 %v4064, 1.442695
  %v4086 = vpow.pop %v4085
  %v4087 = vmul.f32 %v4065, 1.442695
  %v4088 = vpow.pop %v4087
  %v4089 = vmul.f32 %v4066, 1.442695
  %v4090 = vpow.pop %v4089
  %v4091 = vmul.f32 %v4067, 1.442695
  %v4092 = vpow.pop %v4091
  %v4093 = vmul.f32 %v4068, 1.442695
  %v4094 = vpow.pop %v4093
  %v4095 = vmul.f32 %v4069, 1.442695
  %v4096 = vpow.pop %v4095
  %v4097 = vmul.f32 %v4070, 1.442695
  %v4098 = vpow.pop %v4097
  %v4099 = vmul.f32 %v4071, 1.442695
  %v4100 = vpow.pop %v4099
  %v4101 = vmul.f32 %v4072, 1.442695
  %v4102 = vpow.pop %v4101
  %v4103 = vmul.f32 %v4073, 1.442695
  %v4104 = vpow.pop %v4103
  %v4105 = vmul.f32 %v4074, 1.442695
  %v4106 = vpow.pop %v4105
  %4123 = vset.pattern.permute.xlu0 0
  %4124 = vperm.xlu0 %4123, %v4076
  %v4125 = vpop.permute.xlu0 %4124
  %4126 = vset.pattern.permute.xlu0 0
  %4127 = vperm.xlu0 %4126, %v4078
  %v4128 = vpop.permute.xlu0 %4127
  %4129 = vset.pattern.permute.xlu0 0
  %4130 = vperm.xlu0 %4129, %v4080
  %v4131 = vpop.permute.xlu0 %4130
  %4132 = vset.pattern.permute.xlu0 0
  %4133 = vperm.xlu0 %4132, %v4082
  %v4134 = vpop.permute.xlu0 %4133
  %4135 = vset.pattern.permute.xlu0 0
  %4136 = vperm.xlu0 %4135, %v4084
  %v4137 = vpop.permute.xlu0 %4136
  %4138 = vset.pattern.permute.xlu0 0
  %4139 = vperm.xlu0 %4138, %v4086
  %v4140 = vpop.permute.xlu0 %4139
  %4141 = vset.pattern.permute.xlu0 0
  %4142 = vperm.xlu0 %4141, %v4088
  %v4143 = vpop.permute.xlu0 %4142
  %4144 = vset.pattern.permute.xlu0 0
  %4145 = vperm.xlu0 %4144, %v4090
  %v4146 = vpop.permute.xlu0 %4145
  %4147 = vset.pattern.permute.xlu0 0
  %4148 = vperm.xlu0 %4147, %v4092
  %v4149 = vpop.permute.xlu0 %4148
  %4150 = vset.pattern.permute.xlu0 0
  %4151 = vperm.xlu0 %4150, %v4094
  %v4152 = vpop.permute.xlu0 %4151
  %4153 = vset.pattern.permute.xlu0 0
  %4154 = vperm.xlu0 %4153, %v4096
  %v4155 = vpop.permute.xlu0 %4154
  %4156 = vset.pattern.permute.xlu0 0
  %4157 = vperm.xlu0 %4156, %v4098
  %v4158 = vpop.permute.xlu0 %4157
  %4159 = vset.pattern.permute.xlu0 0
  %4160 = vperm.xlu0 %4159, %v4100
  %v4161 = vpop.permute.xlu0 %4160
  %4162 = vset.pattern.permute.xlu0 0
  %4163 = vperm.xlu0 %4162, %v4102
  %v4164 = vpop.permute.xlu0 %4163
  %4165 = vset.pattern.permute.xlu0 0
  %4166 = vperm.xlu0 %4165, %v4104
  %v4167 = vpop.permute.xlu0 %4166
  %4168 = vset.pattern.permute.xlu0 0
  %4169 = vperm.xlu0 %4168, %v4106
  %v4170 = vpop.permute.xlu0 %4169
  %v4171 = vlaneseq
  %v4172 = vshrl.u32 %v4171, 7
  %v4173 = vsub.s32 %v58, %v4172
  %v4174 = vrot.slane %v4125, %v4173
  %v4175 = vlaneseq
  %v4176 = vshrl.u32 %v4175, 7
  %v4177 = vsub.s32 %v2027, %v4176
  %v4178 = vrot.slane %v4128, %v4177
  %v4179 = vsel %vm2032, %v4178, %v4174
  %v4180 = vlaneseq
  %v4181 = vshrl.u32 %v4180, 7
  %v4182 = vsub.s32 %v58, %v4181
  %v4183 = vrot.slane %v4131, %v4182
  %v4184 = vlaneseq
  %v4185 = vshrl.u32 %v4184, 7
  %v4186 = vsub.s32 %v2027, %v4185
  %v4187 = vrot.slane %v4134, %v4186
  %v4188 = vsel %vm2032, %v4187, %v4183
  %v4189 = vlaneseq
  %v4190 = vshrl.u32 %v4189, 7
  %v4191 = vsub.s32 %v58, %v4190
  %v4192 = vrot.slane %v4137, %v4191
  %v4193 = vlaneseq
  %v4194 = vshrl.u32 %v4193, 7
  %v4195 = vsub.s32 %v2027, %v4194
  %v4196 = vrot.slane %v4140, %v4195
  %v4197 = vsel %vm2032, %v4196, %v4192
  %v4198 = vlaneseq
  %v4199 = vshrl.u32 %v4198, 7
  %v4200 = vsub.s32 %v58, %v4199
  %v4201 = vrot.slane %v4143, %v4200
  %v4202 = vlaneseq
  %v4203 = vshrl.u32 %v4202, 7
  %v4204 = vsub.s32 %v2027, %v4203
  %v4205 = vrot.slane %v4146, %v4204
  %v4206 = vsel %vm2032, %v4205, %v4201
  %v4207 = vlaneseq
  %v4208 = vshrl.u32 %v4207, 7
  %v4209 = vsub.s32 %v58, %v4208
  %v4210 = vrot.slane %v4149, %v4209
  %v4211 = vlaneseq
  %v4212 = vshrl.u32 %v4211, 7
  %v4213 = vsub.s32 %v2027, %v4212
  %v4214 = vrot.slane %v4152, %v4213
  %v4215 = vsel %vm2032, %v4214, %v4210
  %v4216 = vlaneseq
  %v4217 = vshrl.u32 %v4216, 7
  %v4218 = vsub.s32 %v58, %v4217
  %v4219 = vrot.slane %v4155, %v4218
  %v4220 = vlaneseq
  %v4221 = vshrl.u32 %v4220, 7
  %v4222 = vsub.s32 %v2027, %v4221
  %v4223 = vrot.slane %v4158, %v4222
  %v4224 = vsel %vm2032, %v4223, %v4219
  %v4225 = vlaneseq
  %v4226 = vshrl.u32 %v4225, 7
  %v4227 = vsub.s32 %v58, %v4226
  %v4228 = vrot.slane %v4161, %v4227
  %v4229 = vlaneseq
  %v4230 = vshrl.u32 %v4229, 7
  %v4231 = vsub.s32 %v2027, %v4230
  %v4232 = vrot.slane %v4164, %v4231
  %v4233 = vsel %vm2032, %v4232, %v4228
  %v4234 = vlaneseq
  %v4235 = vshrl.u32 %v4234, 7
  %v4236 = vsub.s32 %v58, %v4235
  %v4237 = vrot.slane %v4167, %v4236
  %v4238 = vlaneseq
  %v4239 = vshrl.u32 %v4238, 7
  %v4240 = vsub.s32 %v2027, %v4239
  %v4241 = vrot.slane %v4170, %v4240
  %v4242 = vsel %vm2032, %v4241, %v4237
  %v4243 = vsel %vm2097, %v4188, %v4179
  %v4244 = vsel %vm2099, %v4197, %v4243
  %v4245 = vsel %vm2101, %v4206, %v4244
  %v4246 = vsel %vm2103, %v4215, %v4245
  %v4247 = vsel %vm2105, %v4224, %v4246
  %v4248 = vsel %vm2107, %v4233, %v4247
  %v4249 = vsel %vm2109, %v4242, %v4248
  %v4251 = vsel %vm2112, %v4249, 0.0
  %4252 = vadd.xlane.f32.xlu0 %v4251
  %v4253 = vpop.xlane.xlu0 %4252
  %v4254 = vrcp.pop %v4253
  %v4256 = vlaneseq
  %v4257 = vshrl.u32 %v4256, 7
  %v4258 = vsub.s32 0, %v4257
  %v4259 = vrot.slane %v4254, %v4258
  %v4260 = vlaneseq
  %v4261 = vshrl.u32 %v4260, 7
  %v4262 = vsub.s32 1, %v4261
  %v4263 = vrot.slane %v4254, %v4262
  %v4264 = vlaneseq
  %v4265 = vshrl.u32 %v4264, 7
  %v4266 = vsub.s32 2, %v4265
  %v4267 = vrot.slane %v4254, %v4266
  %v4268 = vlaneseq
  %v4269 = vshrl.u32 %v4268, 7
  %v4270 = vsub.s32 3, %v4269
  %v4271 = vrot.slane %v4254, %v4270
  %v4272 = vlaneseq
  %v4273 = vshrl.u32 %v4272, 7
  %v4274 = vsub.s32 4, %v4273
  %v4275 = vrot.slane %v4254, %v4274
  %v4276 = vlaneseq
  %v4277 = vshrl.u32 %v4276, 7
  %v4278 = vsub.s32 5, %v4277
  %v4279 = vrot.slane %v4254, %v4278
  %v4280 = vlaneseq
  %v4281 = vshrl.u32 %v4280, 7
  %v4282 = vsub.s32 6, %v4281
  %v4283 = vrot.slane %v4254, %v4282
  %v4284 = vlaneseq
  %v4285 = vshrl.u32 %v4284, 7
  %v4286 = vsub.s32 7, %v4285
  %v4287 = vrot.slane %v4254, %v4286
  %v4296 = vmul.f32 %v4076, %v4259
  %v4297 = vmul.f32 %v4078, %v4259
  %v4298 = vmul.f32 %v4080, %v4263
  %v4299 = vmul.f32 %v4082, %v4263
  %v4300 = vmul.f32 %v4084, %v4267
  %v4301 = vmul.f32 %v4086, %v4267
  %v4302 = vmul.f32 %v4088, %v4271
  %v4303 = vmul.f32 %v4090, %v4271
  %v4304 = vmul.f32 %v4092, %v4275
  %v4305 = vmul.f32 %v4094, %v4275
  %v4306 = vmul.f32 %v4096, %v4279
  %v4307 = vmul.f32 %v4098, %v4279
  %v4308 = vmul.f32 %v4100, %v4283
  %v4309 = vmul.f32 %v4102, %v4283
  %v4310 = vmul.f32 %v4104, %v4287
  %v4311 = vmul.f32 %v4106, %v4287
  %4313 = vset.pattern.permute.xlu0 0
  %4314 = vperm.xlu0 %4313, %v4296
  %v4315 = vpop.permute.xlu0 %4314
  %4318 = vset.pattern.permute.xlu0 0
  %4319 = vperm.xlu0 %4318, %v4297
  %v4320 = vpop.permute.xlu0 %4319
  %4323 = vset.pattern.permute.xlu0 0
  %4324 = vperm.xlu0 %4323, %v4298
  %v4325 = vpop.permute.xlu0 %4324
  %4328 = vset.pattern.permute.xlu0 0
  %4329 = vperm.xlu0 %4328, %v4299
  %v4330 = vpop.permute.xlu0 %4329
  %4333 = vset.pattern.permute.xlu0 0
  %4334 = vperm.xlu0 %4333, %v4300
  %v4335 = vpop.permute.xlu0 %4334
  %4338 = vset.pattern.permute.xlu0 0
  %4339 = vperm.xlu0 %4338, %v4301
  %v4340 = vpop.permute.xlu0 %4339
  %4343 = vset.pattern.permute.xlu0 0
  %4344 = vperm.xlu0 %4343, %v4302
  %v4345 = vpop.permute.xlu0 %4344
  %4348 = vset.pattern.permute.xlu0 0
  %4349 = vperm.xlu0 %4348, %v4303
  %v4350 = vpop.permute.xlu0 %4349
  %4353 = vset.pattern.permute.xlu0 0
  %4354 = vperm.xlu0 %4353, %v4304
  %v4355 = vpop.permute.xlu0 %4354
  %4358 = vset.pattern.permute.xlu0 0
  %4359 = vperm.xlu0 %4358, %v4305
  %v4360 = vpop.permute.xlu0 %4359
  %4363 = vset.pattern.permute.xlu0 0
  %4364 = vperm.xlu0 %4363, %v4306
  %v4365 = vpop.permute.xlu0 %4364
  %4368 = vset.pattern.permute.xlu0 0
  %4369 = vperm.xlu0 %4368, %v4307
  %v4370 = vpop.permute.xlu0 %4369
  %4373 = vset.pattern.permute.xlu0 0
  %4374 = vperm.xlu0 %4373, %v4308
  %v4375 = vpop.permute.xlu0 %4374
  %4378 = vset.pattern.permute.xlu0 0
  %4379 = vperm.xlu0 %4378, %v4309
  %v4380 = vpop.permute.xlu0 %4379
  %4383 = vset.pattern.permute.xlu0 0
  %4384 = vperm.xlu0 %4383, %v4310
  %v4385 = vpop.permute.xlu0 %4384
  %4388 = vset.pattern.permute.xlu0 0
  %4389 = vperm.xlu0 %4388, %v4311
  %v4390 = vpop.permute.xlu0 %4389
  %v4392 = vmul.f32 %v4315, %v1549
  %v4393 = vmul.f32 %v4320, %v1554
  %v4394 = vmul.f32 %v4325, %v1559
  %v4395 = vmul.f32 %v4330, %v1564
  %v4396 = vmul.f32 %v4335, %v1569
  %v4397 = vmul.f32 %v4340, %v1574
  %v4398 = vmul.f32 %v4345, %v1579
  %v4399 = vmul.f32 %v4350, %v1584
  %v4400 = vmul.f32 %v4355, %v1589
  %v4401 = vmul.f32 %v4360, %v1594
  %v4402 = vmul.f32 %v4365, %v1599
  %v4403 = vmul.f32 %v4370, %v1604
  %v4404 = vmul.f32 %v4375, %v1609
  %v4405 = vmul.f32 %v4380, %v1614
  %v4406 = vmul.f32 %v4385, %v1619
  %v4407 = vmul.f32 %v4390, %v1624
  %v4408 = vsel %vm79, %v4392, 0.0
  %v4409 = vsel %vm79, %v4393, 0.0
  %v4410 = vadd.f32 %v4408, %v4409
  %v4411 = vrot.slane %v4410, 4
  %v4412 = vadd.f32 %v4410, %v4411
  %v4413 = vrot.slane %v4412, 2
  %v4414 = vadd.f32 %v4412, %v4413
  %v4415 = vrot.slane %v4414, 1
  %v4416 = vadd.f32 %v4414, %v4415
  %v4417 = vsel %vm79, %v4394, 0.0
  %v4418 = vsel %vm79, %v4395, 0.0
  %v4419 = vadd.f32 %v4417, %v4418
  %v4420 = vrot.slane %v4419, 4
  %v4421 = vadd.f32 %v4419, %v4420
  %v4422 = vrot.slane %v4421, 2
  %v4423 = vadd.f32 %v4421, %v4422
  %v4424 = vrot.slane %v4423, 1
  %v4425 = vadd.f32 %v4423, %v4424
  %v4426 = vsel %vm79, %v4396, 0.0
  %v4427 = vsel %vm79, %v4397, 0.0
  %v4428 = vadd.f32 %v4426, %v4427
  %v4429 = vrot.slane %v4428, 4
  %v4430 = vadd.f32 %v4428, %v4429
  %v4431 = vrot.slane %v4430, 2
  %v4432 = vadd.f32 %v4430, %v4431
  %v4433 = vrot.slane %v4432, 1
  %v4434 = vadd.f32 %v4432, %v4433
  %v4435 = vsel %vm79, %v4398, 0.0
  %v4436 = vsel %vm79, %v4399, 0.0
  %v4437 = vadd.f32 %v4435, %v4436
  %v4438 = vrot.slane %v4437, 4
  %v4439 = vadd.f32 %v4437, %v4438
  %v4440 = vrot.slane %v4439, 2
  %v4441 = vadd.f32 %v4439, %v4440
  %v4442 = vrot.slane %v4441, 1
  %v4443 = vadd.f32 %v4441, %v4442
  %v4444 = vsel %vm79, %v4400, 0.0
  %v4445 = vsel %vm79, %v4401, 0.0
  %v4446 = vadd.f32 %v4444, %v4445
  %v4447 = vrot.slane %v4446, 4
  %v4448 = vadd.f32 %v4446, %v4447
  %v4449 = vrot.slane %v4448, 2
  %v4450 = vadd.f32 %v4448, %v4449
  %v4451 = vrot.slane %v4450, 1
  %v4452 = vadd.f32 %v4450, %v4451
  %v4453 = vsel %vm79, %v4402, 0.0
  %v4454 = vsel %vm79, %v4403, 0.0
  %v4455 = vadd.f32 %v4453, %v4454
  %v4456 = vrot.slane %v4455, 4
  %v4457 = vadd.f32 %v4455, %v4456
  %v4458 = vrot.slane %v4457, 2
  %v4459 = vadd.f32 %v4457, %v4458
  %v4460 = vrot.slane %v4459, 1
  %v4461 = vadd.f32 %v4459, %v4460
  %v4462 = vsel %vm79, %v4404, 0.0
  %v4463 = vsel %vm79, %v4405, 0.0
  %v4464 = vadd.f32 %v4462, %v4463
  %v4465 = vrot.slane %v4464, 4
  %v4466 = vadd.f32 %v4464, %v4465
  %v4467 = vrot.slane %v4466, 2
  %v4468 = vadd.f32 %v4466, %v4467
  %v4469 = vrot.slane %v4468, 1
  %v4470 = vadd.f32 %v4468, %v4469
  %v4471 = vsel %vm79, %v4406, 0.0
  %v4472 = vsel %vm79, %v4407, 0.0
  %v4473 = vadd.f32 %v4471, %v4472
  %v4474 = vrot.slane %v4473, 4
  %v4475 = vadd.f32 %v4473, %v4474
  %v4476 = vrot.slane %v4475, 2
  %v4477 = vadd.f32 %v4475, %v4476
  %v4478 = vrot.slane %v4477, 1
  %v4479 = vadd.f32 %v4477, %v4478
  %v4488 = vsel %vm2097, %v4425, %v4416
  %v4489 = vsel %vm2099, %v4434, %v4488
  %v4490 = vsel %vm2101, %v4443, %v4489
  %v4491 = vsel %vm2103, %v4452, %v4490
  %v4492 = vsel %vm2105, %v4461, %v4491
  %v4493 = vsel %vm2107, %v4470, %v4492
  %v4494 = vsel %vm2109, %v4479, %v4493
  %4496 = vst.msk [vmem:[#allocation3 + $0x10] sm:$0xff] %vm79, %v4494
  %v4498 = vcombine.high %v1234, %v1234
  %v4500 = vunpack.c.l.s4 1966171168
  %v4501 = vunpack.c.0.s8 %v4500
  %v4502 = vlaneseq
  %v4503 = vshrl.u32 %v4502, 7
  %v4504 = vsub.s32 %v4501, %v4503
  %v4505 = vrot.slane %v1234, %v4504
  %v4507 = vunpack.c.l.s4 1966171168
  %v4508 = vunpack.c.0.s8 %v4507
  %v4509 = vlaneseq
  %v4510 = vshrl.u32 %v4509, 7
  %v4511 = vsub.s32 %v4508, %v4510
  %v4512 = vrot.slane %v4498, %v4511
  %v4513 = vcombine.high %v4505, %v4505
  %v4514 = vcombine.high %v4512, %v4512
  %v4516 = vunpack.c.l.s4 1966171168
  %v4517 = vunpack.c.0.s8 %v4516
  %v4518 = vlaneseq
  %v4519 = vshrl.u32 %v4518, 7
  %v4520 = vsub.s32 %v4517, %v4519
  %v4521 = vrot.slane %v4505, %v4520
  %v4523 = vunpack.c.l.s4 1966171168
  %v4524 = vunpack.c.0.s8 %v4523
  %v4525 = vlaneseq
  %v4526 = vshrl.u32 %v4525, 7
  %v4527 = vsub.s32 %v4524, %v4526
  %v4528 = vrot.slane %v4512, %v4527
  %v4530 = vunpack.c.l.s4 1966171168
  %v4531 = vunpack.c.0.s8 %v4530
  %v4532 = vlaneseq
  %v4533 = vshrl.u32 %v4532, 7
  %v4534 = vsub.s32 %v4531, %v4533
  %v4535 = vrot.slane %v4513, %v4534
  %v4537 = vunpack.c.l.s4 1966171168
  %v4538 = vunpack.c.0.s8 %v4537
  %v4539 = vlaneseq
  %v4540 = vshrl.u32 %v4539, 7
  %v4541 = vsub.s32 %v4538, %v4540
  %v4542 = vrot.slane %v4514, %v4541
  %v4543 = vcombine.high %v4521, %v4521
  %v4544 = vcombine.high %v4528, %v4528
  %v4545 = vcombine.high %v4535, %v4535
  %v4546 = vcombine.high %v4542, %v4542
  %v4547 = vlaneseq
  %v4548 = vshrl.u32 %v4547, 7
  %v4549 = vsub.s32 0, %v4548
  %v4550 = vrot.slane %v4521, %v4549
  %v4551 = vlaneseq
  %v4552 = vshrl.u32 %v4551, 7
  %v4553 = vsub.s32 0, %v4552
  %v4554 = vrot.slane %v4535, %v4553
  %v4555 = vlaneseq
  %v4556 = vshrl.u32 %v4555, 7
  %v4557 = vsub.s32 0, %v4556
  %v4558 = vrot.slane %v4543, %v4557
  %v4559 = vlaneseq
  %v4560 = vshrl.u32 %v4559, 7
  %v4561 = vsub.s32 0, %v4560
  %v4562 = vrot.slane %v4545, %v4561
  %v4563 = vlaneseq
  %v4564 = vshrl.u32 %v4563, 7
  %v4565 = vsub.s32 0, %v4564
  %v4566 = vrot.slane %v4528, %v4565
  %v4567 = vlaneseq
  %v4568 = vshrl.u32 %v4567, 7
  %v4569 = vsub.s32 0, %v4568
  %v4570 = vrot.slane %v4542, %v4569
  %v4571 = vlaneseq
  %v4572 = vshrl.u32 %v4571, 7
  %v4573 = vsub.s32 0, %v4572
  %v4574 = vrot.slane %v4544, %v4573
  %v4575 = vlaneseq
  %v4576 = vshrl.u32 %v4575, 7
  %v4577 = vsub.s32 0, %v4576
  %v4578 = vrot.slane %v4546, %v4577
  %v4587 = vadd.f32 %v4550, %v1396
  %v4588 = vadd.f32 %v4550, %v1401
  %v4589 = vadd.f32 %v4554, %v1406
  %v4590 = vadd.f32 %v4554, %v1411
  %v4591 = vadd.f32 %v4558, %v1416
  %v4592 = vadd.f32 %v4558, %v1421
  %v4593 = vadd.f32 %v4562, %v1426
  %v4594 = vadd.f32 %v4562, %v1431
  %v4595 = vadd.f32 %v4566, %v1436
  %v4596 = vadd.f32 %v4566, %v1441
  %v4597 = vadd.f32 %v4570, %v1446
  %v4598 = vadd.f32 %v4570, %v1451
  %v4599 = vadd.f32 %v4574, %v1456
  %v4600 = vadd.f32 %v4574, %v1461
  %v4601 = vadd.f32 %v4578, %v1466
  %v4602 = vadd.f32 %v4578, %v1471
  %v4603 = vtanh.pop %v4587
  %v4604 = vtanh.pop %v4588
  %v4605 = vtanh.pop %v4589
  %v4606 = vtanh.pop %v4590
  %v4607 = vtanh.pop %v4591
  %v4608 = vtanh.pop %v4592
  %v4609 = vtanh.pop %v4593
  %v4610 = vtanh.pop %v4594
  %v4611 = vtanh.pop %v4595
  %v4612 = vtanh.pop %v4596
  %v4613 = vtanh.pop %v4597
  %v4614 = vtanh.pop %v4598
  %v4615 = vtanh.pop %v4599
  %v4616 = vtanh.pop %v4600
  %v4617 = vtanh.pop %v4601
  %v4618 = vtanh.pop %v4602
  %v4619 = vmul.f32 %v4603, %v1752
  %v4620 = vmul.f32 %v4604, %v1752
  %v4621 = vmul.f32 %v4605, %v1752
  %v4622 = vmul.f32 %v4606, %v1752
  %v4623 = vmul.f32 %v4607, %v1752
  %v4624 = vmul.f32 %v4608, %v1752
  %v4625 = vmul.f32 %v4609, %v1752
  %v4626 = vmul.f32 %v4610, %v1752
  %v4627 = vmul.f32 %v4611, %v1752
  %v4628 = vmul.f32 %v4612, %v1752
  %v4629 = vmul.f32 %v4613, %v1752
  %v4630 = vmul.f32 %v4614, %v1752
  %v4631 = vmul.f32 %v4615, %v1752
  %v4632 = vmul.f32 %v4616, %v1752
  %v4633 = vmul.f32 %v4617, %v1752
  %v4634 = vmul.f32 %v4618, %v1752
  %v4635 = vsel %vm79, %v4619, 0.0
  %4636 = vadd.xlane.f32.xlu0 %v4635
  %v4637 = vpop.xlane.xlu0 %4636
  %v4638 = vsel %vm79, %v4620, 0.0
  %4639 = vadd.xlane.f32.xlu0 %v4638
  %v4640 = vpop.xlane.xlu0 %4639
  %v4641 = vsel %vm79, %v4621, 0.0
  %4642 = vadd.xlane.f32.xlu0 %v4641
  %v4643 = vpop.xlane.xlu0 %4642
  %v4644 = vsel %vm79, %v4622, 0.0
  %4645 = vadd.xlane.f32.xlu0 %v4644
  %v4646 = vpop.xlane.xlu0 %4645
  %v4647 = vsel %vm79, %v4623, 0.0
  %4648 = vadd.xlane.f32.xlu0 %v4647
  %v4649 = vpop.xlane.xlu0 %4648
  %v4650 = vsel %vm79, %v4624, 0.0
  %4651 = vadd.xlane.f32.xlu0 %v4650
  %v4652 = vpop.xlane.xlu0 %4651
  %v4653 = vsel %vm79, %v4625, 0.0
  %4654 = vadd.xlane.f32.xlu0 %v4653
  %v4655 = vpop.xlane.xlu0 %4654
  %v4656 = vsel %vm79, %v4626, 0.0
  %4657 = vadd.xlane.f32.xlu0 %v4656
  %v4658 = vpop.xlane.xlu0 %4657
  %v4659 = vsel %vm79, %v4627, 0.0
  %4660 = vadd.xlane.f32.xlu0 %v4659
  %v4661 = vpop.xlane.xlu0 %4660
  %v4662 = vsel %vm79, %v4628, 0.0
  %4663 = vadd.xlane.f32.xlu0 %v4662
  %v4664 = vpop.xlane.xlu0 %4663
  %v4665 = vsel %vm79, %v4629, 0.0
  %4666 = vadd.xlane.f32.xlu0 %v4665
  %v4667 = vpop.xlane.xlu0 %4666
  %v4668 = vsel %vm79, %v4630, 0.0
  %4669 = vadd.xlane.f32.xlu0 %v4668
  %v4670 = vpop.xlane.xlu0 %4669
  %v4671 = vsel %vm79, %v4631, 0.0
  %4672 = vadd.xlane.f32.xlu0 %v4671
  %v4673 = vpop.xlane.xlu0 %4672
  %v4674 = vsel %vm79, %v4632, 0.0
  %4675 = vadd.xlane.f32.xlu0 %v4674
  %v4676 = vpop.xlane.xlu0 %4675
  %v4677 = vsel %vm79, %v4633, 0.0
  %4678 = vadd.xlane.f32.xlu0 %v4677
  %v4679 = vpop.xlane.xlu0 %4678
  %v4680 = vsel %vm79, %v4634, 0.0
  %4681 = vadd.xlane.f32.xlu0 %v4680
  %v4682 = vpop.xlane.xlu0 %4681
  %v4683 = vadd.f32 %v4637, %v1819
  %v4684 = vadd.f32 %v4640, %v1819
  %v4685 = vadd.f32 %v4643, %v1819
  %v4686 = vadd.f32 %v4646, %v1819
  %v4687 = vadd.f32 %v4649, %v1819
  %v4688 = vadd.f32 %v4652, %v1819
  %v4689 = vadd.f32 %v4655, %v1819
  %v4690 = vadd.f32 %v4658, %v1819
  %v4691 = vadd.f32 %v4661, %v1819
  %v4692 = vadd.f32 %v4664, %v1819
  %v4693 = vadd.f32 %v4667, %v1819
  %v4694 = vadd.f32 %v4670, %v1819
  %v4695 = vadd.f32 %v4673, %v1819
  %v4696 = vadd.f32 %v4676, %v1819
  %v4697 = vadd.f32 %v4679, %v1819
  %v4698 = vadd.f32 %v4682, %v1819
  %s4699 = scalar_lea.vmem %s2, 24
  %v4700 = vld [vmem:[%s4699] sm:$0xff]
  %v4702 = vlaneseq
  %v4703 = vshrl.u32 %v4702, 7
  %v4704 = vsub.s32 0, %v4703
  %v4705 = vrot.slane %v4700, %v4704
  %4707 = vbcast.lane.b32.xlu0 %v4705, 256
  %v4708 = vpop.permute.xlu0 %4707
  %s4710 = sor.u32 256, 8
  %4711 = vbcast.lane.b32.xlu0 %v4705, %s4710
  %v4712 = vpop.permute.xlu0 %4711
  %v4713 = vlaneseq
  %v4714 = vshrl.u32 %v4713, 7
  %v4715 = vsub.s32 1, %v4714
  %v4716 = vrot.slane %v4700, %v4715
  %4718 = vbcast.lane.b32.xlu0 %v4716, 256
  %v4719 = vpop.permute.xlu0 %4718
  %s4721 = sor.u32 256, 8
  %4722 = vbcast.lane.b32.xlu0 %v4716, %s4721
  %v4723 = vpop.permute.xlu0 %4722
  %v4724 = vlaneseq
  %v4725 = vshrl.u32 %v4724, 7
  %v4726 = vsub.s32 2, %v4725
  %v4727 = vrot.slane %v4700, %v4726
  %4729 = vbcast.lane.b32.xlu0 %v4727, 256
  %v4730 = vpop.permute.xlu0 %4729
  %s4732 = sor.u32 256, 8
  %4733 = vbcast.lane.b32.xlu0 %v4727, %s4732
  %v4734 = vpop.permute.xlu0 %4733
  %v4735 = vlaneseq
  %v4736 = vshrl.u32 %v4735, 7
  %v4737 = vsub.s32 3, %v4736
  %v4738 = vrot.slane %v4700, %v4737
  %4740 = vbcast.lane.b32.xlu0 %v4738, 256
  %v4741 = vpop.permute.xlu0 %4740
  %s4743 = sor.u32 256, 8
  %4744 = vbcast.lane.b32.xlu0 %v4738, %s4743
  %v4745 = vpop.permute.xlu0 %4744
  %v4746 = vlaneseq
  %v4747 = vshrl.u32 %v4746, 7
  %v4748 = vsub.s32 4, %v4747
  %v4749 = vrot.slane %v4700, %v4748
  %4751 = vbcast.lane.b32.xlu0 %v4749, 256
  %v4752 = vpop.permute.xlu0 %4751
  %s4754 = sor.u32 256, 8
  %4755 = vbcast.lane.b32.xlu0 %v4749, %s4754
  %v4756 = vpop.permute.xlu0 %4755
  %v4757 = vlaneseq
  %v4758 = vshrl.u32 %v4757, 7
  %v4759 = vsub.s32 5, %v4758
  %v4760 = vrot.slane %v4700, %v4759
  %4762 = vbcast.lane.b32.xlu0 %v4760, 256
  %v4763 = vpop.permute.xlu0 %4762
  %s4765 = sor.u32 256, 8
  %4766 = vbcast.lane.b32.xlu0 %v4760, %s4765
  %v4767 = vpop.permute.xlu0 %4766
  %v4768 = vlaneseq
  %v4769 = vshrl.u32 %v4768, 7
  %v4770 = vsub.s32 6, %v4769
  %v4771 = vrot.slane %v4700, %v4770
  %4773 = vbcast.lane.b32.xlu0 %v4771, 256
  %v4774 = vpop.permute.xlu0 %4773
  %s4776 = sor.u32 256, 8
  %4777 = vbcast.lane.b32.xlu0 %v4771, %s4776
  %v4778 = vpop.permute.xlu0 %4777
  %v4779 = vlaneseq
  %v4780 = vshrl.u32 %v4779, 7
  %v4781 = vsub.s32 7, %v4780
  %v4782 = vrot.slane %v4700, %v4781
  %4784 = vbcast.lane.b32.xlu0 %v4782, 256
  %v4785 = vpop.permute.xlu0 %4784
  %s4787 = sor.u32 256, 8
  %4788 = vbcast.lane.b32.xlu0 %v4782, %s4787
  %v4789 = vpop.permute.xlu0 %4788
  %v4806 = vadd.f32 %v4683, %v4708
  %v4807 = vadd.f32 %v4684, %v4712
  %v4808 = vadd.f32 %v4685, %v4719
  %v4809 = vadd.f32 %v4686, %v4723
  %v4810 = vadd.f32 %v4687, %v4730
  %v4811 = vadd.f32 %v4688, %v4734
  %v4812 = vadd.f32 %v4689, %v4741
  %v4813 = vadd.f32 %v4690, %v4745
  %v4814 = vadd.f32 %v4691, %v4752
  %v4815 = vadd.f32 %v4692, %v4756
  %v4816 = vadd.f32 %v4693, %v4763
  %v4817 = vadd.f32 %v4694, %v4767
  %v4818 = vadd.f32 %v4695, %v4774
  %v4819 = vadd.f32 %v4696, %v4778
  %v4820 = vadd.f32 %v4697, %v4785
  %v4821 = vadd.f32 %v4698, %v4789
  %4838 = vset.pattern.permute.xlu0 0
  %4839 = vperm.xlu0 %4838, %v4806
  %v4840 = vpop.permute.xlu0 %4839
  %4841 = vset.pattern.permute.xlu0 0
  %4842 = vperm.xlu0 %4841, %v4807
  %v4843 = vpop.permute.xlu0 %4842
  %4844 = vset.pattern.permute.xlu0 0
  %4845 = vperm.xlu0 %4844, %v4808
  %v4846 = vpop.permute.xlu0 %4845
  %4847 = vset.pattern.permute.xlu0 0
  %4848 = vperm.xlu0 %4847, %v4809
  %v4849 = vpop.permute.xlu0 %4848
  %4850 = vset.pattern.permute.xlu0 0
  %4851 = vperm.xlu0 %4850, %v4810
  %v4852 = vpop.permute.xlu0 %4851
  %4853 = vset.pattern.permute.xlu0 0
  %4854 = vperm.xlu0 %4853, %v4811
  %v4855 = vpop.permute.xlu0 %4854
  %4856 = vset.pattern.permute.xlu0 0
  %4857 = vperm.xlu0 %4856, %v4812
  %v4858 = vpop.permute.xlu0 %4857
  %4859 = vset.pattern.permute.xlu0 0
  %4860 = vperm.xlu0 %4859, %v4813
  %v4861 = vpop.permute.xlu0 %4860
  %4862 = vset.pattern.permute.xlu0 0
  %4863 = vperm.xlu0 %4862, %v4814
  %v4864 = vpop.permute.xlu0 %4863
  %4865 = vset.pattern.permute.xlu0 0
  %4866 = vperm.xlu0 %4865, %v4815
  %v4867 = vpop.permute.xlu0 %4866
  %4868 = vset.pattern.permute.xlu0 0
  %4869 = vperm.xlu0 %4868, %v4816
  %v4870 = vpop.permute.xlu0 %4869
  %4871 = vset.pattern.permute.xlu0 0
  %4872 = vperm.xlu0 %4871, %v4817
  %v4873 = vpop.permute.xlu0 %4872
  %4874 = vset.pattern.permute.xlu0 0
  %4875 = vperm.xlu0 %4874, %v4818
  %v4876 = vpop.permute.xlu0 %4875
  %4877 = vset.pattern.permute.xlu0 0
  %4878 = vperm.xlu0 %4877, %v4819
  %v4879 = vpop.permute.xlu0 %4878
  %4880 = vset.pattern.permute.xlu0 0
  %4881 = vperm.xlu0 %4880, %v4820
  %v4882 = vpop.permute.xlu0 %4881
  %4883 = vset.pattern.permute.xlu0 0
  %4884 = vperm.xlu0 %4883, %v4821
  %v4885 = vpop.permute.xlu0 %4884
  %v4886 = vlaneseq
  %v4887 = vshrl.u32 %v4886, 7
  %v4888 = vsub.s32 %v58, %v4887
  %v4889 = vrot.slane %v4840, %v4888
  %v4890 = vlaneseq
  %v4891 = vshrl.u32 %v4890, 7
  %v4892 = vsub.s32 %v2027, %v4891
  %v4893 = vrot.slane %v4843, %v4892
  %v4894 = vsel %vm2032, %v4893, %v4889
  %v4895 = vlaneseq
  %v4896 = vshrl.u32 %v4895, 7
  %v4897 = vsub.s32 %v58, %v4896
  %v4898 = vrot.slane %v4846, %v4897
  %v4899 = vlaneseq
  %v4900 = vshrl.u32 %v4899, 7
  %v4901 = vsub.s32 %v2027, %v4900
  %v4902 = vrot.slane %v4849, %v4901
  %v4903 = vsel %vm2032, %v4902, %v4898
  %v4904 = vlaneseq
  %v4905 = vshrl.u32 %v4904, 7
  %v4906 = vsub.s32 %v58, %v4905
  %v4907 = vrot.slane %v4852, %v4906
  %v4908 = vlaneseq
  %v4909 = vshrl.u32 %v4908, 7
  %v4910 = vsub.s32 %v2027, %v4909
  %v4911 = vrot.slane %v4855, %v4910
  %v4912 = vsel %vm2032, %v4911, %v4907
  %v4913 = vlaneseq
  %v4914 = vshrl.u32 %v4913, 7
  %v4915 = vsub.s32 %v58, %v4914
  %v4916 = vrot.slane %v4858, %v4915
  %v4917 = vlaneseq
  %v4918 = vshrl.u32 %v4917, 7
  %v4919 = vsub.s32 %v2027, %v4918
  %v4920 = vrot.slane %v4861, %v4919
  %v4921 = vsel %vm2032, %v4920, %v4916
  %v4922 = vlaneseq
  %v4923 = vshrl.u32 %v4922, 7
  %v4924 = vsub.s32 %v58, %v4923
  %v4925 = vrot.slane %v4864, %v4924
  %v4926 = vlaneseq
  %v4927 = vshrl.u32 %v4926, 7
  %v4928 = vsub.s32 %v2027, %v4927
  %v4929 = vrot.slane %v4867, %v4928
  %v4930 = vsel %vm2032, %v4929, %v4925
  %v4931 = vlaneseq
  %v4932 = vshrl.u32 %v4931, 7
  %v4933 = vsub.s32 %v58, %v4932
  %v4934 = vrot.slane %v4870, %v4933
  %v4935 = vlaneseq
  %v4936 = vshrl.u32 %v4935, 7
  %v4937 = vsub.s32 %v2027, %v4936
  %v4938 = vrot.slane %v4873, %v4937
  %v4939 = vsel %vm2032, %v4938, %v4934
  %v4940 = vlaneseq
  %v4941 = vshrl.u32 %v4940, 7
  %v4942 = vsub.s32 %v58, %v4941
  %v4943 = vrot.slane %v4876, %v4942
  %v4944 = vlaneseq
  %v4945 = vshrl.u32 %v4944, 7
  %v4946 = vsub.s32 %v2027, %v4945
  %v4947 = vrot.slane %v4879, %v4946
  %v4948 = vsel %vm2032, %v4947, %v4943
  %v4949 = vlaneseq
  %v4950 = vshrl.u32 %v4949, 7
  %v4951 = vsub.s32 %v58, %v4950
  %v4952 = vrot.slane %v4882, %v4951
  %v4953 = vlaneseq
  %v4954 = vshrl.u32 %v4953, 7
  %v4955 = vsub.s32 %v2027, %v4954
  %v4956 = vrot.slane %v4885, %v4955
  %v4957 = vsel %vm2032, %v4956, %v4952
  %v4958 = vsel %vm2097, %v4903, %v4894
  %v4959 = vsel %vm2099, %v4912, %v4958
  %v4960 = vsel %vm2101, %v4921, %v4959
  %v4961 = vsel %vm2103, %v4930, %v4960
  %v4962 = vsel %vm2105, %v4939, %v4961
  %v4963 = vsel %vm2107, %v4948, %v4962
  %v4964 = vsel %vm2109, %v4957, %v4963
  %v4966 = vsel %vm2112, %v4964, -inf
  %4967 = vmax.xlane.f32.xlu0 %v4966
  %v4968 = vpop.xlane.xlu0 %4967
  %v4970 = vlaneseq
  %v4971 = vshrl.u32 %v4970, 7
  %v4972 = vsub.s32 0, %v4971
  %v4973 = vrot.slane %v4968, %v4972
  %v4974 = vlaneseq
  %v4975 = vshrl.u32 %v4974, 7
  %v4976 = vsub.s32 1, %v4975
  %v4977 = vrot.slane %v4968, %v4976
  %v4978 = vlaneseq
  %v4979 = vshrl.u32 %v4978, 7
  %v4980 = vsub.s32 2, %v4979
  %v4981 = vrot.slane %v4968, %v4980
  %v4982 = vlaneseq
  %v4983 = vshrl.u32 %v4982, 7
  %v4984 = vsub.s32 3, %v4983
  %v4985 = vrot.slane %v4968, %v4984
  %v4986 = vlaneseq
  %v4987 = vshrl.u32 %v4986, 7
  %v4988 = vsub.s32 4, %v4987
  %v4989 = vrot.slane %v4968, %v4988
  %v4990 = vlaneseq
  %v4991 = vshrl.u32 %v4990, 7
  %v4992 = vsub.s32 5, %v4991
  %v4993 = vrot.slane %v4968, %v4992
  %v4994 = vlaneseq
  %v4995 = vshrl.u32 %v4994, 7
  %v4996 = vsub.s32 6, %v4995
  %v4997 = vrot.slane %v4968, %v4996
  %v4998 = vlaneseq
  %v4999 = vshrl.u32 %v4998, 7
  %v5000 = vsub.s32 7, %v4999
  %v5001 = vrot.slane %v4968, %v5000
  %v5010 = vsub.f32 %v4806, %v4973
  %v5011 = vsub.f32 %v4807, %v4973
  %v5012 = vsub.f32 %v4808, %v4977
  %v5013 = vsub.f32 %v4809, %v4977
  %v5014 = vsub.f32 %v4810, %v4981
  %v5015 = vsub.f32 %v4811, %v4981
  %v5016 = vsub.f32 %v4812, %v4985
  %v5017 = vsub.f32 %v4813, %v4985
  %v5018 = vsub.f32 %v4814, %v4989
  %v5019 = vsub.f32 %v4815, %v4989
  %v5020 = vsub.f32 %v4816, %v4993
  %v5021 = vsub.f32 %v4817, %v4993
  %v5022 = vsub.f32 %v4818, %v4997
  %v5023 = vsub.f32 %v4819, %v4997
  %v5024 = vsub.f32 %v4820, %v5001
  %v5025 = vsub.f32 %v4821, %v5001
  %v5026 = vmul.f32 %v5010, 1.442695
  %v5027 = vpow.pop %v5026
  %v5028 = vmul.f32 %v5011, 1.442695
  %v5029 = vpow.pop %v5028
  %v5030 = vmul.f32 %v5012, 1.442695
  %v5031 = vpow.pop %v5030
  %v5032 = vmul.f32 %v5013, 1.442695
  %v5033 = vpow.pop %v5032
  %v5034 = vmul.f32 %v5014, 1.442695
  %v5035 = vpow.pop %v5034
  %v5036 = vmul.f32 %v5015, 1.442695
  %v5037 = vpow.pop %v5036
  %v5038 = vmul.f32 %v5016, 1.442695
  %v5039 = vpow.pop %v5038
  %v5040 = vmul.f32 %v5017, 1.442695
  %v5041 = vpow.pop %v5040
  %v5042 = vmul.f32 %v5018, 1.442695
  %v5043 = vpow.pop %v5042
  %v5044 = vmul.f32 %v5019, 1.442695
  %v5045 = vpow.pop %v5044
  %v5046 = vmul.f32 %v5020, 1.442695
  %v5047 = vpow.pop %v5046
  %v5048 = vmul.f32 %v5021, 1.442695
  %v5049 = vpow.pop %v5048
  %v5050 = vmul.f32 %v5022, 1.442695
  %v5051 = vpow.pop %v5050
  %v5052 = vmul.f32 %v5023, 1.442695
  %v5053 = vpow.pop %v5052
  %v5054 = vmul.f32 %v5024, 1.442695
  %v5055 = vpow.pop %v5054
  %v5056 = vmul.f32 %v5025, 1.442695
  %v5057 = vpow.pop %v5056
  %5074 = vset.pattern.permute.xlu0 0
  %5075 = vperm.xlu0 %5074, %v5027
  %v5076 = vpop.permute.xlu0 %5075
  %5077 = vset.pattern.permute.xlu0 0
  %5078 = vperm.xlu0 %5077, %v5029
  %v5079 = vpop.permute.xlu0 %5078
  %5080 = vset.pattern.permute.xlu0 0
  %5081 = vperm.xlu0 %5080, %v5031
  %v5082 = vpop.permute.xlu0 %5081
  %5083 = vset.pattern.permute.xlu0 0
  %5084 = vperm.xlu0 %5083, %v5033
  %v5085 = vpop.permute.xlu0 %5084
  %5086 = vset.pattern.permute.xlu0 0
  %5087 = vperm.xlu0 %5086, %v5035
  %v5088 = vpop.permute.xlu0 %5087
  %5089 = vset.pattern.permute.xlu0 0
  %5090 = vperm.xlu0 %5089, %v5037
  %v5091 = vpop.permute.xlu0 %5090
  %5092 = vset.pattern.permute.xlu0 0
  %5093 = vperm.xlu0 %5092, %v5039
  %v5094 = vpop.permute.xlu0 %5093
  %5095 = vset.pattern.permute.xlu0 0
  %5096 = vperm.xlu0 %5095, %v5041
  %v5097 = vpop.permute.xlu0 %5096
  %5098 = vset.pattern.permute.xlu0 0
  %5099 = vperm.xlu0 %5098, %v5043
  %v5100 = vpop.permute.xlu0 %5099
  %5101 = vset.pattern.permute.xlu0 0
  %5102 = vperm.xlu0 %5101, %v5045
  %v5103 = vpop.permute.xlu0 %5102
  %5104 = vset.pattern.permute.xlu0 0
  %5105 = vperm.xlu0 %5104, %v5047
  %v5106 = vpop.permute.xlu0 %5105
  %5107 = vset.pattern.permute.xlu0 0
  %5108 = vperm.xlu0 %5107, %v5049
  %v5109 = vpop.permute.xlu0 %5108
  %5110 = vset.pattern.permute.xlu0 0
  %5111 = vperm.xlu0 %5110, %v5051
  %v5112 = vpop.permute.xlu0 %5111
  %5113 = vset.pattern.permute.xlu0 0
  %5114 = vperm.xlu0 %5113, %v5053
  %v5115 = vpop.permute.xlu0 %5114
  %5116 = vset.pattern.permute.xlu0 0
  %5117 = vperm.xlu0 %5116, %v5055
  %v5118 = vpop.permute.xlu0 %5117
  %5119 = vset.pattern.permute.xlu0 0
  %5120 = vperm.xlu0 %5119, %v5057
  %v5121 = vpop.permute.xlu0 %5120
  %v5122 = vlaneseq
  %v5123 = vshrl.u32 %v5122, 7
  %v5124 = vsub.s32 %v58, %v5123
  %v5125 = vrot.slane %v5076, %v5124
  %v5126 = vlaneseq
  %v5127 = vshrl.u32 %v5126, 7
  %v5128 = vsub.s32 %v2027, %v5127
  %v5129 = vrot.slane %v5079, %v5128
  %v5130 = vsel %vm2032, %v5129, %v5125
  %v5131 = vlaneseq
  %v5132 = vshrl.u32 %v5131, 7
  %v5133 = vsub.s32 %v58, %v5132
  %v5134 = vrot.slane %v5082, %v5133
  %v5135 = vlaneseq
  %v5136 = vshrl.u32 %v5135, 7
  %v5137 = vsub.s32 %v2027, %v5136
  %v5138 = vrot.slane %v5085, %v5137
  %v5139 = vsel %vm2032, %v5138, %v5134
  %v5140 = vlaneseq
  %v5141 = vshrl.u32 %v5140, 7
  %v5142 = vsub.s32 %v58, %v5141
  %v5143 = vrot.slane %v5088, %v5142
  %v5144 = vlaneseq
  %v5145 = vshrl.u32 %v5144, 7
  %v5146 = vsub.s32 %v2027, %v5145
  %v5147 = vrot.slane %v5091, %v5146
  %v5148 = vsel %vm2032, %v5147, %v5143
  %v5149 = vlaneseq
  %v5150 = vshrl.u32 %v5149, 7
  %v5151 = vsub.s32 %v58, %v5150
  %v5152 = vrot.slane %v5094, %v5151
  %v5153 = vlaneseq
  %v5154 = vshrl.u32 %v5153, 7
  %v5155 = vsub.s32 %v2027, %v5154
  %v5156 = vrot.slane %v5097, %v5155
  %v5157 = vsel %vm2032, %v5156, %v5152
  %v5158 = vlaneseq
  %v5159 = vshrl.u32 %v5158, 7
  %v5160 = vsub.s32 %v58, %v5159
  %v5161 = vrot.slane %v5100, %v5160
  %v5162 = vlaneseq
  %v5163 = vshrl.u32 %v5162, 7
  %v5164 = vsub.s32 %v2027, %v5163
  %v5165 = vrot.slane %v5103, %v5164
  %v5166 = vsel %vm2032, %v5165, %v5161
  %v5167 = vlaneseq
  %v5168 = vshrl.u32 %v5167, 7
  %v5169 = vsub.s32 %v58, %v5168
  %v5170 = vrot.slane %v5106, %v5169
  %v5171 = vlaneseq
  %v5172 = vshrl.u32 %v5171, 7
  %v5173 = vsub.s32 %v2027, %v5172
  %v5174 = vrot.slane %v5109, %v5173
  %v5175 = vsel %vm2032, %v5174, %v5170
  %v5176 = vlaneseq
  %v5177 = vshrl.u32 %v5176, 7
  %v5178 = vsub.s32 %v58, %v5177
  %v5179 = vrot.slane %v5112, %v5178
  %v5180 = vlaneseq
  %v5181 = vshrl.u32 %v5180, 7
  %v5182 = vsub.s32 %v2027, %v5181
  %v5183 = vrot.slane %v5115, %v5182
  %v5184 = vsel %vm2032, %v5183, %v5179
  %v5185 = vlaneseq
  %v5186 = vshrl.u32 %v5185, 7
  %v5187 = vsub.s32 %v58, %v5186
  %v5188 = vrot.slane %v5118, %v5187
  %v5189 = vlaneseq
  %v5190 = vshrl.u32 %v5189, 7
  %v5191 = vsub.s32 %v2027, %v5190
  %v5192 = vrot.slane %v5121, %v5191
  %v5193 = vsel %vm2032, %v5192, %v5188
  %v5194 = vsel %vm2097, %v5139, %v5130
  %v5195 = vsel %vm2099, %v5148, %v5194
  %v5196 = vsel %vm2101, %v5157, %v5195
  %v5197 = vsel %vm2103, %v5166, %v5196
  %v5198 = vsel %vm2105, %v5175, %v5197
  %v5199 = vsel %vm2107, %v5184, %v5198
  %v5200 = vsel %vm2109, %v5193, %v5199
  %v5202 = vsel %vm2112, %v5200, 0.0
  %5203 = vadd.xlane.f32.xlu0 %v5202
  %v5204 = vpop.xlane.xlu0 %5203
  %v5205 = vrcp.pop %v5204
  %v5207 = vlaneseq
  %v5208 = vshrl.u32 %v5207, 7
  %v5209 = vsub.s32 0, %v5208
  %v5210 = vrot.slane %v5205, %v5209
  %v5211 = vlaneseq
  %v5212 = vshrl.u32 %v5211, 7
  %v5213 = vsub.s32 1, %v5212
  %v5214 = vrot.slane %v5205, %v5213
  %v5215 = vlaneseq
  %v5216 = vshrl.u32 %v5215, 7
  %v5217 = vsub.s32 2, %v5216
  %v5218 = vrot.slane %v5205, %v5217
  %v5219 = vlaneseq
  %v5220 = vshrl.u32 %v5219, 7
  %v5221 = vsub.s32 3, %v5220
  %v5222 = vrot.slane %v5205, %v5221
  %v5223 = vlaneseq
  %v5224 = vshrl.u32 %v5223, 7
  %v5225 = vsub.s32 4, %v5224
  %v5226 = vrot.slane %v5205, %v5225
  %v5227 = vlaneseq
  %v5228 = vshrl.u32 %v5227, 7
  %v5229 = vsub.s32 5, %v5228
  %v5230 = vrot.slane %v5205, %v5229
  %v5231 = vlaneseq
  %v5232 = vshrl.u32 %v5231, 7
  %v5233 = vsub.s32 6, %v5232
  %v5234 = vrot.slane %v5205, %v5233
  %v5235 = vlaneseq
  %v5236 = vshrl.u32 %v5235, 7
  %v5237 = vsub.s32 7, %v5236
  %v5238 = vrot.slane %v5205, %v5237
  %v5247 = vmul.f32 %v5027, %v5210
  %v5248 = vmul.f32 %v5029, %v5210
  %v5249 = vmul.f32 %v5031, %v5214
  %v5250 = vmul.f32 %v5033, %v5214
  %v5251 = vmul.f32 %v5035, %v5218
  %v5252 = vmul.f32 %v5037, %v5218
  %v5253 = vmul.f32 %v5039, %v5222
  %v5254 = vmul.f32 %v5041, %v5222
  %v5255 = vmul.f32 %v5043, %v5226
  %v5256 = vmul.f32 %v5045, %v5226
  %v5257 = vmul.f32 %v5047, %v5230
  %v5258 = vmul.f32 %v5049, %v5230
  %v5259 = vmul.f32 %v5051, %v5234
  %v5260 = vmul.f32 %v5053, %v5234
  %v5261 = vmul.f32 %v5055, %v5238
  %v5262 = vmul.f32 %v5057, %v5238
  %5264 = vset.pattern.permute.xlu0 0
  %5265 = vperm.xlu0 %5264, %v5247
  %v5266 = vpop.permute.xlu0 %5265
  %5269 = vset.pattern.permute.xlu0 0
  %5270 = vperm.xlu0 %5269, %v5248
  %v5271 = vpop.permute.xlu0 %5270
  %5274 = vset.pattern.permute.xlu0 0
  %5275 = vperm.xlu0 %5274, %v5249
  %v5276 = vpop.permute.xlu0 %5275
  %5279 = vset.pattern.permute.xlu0 0
  %5280 = vperm.xlu0 %5279, %v5250
  %v5281 = vpop.permute.xlu0 %5280
  %5284 = vset.pattern.permute.xlu0 0
  %5285 = vperm.xlu0 %5284, %v5251
  %v5286 = vpop.permute.xlu0 %5285
  %5289 = vset.pattern.permute.xlu0 0
  %5290 = vperm.xlu0 %5289, %v5252
  %v5291 = vpop.permute.xlu0 %5290
  %5294 = vset.pattern.permute.xlu0 0
  %5295 = vperm.xlu0 %5294, %v5253
  %v5296 = vpop.permute.xlu0 %5295
  %5299 = vset.pattern.permute.xlu0 0
  %5300 = vperm.xlu0 %5299, %v5254
  %v5301 = vpop.permute.xlu0 %5300
  %5304 = vset.pattern.permute.xlu0 0
  %5305 = vperm.xlu0 %5304, %v5255
  %v5306 = vpop.permute.xlu0 %5305
  %5309 = vset.pattern.permute.xlu0 0
  %5310 = vperm.xlu0 %5309, %v5256
  %v5311 = vpop.permute.xlu0 %5310
  %5314 = vset.pattern.permute.xlu0 0
  %5315 = vperm.xlu0 %5314, %v5257
  %v5316 = vpop.permute.xlu0 %5315
  %5319 = vset.pattern.permute.xlu0 0
  %5320 = vperm.xlu0 %5319, %v5258
  %v5321 = vpop.permute.xlu0 %5320
  %5324 = vset.pattern.permute.xlu0 0
  %5325 = vperm.xlu0 %5324, %v5259
  %v5326 = vpop.permute.xlu0 %5325
  %5329 = vset.pattern.permute.xlu0 0
  %5330 = vperm.xlu0 %5329, %v5260
  %v5331 = vpop.permute.xlu0 %5330
  %5334 = vset.pattern.permute.xlu0 0
  %5335 = vperm.xlu0 %5334, %v5261
  %v5336 = vpop.permute.xlu0 %5335
  %5339 = vset.pattern.permute.xlu0 0
  %5340 = vperm.xlu0 %5339, %v5262
  %v5341 = vpop.permute.xlu0 %5340
  %v5343 = vmul.f32 %v5266, %v1549
  %v5344 = vmul.f32 %v5271, %v1554
  %v5345 = vmul.f32 %v5276, %v1559
  %v5346 = vmul.f32 %v5281, %v1564
  %v5347 = vmul.f32 %v5286, %v1569
  %v5348 = vmul.f32 %v5291, %v1574
  %v5349 = vmul.f32 %v5296, %v1579
  %v5350 = vmul.f32 %v5301, %v1584
  %v5351 = vmul.f32 %v5306, %v1589
  %v5352 = vmul.f32 %v5311, %v1594
  %v5353 = vmul.f32 %v5316, %v1599
  %v5354 = vmul.f32 %v5321, %v1604
  %v5355 = vmul.f32 %v5326, %v1609
  %v5356 = vmul.f32 %v5331, %v1614
  %v5357 = vmul.f32 %v5336, %v1619
  %v5358 = vmul.f32 %v5341, %v1624
  %v5359 = vsel %vm79, %v5343, 0.0
  %v5360 = vsel %vm79, %v5344, 0.0
  %v5361 = vadd.f32 %v5359, %v5360
  %v5362 = vrot.slane %v5361, 4
  %v5363 = vadd.f32 %v5361, %v5362
  %v5364 = vrot.slane %v5363, 2
  %v5365 = vadd.f32 %v5363, %v5364
  %v5366 = vrot.slane %v5365, 1
  %v5367 = vadd.f32 %v5365, %v5366
  %v5368 = vsel %vm79, %v5345, 0.0
  %v5369 = vsel %vm79, %v5346, 0.0
  %v5370 = vadd.f32 %v5368, %v5369
  %v5371 = vrot.slane %v5370, 4
  %v5372 = vadd.f32 %v5370, %v5371
  %v5373 = vrot.slane %v5372, 2
  %v5374 = vadd.f32 %v5372, %v5373
  %v5375 = vrot.slane %v5374, 1
  %v5376 = vadd.f32 %v5374, %v5375
  %v5377 = vsel %vm79, %v5347, 0.0
  %v5378 = vsel %vm79, %v5348, 0.0
  %v5379 = vadd.f32 %v5377, %v5378
  %v5380 = vrot.slane %v5379, 4
  %v5381 = vadd.f32 %v5379, %v5380
  %v5382 = vrot.slane %v5381, 2
  %v5383 = vadd.f32 %v5381, %v5382
  %v5384 = vrot.slane %v5383, 1
  %v5385 = vadd.f32 %v5383, %v5384
  %v5386 = vsel %vm79, %v5349, 0.0
  %v5387 = vsel %vm79, %v5350, 0.0
  %v5388 = vadd.f32 %v5386, %v5387
  %v5389 = vrot.slane %v5388, 4
  %v5390 = vadd.f32 %v5388, %v5389
  %v5391 = vrot.slane %v5390, 2
  %v5392 = vadd.f32 %v5390, %v5391
  %v5393 = vrot.slane %v5392, 1
  %v5394 = vadd.f32 %v5392, %v5393
  %v5395 = vsel %vm79, %v5351, 0.0
  %v5396 = vsel %vm79, %v5352, 0.0
  %v5397 = vadd.f32 %v5395, %v5396
  %v5398 = vrot.slane %v5397, 4
  %v5399 = vadd.f32 %v5397, %v5398
  %v5400 = vrot.slane %v5399, 2
  %v5401 = vadd.f32 %v5399, %v5400
  %v5402 = vrot.slane %v5401, 1
  %v5403 = vadd.f32 %v5401, %v5402
  %v5404 = vsel %vm79, %v5353, 0.0
  %v5405 = vsel %vm79, %v5354, 0.0
  %v5406 = vadd.f32 %v5404, %v5405
  %v5407 = vrot.slane %v5406, 4
  %v5408 = vadd.f32 %v5406, %v5407
  %v5409 = vrot.slane %v5408, 2
  %v5410 = vadd.f32 %v5408, %v5409
  %v5411 = vrot.slane %v5410, 1
  %v5412 = vadd.f32 %v5410, %v5411
  %v5413 = vsel %vm79, %v5355, 0.0
  %v5414 = vsel %vm79, %v5356, 0.0
  %v5415 = vadd.f32 %v5413, %v5414
  %v5416 = vrot.slane %v5415, 4
  %v5417 = vadd.f32 %v5415, %v5416
  %v5418 = vrot.slane %v5417, 2
  %v5419 = vadd.f32 %v5417, %v5418
  %v5420 = vrot.slane %v5419, 1
  %v5421 = vadd.f32 %v5419, %v5420
  %v5422 = vsel %vm79, %v5357, 0.0
  %v5423 = vsel %vm79, %v5358, 0.0
  %v5424 = vadd.f32 %v5422, %v5423
  %v5425 = vrot.slane %v5424, 4
  %v5426 = vadd.f32 %v5424, %v5425
  %v5427 = vrot.slane %v5426, 2
  %v5428 = vadd.f32 %v5426, %v5427
  %v5429 = vrot.slane %v5428, 1
  %v5430 = vadd.f32 %v5428, %v5429
  %v5439 = vsel %vm2097, %v5376, %v5367
  %v5440 = vsel %vm2099, %v5385, %v5439
  %v5441 = vsel %vm2101, %v5394, %v5440
  %v5442 = vsel %vm2103, %v5403, %v5441
  %v5443 = vsel %vm2105, %v5412, %v5442
  %v5444 = vsel %vm2107, %v5421, %v5443
  %v5445 = vsel %vm2109, %v5430, %v5444
  %5447 = vst.msk [vmem:[#allocation3 + $0x18] sm:$0xff] %vm79, %v5445
  %v5449 = vcombine.high %v1239, %v1239
  %v5451 = vunpack.c.l.s4 1966171168
  %v5452 = vunpack.c.0.s8 %v5451
  %v5453 = vlaneseq
  %v5454 = vshrl.u32 %v5453, 7
  %v5455 = vsub.s32 %v5452, %v5454
  %v5456 = vrot.slane %v1239, %v5455
  %v5458 = vunpack.c.l.s4 1966171168
  %v5459 = vunpack.c.0.s8 %v5458
  %v5460 = vlaneseq
  %v5461 = vshrl.u32 %v5460, 7
  %v5462 = vsub.s32 %v5459, %v5461
  %v5463 = vrot.slane %v5449, %v5462
  %v5464 = vcombine.high %v5456, %v5456
  %v5465 = vcombine.high %v5463, %v5463
  %v5467 = vunpack.c.l.s4 1966171168
  %v5468 = vunpack.c.0.s8 %v5467
  %v5469 = vlaneseq
  %v5470 = vshrl.u32 %v5469, 7
  %v5471 = vsub.s32 %v5468, %v5470
  %v5472 = vrot.slane %v5456, %v5471
  %v5474 = vunpack.c.l.s4 1966171168
  %v5475 = vunpack.c.0.s8 %v5474
  %v5476 = vlaneseq
  %v5477 = vshrl.u32 %v5476, 7
  %v5478 = vsub.s32 %v5475, %v5477
  %v5479 = vrot.slane %v5463, %v5478
  %v5481 = vunpack.c.l.s4 1966171168
  %v5482 = vunpack.c.0.s8 %v5481
  %v5483 = vlaneseq
  %v5484 = vshrl.u32 %v5483, 7
  %v5485 = vsub.s32 %v5482, %v5484
  %v5486 = vrot.slane %v5464, %v5485
  %v5488 = vunpack.c.l.s4 1966171168
  %v5489 = vunpack.c.0.s8 %v5488
  %v5490 = vlaneseq
  %v5491 = vshrl.u32 %v5490, 7
  %v5492 = vsub.s32 %v5489, %v5491
  %v5493 = vrot.slane %v5465, %v5492
  %v5494 = vcombine.high %v5472, %v5472
  %v5495 = vcombine.high %v5479, %v5479
  %v5496 = vcombine.high %v5486, %v5486
  %v5497 = vcombine.high %v5493, %v5493
  %v5498 = vlaneseq
  %v5499 = vshrl.u32 %v5498, 7
  %v5500 = vsub.s32 0, %v5499
  %v5501 = vrot.slane %v5472, %v5500
  %v5502 = vlaneseq
  %v5503 = vshrl.u32 %v5502, 7
  %v5504 = vsub.s32 0, %v5503
  %v5505 = vrot.slane %v5486, %v5504
  %v5506 = vlaneseq
  %v5507 = vshrl.u32 %v5506, 7
  %v5508 = vsub.s32 0, %v5507
  %v5509 = vrot.slane %v5494, %v5508
  %v5510 = vlaneseq
  %v5511 = vshrl.u32 %v5510, 7
  %v5512 = vsub.s32 0, %v5511
  %v5513 = vrot.slane %v5496, %v5512
  %v5514 = vlaneseq
  %v5515 = vshrl.u32 %v5514, 7
  %v5516 = vsub.s32 0, %v5515
  %v5517 = vrot.slane %v5479, %v5516
  %v5518 = vlaneseq
  %v5519 = vshrl.u32 %v5518, 7
  %v5520 = vsub.s32 0, %v5519
  %v5521 = vrot.slane %v5493, %v5520
  %v5522 = vlaneseq
  %v5523 = vshrl.u32 %v5522, 7
  %v5524 = vsub.s32 0, %v5523
  %v5525 = vrot.slane %v5495, %v5524
  %v5526 = vlaneseq
  %v5527 = vshrl.u32 %v5526, 7
  %v5528 = vsub.s32 0, %v5527
  %v5529 = vrot.slane %v5497, %v5528
  %v5538 = vadd.f32 %v5501, %v1396
  %v5539 = vadd.f32 %v5501, %v1401
  %v5540 = vadd.f32 %v5505, %v1406
  %v5541 = vadd.f32 %v5505, %v1411
  %v5542 = vadd.f32 %v5509, %v1416
  %v5543 = vadd.f32 %v5509, %v1421
  %v5544 = vadd.f32 %v5513, %v1426
  %v5545 = vadd.f32 %v5513, %v1431
  %v5546 = vadd.f32 %v5517, %v1436
  %v5547 = vadd.f32 %v5517, %v1441
  %v5548 = vadd.f32 %v5521, %v1446
  %v5549 = vadd.f32 %v5521, %v1451
  %v5550 = vadd.f32 %v5525, %v1456
  %v5551 = vadd.f32 %v5525, %v1461
  %v5552 = vadd.f32 %v5529, %v1466
  %v5553 = vadd.f32 %v5529, %v1471
  %v5554 = vtanh.pop %v5538
  %v5555 = vtanh.pop %v5539
  %v5556 = vtanh.pop %v5540
  %v5557 = vtanh.pop %v5541
  %v5558 = vtanh.pop %v5542
  %v5559 = vtanh.pop %v5543
  %v5560 = vtanh.pop %v5544
  %v5561 = vtanh.pop %v5545
  %v5562 = vtanh.pop %v5546
  %v5563 = vtanh.pop %v5547
  %v5564 = vtanh.pop %v5548
  %v5565 = vtanh.pop %v5549
  %v5566 = vtanh.pop %v5550
  %v5567 = vtanh.pop %v5551
  %v5568 = vtanh.pop %v5552
  %v5569 = vtanh.pop %v5553
  %v5570 = vmul.f32 %v5554, %v1752
  %v5571 = vmul.f32 %v5555, %v1752
  %v5572 = vmul.f32 %v5556, %v1752
  %v5573 = vmul.f32 %v5557, %v1752
  %v5574 = vmul.f32 %v5558, %v1752
  %v5575 = vmul.f32 %v5559, %v1752
  %v5576 = vmul.f32 %v5560, %v1752
  %v5577 = vmul.f32 %v5561, %v1752
  %v5578 = vmul.f32 %v5562, %v1752
  %v5579 = vmul.f32 %v5563, %v1752
  %v5580 = vmul.f32 %v5564, %v1752
  %v5581 = vmul.f32 %v5565, %v1752
  %v5582 = vmul.f32 %v5566, %v1752
  %v5583 = vmul.f32 %v5567, %v1752
  %v5584 = vmul.f32 %v5568, %v1752
  %v5585 = vmul.f32 %v5569, %v1752
  %v5586 = vsel %vm79, %v5570, 0.0
  %5587 = vadd.xlane.f32.xlu0 %v5586
  %v5588 = vpop.xlane.xlu0 %5587
  %v5589 = vsel %vm79, %v5571, 0.0
  %5590 = vadd.xlane.f32.xlu0 %v5589
  %v5591 = vpop.xlane.xlu0 %5590
  %v5592 = vsel %vm79, %v5572, 0.0
  %5593 = vadd.xlane.f32.xlu0 %v5592
  %v5594 = vpop.xlane.xlu0 %5593
  %v5595 = vsel %vm79, %v5573, 0.0
  %5596 = vadd.xlane.f32.xlu0 %v5595
  %v5597 = vpop.xlane.xlu0 %5596
  %v5598 = vsel %vm79, %v5574, 0.0
  %5599 = vadd.xlane.f32.xlu0 %v5598
  %v5600 = vpop.xlane.xlu0 %5599
  %v5601 = vsel %vm79, %v5575, 0.0
  %5602 = vadd.xlane.f32.xlu0 %v5601
  %v5603 = vpop.xlane.xlu0 %5602
  %v5604 = vsel %vm79, %v5576, 0.0
  %5605 = vadd.xlane.f32.xlu0 %v5604
  %v5606 = vpop.xlane.xlu0 %5605
  %v5607 = vsel %vm79, %v5577, 0.0
  %5608 = vadd.xlane.f32.xlu0 %v5607
  %v5609 = vpop.xlane.xlu0 %5608
  %v5610 = vsel %vm79, %v5578, 0.0
  %5611 = vadd.xlane.f32.xlu0 %v5610
  %v5612 = vpop.xlane.xlu0 %5611
  %v5613 = vsel %vm79, %v5579, 0.0
  %5614 = vadd.xlane.f32.xlu0 %v5613
  %v5615 = vpop.xlane.xlu0 %5614
  %v5616 = vsel %vm79, %v5580, 0.0
  %5617 = vadd.xlane.f32.xlu0 %v5616
  %v5618 = vpop.xlane.xlu0 %5617
  %v5619 = vsel %vm79, %v5581, 0.0
  %5620 = vadd.xlane.f32.xlu0 %v5619
  %v5621 = vpop.xlane.xlu0 %5620
  %v5622 = vsel %vm79, %v5582, 0.0
  %5623 = vadd.xlane.f32.xlu0 %v5622
  %v5624 = vpop.xlane.xlu0 %5623
  %v5625 = vsel %vm79, %v5583, 0.0
  %5626 = vadd.xlane.f32.xlu0 %v5625
  %v5627 = vpop.xlane.xlu0 %5626
  %v5628 = vsel %vm79, %v5584, 0.0
  %5629 = vadd.xlane.f32.xlu0 %v5628
  %v5630 = vpop.xlane.xlu0 %5629
  %v5631 = vsel %vm79, %v5585, 0.0
  %5632 = vadd.xlane.f32.xlu0 %v5631
  %v5633 = vpop.xlane.xlu0 %5632
  %v5634 = vadd.f32 %v5588, %v1819
  %v5635 = vadd.f32 %v5591, %v1819
  %v5636 = vadd.f32 %v5594, %v1819
  %v5637 = vadd.f32 %v5597, %v1819
  %v5638 = vadd.f32 %v5600, %v1819
  %v5639 = vadd.f32 %v5603, %v1819
  %v5640 = vadd.f32 %v5606, %v1819
  %v5641 = vadd.f32 %v5609, %v1819
  %v5642 = vadd.f32 %v5612, %v1819
  %v5643 = vadd.f32 %v5615, %v1819
  %v5644 = vadd.f32 %v5618, %v1819
  %v5645 = vadd.f32 %v5621, %v1819
  %v5646 = vadd.f32 %v5624, %v1819
  %v5647 = vadd.f32 %v5627, %v1819
  %v5648 = vadd.f32 %v5630, %v1819
  %v5649 = vadd.f32 %v5633, %v1819
  %s5650 = scalar_lea.vmem %s2, 32
  %v5651 = vld [vmem:[%s5650] sm:$0xff]
  %v5653 = vlaneseq
  %v5654 = vshrl.u32 %v5653, 7
  %v5655 = vsub.s32 0, %v5654
  %v5656 = vrot.slane %v5651, %v5655
  %5658 = vbcast.lane.b32.xlu0 %v5656, 256
  %v5659 = vpop.permute.xlu0 %5658
  %s5661 = sor.u32 256, 8
  %5662 = vbcast.lane.b32.xlu0 %v5656, %s5661
  %v5663 = vpop.permute.xlu0 %5662
  %v5664 = vlaneseq
  %v5665 = vshrl.u32 %v5664, 7
  %v5666 = vsub.s32 1, %v5665
  %v5667 = vrot.slane %v5651, %v5666
  %5669 = vbcast.lane.b32.xlu0 %v5667, 256
  %v5670 = vpop.permute.xlu0 %5669
  %s5672 = sor.u32 256, 8
  %5673 = vbcast.lane.b32.xlu0 %v5667, %s5672
  %v5674 = vpop.permute.xlu0 %5673
  %v5675 = vlaneseq
  %v5676 = vshrl.u32 %v5675, 7
  %v5677 = vsub.s32 2, %v5676
  %v5678 = vrot.slane %v5651, %v5677
  %5680 = vbcast.lane.b32.xlu0 %v5678, 256
  %v5681 = vpop.permute.xlu0 %5680
  %s5683 = sor.u32 256, 8
  %5684 = vbcast.lane.b32.xlu0 %v5678, %s5683
  %v5685 = vpop.permute.xlu0 %5684
  %v5686 = vlaneseq
  %v5687 = vshrl.u32 %v5686, 7
  %v5688 = vsub.s32 3, %v5687
  %v5689 = vrot.slane %v5651, %v5688
  %5691 = vbcast.lane.b32.xlu0 %v5689, 256
  %v5692 = vpop.permute.xlu0 %5691
  %s5694 = sor.u32 256, 8
  %5695 = vbcast.lane.b32.xlu0 %v5689, %s5694
  %v5696 = vpop.permute.xlu0 %5695
  %v5697 = vlaneseq
  %v5698 = vshrl.u32 %v5697, 7
  %v5699 = vsub.s32 4, %v5698
  %v5700 = vrot.slane %v5651, %v5699
  %5702 = vbcast.lane.b32.xlu0 %v5700, 256
  %v5703 = vpop.permute.xlu0 %5702
  %s5705 = sor.u32 256, 8
  %5706 = vbcast.lane.b32.xlu0 %v5700, %s5705
  %v5707 = vpop.permute.xlu0 %5706
  %v5708 = vlaneseq
  %v5709 = vshrl.u32 %v5708, 7
  %v5710 = vsub.s32 5, %v5709
  %v5711 = vrot.slane %v5651, %v5710
  %5713 = vbcast.lane.b32.xlu0 %v5711, 256
  %v5714 = vpop.permute.xlu0 %5713
  %s5716 = sor.u32 256, 8
  %5717 = vbcast.lane.b32.xlu0 %v5711, %s5716
  %v5718 = vpop.permute.xlu0 %5717
  %v5719 = vlaneseq
  %v5720 = vshrl.u32 %v5719, 7
  %v5721 = vsub.s32 6, %v5720
  %v5722 = vrot.slane %v5651, %v5721
  %5724 = vbcast.lane.b32.xlu0 %v5722, 256
  %v5725 = vpop.permute.xlu0 %5724
  %s5727 = sor.u32 256, 8
  %5728 = vbcast.lane.b32.xlu0 %v5722, %s5727
  %v5729 = vpop.permute.xlu0 %5728
  %v5730 = vlaneseq
  %v5731 = vshrl.u32 %v5730, 7
  %v5732 = vsub.s32 7, %v5731
  %v5733 = vrot.slane %v5651, %v5732
  %5735 = vbcast.lane.b32.xlu0 %v5733, 256
  %v5736 = vpop.permute.xlu0 %5735
  %s5738 = sor.u32 256, 8
  %5739 = vbcast.lane.b32.xlu0 %v5733, %s5738
  %v5740 = vpop.permute.xlu0 %5739
  %v5757 = vadd.f32 %v5634, %v5659
  %v5758 = vadd.f32 %v5635, %v5663
  %v5759 = vadd.f32 %v5636, %v5670
  %v5760 = vadd.f32 %v5637, %v5674
  %v5761 = vadd.f32 %v5638, %v5681
  %v5762 = vadd.f32 %v5639, %v5685
  %v5763 = vadd.f32 %v5640, %v5692
  %v5764 = vadd.f32 %v5641, %v5696
  %v5765 = vadd.f32 %v5642, %v5703
  %v5766 = vadd.f32 %v5643, %v5707
  %v5767 = vadd.f32 %v5644, %v5714
  %v5768 = vadd.f32 %v5645, %v5718
  %v5769 = vadd.f32 %v5646, %v5725
  %v5770 = vadd.f32 %v5647, %v5729
  %v5771 = vadd.f32 %v5648, %v5736
  %v5772 = vadd.f32 %v5649, %v5740
  %5789 = vset.pattern.permute.xlu0 0
  %5790 = vperm.xlu0 %5789, %v5757
  %v5791 = vpop.permute.xlu0 %5790
  %5792 = vset.pattern.permute.xlu0 0
  %5793 = vperm.xlu0 %5792, %v5758
  %v5794 = vpop.permute.xlu0 %5793
  %5795 = vset.pattern.permute.xlu0 0
  %5796 = vperm.xlu0 %5795, %v5759
  %v5797 = vpop.permute.xlu0 %5796
  %5798 = vset.pattern.permute.xlu0 0
  %5799 = vperm.xlu0 %5798, %v5760
  %v5800 = vpop.permute.xlu0 %5799
  %5801 = vset.pattern.permute.xlu0 0
  %5802 = vperm.xlu0 %5801, %v5761
  %v5803 = vpop.permute.xlu0 %5802
  %5804 = vset.pattern.permute.xlu0 0
  %5805 = vperm.xlu0 %5804, %v5762
  %v5806 = vpop.permute.xlu0 %5805
  %5807 = vset.pattern.permute.xlu0 0
  %5808 = vperm.xlu0 %5807, %v5763
  %v5809 = vpop.permute.xlu0 %5808
  %5810 = vset.pattern.permute.xlu0 0
  %5811 = vperm.xlu0 %5810, %v5764
  %v5812 = vpop.permute.xlu0 %5811
  %5813 = vset.pattern.permute.xlu0 0
  %5814 = vperm.xlu0 %5813, %v5765
  %v5815 = vpop.permute.xlu0 %5814
  %5816 = vset.pattern.permute.xlu0 0
  %5817 = vperm.xlu0 %5816, %v5766
  %v5818 = vpop.permute.xlu0 %5817
  %5819 = vset.pattern.permute.xlu0 0
  %5820 = vperm.xlu0 %5819, %v5767
  %v5821 = vpop.permute.xlu0 %5820
  %5822 = vset.pattern.permute.xlu0 0
  %5823 = vperm.xlu0 %5822, %v5768
  %v5824 = vpop.permute.xlu0 %5823
  %5825 = vset.pattern.permute.xlu0 0
  %5826 = vperm.xlu0 %5825, %v5769
  %v5827 = vpop.permute.xlu0 %5826
  %5828 = vset.pattern.permute.xlu0 0
  %5829 = vperm.xlu0 %5828, %v5770
  %v5830 = vpop.permute.xlu0 %5829
  %5831 = vset.pattern.permute.xlu0 0
  %5832 = vperm.xlu0 %5831, %v5771
  %v5833 = vpop.permute.xlu0 %5832
  %5834 = vset.pattern.permute.xlu0 0
  %5835 = vperm.xlu0 %5834, %v5772
  %v5836 = vpop.permute.xlu0 %5835
  %v5837 = vlaneseq
  %v5838 = vshrl.u32 %v5837, 7
  %v5839 = vsub.s32 %v58, %v5838
  %v5840 = vrot.slane %v5791, %v5839
  %v5841 = vlaneseq
  %v5842 = vshrl.u32 %v5841, 7
  %v5843 = vsub.s32 %v2027, %v5842
  %v5844 = vrot.slane %v5794, %v5843
  %v5845 = vsel %vm2032, %v5844, %v5840
  %v5846 = vlaneseq
  %v5847 = vshrl.u32 %v5846, 7
  %v5848 = vsub.s32 %v58, %v5847
  %v5849 = vrot.slane %v5797, %v5848
  %v5850 = vlaneseq
  %v5851 = vshrl.u32 %v5850, 7
  %v5852 = vsub.s32 %v2027, %v5851
  %v5853 = vrot.slane %v5800, %v5852
  %v5854 = vsel %vm2032, %v5853, %v5849
  %v5855 = vlaneseq
  %v5856 = vshrl.u32 %v5855, 7
  %v5857 = vsub.s32 %v58, %v5856
  %v5858 = vrot.slane %v5803, %v5857
  %v5859 = vlaneseq
  %v5860 = vshrl.u32 %v5859, 7
  %v5861 = vsub.s32 %v2027, %v5860
  %v5862 = vrot.slane %v5806, %v5861
  %v5863 = vsel %vm2032, %v5862, %v5858
  %v5864 = vlaneseq
  %v5865 = vshrl.u32 %v5864, 7
  %v5866 = vsub.s32 %v58, %v5865
  %v5867 = vrot.slane %v5809, %v5866
  %v5868 = vlaneseq
  %v5869 = vshrl.u32 %v5868, 7
  %v5870 = vsub.s32 %v2027, %v5869
  %v5871 = vrot.slane %v5812, %v5870
  %v5872 = vsel %vm2032, %v5871, %v5867
  %v5873 = vlaneseq
  %v5874 = vshrl.u32 %v5873, 7
  %v5875 = vsub.s32 %v58, %v5874
  %v5876 = vrot.slane %v5815, %v5875
  %v5877 = vlaneseq
  %v5878 = vshrl.u32 %v5877, 7
  %v5879 = vsub.s32 %v2027, %v5878
  %v5880 = vrot.slane %v5818, %v5879
  %v5881 = vsel %vm2032, %v5880, %v5876
  %v5882 = vlaneseq
  %v5883 = vshrl.u32 %v5882, 7
  %v5884 = vsub.s32 %v58, %v5883
  %v5885 = vrot.slane %v5821, %v5884
  %v5886 = vlaneseq
  %v5887 = vshrl.u32 %v5886, 7
  %v5888 = vsub.s32 %v2027, %v5887
  %v5889 = vrot.slane %v5824, %v5888
  %v5890 = vsel %vm2032, %v5889, %v5885
  %v5891 = vlaneseq
  %v5892 = vshrl.u32 %v5891, 7
  %v5893 = vsub.s32 %v58, %v5892
  %v5894 = vrot.slane %v5827, %v5893
  %v5895 = vlaneseq
  %v5896 = vshrl.u32 %v5895, 7
  %v5897 = vsub.s32 %v2027, %v5896
  %v5898 = vrot.slane %v5830, %v5897
  %v5899 = vsel %vm2032, %v5898, %v5894
  %v5900 = vlaneseq
  %v5901 = vshrl.u32 %v5900, 7
  %v5902 = vsub.s32 %v58, %v5901
  %v5903 = vrot.slane %v5833, %v5902
  %v5904 = vlaneseq
  %v5905 = vshrl.u32 %v5904, 7
  %v5906 = vsub.s32 %v2027, %v5905
  %v5907 = vrot.slane %v5836, %v5906
  %v5908 = vsel %vm2032, %v5907, %v5903
  %v5909 = vsel %vm2097, %v5854, %v5845
  %v5910 = vsel %vm2099, %v5863, %v5909
  %v5911 = vsel %vm2101, %v5872, %v5910
  %v5912 = vsel %vm2103, %v5881, %v5911
  %v5913 = vsel %vm2105, %v5890, %v5912
  %v5914 = vsel %vm2107, %v5899, %v5913
  %v5915 = vsel %vm2109, %v5908, %v5914
  %v5917 = vsel %vm2112, %v5915, -inf
  %5918 = vmax.xlane.f32.xlu0 %v5917
  %v5919 = vpop.xlane.xlu0 %5918
  %v5921 = vlaneseq
  %v5922 = vshrl.u32 %v5921, 7
  %v5923 = vsub.s32 0, %v5922
  %v5924 = vrot.slane %v5919, %v5923
  %v5925 = vlaneseq
  %v5926 = vshrl.u32 %v5925, 7
  %v5927 = vsub.s32 1, %v5926
  %v5928 = vrot.slane %v5919, %v5927
  %v5929 = vlaneseq
  %v5930 = vshrl.u32 %v5929, 7
  %v5931 = vsub.s32 2, %v5930
  %v5932 = vrot.slane %v5919, %v5931
  %v5933 = vlaneseq
  %v5934 = vshrl.u32 %v5933, 7
  %v5935 = vsub.s32 3, %v5934
  %v5936 = vrot.slane %v5919, %v5935
  %v5937 = vlaneseq
  %v5938 = vshrl.u32 %v5937, 7
  %v5939 = vsub.s32 4, %v5938
  %v5940 = vrot.slane %v5919, %v5939
  %v5941 = vlaneseq
  %v5942 = vshrl.u32 %v5941, 7
  %v5943 = vsub.s32 5, %v5942
  %v5944 = vrot.slane %v5919, %v5943
  %v5945 = vlaneseq
  %v5946 = vshrl.u32 %v5945, 7
  %v5947 = vsub.s32 6, %v5946
  %v5948 = vrot.slane %v5919, %v5947
  %v5949 = vlaneseq
  %v5950 = vshrl.u32 %v5949, 7
  %v5951 = vsub.s32 7, %v5950
  %v5952 = vrot.slane %v5919, %v5951
  %v5961 = vsub.f32 %v5757, %v5924
  %v5962 = vsub.f32 %v5758, %v5924
  %v5963 = vsub.f32 %v5759, %v5928
  %v5964 = vsub.f32 %v5760, %v5928
  %v5965 = vsub.f32 %v5761, %v5932
  %v5966 = vsub.f32 %v5762, %v5932
  %v5967 = vsub.f32 %v5763, %v5936
  %v5968 = vsub.f32 %v5764, %v5936
  %v5969 = vsub.f32 %v5765, %v5940
  %v5970 = vsub.f32 %v5766, %v5940
  %v5971 = vsub.f32 %v5767, %v5944
  %v5972 = vsub.f32 %v5768, %v5944
  %v5973 = vsub.f32 %v5769, %v5948
  %v5974 = vsub.f32 %v5770, %v5948
  %v5975 = vsub.f32 %v5771, %v5952
  %v5976 = vsub.f32 %v5772, %v5952
  %v5977 = vmul.f32 %v5961, 1.442695
  %v5978 = vpow.pop %v5977
  %v5979 = vmul.f32 %v5962, 1.442695
  %v5980 = vpow.pop %v5979
  %v5981 = vmul.f32 %v5963, 1.442695
  %v5982 = vpow.pop %v5981
  %v5983 = vmul.f32 %v5964, 1.442695
  %v5984 = vpow.pop %v5983
  %v5985 = vmul.f32 %v5965, 1.442695
  %v5986 = vpow.pop %v5985
  %v5987 = vmul.f32 %v5966, 1.442695
  %v5988 = vpow.pop %v5987
  %v5989 = vmul.f32 %v5967, 1.442695
  %v5990 = vpow.pop %v5989
  %v5991 = vmul.f32 %v5968, 1.442695
  %v5992 = vpow.pop %v5991
  %v5993 = vmul.f32 %v5969, 1.442695
  %v5994 = vpow.pop %v5993
  %v5995 = vmul.f32 %v5970, 1.442695
  %v5996 = vpow.pop %v5995
  %v5997 = vmul.f32 %v5971, 1.442695
  %v5998 = vpow.pop %v5997
  %v5999 = vmul.f32 %v5972, 1.442695
  %v6000 = vpow.pop %v5999
  %v6001 = vmul.f32 %v5973, 1.442695
  %v6002 = vpow.pop %v6001
  %v6003 = vmul.f32 %v5974, 1.442695
  %v6004 = vpow.pop %v6003
  %v6005 = vmul.f32 %v5975, 1.442695
  %v6006 = vpow.pop %v6005
  %v6007 = vmul.f32 %v5976, 1.442695
  %v6008 = vpow.pop %v6007
  %6025 = vset.pattern.permute.xlu0 0
  %6026 = vperm.xlu0 %6025, %v5978
  %v6027 = vpop.permute.xlu0 %6026
  %6028 = vset.pattern.permute.xlu0 0
  %6029 = vperm.xlu0 %6028, %v5980
  %v6030 = vpop.permute.xlu0 %6029
  %6031 = vset.pattern.permute.xlu0 0
  %6032 = vperm.xlu0 %6031, %v5982
  %v6033 = vpop.permute.xlu0 %6032
  %6034 = vset.pattern.permute.xlu0 0
  %6035 = vperm.xlu0 %6034, %v5984
  %v6036 = vpop.permute.xlu0 %6035
  %6037 = vset.pattern.permute.xlu0 0
  %6038 = vperm.xlu0 %6037, %v5986
  %v6039 = vpop.permute.xlu0 %6038
  %6040 = vset.pattern.permute.xlu0 0
  %6041 = vperm.xlu0 %6040, %v5988
  %v6042 = vpop.permute.xlu0 %6041
  %6043 = vset.pattern.permute.xlu0 0
  %6044 = vperm.xlu0 %6043, %v5990
  %v6045 = vpop.permute.xlu0 %6044
  %6046 = vset.pattern.permute.xlu0 0
  %6047 = vperm.xlu0 %6046, %v5992
  %v6048 = vpop.permute.xlu0 %6047
  %6049 = vset.pattern.permute.xlu0 0
  %6050 = vperm.xlu0 %6049, %v5994
  %v6051 = vpop.permute.xlu0 %6050
  %6052 = vset.pattern.permute.xlu0 0
  %6053 = vperm.xlu0 %6052, %v5996
  %v6054 = vpop.permute.xlu0 %6053
  %6055 = vset.pattern.permute.xlu0 0
  %6056 = vperm.xlu0 %6055, %v5998
  %v6057 = vpop.permute.xlu0 %6056
  %6058 = vset.pattern.permute.xlu0 0
  %6059 = vperm.xlu0 %6058, %v6000
  %v6060 = vpop.permute.xlu0 %6059
  %6061 = vset.pattern.permute.xlu0 0
  %6062 = vperm.xlu0 %6061, %v6002
  %v6063 = vpop.permute.xlu0 %6062
  %6064 = vset.pattern.permute.xlu0 0
  %6065 = vperm.xlu0 %6064, %v6004
  %v6066 = vpop.permute.xlu0 %6065
  %6067 = vset.pattern.permute.xlu0 0
  %6068 = vperm.xlu0 %6067, %v6006
  %v6069 = vpop.permute.xlu0 %6068
  %6070 = vset.pattern.permute.xlu0 0
  %6071 = vperm.xlu0 %6070, %v6008
  %v6072 = vpop.permute.xlu0 %6071
  %v6073 = vlaneseq
  %v6074 = vshrl.u32 %v6073, 7
  %v6075 = vsub.s32 %v58, %v6074
  %v6076 = vrot.slane %v6027, %v6075
  %v6077 = vlaneseq
  %v6078 = vshrl.u32 %v6077, 7
  %v6079 = vsub.s32 %v2027, %v6078
  %v6080 = vrot.slane %v6030, %v6079
  %v6081 = vsel %vm2032, %v6080, %v6076
  %v6082 = vlaneseq
  %v6083 = vshrl.u32 %v6082, 7
  %v6084 = vsub.s32 %v58, %v6083
  %v6085 = vrot.slane %v6033, %v6084
  %v6086 = vlaneseq
  %v6087 = vshrl.u32 %v6086, 7
  %v6088 = vsub.s32 %v2027, %v6087
  %v6089 = vrot.slane %v6036, %v6088
  %v6090 = vsel %vm2032, %v6089, %v6085
  %v6091 = vlaneseq
  %v6092 = vshrl.u32 %v6091, 7
  %v6093 = vsub.s32 %v58, %v6092
  %v6094 = vrot.slane %v6039, %v6093
  %v6095 = vlaneseq
  %v6096 = vshrl.u32 %v6095, 7
  %v6097 = vsub.s32 %v2027, %v6096
  %v6098 = vrot.slane %v6042, %v6097
  %v6099 = vsel %vm2032, %v6098, %v6094
  %v6100 = vlaneseq
  %v6101 = vshrl.u32 %v6100, 7
  %v6102 = vsub.s32 %v58, %v6101
  %v6103 = vrot.slane %v6045, %v6102
  %v6104 = vlaneseq
  %v6105 = vshrl.u32 %v6104, 7
  %v6106 = vsub.s32 %v2027, %v6105
  %v6107 = vrot.slane %v6048, %v6106
  %v6108 = vsel %vm2032, %v6107, %v6103
  %v6109 = vlaneseq
  %v6110 = vshrl.u32 %v6109, 7
  %v6111 = vsub.s32 %v58, %v6110
  %v6112 = vrot.slane %v6051, %v6111
  %v6113 = vlaneseq
  %v6114 = vshrl.u32 %v6113, 7
  %v6115 = vsub.s32 %v2027, %v6114
  %v6116 = vrot.slane %v6054, %v6115
  %v6117 = vsel %vm2032, %v6116, %v6112
  %v6118 = vlaneseq
  %v6119 = vshrl.u32 %v6118, 7
  %v6120 = vsub.s32 %v58, %v6119
  %v6121 = vrot.slane %v6057, %v6120
  %v6122 = vlaneseq
  %v6123 = vshrl.u32 %v6122, 7
  %v6124 = vsub.s32 %v2027, %v6123
  %v6125 = vrot.slane %v6060, %v6124
  %v6126 = vsel %vm2032, %v6125, %v6121
  %v6127 = vlaneseq
  %v6128 = vshrl.u32 %v6127, 7
  %v6129 = vsub.s32 %v58, %v6128
  %v6130 = vrot.slane %v6063, %v6129
  %v6131 = vlaneseq
  %v6132 = vshrl.u32 %v6131, 7
  %v6133 = vsub.s32 %v2027, %v6132
  %v6134 = vrot.slane %v6066, %v6133
  %v6135 = vsel %vm2032, %v6134, %v6130
  %v6136 = vlaneseq
  %v6137 = vshrl.u32 %v6136, 7
  %v6138 = vsub.s32 %v58, %v6137
  %v6139 = vrot.slane %v6069, %v6138
  %v6140 = vlaneseq
  %v6141 = vshrl.u32 %v6140, 7
  %v6142 = vsub.s32 %v2027, %v6141
  %v6143 = vrot.slane %v6072, %v6142
  %v6144 = vsel %vm2032, %v6143, %v6139
  %v6145 = vsel %vm2097, %v6090, %v6081
  %v6146 = vsel %vm2099, %v6099, %v6145
  %v6147 = vsel %vm2101, %v6108, %v6146
  %v6148 = vsel %vm2103, %v6117, %v6147
  %v6149 = vsel %vm2105, %v6126, %v6148
  %v6150 = vsel %vm2107, %v6135, %v6149
  %v6151 = vsel %vm2109, %v6144, %v6150
  %v6153 = vsel %vm2112, %v6151, 0.0
  %6154 = vadd.xlane.f32.xlu0 %v6153
  %v6155 = vpop.xlane.xlu0 %6154
  %v6156 = vrcp.pop %v6155
  %v6158 = vlaneseq
  %v6159 = vshrl.u32 %v6158, 7
  %v6160 = vsub.s32 0, %v6159
  %v6161 = vrot.slane %v6156, %v6160
  %v6162 = vlaneseq
  %v6163 = vshrl.u32 %v6162, 7
  %v6164 = vsub.s32 1, %v6163
  %v6165 = vrot.slane %v6156, %v6164
  %v6166 = vlaneseq
  %v6167 = vshrl.u32 %v6166, 7
  %v6168 = vsub.s32 2, %v6167
  %v6169 = vrot.slane %v6156, %v6168
  %v6170 = vlaneseq
  %v6171 = vshrl.u32 %v6170, 7
  %v6172 = vsub.s32 3, %v6171
  %v6173 = vrot.slane %v6156, %v6172
  %v6174 = vlaneseq
  %v6175 = vshrl.u32 %v6174, 7
  %v6176 = vsub.s32 4, %v6175
  %v6177 = vrot.slane %v6156, %v6176
  %v6178 = vlaneseq
  %v6179 = vshrl.u32 %v6178, 7
  %v6180 = vsub.s32 5, %v6179
  %v6181 = vrot.slane %v6156, %v6180
  %v6182 = vlaneseq
  %v6183 = vshrl.u32 %v6182, 7
  %v6184 = vsub.s32 6, %v6183
  %v6185 = vrot.slane %v6156, %v6184
  %v6186 = vlaneseq
  %v6187 = vshrl.u32 %v6186, 7
  %v6188 = vsub.s32 7, %v6187
  %v6189 = vrot.slane %v6156, %v6188
  %v6198 = vmul.f32 %v5978, %v6161
  %v6199 = vmul.f32 %v5980, %v6161
  %v6200 = vmul.f32 %v5982, %v6165
  %v6201 = vmul.f32 %v5984, %v6165
  %v6202 = vmul.f32 %v5986, %v6169
  %v6203 = vmul.f32 %v5988, %v6169
  %v6204 = vmul.f32 %v5990, %v6173
  %v6205 = vmul.f32 %v5992, %v6173
  %v6206 = vmul.f32 %v5994, %v6177
  %v6207 = vmul.f32 %v5996, %v6177
  %v6208 = vmul.f32 %v5998, %v6181
  %v6209 = vmul.f32 %v6000, %v6181
  %v6210 = vmul.f32 %v6002, %v6185
  %v6211 = vmul.f32 %v6004, %v6185
  %v6212 = vmul.f32 %v6006, %v6189
  %v6213 = vmul.f32 %v6008, %v6189
  %6215 = vset.pattern.permute.xlu0 0
  %6216 = vperm.xlu0 %6215, %v6198
  %v6217 = vpop.permute.xlu0 %6216
  %6220 = vset.pattern.permute.xlu0 0
  %6221 = vperm.xlu0 %6220, %v6199
  %v6222 = vpop.permute.xlu0 %6221
  %6225 = vset.pattern.permute.xlu0 0
  %6226 = vperm.xlu0 %6225, %v6200
  %v6227 = vpop.permute.xlu0 %6226
  %6230 = vset.pattern.permute.xlu0 0
  %6231 = vperm.xlu0 %6230, %v6201
  %v6232 = vpop.permute.xlu0 %6231
  %6235 = vset.pattern.permute.xlu0 0
  %6236 = vperm.xlu0 %6235, %v6202
  %v6237 = vpop.permute.xlu0 %6236
  %6240 = vset.pattern.permute.xlu0 0
  %6241 = vperm.xlu0 %6240, %v6203
  %v6242 = vpop.permute.xlu0 %6241
  %6245 = vset.pattern.permute.xlu0 0
  %6246 = vperm.xlu0 %6245, %v6204
  %v6247 = vpop.permute.xlu0 %6246
  %6250 = vset.pattern.permute.xlu0 0
  %6251 = vperm.xlu0 %6250, %v6205
  %v6252 = vpop.permute.xlu0 %6251
  %6255 = vset.pattern.permute.xlu0 0
  %6256 = vperm.xlu0 %6255, %v6206
  %v6257 = vpop.permute.xlu0 %6256
  %6260 = vset.pattern.permute.xlu0 0
  %6261 = vperm.xlu0 %6260, %v6207
  %v6262 = vpop.permute.xlu0 %6261
  %6265 = vset.pattern.permute.xlu0 0
  %6266 = vperm.xlu0 %6265, %v6208
  %v6267 = vpop.permute.xlu0 %6266
  %6270 = vset.pattern.permute.xlu0 0
  %6271 = vperm.xlu0 %6270, %v6209
  %v6272 = vpop.permute.xlu0 %6271
  %6275 = vset.pattern.permute.xlu0 0
  %6276 = vperm.xlu0 %6275, %v6210
  %v6277 = vpop.permute.xlu0 %6276
  %6280 = vset.pattern.permute.xlu0 0
  %6281 = vperm.xlu0 %6280, %v6211
  %v6282 = vpop.permute.xlu0 %6281
  %6285 = vset.pattern.permute.xlu0 0
  %6286 = vperm.xlu0 %6285, %v6212
  %v6287 = vpop.permute.xlu0 %6286
  %6290 = vset.pattern.permute.xlu0 0
  %6291 = vperm.xlu0 %6290, %v6213
  %v6292 = vpop.permute.xlu0 %6291
  %v6294 = vmul.f32 %v6217, %v1549
  %v6295 = vmul.f32 %v6222, %v1554
  %v6296 = vmul.f32 %v6227, %v1559
  %v6297 = vmul.f32 %v6232, %v1564
  %v6298 = vmul.f32 %v6237, %v1569
  %v6299 = vmul.f32 %v6242, %v1574
  %v6300 = vmul.f32 %v6247, %v1579
  %v6301 = vmul.f32 %v6252, %v1584
  %v6302 = vmul.f32 %v6257, %v1589
  %v6303 = vmul.f32 %v6262, %v1594
  %v6304 = vmul.f32 %v6267, %v1599
  %v6305 = vmul.f32 %v6272, %v1604
  %v6306 = vmul.f32 %v6277, %v1609
  %v6307 = vmul.f32 %v6282, %v1614
  %v6308 = vmul.f32 %v6287, %v1619
  %v6309 = vmul.f32 %v6292, %v1624
  %v6310 = vsel %vm79, %v6294, 0.0
  %v6311 = vsel %vm79, %v6295, 0.0
  %v6312 = vadd.f32 %v6310, %v6311
  %v6313 = vrot.slane %v6312, 4
  %v6314 = vadd.f32 %v6312, %v6313
  %v6315 = vrot.slane %v6314, 2
  %v6316 = vadd.f32 %v6314, %v6315
  %v6317 = vrot.slane %v6316, 1
  %v6318 = vadd.f32 %v6316, %v6317
  %v6319 = vsel %vm79, %v6296, 0.0
  %v6320 = vsel %vm79, %v6297, 0.0
  %v6321 = vadd.f32 %v6319, %v6320
  %v6322 = vrot.slane %v6321, 4
  %v6323 = vadd.f32 %v6321, %v6322
  %v6324 = vrot.slane %v6323, 2
  %v6325 = vadd.f32 %v6323, %v6324
  %v6326 = vrot.slane %v6325, 1
  %v6327 = vadd.f32 %v6325, %v6326
  %v6328 = vsel %vm79, %v6298, 0.0
  %v6329 = vsel %vm79, %v6299, 0.0
  %v6330 = vadd.f32 %v6328, %v6329
  %v6331 = vrot.slane %v6330, 4
  %v6332 = vadd.f32 %v6330, %v6331
  %v6333 = vrot.slane %v6332, 2
  %v6334 = vadd.f32 %v6332, %v6333
  %v6335 = vrot.slane %v6334, 1
  %v6336 = vadd.f32 %v6334, %v6335
  %v6337 = vsel %vm79, %v6300, 0.0
  %v6338 = vsel %vm79, %v6301, 0.0
  %v6339 = vadd.f32 %v6337, %v6338
  %v6340 = vrot.slane %v6339, 4
  %v6341 = vadd.f32 %v6339, %v6340
  %v6342 = vrot.slane %v6341, 2
  %v6343 = vadd.f32 %v6341, %v6342
  %v6344 = vrot.slane %v6343, 1
  %v6345 = vadd.f32 %v6343, %v6344
  %v6346 = vsel %vm79, %v6302, 0.0
  %v6347 = vsel %vm79, %v6303, 0.0
  %v6348 = vadd.f32 %v6346, %v6347
  %v6349 = vrot.slane %v6348, 4
  %v6350 = vadd.f32 %v6348, %v6349
  %v6351 = vrot.slane %v6350, 2
  %v6352 = vadd.f32 %v6350, %v6351
  %v6353 = vrot.slane %v6352, 1
  %v6354 = vadd.f32 %v6352, %v6353
  %v6355 = vsel %vm79, %v6304, 0.0
  %v6356 = vsel %vm79, %v6305, 0.0
  %v6357 = vadd.f32 %v6355, %v6356
  %v6358 = vrot.slane %v6357, 4
  %v6359 = vadd.f32 %v6357, %v6358
  %v6360 = vrot.slane %v6359, 2
  %v6361 = vadd.f32 %v6359, %v6360
  %v6362 = vrot.slane %v6361, 1
  %v6363 = vadd.f32 %v6361, %v6362
  %v6364 = vsel %vm79, %v6306, 0.0
  %v6365 = vsel %vm79, %v6307, 0.0
  %v6366 = vadd.f32 %v6364, %v6365
  %v6367 = vrot.slane %v6366, 4
  %v6368 = vadd.f32 %v6366, %v6367
  %v6369 = vrot.slane %v6368, 2
  %v6370 = vadd.f32 %v6368, %v6369
  %v6371 = vrot.slane %v6370, 1
  %v6372 = vadd.f32 %v6370, %v6371
  %v6373 = vsel %vm79, %v6308, 0.0
  %v6374 = vsel %vm79, %v6309, 0.0
  %v6375 = vadd.f32 %v6373, %v6374
  %v6376 = vrot.slane %v6375, 4
  %v6377 = vadd.f32 %v6375, %v6376
  %v6378 = vrot.slane %v6377, 2
  %v6379 = vadd.f32 %v6377, %v6378
  %v6380 = vrot.slane %v6379, 1
  %v6381 = vadd.f32 %v6379, %v6380
  %v6390 = vsel %vm2097, %v6327, %v6318
  %v6391 = vsel %vm2099, %v6336, %v6390
  %v6392 = vsel %vm2101, %v6345, %v6391
  %v6393 = vsel %vm2103, %v6354, %v6392
  %v6394 = vsel %vm2105, %v6363, %v6393
  %v6395 = vsel %vm2107, %v6372, %v6394
  %v6396 = vsel %vm2109, %v6381, %v6395
  %6398 = vst.msk [vmem:[#allocation3 + $0x20] sm:$0xff] %vm79, %v6396
  %v6400 = vcombine.high %v1244, %v1244
  %v6402 = vunpack.c.l.s4 1966171168
  %v6403 = vunpack.c.0.s8 %v6402
  %v6404 = vlaneseq
  %v6405 = vshrl.u32 %v6404, 7
  %v6406 = vsub.s32 %v6403, %v6405
  %v6407 = vrot.slane %v1244, %v6406
  %v6409 = vunpack.c.l.s4 1966171168
  %v6410 = vunpack.c.0.s8 %v6409
  %v6411 = vlaneseq
  %v6412 = vshrl.u32 %v6411, 7
  %v6413 = vsub.s32 %v6410, %v6412
  %v6414 = vrot.slane %v6400, %v6413
  %v6415 = vcombine.high %v6407, %v6407
  %v6416 = vcombine.high %v6414, %v6414
  %v6418 = vunpack.c.l.s4 1966171168
  %v6419 = vunpack.c.0.s8 %v6418
  %v6420 = vlaneseq
  %v6421 = vshrl.u32 %v6420, 7
  %v6422 = vsub.s32 %v6419, %v6421
  %v6423 = vrot.slane %v6407, %v6422
  %v6425 = vunpack.c.l.s4 1966171168
  %v6426 = vunpack.c.0.s8 %v6425
  %v6427 = vlaneseq
  %v6428 = vshrl.u32 %v6427, 7
  %v6429 = vsub.s32 %v6426, %v6428
  %v6430 = vrot.slane %v6414, %v6429
  %v6432 = vunpack.c.l.s4 1966171168
  %v6433 = vunpack.c.0.s8 %v6432
  %v6434 = vlaneseq
  %v6435 = vshrl.u32 %v6434, 7
  %v6436 = vsub.s32 %v6433, %v6435
  %v6437 = vrot.slane %v6415, %v6436
  %v6439 = vunpack.c.l.s4 1966171168
  %v6440 = vunpack.c.0.s8 %v6439
  %v6441 = vlaneseq
  %v6442 = vshrl.u32 %v6441, 7
  %v6443 = vsub.s32 %v6440, %v6442
  %v6444 = vrot.slane %v6416, %v6443
  %v6445 = vcombine.high %v6423, %v6423
  %v6446 = vcombine.high %v6430, %v6430
  %v6447 = vcombine.high %v6437, %v6437
  %v6448 = vcombine.high %v6444, %v6444
  %v6449 = vlaneseq
  %v6450 = vshrl.u32 %v6449, 7
  %v6451 = vsub.s32 0, %v6450
  %v6452 = vrot.slane %v6423, %v6451
  %v6453 = vlaneseq
  %v6454 = vshrl.u32 %v6453, 7
  %v6455 = vsub.s32 0, %v6454
  %v6456 = vrot.slane %v6437, %v6455
  %v6457 = vlaneseq
  %v6458 = vshrl.u32 %v6457, 7
  %v6459 = vsub.s32 0, %v6458
  %v6460 = vrot.slane %v6445, %v6459
  %v6461 = vlaneseq
  %v6462 = vshrl.u32 %v6461, 7
  %v6463 = vsub.s32 0, %v6462
  %v6464 = vrot.slane %v6447, %v6463
  %v6465 = vlaneseq
  %v6466 = vshrl.u32 %v6465, 7
  %v6467 = vsub.s32 0, %v6466
  %v6468 = vrot.slane %v6430, %v6467
  %v6469 = vlaneseq
  %v6470 = vshrl.u32 %v6469, 7
  %v6471 = vsub.s32 0, %v6470
  %v6472 = vrot.slane %v6444, %v6471
  %v6473 = vlaneseq
  %v6474 = vshrl.u32 %v6473, 7
  %v6475 = vsub.s32 0, %v6474
  %v6476 = vrot.slane %v6446, %v6475
  %v6477 = vlaneseq
  %v6478 = vshrl.u32 %v6477, 7
  %v6479 = vsub.s32 0, %v6478
  %v6480 = vrot.slane %v6448, %v6479
  %v6489 = vadd.f32 %v6452, %v1396
  %v6490 = vadd.f32 %v6452, %v1401
  %v6491 = vadd.f32 %v6456, %v1406
  %v6492 = vadd.f32 %v6456, %v1411
  %v6493 = vadd.f32 %v6460, %v1416
  %v6494 = vadd.f32 %v6460, %v1421
  %v6495 = vadd.f32 %v6464, %v1426
  %v6496 = vadd.f32 %v6464, %v1431
  %v6497 = vadd.f32 %v6468, %v1436
  %v6498 = vadd.f32 %v6468, %v1441
  %v6499 = vadd.f32 %v6472, %v1446
  %v6500 = vadd.f32 %v6472, %v1451
  %v6501 = vadd.f32 %v6476, %v1456
  %v6502 = vadd.f32 %v6476, %v1461
  %v6503 = vadd.f32 %v6480, %v1466
  %v6504 = vadd.f32 %v6480, %v1471
  %v6505 = vtanh.pop %v6489
  %v6506 = vtanh.pop %v6490
  %v6507 = vtanh.pop %v6491
  %v6508 = vtanh.pop %v6492
  %v6509 = vtanh.pop %v6493
  %v6510 = vtanh.pop %v6494
  %v6511 = vtanh.pop %v6495
  %v6512 = vtanh.pop %v6496
  %v6513 = vtanh.pop %v6497
  %v6514 = vtanh.pop %v6498
  %v6515 = vtanh.pop %v6499
  %v6516 = vtanh.pop %v6500
  %v6517 = vtanh.pop %v6501
  %v6518 = vtanh.pop %v6502
  %v6519 = vtanh.pop %v6503
  %v6520 = vtanh.pop %v6504
  %v6521 = vmul.f32 %v6505, %v1752
  %v6522 = vmul.f32 %v6506, %v1752
  %v6523 = vmul.f32 %v6507, %v1752
  %v6524 = vmul.f32 %v6508, %v1752
  %v6525 = vmul.f32 %v6509, %v1752
  %v6526 = vmul.f32 %v6510, %v1752
  %v6527 = vmul.f32 %v6511, %v1752
  %v6528 = vmul.f32 %v6512, %v1752
  %v6529 = vmul.f32 %v6513, %v1752
  %v6530 = vmul.f32 %v6514, %v1752
  %v6531 = vmul.f32 %v6515, %v1752
  %v6532 = vmul.f32 %v6516, %v1752
  %v6533 = vmul.f32 %v6517, %v1752
  %v6534 = vmul.f32 %v6518, %v1752
  %v6535 = vmul.f32 %v6519, %v1752
  %v6536 = vmul.f32 %v6520, %v1752
  %v6537 = vsel %vm79, %v6521, 0.0
  %6538 = vadd.xlane.f32.xlu0 %v6537
  %v6539 = vpop.xlane.xlu0 %6538
  %v6540 = vsel %vm79, %v6522, 0.0
  %6541 = vadd.xlane.f32.xlu0 %v6540
  %v6542 = vpop.xlane.xlu0 %6541
  %v6543 = vsel %vm79, %v6523, 0.0
  %6544 = vadd.xlane.f32.xlu0 %v6543
  %v6545 = vpop.xlane.xlu0 %6544
  %v6546 = vsel %vm79, %v6524, 0.0
  %6547 = vadd.xlane.f32.xlu0 %v6546
  %v6548 = vpop.xlane.xlu0 %6547
  %v6549 = vsel %vm79, %v6525, 0.0
  %6550 = vadd.xlane.f32.xlu0 %v6549
  %v6551 = vpop.xlane.xlu0 %6550
  %v6552 = vsel %vm79, %v6526, 0.0
  %6553 = vadd.xlane.f32.xlu0 %v6552
  %v6554 = vpop.xlane.xlu0 %6553
  %v6555 = vsel %vm79, %v6527, 0.0
  %6556 = vadd.xlane.f32.xlu0 %v6555
  %v6557 = vpop.xlane.xlu0 %6556
  %v6558 = vsel %vm79, %v6528, 0.0
  %6559 = vadd.xlane.f32.xlu0 %v6558
  %v6560 = vpop.xlane.xlu0 %6559
  %v6561 = vsel %vm79, %v6529, 0.0
  %6562 = vadd.xlane.f32.xlu0 %v6561
  %v6563 = vpop.xlane.xlu0 %6562
  %v6564 = vsel %vm79, %v6530, 0.0
  %6565 = vadd.xlane.f32.xlu0 %v6564
  %v6566 = vpop.xlane.xlu0 %6565
  %v6567 = vsel %vm79, %v6531, 0.0
  %6568 = vadd.xlane.f32.xlu0 %v6567
  %v6569 = vpop.xlane.xlu0 %6568
  %v6570 = vsel %vm79, %v6532, 0.0
  %6571 = vadd.xlane.f32.xlu0 %v6570
  %v6572 = vpop.xlane.xlu0 %6571
  %v6573 = vsel %vm79, %v6533, 0.0
  %6574 = vadd.xlane.f32.xlu0 %v6573
  %v6575 = vpop.xlane.xlu0 %6574
  %v6576 = vsel %vm79, %v6534, 0.0
  %6577 = vadd.xlane.f32.xlu0 %v6576
  %v6578 = vpop.xlane.xlu0 %6577
  %v6579 = vsel %vm79, %v6535, 0.0
  %6580 = vadd.xlane.f32.xlu0 %v6579
  %v6581 = vpop.xlane.xlu0 %6580
  %v6582 = vsel %vm79, %v6536, 0.0
  %6583 = vadd.xlane.f32.xlu0 %v6582
  %v6584 = vpop.xlane.xlu0 %6583
  %v6585 = vadd.f32 %v6539, %v1819
  %v6586 = vadd.f32 %v6542, %v1819
  %v6587 = vadd.f32 %v6545, %v1819
  %v6588 = vadd.f32 %v6548, %v1819
  %v6589 = vadd.f32 %v6551, %v1819
  %v6590 = vadd.f32 %v6554, %v1819
  %v6591 = vadd.f32 %v6557, %v1819
  %v6592 = vadd.f32 %v6560, %v1819
  %v6593 = vadd.f32 %v6563, %v1819
  %v6594 = vadd.f32 %v6566, %v1819
  %v6595 = vadd.f32 %v6569, %v1819
  %v6596 = vadd.f32 %v6572, %v1819
  %v6597 = vadd.f32 %v6575, %v1819
  %v6598 = vadd.f32 %v6578, %v1819
  %v6599 = vadd.f32 %v6581, %v1819
  %v6600 = vadd.f32 %v6584, %v1819
  %s6601 = scalar_lea.vmem %s2, 40
  %v6602 = vld [vmem:[%s6601] sm:$0xff]
  %v6604 = vlaneseq
  %v6605 = vshrl.u32 %v6604, 7
  %v6606 = vsub.s32 0, %v6605
  %v6607 = vrot.slane %v6602, %v6606
  %6609 = vbcast.lane.b32.xlu0 %v6607, 256
  %v6610 = vpop.permute.xlu0 %6609
  %s6612 = sor.u32 256, 8
  %6613 = vbcast.lane.b32.xlu0 %v6607, %s6612
  %v6614 = vpop.permute.xlu0 %6613
  %v6615 = vlaneseq
  %v6616 = vshrl.u32 %v6615, 7
  %v6617 = vsub.s32 1, %v6616
  %v6618 = vrot.slane %v6602, %v6617
  %6620 = vbcast.lane.b32.xlu0 %v6618, 256
  %v6621 = vpop.permute.xlu0 %6620
  %s6623 = sor.u32 256, 8
  %6624 = vbcast.lane.b32.xlu0 %v6618, %s6623
  %v6625 = vpop.permute.xlu0 %6624
  %v6626 = vlaneseq
  %v6627 = vshrl.u32 %v6626, 7
  %v6628 = vsub.s32 2, %v6627
  %v6629 = vrot.slane %v6602, %v6628
  %6631 = vbcast.lane.b32.xlu0 %v6629, 256
  %v6632 = vpop.permute.xlu0 %6631
  %s6634 = sor.u32 256, 8
  %6635 = vbcast.lane.b32.xlu0 %v6629, %s6634
  %v6636 = vpop.permute.xlu0 %6635
  %v6637 = vlaneseq
  %v6638 = vshrl.u32 %v6637, 7
  %v6639 = vsub.s32 3, %v6638
  %v6640 = vrot.slane %v6602, %v6639
  %6642 = vbcast.lane.b32.xlu0 %v6640, 256
  %v6643 = vpop.permute.xlu0 %6642
  %s6645 = sor.u32 256, 8
  %6646 = vbcast.lane.b32.xlu0 %v6640, %s6645
  %v6647 = vpop.permute.xlu0 %6646
  %v6648 = vlaneseq
  %v6649 = vshrl.u32 %v6648, 7
  %v6650 = vsub.s32 4, %v6649
  %v6651 = vrot.slane %v6602, %v6650
  %6653 = vbcast.lane.b32.xlu0 %v6651, 256
  %v6654 = vpop.permute.xlu0 %6653
  %s6656 = sor.u32 256, 8
  %6657 = vbcast.lane.b32.xlu0 %v6651, %s6656
  %v6658 = vpop.permute.xlu0 %6657
  %v6659 = vlaneseq
  %v6660 = vshrl.u32 %v6659, 7
  %v6661 = vsub.s32 5, %v6660
  %v6662 = vrot.slane %v6602, %v6661
  %6664 = vbcast.lane.b32.xlu0 %v6662, 256
  %v6665 = vpop.permute.xlu0 %6664
  %s6667 = sor.u32 256, 8
  %6668 = vbcast.lane.b32.xlu0 %v6662, %s6667
  %v6669 = vpop.permute.xlu0 %6668
  %v6670 = vlaneseq
  %v6671 = vshrl.u32 %v6670, 7
  %v6672 = vsub.s32 6, %v6671
  %v6673 = vrot.slane %v6602, %v6672
  %6675 = vbcast.lane.b32.xlu0 %v6673, 256
  %v6676 = vpop.permute.xlu0 %6675
  %s6678 = sor.u32 256, 8
  %6679 = vbcast.lane.b32.xlu0 %v6673, %s6678
  %v6680 = vpop.permute.xlu0 %6679
  %v6681 = vlaneseq
  %v6682 = vshrl.u32 %v6681, 7
  %v6683 = vsub.s32 7, %v6682
  %v6684 = vrot.slane %v6602, %v6683
  %6686 = vbcast.lane.b32.xlu0 %v6684, 256
  %v6687 = vpop.permute.xlu0 %6686
  %s6689 = sor.u32 256, 8
  %6690 = vbcast.lane.b32.xlu0 %v6684, %s6689
  %v6691 = vpop.permute.xlu0 %6690
  %v6708 = vadd.f32 %v6585, %v6610
  %v6709 = vadd.f32 %v6586, %v6614
  %v6710 = vadd.f32 %v6587, %v6621
  %v6711 = vadd.f32 %v6588, %v6625
  %v6712 = vadd.f32 %v6589, %v6632
  %v6713 = vadd.f32 %v6590, %v6636
  %v6714 = vadd.f32 %v6591, %v6643
  %v6715 = vadd.f32 %v6592, %v6647
  %v6716 = vadd.f32 %v6593, %v6654
  %v6717 = vadd.f32 %v6594, %v6658
  %v6718 = vadd.f32 %v6595, %v6665
  %v6719 = vadd.f32 %v6596, %v6669
  %v6720 = vadd.f32 %v6597, %v6676
  %v6721 = vadd.f32 %v6598, %v6680
  %v6722 = vadd.f32 %v6599, %v6687
  %v6723 = vadd.f32 %v6600, %v6691
  %6740 = vset.pattern.permute.xlu0 0
  %6741 = vperm.xlu0 %6740, %v6708
  %v6742 = vpop.permute.xlu0 %6741
  %6743 = vset.pattern.permute.xlu0 0
  %6744 = vperm.xlu0 %6743, %v6709
  %v6745 = vpop.permute.xlu0 %6744
  %6746 = vset.pattern.permute.xlu0 0
  %6747 = vperm.xlu0 %6746, %v6710
  %v6748 = vpop.permute.xlu0 %6747
  %6749 = vset.pattern.permute.xlu0 0
  %6750 = vperm.xlu0 %6749, %v6711
  %v6751 = vpop.permute.xlu0 %6750
  %6752 = vset.pattern.permute.xlu0 0
  %6753 = vperm.xlu0 %6752, %v6712
  %v6754 = vpop.permute.xlu0 %6753
  %6755 = vset.pattern.permute.xlu0 0
  %6756 = vperm.xlu0 %6755, %v6713
  %v6757 = vpop.permute.xlu0 %6756
  %6758 = vset.pattern.permute.xlu0 0
  %6759 = vperm.xlu0 %6758, %v6714
  %v6760 = vpop.permute.xlu0 %6759
  %6761 = vset.pattern.permute.xlu0 0
  %6762 = vperm.xlu0 %6761, %v6715
  %v6763 = vpop.permute.xlu0 %6762
  %6764 = vset.pattern.permute.xlu0 0
  %6765 = vperm.xlu0 %6764, %v6716
  %v6766 = vpop.permute.xlu0 %6765
  %6767 = vset.pattern.permute.xlu0 0
  %6768 = vperm.xlu0 %6767, %v6717
  %v6769 = vpop.permute.xlu0 %6768
  %6770 = vset.pattern.permute.xlu0 0
  %6771 = vperm.xlu0 %6770, %v6718
  %v6772 = vpop.permute.xlu0 %6771
  %6773 = vset.pattern.permute.xlu0 0
  %6774 = vperm.xlu0 %6773, %v6719
  %v6775 = vpop.permute.xlu0 %6774
  %6776 = vset.pattern.permute.xlu0 0
  %6777 = vperm.xlu0 %6776, %v6720
  %v6778 = vpop.permute.xlu0 %6777
  %6779 = vset.pattern.permute.xlu0 0
  %6780 = vperm.xlu0 %6779, %v6721
  %v6781 = vpop.permute.xlu0 %6780
  %6782 = vset.pattern.permute.xlu0 0
  %6783 = vperm.xlu0 %6782, %v6722
  %v6784 = vpop.permute.xlu0 %6783
  %6785 = vset.pattern.permute.xlu0 0
  %6786 = vperm.xlu0 %6785, %v6723
  %v6787 = vpop.permute.xlu0 %6786
  %v6788 = vlaneseq
  %v6789 = vshrl.u32 %v6788, 7
  %v6790 = vsub.s32 %v58, %v6789
  %v6791 = vrot.slane %v6742, %v6790
  %v6792 = vlaneseq
  %v6793 = vshrl.u32 %v6792, 7
  %v6794 = vsub.s32 %v2027, %v6793
  %v6795 = vrot.slane %v6745, %v6794
  %v6796 = vsel %vm2032, %v6795, %v6791
  %v6797 = vlaneseq
  %v6798 = vshrl.u32 %v6797, 7
  %v6799 = vsub.s32 %v58, %v6798
  %v6800 = vrot.slane %v6748, %v6799
  %v6801 = vlaneseq
  %v6802 = vshrl.u32 %v6801, 7
  %v6803 = vsub.s32 %v2027, %v6802
  %v6804 = vrot.slane %v6751, %v6803
  %v6805 = vsel %vm2032, %v6804, %v6800
  %v6806 = vlaneseq
  %v6807 = vshrl.u32 %v6806, 7
  %v6808 = vsub.s32 %v58, %v6807
  %v6809 = vrot.slane %v6754, %v6808
  %v6810 = vlaneseq
  %v6811 = vshrl.u32 %v6810, 7
  %v6812 = vsub.s32 %v2027, %v6811
  %v6813 = vrot.slane %v6757, %v6812
  %v6814 = vsel %vm2032, %v6813, %v6809
  %v6815 = vlaneseq
  %v6816 = vshrl.u32 %v6815, 7
  %v6817 = vsub.s32 %v58, %v6816
  %v6818 = vrot.slane %v6760, %v6817
  %v6819 = vlaneseq
  %v6820 = vshrl.u32 %v6819, 7
  %v6821 = vsub.s32 %v2027, %v6820
  %v6822 = vrot.slane %v6763, %v6821
  %v6823 = vsel %vm2032, %v6822, %v6818
  %v6824 = vlaneseq
  %v6825 = vshrl.u32 %v6824, 7
  %v6826 = vsub.s32 %v58, %v6825
  %v6827 = vrot.slane %v6766, %v6826
  %v6828 = vlaneseq
  %v6829 = vshrl.u32 %v6828, 7
  %v6830 = vsub.s32 %v2027, %v6829
  %v6831 = vrot.slane %v6769, %v6830
  %v6832 = vsel %vm2032, %v6831, %v6827
  %v6833 = vlaneseq
  %v6834 = vshrl.u32 %v6833, 7
  %v6835 = vsub.s32 %v58, %v6834
  %v6836 = vrot.slane %v6772, %v6835
  %v6837 = vlaneseq
  %v6838 = vshrl.u32 %v6837, 7
  %v6839 = vsub.s32 %v2027, %v6838
  %v6840 = vrot.slane %v6775, %v6839
  %v6841 = vsel %vm2032, %v6840, %v6836
  %v6842 = vlaneseq
  %v6843 = vshrl.u32 %v6842, 7
  %v6844 = vsub.s32 %v58, %v6843
  %v6845 = vrot.slane %v6778, %v6844
  %v6846 = vlaneseq
  %v6847 = vshrl.u32 %v6846, 7
  %v6848 = vsub.s32 %v2027, %v6847
  %v6849 = vrot.slane %v6781, %v6848
  %v6850 = vsel %vm2032, %v6849, %v6845
  %v6851 = vlaneseq
  %v6852 = vshrl.u32 %v6851, 7
  %v6853 = vsub.s32 %v58, %v6852
  %v6854 = vrot.slane %v6784, %v6853
  %v6855 = vlaneseq
  %v6856 = vshrl.u32 %v6855, 7
  %v6857 = vsub.s32 %v2027, %v6856
  %v6858 = vrot.slane %v6787, %v6857
  %v6859 = vsel %vm2032, %v6858, %v6854
  %v6860 = vsel %vm2097, %v6805, %v6796
  %v6861 = vsel %vm2099, %v6814, %v6860
  %v6862 = vsel %vm2101, %v6823, %v6861
  %v6863 = vsel %vm2103, %v6832, %v6862
  %v6864 = vsel %vm2105, %v6841, %v6863
  %v6865 = vsel %vm2107, %v6850, %v6864
  %v6866 = vsel %vm2109, %v6859, %v6865
  %v6868 = vsel %vm2112, %v6866, -inf
  %6869 = vmax.xlane.f32.xlu0 %v6868
  %v6870 = vpop.xlane.xlu0 %6869
  %v6872 = vlaneseq
  %v6873 = vshrl.u32 %v6872, 7
  %v6874 = vsub.s32 0, %v6873
  %v6875 = vrot.slane %v6870, %v6874
  %v6876 = vlaneseq
  %v6877 = vshrl.u32 %v6876, 7
  %v6878 = vsub.s32 1, %v6877
  %v6879 = vrot.slane %v6870, %v6878
  %v6880 = vlaneseq
  %v6881 = vshrl.u32 %v6880, 7
  %v6882 = vsub.s32 2, %v6881
  %v6883 = vrot.slane %v6870, %v6882
  %v6884 = vlaneseq
  %v6885 = vshrl.u32 %v6884, 7
  %v6886 = vsub.s32 3, %v6885
  %v6887 = vrot.slane %v6870, %v6886
  %v6888 = vlaneseq
  %v6889 = vshrl.u32 %v6888, 7
  %v6890 = vsub.s32 4, %v6889
  %v6891 = vrot.slane %v6870, %v6890
  %v6892 = vlaneseq
  %v6893 = vshrl.u32 %v6892, 7
  %v6894 = vsub.s32 5, %v6893
  %v6895 = vrot.slane %v6870, %v6894
  %v6896 = vlaneseq
  %v6897 = vshrl.u32 %v6896, 7
  %v6898 = vsub.s32 6, %v6897
  %v6899 = vrot.slane %v6870, %v6898
  %v6900 = vlaneseq
  %v6901 = vshrl.u32 %v6900, 7
  %v6902 = vsub.s32 7, %v6901
  %v6903 = vrot.slane %v6870, %v6902
  %v6912 = vsub.f32 %v6708, %v6875
  %v6913 = vsub.f32 %v6709, %v6875
  %v6914 = vsub.f32 %v6710, %v6879
  %v6915 = vsub.f32 %v6711, %v6879
  %v6916 = vsub.f32 %v6712, %v6883
  %v6917 = vsub.f32 %v6713, %v6883
  %v6918 = vsub.f32 %v6714, %v6887
  %v6919 = vsub.f32 %v6715, %v6887
  %v6920 = vsub.f32 %v6716, %v6891
  %v6921 = vsub.f32 %v6717, %v6891
  %v6922 = vsub.f32 %v6718, %v6895
  %v6923 = vsub.f32 %v6719, %v6895
  %v6924 = vsub.f32 %v6720, %v6899
  %v6925 = vsub.f32 %v6721, %v6899
  %v6926 = vsub.f32 %v6722, %v6903
  %v6927 = vsub.f32 %v6723, %v6903
  %v6928 = vmul.f32 %v6912, 1.442695
  %v6929 = vpow.pop %v6928
  %v6930 = vmul.f32 %v6913, 1.442695
  %v6931 = vpow.pop %v6930
  %v6932 = vmul.f32 %v6914, 1.442695
  %v6933 = vpow.pop %v6932
  %v6934 = vmul.f32 %v6915, 1.442695
  %v6935 = vpow.pop %v6934
  %v6936 = vmul.f32 %v6916, 1.442695
  %v6937 = vpow.pop %v6936
  %v6938 = vmul.f32 %v6917, 1.442695
  %v6939 = vpow.pop %v6938
  %v6940 = vmul.f32 %v6918, 1.442695
  %v6941 = vpow.pop %v6940
  %v6942 = vmul.f32 %v6919, 1.442695
  %v6943 = vpow.pop %v6942
  %v6944 = vmul.f32 %v6920, 1.442695
  %v6945 = vpow.pop %v6944
  %v6946 = vmul.f32 %v6921, 1.442695
  %v6947 = vpow.pop %v6946
  %v6948 = vmul.f32 %v6922, 1.442695
  %v6949 = vpow.pop %v6948
  %v6950 = vmul.f32 %v6923, 1.442695
  %v6951 = vpow.pop %v6950
  %v6952 = vmul.f32 %v6924, 1.442695
  %v6953 = vpow.pop %v6952
  %v6954 = vmul.f32 %v6925, 1.442695
  %v6955 = vpow.pop %v6954
  %v6956 = vmul.f32 %v6926, 1.442695
  %v6957 = vpow.pop %v6956
  %v6958 = vmul.f32 %v6927, 1.442695
  %v6959 = vpow.pop %v6958
  %6976 = vset.pattern.permute.xlu0 0
  %6977 = vperm.xlu0 %6976, %v6929
  %v6978 = vpop.permute.xlu0 %6977
  %6979 = vset.pattern.permute.xlu0 0
  %6980 = vperm.xlu0 %6979, %v6931
  %v6981 = vpop.permute.xlu0 %6980
  %6982 = vset.pattern.permute.xlu0 0
  %6983 = vperm.xlu0 %6982, %v6933
  %v6984 = vpop.permute.xlu0 %6983
  %6985 = vset.pattern.permute.xlu0 0
  %6986 = vperm.xlu0 %6985, %v6935
  %v6987 = vpop.permute.xlu0 %6986
  %6988 = vset.pattern.permute.xlu0 0
  %6989 = vperm.xlu0 %6988, %v6937
  %v6990 = vpop.permute.xlu0 %6989
  %6991 = vset.pattern.permute.xlu0 0
  %6992 = vperm.xlu0 %6991, %v6939
  %v6993 = vpop.permute.xlu0 %6992
  %6994 = vset.pattern.permute.xlu0 0
  %6995 = vperm.xlu0 %6994, %v6941
  %v6996 = vpop.permute.xlu0 %6995
  %6997 = vset.pattern.permute.xlu0 0
  %6998 = vperm.xlu0 %6997, %v6943
  %v6999 = vpop.permute.xlu0 %6998
  %7000 = vset.pattern.permute.xlu0 0
  %7001 = vperm.xlu0 %7000, %v6945
  %v7002 = vpop.permute.xlu0 %7001
  %7003 = vset.pattern.permute.xlu0 0
  %7004 = vperm.xlu0 %7003, %v6947
  %v7005 = vpop.permute.xlu0 %7004
  %7006 = vset.pattern.permute.xlu0 0
  %7007 = vperm.xlu0 %7006, %v6949
  %v7008 = vpop.permute.xlu0 %7007
  %7009 = vset.pattern.permute.xlu0 0
  %7010 = vperm.xlu0 %7009, %v6951
  %v7011 = vpop.permute.xlu0 %7010
  %7012 = vset.pattern.permute.xlu0 0
  %7013 = vperm.xlu0 %7012, %v6953
  %v7014 = vpop.permute.xlu0 %7013
  %7015 = vset.pattern.permute.xlu0 0
  %7016 = vperm.xlu0 %7015, %v6955
  %v7017 = vpop.permute.xlu0 %7016
  %7018 = vset.pattern.permute.xlu0 0
  %7019 = vperm.xlu0 %7018, %v6957
  %v7020 = vpop.permute.xlu0 %7019
  %7021 = vset.pattern.permute.xlu0 0
  %7022 = vperm.xlu0 %7021, %v6959
  %v7023 = vpop.permute.xlu0 %7022
  %v7024 = vlaneseq
  %v7025 = vshrl.u32 %v7024, 7
  %v7026 = vsub.s32 %v58, %v7025
  %v7027 = vrot.slane %v6978, %v7026
  %v7028 = vlaneseq
  %v7029 = vshrl.u32 %v7028, 7
  %v7030 = vsub.s32 %v2027, %v7029
  %v7031 = vrot.slane %v6981, %v7030
  %v7032 = vsel %vm2032, %v7031, %v7027
  %v7033 = vlaneseq
  %v7034 = vshrl.u32 %v7033, 7
  %v7035 = vsub.s32 %v58, %v7034
  %v7036 = vrot.slane %v6984, %v7035
  %v7037 = vlaneseq
  %v7038 = vshrl.u32 %v7037, 7
  %v7039 = vsub.s32 %v2027, %v7038
  %v7040 = vrot.slane %v6987, %v7039
  %v7041 = vsel %vm2032, %v7040, %v7036
  %v7042 = vlaneseq
  %v7043 = vshrl.u32 %v7042, 7
  %v7044 = vsub.s32 %v58, %v7043
  %v7045 = vrot.slane %v6990, %v7044
  %v7046 = vlaneseq
  %v7047 = vshrl.u32 %v7046, 7
  %v7048 = vsub.s32 %v2027, %v7047
  %v7049 = vrot.slane %v6993, %v7048
  %v7050 = vsel %vm2032, %v7049, %v7045
  %v7051 = vlaneseq
  %v7052 = vshrl.u32 %v7051, 7
  %v7053 = vsub.s32 %v58, %v7052
  %v7054 = vrot.slane %v6996, %v7053
  %v7055 = vlaneseq
  %v7056 = vshrl.u32 %v7055, 7
  %v7057 = vsub.s32 %v2027, %v7056
  %v7058 = vrot.slane %v6999, %v7057
  %v7059 = vsel %vm2032, %v7058, %v7054
  %v7060 = vlaneseq
  %v7061 = vshrl.u32 %v7060, 7
  %v7062 = vsub.s32 %v58, %v7061
  %v7063 = vrot.slane %v7002, %v7062
  %v7064 = vlaneseq
  %v7065 = vshrl.u32 %v7064, 7
  %v7066 = vsub.s32 %v2027, %v7065
  %v7067 = vrot.slane %v7005, %v7066
  %v7068 = vsel %vm2032, %v7067, %v7063
  %v7069 = vlaneseq
  %v7070 = vshrl.u32 %v7069, 7
  %v7071 = vsub.s32 %v58, %v7070
  %v7072 = vrot.slane %v7008, %v7071
  %v7073 = vlaneseq
  %v7074 = vshrl.u32 %v7073, 7
  %v7075 = vsub.s32 %v2027, %v7074
  %v7076 = vrot.slane %v7011, %v7075
  %v7077 = vsel %vm2032, %v7076, %v7072
  %v7078 = vlaneseq
  %v7079 = vshrl.u32 %v7078, 7
  %v7080 = vsub.s32 %v58, %v7079
  %v7081 = vrot.slane %v7014, %v7080
  %v7082 = vlaneseq
  %v7083 = vshrl.u32 %v7082, 7
  %v7084 = vsub.s32 %v2027, %v7083
  %v7085 = vrot.slane %v7017, %v7084
  %v7086 = vsel %vm2032, %v7085, %v7081
  %v7087 = vlaneseq
  %v7088 = vshrl.u32 %v7087, 7
  %v7089 = vsub.s32 %v58, %v7088
  %v7090 = vrot.slane %v7020, %v7089
  %v7091 = vlaneseq
  %v7092 = vshrl.u32 %v7091, 7
  %v7093 = vsub.s32 %v2027, %v7092
  %v7094 = vrot.slane %v7023, %v7093
  %v7095 = vsel %vm2032, %v7094, %v7090
  %v7096 = vsel %vm2097, %v7041, %v7032
  %v7097 = vsel %vm2099, %v7050, %v7096
  %v7098 = vsel %vm2101, %v7059, %v7097
  %v7099 = vsel %vm2103, %v7068, %v7098
  %v7100 = vsel %vm2105, %v7077, %v7099
  %v7101 = vsel %vm2107, %v7086, %v7100
  %v7102 = vsel %vm2109, %v7095, %v7101
  %v7104 = vsel %vm2112, %v7102, 0.0
  %7105 = vadd.xlane.f32.xlu0 %v7104
  %v7106 = vpop.xlane.xlu0 %7105
  %v7107 = vrcp.pop %v7106
  %v7109 = vlaneseq
  %v7110 = vshrl.u32 %v7109, 7
  %v7111 = vsub.s32 0, %v7110
  %v7112 = vrot.slane %v7107, %v7111
  %v7113 = vlaneseq
  %v7114 = vshrl.u32 %v7113, 7
  %v7115 = vsub.s32 1, %v7114
  %v7116 = vrot.slane %v7107, %v7115
  %v7117 = vlaneseq
  %v7118 = vshrl.u32 %v7117, 7
  %v7119 = vsub.s32 2, %v7118
  %v7120 = vrot.slane %v7107, %v7119
  %v7121 = vlaneseq
  %v7122 = vshrl.u32 %v7121, 7
  %v7123 = vsub.s32 3, %v7122
  %v7124 = vrot.slane %v7107, %v7123
  %v7125 = vlaneseq
  %v7126 = vshrl.u32 %v7125, 7
  %v7127 = vsub.s32 4, %v7126
  %v7128 = vrot.slane %v7107, %v7127
  %v7129 = vlaneseq
  %v7130 = vshrl.u32 %v7129, 7
  %v7131 = vsub.s32 5, %v7130
  %v7132 = vrot.slane %v7107, %v7131
  %v7133 = vlaneseq
  %v7134 = vshrl.u32 %v7133, 7
  %v7135 = vsub.s32 6, %v7134
  %v7136 = vrot.slane %v7107, %v7135
  %v7137 = vlaneseq
  %v7138 = vshrl.u32 %v7137, 7
  %v7139 = vsub.s32 7, %v7138
  %v7140 = vrot.slane %v7107, %v7139
  %v7149 = vmul.f32 %v6929, %v7112
  %v7150 = vmul.f32 %v6931, %v7112
  %v7151 = vmul.f32 %v6933, %v7116
  %v7152 = vmul.f32 %v6935, %v7116
  %v7153 = vmul.f32 %v6937, %v7120
  %v7154 = vmul.f32 %v6939, %v7120
  %v7155 = vmul.f32 %v6941, %v7124
  %v7156 = vmul.f32 %v6943, %v7124
  %v7157 = vmul.f32 %v6945, %v7128
  %v7158 = vmul.f32 %v6947, %v7128
  %v7159 = vmul.f32 %v6949, %v7132
  %v7160 = vmul.f32 %v6951, %v7132
  %v7161 = vmul.f32 %v6953, %v7136
  %v7162 = vmul.f32 %v6955, %v7136
  %v7163 = vmul.f32 %v6957, %v7140
  %v7164 = vmul.f32 %v6959, %v7140
  %7166 = vset.pattern.permute.xlu0 0
  %7167 = vperm.xlu0 %7166, %v7149
  %v7168 = vpop.permute.xlu0 %7167
  %7171 = vset.pattern.permute.xlu0 0
  %7172 = vperm.xlu0 %7171, %v7150
  %v7173 = vpop.permute.xlu0 %7172
  %7176 = vset.pattern.permute.xlu0 0
  %7177 = vperm.xlu0 %7176, %v7151
  %v7178 = vpop.permute.xlu0 %7177
  %7181 = vset.pattern.permute.xlu0 0
  %7182 = vperm.xlu0 %7181, %v7152
  %v7183 = vpop.permute.xlu0 %7182
  %7186 = vset.pattern.permute.xlu0 0
  %7187 = vperm.xlu0 %7186, %v7153
  %v7188 = vpop.permute.xlu0 %7187
  %7191 = vset.pattern.permute.xlu0 0
  %7192 = vperm.xlu0 %7191, %v7154
  %v7193 = vpop.permute.xlu0 %7192
  %7196 = vset.pattern.permute.xlu0 0
  %7197 = vperm.xlu0 %7196, %v7155
  %v7198 = vpop.permute.xlu0 %7197
  %7201 = vset.pattern.permute.xlu0 0
  %7202 = vperm.xlu0 %7201, %v7156
  %v7203 = vpop.permute.xlu0 %7202
  %7206 = vset.pattern.permute.xlu0 0
  %7207 = vperm.xlu0 %7206, %v7157
  %v7208 = vpop.permute.xlu0 %7207
  %7211 = vset.pattern.permute.xlu0 0
  %7212 = vperm.xlu0 %7211, %v7158
  %v7213 = vpop.permute.xlu0 %7212
  %7216 = vset.pattern.permute.xlu0 0
  %7217 = vperm.xlu0 %7216, %v7159
  %v7218 = vpop.permute.xlu0 %7217
  %7221 = vset.pattern.permute.xlu0 0
  %7222 = vperm.xlu0 %7221, %v7160
  %v7223 = vpop.permute.xlu0 %7222
  %7226 = vset.pattern.permute.xlu0 0
  %7227 = vperm.xlu0 %7226, %v7161
  %v7228 = vpop.permute.xlu0 %7227
  %7231 = vset.pattern.permute.xlu0 0
  %7232 = vperm.xlu0 %7231, %v7162
  %v7233 = vpop.permute.xlu0 %7232
  %7236 = vset.pattern.permute.xlu0 0
  %7237 = vperm.xlu0 %7236, %v7163
  %v7238 = vpop.permute.xlu0 %7237
  %7241 = vset.pattern.permute.xlu0 0
  %7242 = vperm.xlu0 %7241, %v7164
  %v7243 = vpop.permute.xlu0 %7242
  %v7245 = vmul.f32 %v7168, %v1549
  %v7246 = vmul.f32 %v7173, %v1554
  %v7247 = vmul.f32 %v7178, %v1559
  %v7248 = vmul.f32 %v7183, %v1564
  %v7249 = vmul.f32 %v7188, %v1569
  %v7250 = vmul.f32 %v7193, %v1574
  %v7251 = vmul.f32 %v7198, %v1579
  %v7252 = vmul.f32 %v7203, %v1584
  %v7253 = vmul.f32 %v7208, %v1589
  %v7254 = vmul.f32 %v7213, %v1594
  %v7255 = vmul.f32 %v7218, %v1599
  %v7256 = vmul.f32 %v7223, %v1604
  %v7257 = vmul.f32 %v7228, %v1609
  %v7258 = vmul.f32 %v7233, %v1614
  %v7259 = vmul.f32 %v7238, %v1619
  %v7260 = vmul.f32 %v7243, %v1624
  %v7261 = vsel %vm79, %v7245, 0.0
  %v7262 = vsel %vm79, %v7246, 0.0
  %v7263 = vadd.f32 %v7261, %v7262
  %v7264 = vrot.slane %v7263, 4
  %v7265 = vadd.f32 %v7263, %v7264
  %v7266 = vrot.slane %v7265, 2
  %v7267 = vadd.f32 %v7265, %v7266
  %v7268 = vrot.slane %v7267, 1
  %v7269 = vadd.f32 %v7267, %v7268
  %v7270 = vsel %vm79, %v7247, 0.0
  %v7271 = vsel %vm79, %v7248, 0.0
  %v7272 = vadd.f32 %v7270, %v7271
  %v7273 = vrot.slane %v7272, 4
  %v7274 = vadd.f32 %v7272, %v7273
  %v7275 = vrot.slane %v7274, 2
  %v7276 = vadd.f32 %v7274, %v7275
  %v7277 = vrot.slane %v7276, 1
  %v7278 = vadd.f32 %v7276, %v7277
  %v7279 = vsel %vm79, %v7249, 0.0
  %v7280 = vsel %vm79, %v7250, 0.0
  %v7281 = vadd.f32 %v7279, %v7280
  %v7282 = vrot.slane %v7281, 4
  %v7283 = vadd.f32 %v7281, %v7282
  %v7284 = vrot.slane %v7283, 2
  %v7285 = vadd.f32 %v7283, %v7284
  %v7286 = vrot.slane %v7285, 1
  %v7287 = vadd.f32 %v7285, %v7286
  %v7288 = vsel %vm79, %v7251, 0.0
  %v7289 = vsel %vm79, %v7252, 0.0
  %v7290 = vadd.f32 %v7288, %v7289
  %v7291 = vrot.slane %v7290, 4
  %v7292 = vadd.f32 %v7290, %v7291
  %v7293 = vrot.slane %v7292, 2
  %v7294 = vadd.f32 %v7292, %v7293
  %v7295 = vrot.slane %v7294, 1
  %v7296 = vadd.f32 %v7294, %v7295
  %v7297 = vsel %vm79, %v7253, 0.0
  %v7298 = vsel %vm79, %v7254, 0.0
  %v7299 = vadd.f32 %v7297, %v7298
  %v7300 = vrot.slane %v7299, 4
  %v7301 = vadd.f32 %v7299, %v7300
  %v7302 = vrot.slane %v7301, 2
  %v7303 = vadd.f32 %v7301, %v7302
  %v7304 = vrot.slane %v7303, 1
  %v7305 = vadd.f32 %v7303, %v7304
  %v7306 = vsel %vm79, %v7255, 0.0
  %v7307 = vsel %vm79, %v7256, 0.0
  %v7308 = vadd.f32 %v7306, %v7307
  %v7309 = vrot.slane %v7308, 4
  %v7310 = vadd.f32 %v7308, %v7309
  %v7311 = vrot.slane %v7310, 2
  %v7312 = vadd.f32 %v7310, %v7311
  %v7313 = vrot.slane %v7312, 1
  %v7314 = vadd.f32 %v7312, %v7313
  %v7315 = vsel %vm79, %v7257, 0.0
  %v7316 = vsel %vm79, %v7258, 0.0
  %v7317 = vadd.f32 %v7315, %v7316
  %v7318 = vrot.slane %v7317, 4
  %v7319 = vadd.f32 %v7317, %v7318
  %v7320 = vrot.slane %v7319, 2
  %v7321 = vadd.f32 %v7319, %v7320
  %v7322 = vrot.slane %v7321, 1
  %v7323 = vadd.f32 %v7321, %v7322
  %v7324 = vsel %vm79, %v7259, 0.0
  %v7325 = vsel %vm79, %v7260, 0.0
  %v7326 = vadd.f32 %v7324, %v7325
  %v7327 = vrot.slane %v7326, 4
  %v7328 = vadd.f32 %v7326, %v7327
  %v7329 = vrot.slane %v7328, 2
  %v7330 = vadd.f32 %v7328, %v7329
  %v7331 = vrot.slane %v7330, 1
  %v7332 = vadd.f32 %v7330, %v7331
  %v7341 = vsel %vm2097, %v7278, %v7269
  %v7342 = vsel %vm2099, %v7287, %v7341
  %v7343 = vsel %vm2101, %v7296, %v7342
  %v7344 = vsel %vm2103, %v7305, %v7343
  %v7345 = vsel %vm2105, %v7314, %v7344
  %v7346 = vsel %vm2107, %v7323, %v7345
  %v7347 = vsel %vm2109, %v7332, %v7346
  %7349 = vst.msk [vmem:[#allocation3 + $0x28] sm:$0xff] %vm79, %v7347
  %v7351 = vcombine.high %v1249, %v1249
  %v7353 = vunpack.c.l.s4 1966171168
  %v7354 = vunpack.c.0.s8 %v7353
  %v7355 = vlaneseq
  %v7356 = vshrl.u32 %v7355, 7
  %v7357 = vsub.s32 %v7354, %v7356
  %v7358 = vrot.slane %v1249, %v7357
  %v7360 = vunpack.c.l.s4 1966171168
  %v7361 = vunpack.c.0.s8 %v7360
  %v7362 = vlaneseq
  %v7363 = vshrl.u32 %v7362, 7
  %v7364 = vsub.s32 %v7361, %v7363
  %v7365 = vrot.slane %v7351, %v7364
  %v7366 = vcombine.high %v7358, %v7358
  %v7367 = vcombine.high %v7365, %v7365
  %v7369 = vunpack.c.l.s4 1966171168
  %v7370 = vunpack.c.0.s8 %v7369
  %v7371 = vlaneseq
  %v7372 = vshrl.u32 %v7371, 7
  %v7373 = vsub.s32 %v7370, %v7372
  %v7374 = vrot.slane %v7358, %v7373
  %v7376 = vunpack.c.l.s4 1966171168
  %v7377 = vunpack.c.0.s8 %v7376
  %v7378 = vlaneseq
  %v7379 = vshrl.u32 %v7378, 7
  %v7380 = vsub.s32 %v7377, %v7379
  %v7381 = vrot.slane %v7365, %v7380
  %v7383 = vunpack.c.l.s4 1966171168
  %v7384 = vunpack.c.0.s8 %v7383
  %v7385 = vlaneseq
  %v7386 = vshrl.u32 %v7385, 7
  %v7387 = vsub.s32 %v7384, %v7386
  %v7388 = vrot.slane %v7366, %v7387
  %v7390 = vunpack.c.l.s4 1966171168
  %v7391 = vunpack.c.0.s8 %v7390
  %v7392 = vlaneseq
  %v7393 = vshrl.u32 %v7392, 7
  %v7394 = vsub.s32 %v7391, %v7393
  %v7395 = vrot.slane %v7367, %v7394
  %v7396 = vcombine.high %v7374, %v7374
  %v7397 = vcombine.high %v7381, %v7381
  %v7398 = vcombine.high %v7388, %v7388
  %v7399 = vcombine.high %v7395, %v7395
  %v7400 = vlaneseq
  %v7401 = vshrl.u32 %v7400, 7
  %v7402 = vsub.s32 0, %v7401
  %v7403 = vrot.slane %v7374, %v7402
  %v7404 = vlaneseq
  %v7405 = vshrl.u32 %v7404, 7
  %v7406 = vsub.s32 0, %v7405
  %v7407 = vrot.slane %v7388, %v7406
  %v7408 = vlaneseq
  %v7409 = vshrl.u32 %v7408, 7
  %v7410 = vsub.s32 0, %v7409
  %v7411 = vrot.slane %v7396, %v7410
  %v7412 = vlaneseq
  %v7413 = vshrl.u32 %v7412, 7
  %v7414 = vsub.s32 0, %v7413
  %v7415 = vrot.slane %v7398, %v7414
  %v7416 = vlaneseq
  %v7417 = vshrl.u32 %v7416, 7
  %v7418 = vsub.s32 0, %v7417
  %v7419 = vrot.slane %v7381, %v7418
  %v7420 = vlaneseq
  %v7421 = vshrl.u32 %v7420, 7
  %v7422 = vsub.s32 0, %v7421
  %v7423 = vrot.slane %v7395, %v7422
  %v7424 = vlaneseq
  %v7425 = vshrl.u32 %v7424, 7
  %v7426 = vsub.s32 0, %v7425
  %v7427 = vrot.slane %v7397, %v7426
  %v7428 = vlaneseq
  %v7429 = vshrl.u32 %v7428, 7
  %v7430 = vsub.s32 0, %v7429
  %v7431 = vrot.slane %v7399, %v7430
  %v7440 = vadd.f32 %v7403, %v1396
  %v7441 = vadd.f32 %v7403, %v1401
  %v7442 = vadd.f32 %v7407, %v1406
  %v7443 = vadd.f32 %v7407, %v1411
  %v7444 = vadd.f32 %v7411, %v1416
  %v7445 = vadd.f32 %v7411, %v1421
  %v7446 = vadd.f32 %v7415, %v1426
  %v7447 = vadd.f32 %v7415, %v1431
  %v7448 = vadd.f32 %v7419, %v1436
  %v7449 = vadd.f32 %v7419, %v1441
  %v7450 = vadd.f32 %v7423, %v1446
  %v7451 = vadd.f32 %v7423, %v1451
  %v7452 = vadd.f32 %v7427, %v1456
  %v7453 = vadd.f32 %v7427, %v1461
  %v7454 = vadd.f32 %v7431, %v1466
  %v7455 = vadd.f32 %v7431, %v1471
  %v7456 = vtanh.pop %v7440
  %v7457 = vtanh.pop %v7441
  %v7458 = vtanh.pop %v7442
  %v7459 = vtanh.pop %v7443
  %v7460 = vtanh.pop %v7444
  %v7461 = vtanh.pop %v7445
  %v7462 = vtanh.pop %v7446
  %v7463 = vtanh.pop %v7447
  %v7464 = vtanh.pop %v7448
  %v7465 = vtanh.pop %v7449
  %v7466 = vtanh.pop %v7450
  %v7467 = vtanh.pop %v7451
  %v7468 = vtanh.pop %v7452
  %v7469 = vtanh.pop %v7453
  %v7470 = vtanh.pop %v7454
  %v7471 = vtanh.pop %v7455
  %v7472 = vmul.f32 %v7456, %v1752
  %v7473 = vmul.f32 %v7457, %v1752
  %v7474 = vmul.f32 %v7458, %v1752
  %v7475 = vmul.f32 %v7459, %v1752
  %v7476 = vmul.f32 %v7460, %v1752
  %v7477 = vmul.f32 %v7461, %v1752
  %v7478 = vmul.f32 %v7462, %v1752
  %v7479 = vmul.f32 %v7463, %v1752
  %v7480 = vmul.f32 %v7464, %v1752
  %v7481 = vmul.f32 %v7465, %v1752
  %v7482 = vmul.f32 %v7466, %v1752
  %v7483 = vmul.f32 %v7467, %v1752
  %v7484 = vmul.f32 %v7468, %v1752
  %v7485 = vmul.f32 %v7469, %v1752
  %v7486 = vmul.f32 %v7470, %v1752
  %v7487 = vmul.f32 %v7471, %v1752
  %v7488 = vsel %vm79, %v7472, 0.0
  %7489 = vadd.xlane.f32.xlu0 %v7488
  %v7490 = vpop.xlane.xlu0 %7489
  %v7491 = vsel %vm79, %v7473, 0.0
  %7492 = vadd.xlane.f32.xlu0 %v7491
  %v7493 = vpop.xlane.xlu0 %7492
  %v7494 = vsel %vm79, %v7474, 0.0
  %7495 = vadd.xlane.f32.xlu0 %v7494
  %v7496 = vpop.xlane.xlu0 %7495
  %v7497 = vsel %vm79, %v7475, 0.0
  %7498 = vadd.xlane.f32.xlu0 %v7497
  %v7499 = vpop.xlane.xlu0 %7498
  %v7500 = vsel %vm79, %v7476, 0.0
  %7501 = vadd.xlane.f32.xlu0 %v7500
  %v7502 = vpop.xlane.xlu0 %7501
  %v7503 = vsel %vm79, %v7477, 0.0
  %7504 = vadd.xlane.f32.xlu0 %v7503
  %v7505 = vpop.xlane.xlu0 %7504
  %v7506 = vsel %vm79, %v7478, 0.0
  %7507 = vadd.xlane.f32.xlu0 %v7506
  %v7508 = vpop.xlane.xlu0 %7507
  %v7509 = vsel %vm79, %v7479, 0.0
  %7510 = vadd.xlane.f32.xlu0 %v7509
  %v7511 = vpop.xlane.xlu0 %7510
  %v7512 = vsel %vm79, %v7480, 0.0
  %7513 = vadd.xlane.f32.xlu0 %v7512
  %v7514 = vpop.xlane.xlu0 %7513
  %v7515 = vsel %vm79, %v7481, 0.0
  %7516 = vadd.xlane.f32.xlu0 %v7515
  %v7517 = vpop.xlane.xlu0 %7516
  %v7518 = vsel %vm79, %v7482, 0.0
  %7519 = vadd.xlane.f32.xlu0 %v7518
  %v7520 = vpop.xlane.xlu0 %7519
  %v7521 = vsel %vm79, %v7483, 0.0
  %7522 = vadd.xlane.f32.xlu0 %v7521
  %v7523 = vpop.xlane.xlu0 %7522
  %v7524 = vsel %vm79, %v7484, 0.0
  %7525 = vadd.xlane.f32.xlu0 %v7524
  %v7526 = vpop.xlane.xlu0 %7525
  %v7527 = vsel %vm79, %v7485, 0.0
  %7528 = vadd.xlane.f32.xlu0 %v7527
  %v7529 = vpop.xlane.xlu0 %7528
  %v7530 = vsel %vm79, %v7486, 0.0
  %7531 = vadd.xlane.f32.xlu0 %v7530
  %v7532 = vpop.xlane.xlu0 %7531
  %v7533 = vsel %vm79, %v7487, 0.0
  %7534 = vadd.xlane.f32.xlu0 %v7533
  %v7535 = vpop.xlane.xlu0 %7534
  %v7536 = vadd.f32 %v7490, %v1819
  %v7537 = vadd.f32 %v7493, %v1819
  %v7538 = vadd.f32 %v7496, %v1819
  %v7539 = vadd.f32 %v7499, %v1819
  %v7540 = vadd.f32 %v7502, %v1819
  %v7541 = vadd.f32 %v7505, %v1819
  %v7542 = vadd.f32 %v7508, %v1819
  %v7543 = vadd.f32 %v7511, %v1819
  %v7544 = vadd.f32 %v7514, %v1819
  %v7545 = vadd.f32 %v7517, %v1819
  %v7546 = vadd.f32 %v7520, %v1819
  %v7547 = vadd.f32 %v7523, %v1819
  %v7548 = vadd.f32 %v7526, %v1819
  %v7549 = vadd.f32 %v7529, %v1819
  %v7550 = vadd.f32 %v7532, %v1819
  %v7551 = vadd.f32 %v7535, %v1819
  %s7552 = scalar_lea.vmem %s2, 48
  %v7553 = vld [vmem:[%s7552] sm:$0xff]
  %v7555 = vlaneseq
  %v7556 = vshrl.u32 %v7555, 7
  %v7557 = vsub.s32 0, %v7556
  %v7558 = vrot.slane %v7553, %v7557
  %7560 = vbcast.lane.b32.xlu0 %v7558, 256
  %v7561 = vpop.permute.xlu0 %7560
  %s7563 = sor.u32 256, 8
  %7564 = vbcast.lane.b32.xlu0 %v7558, %s7563
  %v7565 = vpop.permute.xlu0 %7564
  %v7566 = vlaneseq
  %v7567 = vshrl.u32 %v7566, 7
  %v7568 = vsub.s32 1, %v7567
  %v7569 = vrot.slane %v7553, %v7568
  %7571 = vbcast.lane.b32.xlu0 %v7569, 256
  %v7572 = vpop.permute.xlu0 %7571
  %s7574 = sor.u32 256, 8
  %7575 = vbcast.lane.b32.xlu0 %v7569, %s7574
  %v7576 = vpop.permute.xlu0 %7575
  %v7577 = vlaneseq
  %v7578 = vshrl.u32 %v7577, 7
  %v7579 = vsub.s32 2, %v7578
  %v7580 = vrot.slane %v7553, %v7579
  %7582 = vbcast.lane.b32.xlu0 %v7580, 256
  %v7583 = vpop.permute.xlu0 %7582
  %s7585 = sor.u32 256, 8
  %7586 = vbcast.lane.b32.xlu0 %v7580, %s7585
  %v7587 = vpop.permute.xlu0 %7586
  %v7588 = vlaneseq
  %v7589 = vshrl.u32 %v7588, 7
  %v7590 = vsub.s32 3, %v7589
  %v7591 = vrot.slane %v7553, %v7590
  %7593 = vbcast.lane.b32.xlu0 %v7591, 256
  %v7594 = vpop.permute.xlu0 %7593
  %s7596 = sor.u32 256, 8
  %7597 = vbcast.lane.b32.xlu0 %v7591, %s7596
  %v7598 = vpop.permute.xlu0 %7597
  %v7599 = vlaneseq
  %v7600 = vshrl.u32 %v7599, 7
  %v7601 = vsub.s32 4, %v7600
  %v7602 = vrot.slane %v7553, %v7601
  %7604 = vbcast.lane.b32.xlu0 %v7602, 256
  %v7605 = vpop.permute.xlu0 %7604
  %s7607 = sor.u32 256, 8
  %7608 = vbcast.lane.b32.xlu0 %v7602, %s7607
  %v7609 = vpop.permute.xlu0 %7608
  %v7610 = vlaneseq
  %v7611 = vshrl.u32 %v7610, 7
  %v7612 = vsub.s32 5, %v7611
  %v7613 = vrot.slane %v7553, %v7612
  %7615 = vbcast.lane.b32.xlu0 %v7613, 256
  %v7616 = vpop.permute.xlu0 %7615
  %s7618 = sor.u32 256, 8
  %7619 = vbcast.lane.b32.xlu0 %v7613, %s7618
  %v7620 = vpop.permute.xlu0 %7619
  %v7621 = vlaneseq
  %v7622 = vshrl.u32 %v7621, 7
  %v7623 = vsub.s32 6, %v7622
  %v7624 = vrot.slane %v7553, %v7623
  %7626 = vbcast.lane.b32.xlu0 %v7624, 256
  %v7627 = vpop.permute.xlu0 %7626
  %s7629 = sor.u32 256, 8
  %7630 = vbcast.lane.b32.xlu0 %v7624, %s7629
  %v7631 = vpop.permute.xlu0 %7630
  %v7632 = vlaneseq
  %v7633 = vshrl.u32 %v7632, 7
  %v7634 = vsub.s32 7, %v7633
  %v7635 = vrot.slane %v7553, %v7634
  %7637 = vbcast.lane.b32.xlu0 %v7635, 256
  %v7638 = vpop.permute.xlu0 %7637
  %s7640 = sor.u32 256, 8
  %7641 = vbcast.lane.b32.xlu0 %v7635, %s7640
  %v7642 = vpop.permute.xlu0 %7641
  %v7659 = vadd.f32 %v7536, %v7561
  %v7660 = vadd.f32 %v7537, %v7565
  %v7661 = vadd.f32 %v7538, %v7572
  %v7662 = vadd.f32 %v7539, %v7576
  %v7663 = vadd.f32 %v7540, %v7583
  %v7664 = vadd.f32 %v7541, %v7587
  %v7665 = vadd.f32 %v7542, %v7594
  %v7666 = vadd.f32 %v7543, %v7598
  %v7667 = vadd.f32 %v7544, %v7605
  %v7668 = vadd.f32 %v7545, %v7609
  %v7669 = vadd.f32 %v7546, %v7616
  %v7670 = vadd.f32 %v7547, %v7620
  %v7671 = vadd.f32 %v7548, %v7627
  %v7672 = vadd.f32 %v7549, %v7631
  %v7673 = vadd.f32 %v7550, %v7638
  %v7674 = vadd.f32 %v7551, %v7642
  %7691 = vset.pattern.permute.xlu0 0
  %7692 = vperm.xlu0 %7691, %v7659
  %v7693 = vpop.permute.xlu0 %7692
  %7694 = vset.pattern.permute.xlu0 0
  %7695 = vperm.xlu0 %7694, %v7660
  %v7696 = vpop.permute.xlu0 %7695
  %7697 = vset.pattern.permute.xlu0 0
  %7698 = vperm.xlu0 %7697, %v7661
  %v7699 = vpop.permute.xlu0 %7698
  %7700 = vset.pattern.permute.xlu0 0
  %7701 = vperm.xlu0 %7700, %v7662
  %v7702 = vpop.permute.xlu0 %7701
  %7703 = vset.pattern.permute.xlu0 0
  %7704 = vperm.xlu0 %7703, %v7663
  %v7705 = vpop.permute.xlu0 %7704
  %7706 = vset.pattern.permute.xlu0 0
  %7707 = vperm.xlu0 %7706, %v7664
  %v7708 = vpop.permute.xlu0 %7707
  %7709 = vset.pattern.permute.xlu0 0
  %7710 = vperm.xlu0 %7709, %v7665
  %v7711 = vpop.permute.xlu0 %7710
  %7712 = vset.pattern.permute.xlu0 0
  %7713 = vperm.xlu0 %7712, %v7666
  %v7714 = vpop.permute.xlu0 %7713
  %7715 = vset.pattern.permute.xlu0 0
  %7716 = vperm.xlu0 %7715, %v7667
  %v7717 = vpop.permute.xlu0 %7716
  %7718 = vset.pattern.permute.xlu0 0
  %7719 = vperm.xlu0 %7718, %v7668
  %v7720 = vpop.permute.xlu0 %7719
  %7721 = vset.pattern.permute.xlu0 0
  %7722 = vperm.xlu0 %7721, %v7669
  %v7723 = vpop.permute.xlu0 %7722
  %7724 = vset.pattern.permute.xlu0 0
  %7725 = vperm.xlu0 %7724, %v7670
  %v7726 = vpop.permute.xlu0 %7725
  %7727 = vset.pattern.permute.xlu0 0
  %7728 = vperm.xlu0 %7727, %v7671
  %v7729 = vpop.permute.xlu0 %7728
  %7730 = vset.pattern.permute.xlu0 0
  %7731 = vperm.xlu0 %7730, %v7672
  %v7732 = vpop.permute.xlu0 %7731
  %7733 = vset.pattern.permute.xlu0 0
  %7734 = vperm.xlu0 %7733, %v7673
  %v7735 = vpop.permute.xlu0 %7734
  %7736 = vset.pattern.permute.xlu0 0
  %7737 = vperm.xlu0 %7736, %v7674
  %v7738 = vpop.permute.xlu0 %7737
  %v7739 = vlaneseq
  %v7740 = vshrl.u32 %v7739, 7
  %v7741 = vsub.s32 %v58, %v7740
  %v7742 = vrot.slane %v7693, %v7741
  %v7743 = vlaneseq
  %v7744 = vshrl.u32 %v7743, 7
  %v7745 = vsub.s32 %v2027, %v7744
  %v7746 = vrot.slane %v7696, %v7745
  %v7747 = vsel %vm2032, %v7746, %v7742
  %v7748 = vlaneseq
  %v7749 = vshrl.u32 %v7748, 7
  %v7750 = vsub.s32 %v58, %v7749
  %v7751 = vrot.slane %v7699, %v7750
  %v7752 = vlaneseq
  %v7753 = vshrl.u32 %v7752, 7
  %v7754 = vsub.s32 %v2027, %v7753
  %v7755 = vrot.slane %v7702, %v7754
  %v7756 = vsel %vm2032, %v7755, %v7751
  %v7757 = vlaneseq
  %v7758 = vshrl.u32 %v7757, 7
  %v7759 = vsub.s32 %v58, %v7758
  %v7760 = vrot.slane %v7705, %v7759
  %v7761 = vlaneseq
  %v7762 = vshrl.u32 %v7761, 7
  %v7763 = vsub.s32 %v2027, %v7762
  %v7764 = vrot.slane %v7708, %v7763
  %v7765 = vsel %vm2032, %v7764, %v7760
  %v7766 = vlaneseq
  %v7767 = vshrl.u32 %v7766, 7
  %v7768 = vsub.s32 %v58, %v7767
  %v7769 = vrot.slane %v7711, %v7768
  %v7770 = vlaneseq
  %v7771 = vshrl.u32 %v7770, 7
  %v7772 = vsub.s32 %v2027, %v7771
  %v7773 = vrot.slane %v7714, %v7772
  %v7774 = vsel %vm2032, %v7773, %v7769
  %v7775 = vlaneseq
  %v7776 = vshrl.u32 %v7775, 7
  %v7777 = vsub.s32 %v58, %v7776
  %v7778 = vrot.slane %v7717, %v7777
  %v7779 = vlaneseq
  %v7780 = vshrl.u32 %v7779, 7
  %v7781 = vsub.s32 %v2027, %v7780
  %v7782 = vrot.slane %v7720, %v7781
  %v7783 = vsel %vm2032, %v7782, %v7778
  %v7784 = vlaneseq
  %v7785 = vshrl.u32 %v7784, 7
  %v7786 = vsub.s32 %v58, %v7785
  %v7787 = vrot.slane %v7723, %v7786
  %v7788 = vlaneseq
  %v7789 = vshrl.u32 %v7788, 7
  %v7790 = vsub.s32 %v2027, %v7789
  %v7791 = vrot.slane %v7726, %v7790
  %v7792 = vsel %vm2032, %v7791, %v7787
  %v7793 = vlaneseq
  %v7794 = vshrl.u32 %v7793, 7
  %v7795 = vsub.s32 %v58, %v7794
  %v7796 = vrot.slane %v7729, %v7795
  %v7797 = vlaneseq
  %v7798 = vshrl.u32 %v7797, 7
  %v7799 = vsub.s32 %v2027, %v7798
  %v7800 = vrot.slane %v7732, %v7799
  %v7801 = vsel %vm2032, %v7800, %v7796
  %v7802 = vlaneseq
  %v7803 = vshrl.u32 %v7802, 7
  %v7804 = vsub.s32 %v58, %v7803
  %v7805 = vrot.slane %v7735, %v7804
  %v7806 = vlaneseq
  %v7807 = vshrl.u32 %v7806, 7
  %v7808 = vsub.s32 %v2027, %v7807
  %v7809 = vrot.slane %v7738, %v7808
  %v7810 = vsel %vm2032, %v7809, %v7805
  %v7811 = vsel %vm2097, %v7756, %v7747
  %v7812 = vsel %vm2099, %v7765, %v7811
  %v7813 = vsel %vm2101, %v7774, %v7812
  %v7814 = vsel %vm2103, %v7783, %v7813
  %v7815 = vsel %vm2105, %v7792, %v7814
  %v7816 = vsel %vm2107, %v7801, %v7815
  %v7817 = vsel %vm2109, %v7810, %v7816
  %v7819 = vsel %vm2112, %v7817, -inf
  %7820 = vmax.xlane.f32.xlu0 %v7819
  %v7821 = vpop.xlane.xlu0 %7820
  %v7823 = vlaneseq
  %v7824 = vshrl.u32 %v7823, 7
  %v7825 = vsub.s32 0, %v7824
  %v7826 = vrot.slane %v7821, %v7825
  %v7827 = vlaneseq
  %v7828 = vshrl.u32 %v7827, 7
  %v7829 = vsub.s32 1, %v7828
  %v7830 = vrot.slane %v7821, %v7829
  %v7831 = vlaneseq
  %v7832 = vshrl.u32 %v7831, 7
  %v7833 = vsub.s32 2, %v7832
  %v7834 = vrot.slane %v7821, %v7833
  %v7835 = vlaneseq
  %v7836 = vshrl.u32 %v7835, 7
  %v7837 = vsub.s32 3, %v7836
  %v7838 = vrot.slane %v7821, %v7837
  %v7839 = vlaneseq
  %v7840 = vshrl.u32 %v7839, 7
  %v7841 = vsub.s32 4, %v7840
  %v7842 = vrot.slane %v7821, %v7841
  %v7843 = vlaneseq
  %v7844 = vshrl.u32 %v7843, 7
  %v7845 = vsub.s32 5, %v7844
  %v7846 = vrot.slane %v7821, %v7845
  %v7847 = vlaneseq
  %v7848 = vshrl.u32 %v7847, 7
  %v7849 = vsub.s32 6, %v7848
  %v7850 = vrot.slane %v7821, %v7849
  %v7851 = vlaneseq
  %v7852 = vshrl.u32 %v7851, 7
  %v7853 = vsub.s32 7, %v7852
  %v7854 = vrot.slane %v7821, %v7853
  %v7863 = vsub.f32 %v7659, %v7826
  %v7864 = vsub.f32 %v7660, %v7826
  %v7865 = vsub.f32 %v7661, %v7830
  %v7866 = vsub.f32 %v7662, %v7830
  %v7867 = vsub.f32 %v7663, %v7834
  %v7868 = vsub.f32 %v7664, %v7834
  %v7869 = vsub.f32 %v7665, %v7838
  %v7870 = vsub.f32 %v7666, %v7838
  %v7871 = vsub.f32 %v7667, %v7842
  %v7872 = vsub.f32 %v7668, %v7842
  %v7873 = vsub.f32 %v7669, %v7846
  %v7874 = vsub.f32 %v7670, %v7846
  %v7875 = vsub.f32 %v7671, %v7850
  %v7876 = vsub.f32 %v7672, %v7850
  %v7877 = vsub.f32 %v7673, %v7854
  %v7878 = vsub.f32 %v7674, %v7854
  %v7879 = vmul.f32 %v7863, 1.442695
  %v7880 = vpow.pop %v7879
  %v7881 = vmul.f32 %v7864, 1.442695
  %v7882 = vpow.pop %v7881
  %v7883 = vmul.f32 %v7865, 1.442695
  %v7884 = vpow.pop %v7883
  %v7885 = vmul.f32 %v7866, 1.442695
  %v7886 = vpow.pop %v7885
  %v7887 = vmul.f32 %v7867, 1.442695
  %v7888 = vpow.pop %v7887
  %v7889 = vmul.f32 %v7868, 1.442695
  %v7890 = vpow.pop %v7889
  %v7891 = vmul.f32 %v7869, 1.442695
  %v7892 = vpow.pop %v7891
  %v7893 = vmul.f32 %v7870, 1.442695
  %v7894 = vpow.pop %v7893
  %v7895 = vmul.f32 %v7871, 1.442695
  %v7896 = vpow.pop %v7895
  %v7897 = vmul.f32 %v7872, 1.442695
  %v7898 = vpow.pop %v7897
  %v7899 = vmul.f32 %v7873, 1.442695
  %v7900 = vpow.pop %v7899
  %v7901 = vmul.f32 %v7874, 1.442695
  %v7902 = vpow.pop %v7901
  %v7903 = vmul.f32 %v7875, 1.442695
  %v7904 = vpow.pop %v7903
  %v7905 = vmul.f32 %v7876, 1.442695
  %v7906 = vpow.pop %v7905
  %v7907 = vmul.f32 %v7877, 1.442695
  %v7908 = vpow.pop %v7907
  %v7909 = vmul.f32 %v7878, 1.442695
  %v7910 = vpow.pop %v7909
  %7927 = vset.pattern.permute.xlu0 0
  %7928 = vperm.xlu0 %7927, %v7880
  %v7929 = vpop.permute.xlu0 %7928
  %7930 = vset.pattern.permute.xlu0 0
  %7931 = vperm.xlu0 %7930, %v7882
  %v7932 = vpop.permute.xlu0 %7931
  %7933 = vset.pattern.permute.xlu0 0
  %7934 = vperm.xlu0 %7933, %v7884
  %v7935 = vpop.permute.xlu0 %7934
  %7936 = vset.pattern.permute.xlu0 0
  %7937 = vperm.xlu0 %7936, %v7886
  %v7938 = vpop.permute.xlu0 %7937
  %7939 = vset.pattern.permute.xlu0 0
  %7940 = vperm.xlu0 %7939, %v7888
  %v7941 = vpop.permute.xlu0 %7940
  %7942 = vset.pattern.permute.xlu0 0
  %7943 = vperm.xlu0 %7942, %v7890
  %v7944 = vpop.permute.xlu0 %7943
  %7945 = vset.pattern.permute.xlu0 0
  %7946 = vperm.xlu0 %7945, %v7892
  %v7947 = vpop.permute.xlu0 %7946
  %7948 = vset.pattern.permute.xlu0 0
  %7949 = vperm.xlu0 %7948, %v7894
  %v7950 = vpop.permute.xlu0 %7949
  %7951 = vset.pattern.permute.xlu0 0
  %7952 = vperm.xlu0 %7951, %v7896
  %v7953 = vpop.permute.xlu0 %7952
  %7954 = vset.pattern.permute.xlu0 0
  %7955 = vperm.xlu0 %7954, %v7898
  %v7956 = vpop.permute.xlu0 %7955
  %7957 = vset.pattern.permute.xlu0 0
  %7958 = vperm.xlu0 %7957, %v7900
  %v7959 = vpop.permute.xlu0 %7958
  %7960 = vset.pattern.permute.xlu0 0
  %7961 = vperm.xlu0 %7960, %v7902
  %v7962 = vpop.permute.xlu0 %7961
  %7963 = vset.pattern.permute.xlu0 0
  %7964 = vperm.xlu0 %7963, %v7904
  %v7965 = vpop.permute.xlu0 %7964
  %7966 = vset.pattern.permute.xlu0 0
  %7967 = vperm.xlu0 %7966, %v7906
  %v7968 = vpop.permute.xlu0 %7967
  %7969 = vset.pattern.permute.xlu0 0
  %7970 = vperm.xlu0 %7969, %v7908
  %v7971 = vpop.permute.xlu0 %7970
  %7972 = vset.pattern.permute.xlu0 0
  %7973 = vperm.xlu0 %7972, %v7910
  %v7974 = vpop.permute.xlu0 %7973
  %v7975 = vlaneseq
  %v7976 = vshrl.u32 %v7975, 7
  %v7977 = vsub.s32 %v58, %v7976
  %v7978 = vrot.slane %v7929, %v7977
  %v7979 = vlaneseq
  %v7980 = vshrl.u32 %v7979, 7
  %v7981 = vsub.s32 %v2027, %v7980
  %v7982 = vrot.slane %v7932, %v7981
  %v7983 = vsel %vm2032, %v7982, %v7978
  %v7984 = vlaneseq
  %v7985 = vshrl.u32 %v7984, 7
  %v7986 = vsub.s32 %v58, %v7985
  %v7987 = vrot.slane %v7935, %v7986
  %v7988 = vlaneseq
  %v7989 = vshrl.u32 %v7988, 7
  %v7990 = vsub.s32 %v2027, %v7989
  %v7991 = vrot.slane %v7938, %v7990
  %v7992 = vsel %vm2032, %v7991, %v7987
  %v7993 = vlaneseq
  %v7994 = vshrl.u32 %v7993, 7
  %v7995 = vsub.s32 %v58, %v7994
  %v7996 = vrot.slane %v7941, %v7995
  %v7997 = vlaneseq
  %v7998 = vshrl.u32 %v7997, 7
  %v7999 = vsub.s32 %v2027, %v7998
  %v8000 = vrot.slane %v7944, %v7999
  %v8001 = vsel %vm2032, %v8000, %v7996
  %v8002 = vlaneseq
  %v8003 = vshrl.u32 %v8002, 7
  %v8004 = vsub.s32 %v58, %v8003
  %v8005 = vrot.slane %v7947, %v8004
  %v8006 = vlaneseq
  %v8007 = vshrl.u32 %v8006, 7
  %v8008 = vsub.s32 %v2027, %v8007
  %v8009 = vrot.slane %v7950, %v8008
  %v8010 = vsel %vm2032, %v8009, %v8005
  %v8011 = vlaneseq
  %v8012 = vshrl.u32 %v8011, 7
  %v8013 = vsub.s32 %v58, %v8012
  %v8014 = vrot.slane %v7953, %v8013
  %v8015 = vlaneseq
  %v8016 = vshrl.u32 %v8015, 7
  %v8017 = vsub.s32 %v2027, %v8016
  %v8018 = vrot.slane %v7956, %v8017
  %v8019 = vsel %vm2032, %v8018, %v8014
  %v8020 = vlaneseq
  %v8021 = vshrl.u32 %v8020, 7
  %v8022 = vsub.s32 %v58, %v8021
  %v8023 = vrot.slane %v7959, %v8022
  %v8024 = vlaneseq
  %v8025 = vshrl.u32 %v8024, 7
  %v8026 = vsub.s32 %v2027, %v8025
  %v8027 = vrot.slane %v7962, %v8026
  %v8028 = vsel %vm2032, %v8027, %v8023
  %v8029 = vlaneseq
  %v8030 = vshrl.u32 %v8029, 7
  %v8031 = vsub.s32 %v58, %v8030
  %v8032 = vrot.slane %v7965, %v8031
  %v8033 = vlaneseq
  %v8034 = vshrl.u32 %v8033, 7
  %v8035 = vsub.s32 %v2027, %v8034
  %v8036 = vrot.slane %v7968, %v8035
  %v8037 = vsel %vm2032, %v8036, %v8032
  %v8038 = vlaneseq
  %v8039 = vshrl.u32 %v8038, 7
  %v8040 = vsub.s32 %v58, %v8039
  %v8041 = vrot.slane %v7971, %v8040
  %v8042 = vlaneseq
  %v8043 = vshrl.u32 %v8042, 7
  %v8044 = vsub.s32 %v2027, %v8043
  %v8045 = vrot.slane %v7974, %v8044
  %v8046 = vsel %vm2032, %v8045, %v8041
  %v8047 = vsel %vm2097, %v7992, %v7983
  %v8048 = vsel %vm2099, %v8001, %v8047
  %v8049 = vsel %vm2101, %v8010, %v8048
  %v8050 = vsel %vm2103, %v8019, %v8049
  %v8051 = vsel %vm2105, %v8028, %v8050
  %v8052 = vsel %vm2107, %v8037, %v8051
  %v8053 = vsel %vm2109, %v8046, %v8052
  %v8055 = vsel %vm2112, %v8053, 0.0
  %8056 = vadd.xlane.f32.xlu0 %v8055
  %v8057 = vpop.xlane.xlu0 %8056
  %v8058 = vrcp.pop %v8057
  %v8060 = vlaneseq
  %v8061 = vshrl.u32 %v8060, 7
  %v8062 = vsub.s32 0, %v8061
  %v8063 = vrot.slane %v8058, %v8062
  %v8064 = vlaneseq
  %v8065 = vshrl.u32 %v8064, 7
  %v8066 = vsub.s32 1, %v8065
  %v8067 = vrot.slane %v8058, %v8066
  %v8068 = vlaneseq
  %v8069 = vshrl.u32 %v8068, 7
  %v8070 = vsub.s32 2, %v8069
  %v8071 = vrot.slane %v8058, %v8070
  %v8072 = vlaneseq
  %v8073 = vshrl.u32 %v8072, 7
  %v8074 = vsub.s32 3, %v8073
  %v8075 = vrot.slane %v8058, %v8074
  %v8076 = vlaneseq
  %v8077 = vshrl.u32 %v8076, 7
  %v8078 = vsub.s32 4, %v8077
  %v8079 = vrot.slane %v8058, %v8078
  %v8080 = vlaneseq
  %v8081 = vshrl.u32 %v8080, 7
  %v8082 = vsub.s32 5, %v8081
  %v8083 = vrot.slane %v8058, %v8082
  %v8084 = vlaneseq
  %v8085 = vshrl.u32 %v8084, 7
  %v8086 = vsub.s32 6, %v8085
  %v8087 = vrot.slane %v8058, %v8086
  %v8088 = vlaneseq
  %v8089 = vshrl.u32 %v8088, 7
  %v8090 = vsub.s32 7, %v8089
  %v8091 = vrot.slane %v8058, %v8090
  %v8100 = vmul.f32 %v7880, %v8063
  %v8101 = vmul.f32 %v7882, %v8063
  %v8102 = vmul.f32 %v7884, %v8067
  %v8103 = vmul.f32 %v7886, %v8067
  %v8104 = vmul.f32 %v7888, %v8071
  %v8105 = vmul.f32 %v7890, %v8071
  %v8106 = vmul.f32 %v7892, %v8075
  %v8107 = vmul.f32 %v7894, %v8075
  %v8108 = vmul.f32 %v7896, %v8079
  %v8109 = vmul.f32 %v7898, %v8079
  %v8110 = vmul.f32 %v7900, %v8083
  %v8111 = vmul.f32 %v7902, %v8083
  %v8112 = vmul.f32 %v7904, %v8087
  %v8113 = vmul.f32 %v7906, %v8087
  %v8114 = vmul.f32 %v7908, %v8091
  %v8115 = vmul.f32 %v7910, %v8091
  %8117 = vset.pattern.permute.xlu0 0
  %8118 = vperm.xlu0 %8117, %v8100
  %v8119 = vpop.permute.xlu0 %8118
  %8122 = vset.pattern.permute.xlu0 0
  %8123 = vperm.xlu0 %8122, %v8101
  %v8124 = vpop.permute.xlu0 %8123
  %8127 = vset.pattern.permute.xlu0 0
  %8128 = vperm.xlu0 %8127, %v8102
  %v8129 = vpop.permute.xlu0 %8128
  %8132 = vset.pattern.permute.xlu0 0
  %8133 = vperm.xlu0 %8132, %v8103
  %v8134 = vpop.permute.xlu0 %8133
  %8137 = vset.pattern.permute.xlu0 0
  %8138 = vperm.xlu0 %8137, %v8104
  %v8139 = vpop.permute.xlu0 %8138
  %8142 = vset.pattern.permute.xlu0 0
  %8143 = vperm.xlu0 %8142, %v8105
  %v8144 = vpop.permute.xlu0 %8143
  %8147 = vset.pattern.permute.xlu0 0
  %8148 = vperm.xlu0 %8147, %v8106
  %v8149 = vpop.permute.xlu0 %8148
  %8152 = vset.pattern.permute.xlu0 0
  %8153 = vperm.xlu0 %8152, %v8107
  %v8154 = vpop.permute.xlu0 %8153
  %8157 = vset.pattern.permute.xlu0 0
  %8158 = vperm.xlu0 %8157, %v8108
  %v8159 = vpop.permute.xlu0 %8158
  %8162 = vset.pattern.permute.xlu0 0
  %8163 = vperm.xlu0 %8162, %v8109
  %v8164 = vpop.permute.xlu0 %8163
  %8167 = vset.pattern.permute.xlu0 0
  %8168 = vperm.xlu0 %8167, %v8110
  %v8169 = vpop.permute.xlu0 %8168
  %8172 = vset.pattern.permute.xlu0 0
  %8173 = vperm.xlu0 %8172, %v8111
  %v8174 = vpop.permute.xlu0 %8173
  %8177 = vset.pattern.permute.xlu0 0
  %8178 = vperm.xlu0 %8177, %v8112
  %v8179 = vpop.permute.xlu0 %8178
  %8182 = vset.pattern.permute.xlu0 0
  %8183 = vperm.xlu0 %8182, %v8113
  %v8184 = vpop.permute.xlu0 %8183
  %8187 = vset.pattern.permute.xlu0 0
  %8188 = vperm.xlu0 %8187, %v8114
  %v8189 = vpop.permute.xlu0 %8188
  %8192 = vset.pattern.permute.xlu0 0
  %8193 = vperm.xlu0 %8192, %v8115
  %v8194 = vpop.permute.xlu0 %8193
  %v8196 = vmul.f32 %v8119, %v1549
  %v8197 = vmul.f32 %v8124, %v1554
  %v8198 = vmul.f32 %v8129, %v1559
  %v8199 = vmul.f32 %v8134, %v1564
  %v8200 = vmul.f32 %v8139, %v1569
  %v8201 = vmul.f32 %v8144, %v1574
  %v8202 = vmul.f32 %v8149, %v1579
  %v8203 = vmul.f32 %v8154, %v1584
  %v8204 = vmul.f32 %v8159, %v1589
  %v8205 = vmul.f32 %v8164, %v1594
  %v8206 = vmul.f32 %v8169, %v1599
  %v8207 = vmul.f32 %v8174, %v1604
  %v8208 = vmul.f32 %v8179, %v1609
  %v8209 = vmul.f32 %v8184, %v1614
  %v8210 = vmul.f32 %v8189, %v1619
  %v8211 = vmul.f32 %v8194, %v1624
  %v8212 = vsel %vm79, %v8196, 0.0
  %v8213 = vsel %vm79, %v8197, 0.0
  %v8214 = vadd.f32 %v8212, %v8213
  %v8215 = vrot.slane %v8214, 4
  %v8216 = vadd.f32 %v8214, %v8215
  %v8217 = vrot.slane %v8216, 2
  %v8218 = vadd.f32 %v8216, %v8217
  %v8219 = vrot.slane %v8218, 1
  %v8220 = vadd.f32 %v8218, %v8219
  %v8221 = vsel %vm79, %v8198, 0.0
  %v8222 = vsel %vm79, %v8199, 0.0
  %v8223 = vadd.f32 %v8221, %v8222
  %v8224 = vrot.slane %v8223, 4
  %v8225 = vadd.f32 %v8223, %v8224
  %v8226 = vrot.slane %v8225, 2
  %v8227 = vadd.f32 %v8225, %v8226
  %v8228 = vrot.slane %v8227, 1
  %v8229 = vadd.f32 %v8227, %v8228
  %v8230 = vsel %vm79, %v8200, 0.0
  %v8231 = vsel %vm79, %v8201, 0.0
  %v8232 = vadd.f32 %v8230, %v8231
  %v8233 = vrot.slane %v8232, 4
  %v8234 = vadd.f32 %v8232, %v8233
  %v8235 = vrot.slane %v8234, 2
  %v8236 = vadd.f32 %v8234, %v8235
  %v8237 = vrot.slane %v8236, 1
  %v8238 = vadd.f32 %v8236, %v8237
  %v8239 = vsel %vm79, %v8202, 0.0
  %v8240 = vsel %vm79, %v8203, 0.0
  %v8241 = vadd.f32 %v8239, %v8240
  %v8242 = vrot.slane %v8241, 4
  %v8243 = vadd.f32 %v8241, %v8242
  %v8244 = vrot.slane %v8243, 2
  %v8245 = vadd.f32 %v8243, %v8244
  %v8246 = vrot.slane %v8245, 1
  %v8247 = vadd.f32 %v8245, %v8246
  %v8248 = vsel %vm79, %v8204, 0.0
  %v8249 = vsel %vm79, %v8205, 0.0
  %v8250 = vadd.f32 %v8248, %v8249
  %v8251 = vrot.slane %v8250, 4
  %v8252 = vadd.f32 %v8250, %v8251
  %v8253 = vrot.slane %v8252, 2
  %v8254 = vadd.f32 %v8252, %v8253
  %v8255 = vrot.slane %v8254, 1
  %v8256 = vadd.f32 %v8254, %v8255
  %v8257 = vsel %vm79, %v8206, 0.0
  %v8258 = vsel %vm79, %v8207, 0.0
  %v8259 = vadd.f32 %v8257, %v8258
  %v8260 = vrot.slane %v8259, 4
  %v8261 = vadd.f32 %v8259, %v8260
  %v8262 = vrot.slane %v8261, 2
  %v8263 = vadd.f32 %v8261, %v8262
  %v8264 = vrot.slane %v8263, 1
  %v8265 = vadd.f32 %v8263, %v8264
  %v8266 = vsel %vm79, %v8208, 0.0
  %v8267 = vsel %vm79, %v8209, 0.0
  %v8268 = vadd.f32 %v8266, %v8267
  %v8269 = vrot.slane %v8268, 4
  %v8270 = vadd.f32 %v8268, %v8269
  %v8271 = vrot.slane %v8270, 2
  %v8272 = vadd.f32 %v8270, %v8271
  %v8273 = vrot.slane %v8272, 1
  %v8274 = vadd.f32 %v8272, %v8273
  %v8275 = vsel %vm79, %v8210, 0.0
  %v8276 = vsel %vm79, %v8211, 0.0
  %v8277 = vadd.f32 %v8275, %v8276
  %v8278 = vrot.slane %v8277, 4
  %v8279 = vadd.f32 %v8277, %v8278
  %v8280 = vrot.slane %v8279, 2
  %v8281 = vadd.f32 %v8279, %v8280
  %v8282 = vrot.slane %v8281, 1
  %v8283 = vadd.f32 %v8281, %v8282
  %v8292 = vsel %vm2097, %v8229, %v8220
  %v8293 = vsel %vm2099, %v8238, %v8292
  %v8294 = vsel %vm2101, %v8247, %v8293
  %v8295 = vsel %vm2103, %v8256, %v8294
  %v8296 = vsel %vm2105, %v8265, %v8295
  %v8297 = vsel %vm2107, %v8274, %v8296
  %v8298 = vsel %vm2109, %v8283, %v8297
  %8300 = vst.msk [vmem:[#allocation3 + $0x30] sm:$0xff] %vm79, %v8298
  %v8302 = vcombine.high %v1254, %v1254
  %v8304 = vunpack.c.l.s4 1966171168
  %v8305 = vunpack.c.0.s8 %v8304
  %v8306 = vlaneseq
  %v8307 = vshrl.u32 %v8306, 7
  %v8308 = vsub.s32 %v8305, %v8307
  %v8309 = vrot.slane %v1254, %v8308
  %v8311 = vunpack.c.l.s4 1966171168
  %v8312 = vunpack.c.0.s8 %v8311
  %v8313 = vlaneseq
  %v8314 = vshrl.u32 %v8313, 7
  %v8315 = vsub.s32 %v8312, %v8314
  %v8316 = vrot.slane %v8302, %v8315
  %v8317 = vcombine.high %v8309, %v8309
  %v8318 = vcombine.high %v8316, %v8316
  %v8320 = vunpack.c.l.s4 1966171168
  %v8321 = vunpack.c.0.s8 %v8320
  %v8322 = vlaneseq
  %v8323 = vshrl.u32 %v8322, 7
  %v8324 = vsub.s32 %v8321, %v8323
  %v8325 = vrot.slane %v8309, %v8324
  %v8327 = vunpack.c.l.s4 1966171168
  %v8328 = vunpack.c.0.s8 %v8327
  %v8329 = vlaneseq
  %v8330 = vshrl.u32 %v8329, 7
  %v8331 = vsub.s32 %v8328, %v8330
  %v8332 = vrot.slane %v8316, %v8331
  %v8334 = vunpack.c.l.s4 1966171168
  %v8335 = vunpack.c.0.s8 %v8334
  %v8336 = vlaneseq
  %v8337 = vshrl.u32 %v8336, 7
  %v8338 = vsub.s32 %v8335, %v8337
  %v8339 = vrot.slane %v8317, %v8338
  %v8341 = vunpack.c.l.s4 1966171168
  %v8342 = vunpack.c.0.s8 %v8341
  %v8343 = vlaneseq
  %v8344 = vshrl.u32 %v8343, 7
  %v8345 = vsub.s32 %v8342, %v8344
  %v8346 = vrot.slane %v8318, %v8345
  %v8347 = vcombine.high %v8325, %v8325
  %v8348 = vcombine.high %v8332, %v8332
  %v8349 = vcombine.high %v8339, %v8339
  %v8350 = vcombine.high %v8346, %v8346
  %v8351 = vlaneseq
  %v8352 = vshrl.u32 %v8351, 7
  %v8353 = vsub.s32 0, %v8352
  %v8354 = vrot.slane %v8325, %v8353
  %v8355 = vlaneseq
  %v8356 = vshrl.u32 %v8355, 7
  %v8357 = vsub.s32 0, %v8356
  %v8358 = vrot.slane %v8339, %v8357
  %v8359 = vlaneseq
  %v8360 = vshrl.u32 %v8359, 7
  %v8361 = vsub.s32 0, %v8360
  %v8362 = vrot.slane %v8347, %v8361
  %v8363 = vlaneseq
  %v8364 = vshrl.u32 %v8363, 7
  %v8365 = vsub.s32 0, %v8364
  %v8366 = vrot.slane %v8349, %v8365
  %v8367 = vlaneseq
  %v8368 = vshrl.u32 %v8367, 7
  %v8369 = vsub.s32 0, %v8368
  %v8370 = vrot.slane %v8332, %v8369
  %v8371 = vlaneseq
  %v8372 = vshrl.u32 %v8371, 7
  %v8373 = vsub.s32 0, %v8372
  %v8374 = vrot.slane %v8346, %v8373
  %v8375 = vlaneseq
  %v8376 = vshrl.u32 %v8375, 7
  %v8377 = vsub.s32 0, %v8376
  %v8378 = vrot.slane %v8348, %v8377
  %v8379 = vlaneseq
  %v8380 = vshrl.u32 %v8379, 7
  %v8381 = vsub.s32 0, %v8380
  %v8382 = vrot.slane %v8350, %v8381
  %v8391 = vadd.f32 %v8354, %v1396
  %v8392 = vadd.f32 %v8354, %v1401
  %v8393 = vadd.f32 %v8358, %v1406
  %v8394 = vadd.f32 %v8358, %v1411
  %v8395 = vadd.f32 %v8362, %v1416
  %v8396 = vadd.f32 %v8362, %v1421
  %v8397 = vadd.f32 %v8366, %v1426
  %v8398 = vadd.f32 %v8366, %v1431
  %v8399 = vadd.f32 %v8370, %v1436
  %v8400 = vadd.f32 %v8370, %v1441
  %v8401 = vadd.f32 %v8374, %v1446
  %v8402 = vadd.f32 %v8374, %v1451
  %v8403 = vadd.f32 %v8378, %v1456
  %v8404 = vadd.f32 %v8378, %v1461
  %v8405 = vadd.f32 %v8382, %v1466
  %v8406 = vadd.f32 %v8382, %v1471
  %v8407 = vtanh.pop %v8391
  %v8408 = vtanh.pop %v8392
  %v8409 = vtanh.pop %v8393
  %v8410 = vtanh.pop %v8394
  %v8411 = vtanh.pop %v8395
  %v8412 = vtanh.pop %v8396
  %v8413 = vtanh.pop %v8397
  %v8414 = vtanh.pop %v8398
  %v8415 = vtanh.pop %v8399
  %v8416 = vtanh.pop %v8400
  %v8417 = vtanh.pop %v8401
  %v8418 = vtanh.pop %v8402
  %v8419 = vtanh.pop %v8403
  %v8420 = vtanh.pop %v8404
  %v8421 = vtanh.pop %v8405
  %v8422 = vtanh.pop %v8406
  %v8423 = vmul.f32 %v8407, %v1752
  %v8424 = vmul.f32 %v8408, %v1752
  %v8425 = vmul.f32 %v8409, %v1752
  %v8426 = vmul.f32 %v8410, %v1752
  %v8427 = vmul.f32 %v8411, %v1752
  %v8428 = vmul.f32 %v8412, %v1752
  %v8429 = vmul.f32 %v8413, %v1752
  %v8430 = vmul.f32 %v8414, %v1752
  %v8431 = vmul.f32 %v8415, %v1752
  %v8432 = vmul.f32 %v8416, %v1752
  %v8433 = vmul.f32 %v8417, %v1752
  %v8434 = vmul.f32 %v8418, %v1752
  %v8435 = vmul.f32 %v8419, %v1752
  %v8436 = vmul.f32 %v8420, %v1752
  %v8437 = vmul.f32 %v8421, %v1752
  %v8438 = vmul.f32 %v8422, %v1752
  %v8439 = vsel %vm79, %v8423, 0.0
  %8440 = vadd.xlane.f32.xlu0 %v8439
  %v8441 = vpop.xlane.xlu0 %8440
  %v8442 = vsel %vm79, %v8424, 0.0
  %8443 = vadd.xlane.f32.xlu0 %v8442
  %v8444 = vpop.xlane.xlu0 %8443
  %v8445 = vsel %vm79, %v8425, 0.0
  %8446 = vadd.xlane.f32.xlu0 %v8445
  %v8447 = vpop.xlane.xlu0 %8446
  %v8448 = vsel %vm79, %v8426, 0.0
  %8449 = vadd.xlane.f32.xlu0 %v8448
  %v8450 = vpop.xlane.xlu0 %8449
  %v8451 = vsel %vm79, %v8427, 0.0
  %8452 = vadd.xlane.f32.xlu0 %v8451
  %v8453 = vpop.xlane.xlu0 %8452
  %v8454 = vsel %vm79, %v8428, 0.0
  %8455 = vadd.xlane.f32.xlu0 %v8454
  %v8456 = vpop.xlane.xlu0 %8455
  %v8457 = vsel %vm79, %v8429, 0.0
  %8458 = vadd.xlane.f32.xlu0 %v8457
  %v8459 = vpop.xlane.xlu0 %8458
  %v8460 = vsel %vm79, %v8430, 0.0
  %8461 = vadd.xlane.f32.xlu0 %v8460
  %v8462 = vpop.xlane.xlu0 %8461
  %v8463 = vsel %vm79, %v8431, 0.0
  %8464 = vadd.xlane.f32.xlu0 %v8463
  %v8465 = vpop.xlane.xlu0 %8464
  %v8466 = vsel %vm79, %v8432, 0.0
  %8467 = vadd.xlane.f32.xlu0 %v8466
  %v8468 = vpop.xlane.xlu0 %8467
  %v8469 = vsel %vm79, %v8433, 0.0
  %8470 = vadd.xlane.f32.xlu0 %v8469
  %v8471 = vpop.xlane.xlu0 %8470
  %v8472 = vsel %vm79, %v8434, 0.0
  %8473 = vadd.xlane.f32.xlu0 %v8472
  %v8474 = vpop.xlane.xlu0 %8473
  %v8475 = vsel %vm79, %v8435, 0.0
  %8476 = vadd.xlane.f32.xlu0 %v8475
  %v8477 = vpop.xlane.xlu0 %8476
  %v8478 = vsel %vm79, %v8436, 0.0
  %8479 = vadd.xlane.f32.xlu0 %v8478
  %v8480 = vpop.xlane.xlu0 %8479
  %v8481 = vsel %vm79, %v8437, 0.0
  %8482 = vadd.xlane.f32.xlu0 %v8481
  %v8483 = vpop.xlane.xlu0 %8482
  %v8484 = vsel %vm79, %v8438, 0.0
  %8485 = vadd.xlane.f32.xlu0 %v8484
  %v8486 = vpop.xlane.xlu0 %8485
  %v8487 = vadd.f32 %v8441, %v1819
  %v8488 = vadd.f32 %v8444, %v1819
  %v8489 = vadd.f32 %v8447, %v1819
  %v8490 = vadd.f32 %v8450, %v1819
  %v8491 = vadd.f32 %v8453, %v1819
  %v8492 = vadd.f32 %v8456, %v1819
  %v8493 = vadd.f32 %v8459, %v1819
  %v8494 = vadd.f32 %v8462, %v1819
  %v8495 = vadd.f32 %v8465, %v1819
  %v8496 = vadd.f32 %v8468, %v1819
  %v8497 = vadd.f32 %v8471, %v1819
  %v8498 = vadd.f32 %v8474, %v1819
  %v8499 = vadd.f32 %v8477, %v1819
  %v8500 = vadd.f32 %v8480, %v1819
  %v8501 = vadd.f32 %v8483, %v1819
  %v8502 = vadd.f32 %v8486, %v1819
  %s8503 = scalar_lea.vmem %s2, 56
  %v8504 = vld [vmem:[%s8503] sm:$0xff]
  %v8506 = vlaneseq
  %v8507 = vshrl.u32 %v8506, 7
  %v8508 = vsub.s32 0, %v8507
  %v8509 = vrot.slane %v8504, %v8508
  %8511 = vbcast.lane.b32.xlu0 %v8509, 256
  %v8512 = vpop.permute.xlu0 %8511
  %s8514 = sor.u32 256, 8
  %8515 = vbcast.lane.b32.xlu0 %v8509, %s8514
  %v8516 = vpop.permute.xlu0 %8515
  %v8517 = vlaneseq
  %v8518 = vshrl.u32 %v8517, 7
  %v8519 = vsub.s32 1, %v8518
  %v8520 = vrot.slane %v8504, %v8519
  %8522 = vbcast.lane.b32.xlu0 %v8520, 256
  %v8523 = vpop.permute.xlu0 %8522
  %s8525 = sor.u32 256, 8
  %8526 = vbcast.lane.b32.xlu0 %v8520, %s8525
  %v8527 = vpop.permute.xlu0 %8526
  %v8528 = vlaneseq
  %v8529 = vshrl.u32 %v8528, 7
  %v8530 = vsub.s32 2, %v8529
  %v8531 = vrot.slane %v8504, %v8530
  %8533 = vbcast.lane.b32.xlu0 %v8531, 256
  %v8534 = vpop.permute.xlu0 %8533
  %s8536 = sor.u32 256, 8
  %8537 = vbcast.lane.b32.xlu0 %v8531, %s8536
  %v8538 = vpop.permute.xlu0 %8537
  %v8539 = vlaneseq
  %v8540 = vshrl.u32 %v8539, 7
  %v8541 = vsub.s32 3, %v8540
  %v8542 = vrot.slane %v8504, %v8541
  %8544 = vbcast.lane.b32.xlu0 %v8542, 256
  %v8545 = vpop.permute.xlu0 %8544
  %s8547 = sor.u32 256, 8
  %8548 = vbcast.lane.b32.xlu0 %v8542, %s8547
  %v8549 = vpop.permute.xlu0 %8548
  %v8550 = vlaneseq
  %v8551 = vshrl.u32 %v8550, 7
  %v8552 = vsub.s32 4, %v8551
  %v8553 = vrot.slane %v8504, %v8552
  %8555 = vbcast.lane.b32.xlu0 %v8553, 256
  %v8556 = vpop.permute.xlu0 %8555
  %s8558 = sor.u32 256, 8
  %8559 = vbcast.lane.b32.xlu0 %v8553, %s8558
  %v8560 = vpop.permute.xlu0 %8559
  %v8561 = vlaneseq
  %v8562 = vshrl.u32 %v8561, 7
  %v8563 = vsub.s32 5, %v8562
  %v8564 = vrot.slane %v8504, %v8563
  %8566 = vbcast.lane.b32.xlu0 %v8564, 256
  %v8567 = vpop.permute.xlu0 %8566
  %s8569 = sor.u32 256, 8
  %8570 = vbcast.lane.b32.xlu0 %v8564, %s8569
  %v8571 = vpop.permute.xlu0 %8570
  %v8572 = vlaneseq
  %v8573 = vshrl.u32 %v8572, 7
  %v8574 = vsub.s32 6, %v8573
  %v8575 = vrot.slane %v8504, %v8574
  %8577 = vbcast.lane.b32.xlu0 %v8575, 256
  %v8578 = vpop.permute.xlu0 %8577
  %s8580 = sor.u32 256, 8
  %8581 = vbcast.lane.b32.xlu0 %v8575, %s8580
  %v8582 = vpop.permute.xlu0 %8581
  %v8583 = vlaneseq
  %v8584 = vshrl.u32 %v8583, 7
  %v8585 = vsub.s32 7, %v8584
  %v8586 = vrot.slane %v8504, %v8585
  %8588 = vbcast.lane.b32.xlu0 %v8586, 256
  %v8589 = vpop.permute.xlu0 %8588
  %s8591 = sor.u32 256, 8
  %8592 = vbcast.lane.b32.xlu0 %v8586, %s8591
  %v8593 = vpop.permute.xlu0 %8592
  %v8610 = vadd.f32 %v8487, %v8512
  %v8611 = vadd.f32 %v8488, %v8516
  %v8612 = vadd.f32 %v8489, %v8523
  %v8613 = vadd.f32 %v8490, %v8527
  %v8614 = vadd.f32 %v8491, %v8534
  %v8615 = vadd.f32 %v8492, %v8538
  %v8616 = vadd.f32 %v8493, %v8545
  %v8617 = vadd.f32 %v8494, %v8549
  %v8618 = vadd.f32 %v8495, %v8556
  %v8619 = vadd.f32 %v8496, %v8560
  %v8620 = vadd.f32 %v8497, %v8567
  %v8621 = vadd.f32 %v8498, %v8571
  %v8622 = vadd.f32 %v8499, %v8578
  %v8623 = vadd.f32 %v8500, %v8582
  %v8624 = vadd.f32 %v8501, %v8589
  %v8625 = vadd.f32 %v8502, %v8593
  %8642 = vset.pattern.permute.xlu0 0
  %8643 = vperm.xlu0 %8642, %v8610
  %v8644 = vpop.permute.xlu0 %8643
  %8645 = vset.pattern.permute.xlu0 0
  %8646 = vperm.xlu0 %8645, %v8611
  %v8647 = vpop.permute.xlu0 %8646
  %8648 = vset.pattern.permute.xlu0 0
  %8649 = vperm.xlu0 %8648, %v8612
  %v8650 = vpop.permute.xlu0 %8649
  %8651 = vset.pattern.permute.xlu0 0
  %8652 = vperm.xlu0 %8651, %v8613
  %v8653 = vpop.permute.xlu0 %8652
  %8654 = vset.pattern.permute.xlu0 0
  %8655 = vperm.xlu0 %8654, %v8614
  %v8656 = vpop.permute.xlu0 %8655
  %8657 = vset.pattern.permute.xlu0 0
  %8658 = vperm.xlu0 %8657, %v8615
  %v8659 = vpop.permute.xlu0 %8658
  %8660 = vset.pattern.permute.xlu0 0
  %8661 = vperm.xlu0 %8660, %v8616
  %v8662 = vpop.permute.xlu0 %8661
  %8663 = vset.pattern.permute.xlu0 0
  %8664 = vperm.xlu0 %8663, %v8617
  %v8665 = vpop.permute.xlu0 %8664
  %8666 = vset.pattern.permute.xlu0 0
  %8667 = vperm.xlu0 %8666, %v8618
  %v8668 = vpop.permute.xlu0 %8667
  %8669 = vset.pattern.permute.xlu0 0
  %8670 = vperm.xlu0 %8669, %v8619
  %v8671 = vpop.permute.xlu0 %8670
  %8672 = vset.pattern.permute.xlu0 0
  %8673 = vperm.xlu0 %8672, %v8620
  %v8674 = vpop.permute.xlu0 %8673
  %8675 = vset.pattern.permute.xlu0 0
  %8676 = vperm.xlu0 %8675, %v8621
  %v8677 = vpop.permute.xlu0 %8676
  %8678 = vset.pattern.permute.xlu0 0
  %8679 = vperm.xlu0 %8678, %v8622
  %v8680 = vpop.permute.xlu0 %8679
  %8681 = vset.pattern.permute.xlu0 0
  %8682 = vperm.xlu0 %8681, %v8623
  %v8683 = vpop.permute.xlu0 %8682
  %8684 = vset.pattern.permute.xlu0 0
  %8685 = vperm.xlu0 %8684, %v8624
  %v8686 = vpop.permute.xlu0 %8685
  %8687 = vset.pattern.permute.xlu0 0
  %8688 = vperm.xlu0 %8687, %v8625
  %v8689 = vpop.permute.xlu0 %8688
  %v8690 = vlaneseq
  %v8691 = vshrl.u32 %v8690, 7
  %v8692 = vsub.s32 %v58, %v8691
  %v8693 = vrot.slane %v8644, %v8692
  %v8694 = vlaneseq
  %v8695 = vshrl.u32 %v8694, 7
  %v8696 = vsub.s32 %v2027, %v8695
  %v8697 = vrot.slane %v8647, %v8696
  %v8698 = vsel %vm2032, %v8697, %v8693
  %v8699 = vlaneseq
  %v8700 = vshrl.u32 %v8699, 7
  %v8701 = vsub.s32 %v58, %v8700
  %v8702 = vrot.slane %v8650, %v8701
  %v8703 = vlaneseq
  %v8704 = vshrl.u32 %v8703, 7
  %v8705 = vsub.s32 %v2027, %v8704
  %v8706 = vrot.slane %v8653, %v8705
  %v8707 = vsel %vm2032, %v8706, %v8702
  %v8708 = vlaneseq
  %v8709 = vshrl.u32 %v8708, 7
  %v8710 = vsub.s32 %v58, %v8709
  %v8711 = vrot.slane %v8656, %v8710
  %v8712 = vlaneseq
  %v8713 = vshrl.u32 %v8712, 7
  %v8714 = vsub.s32 %v2027, %v8713
  %v8715 = vrot.slane %v8659, %v8714
  %v8716 = vsel %vm2032, %v8715, %v8711
  %v8717 = vlaneseq
  %v8718 = vshrl.u32 %v8717, 7
  %v8719 = vsub.s32 %v58, %v8718
  %v8720 = vrot.slane %v8662, %v8719
  %v8721 = vlaneseq
  %v8722 = vshrl.u32 %v8721, 7
  %v8723 = vsub.s32 %v2027, %v8722
  %v8724 = vrot.slane %v8665, %v8723
  %v8725 = vsel %vm2032, %v8724, %v8720
  %v8726 = vlaneseq
  %v8727 = vshrl.u32 %v8726, 7
  %v8728 = vsub.s32 %v58, %v8727
  %v8729 = vrot.slane %v8668, %v8728
  %v8730 = vlaneseq
  %v8731 = vshrl.u32 %v8730, 7
  %v8732 = vsub.s32 %v2027, %v8731
  %v8733 = vrot.slane %v8671, %v8732
  %v8734 = vsel %vm2032, %v8733, %v8729
  %v8735 = vlaneseq
  %v8736 = vshrl.u32 %v8735, 7
  %v8737 = vsub.s32 %v58, %v8736
  %v8738 = vrot.slane %v8674, %v8737
  %v8739 = vlaneseq
  %v8740 = vshrl.u32 %v8739, 7
  %v8741 = vsub.s32 %v2027, %v8740
  %v8742 = vrot.slane %v8677, %v8741
  %v8743 = vsel %vm2032, %v8742, %v8738
  %v8744 = vlaneseq
  %v8745 = vshrl.u32 %v8744, 7
  %v8746 = vsub.s32 %v58, %v8745
  %v8747 = vrot.slane %v8680, %v8746
  %v8748 = vlaneseq
  %v8749 = vshrl.u32 %v8748, 7
  %v8750 = vsub.s32 %v2027, %v8749
  %v8751 = vrot.slane %v8683, %v8750
  %v8752 = vsel %vm2032, %v8751, %v8747
  %v8753 = vlaneseq
  %v8754 = vshrl.u32 %v8753, 7
  %v8755 = vsub.s32 %v58, %v8754
  %v8756 = vrot.slane %v8686, %v8755
  %v8757 = vlaneseq
  %v8758 = vshrl.u32 %v8757, 7
  %v8759 = vsub.s32 %v2027, %v8758
  %v8760 = vrot.slane %v8689, %v8759
  %v8761 = vsel %vm2032, %v8760, %v8756
  %v8762 = vsel %vm2097, %v8707, %v8698
  %v8763 = vsel %vm2099, %v8716, %v8762
  %v8764 = vsel %vm2101, %v8725, %v8763
  %v8765 = vsel %vm2103, %v8734, %v8764
  %v8766 = vsel %vm2105, %v8743, %v8765
  %v8767 = vsel %vm2107, %v8752, %v8766
  %v8768 = vsel %vm2109, %v8761, %v8767
  %v8770 = vsel %vm2112, %v8768, -inf
  %8771 = vmax.xlane.f32.xlu0 %v8770
  %v8772 = vpop.xlane.xlu0 %8771
  %v8774 = vlaneseq
  %v8775 = vshrl.u32 %v8774, 7
  %v8776 = vsub.s32 0, %v8775
  %v8777 = vrot.slane %v8772, %v8776
  %v8778 = vlaneseq
  %v8779 = vshrl.u32 %v8778, 7
  %v8780 = vsub.s32 1, %v8779
  %v8781 = vrot.slane %v8772, %v8780
  %v8782 = vlaneseq
  %v8783 = vshrl.u32 %v8782, 7
  %v8784 = vsub.s32 2, %v8783
  %v8785 = vrot.slane %v8772, %v8784
  %v8786 = vlaneseq
  %v8787 = vshrl.u32 %v8786, 7
  %v8788 = vsub.s32 3, %v8787
  %v8789 = vrot.slane %v8772, %v8788
  %v8790 = vlaneseq
  %v8791 = vshrl.u32 %v8790, 7
  %v8792 = vsub.s32 4, %v8791
  %v8793 = vrot.slane %v8772, %v8792
  %v8794 = vlaneseq
  %v8795 = vshrl.u32 %v8794, 7
  %v8796 = vsub.s32 5, %v8795
  %v8797 = vrot.slane %v8772, %v8796
  %v8798 = vlaneseq
  %v8799 = vshrl.u32 %v8798, 7
  %v8800 = vsub.s32 6, %v8799
  %v8801 = vrot.slane %v8772, %v8800
  %v8802 = vlaneseq
  %v8803 = vshrl.u32 %v8802, 7
  %v8804 = vsub.s32 7, %v8803
  %v8805 = vrot.slane %v8772, %v8804
  %v8814 = vsub.f32 %v8610, %v8777
  %v8815 = vsub.f32 %v8611, %v8777
  %v8816 = vsub.f32 %v8612, %v8781
  %v8817 = vsub.f32 %v8613, %v8781
  %v8818 = vsub.f32 %v8614, %v8785
  %v8819 = vsub.f32 %v8615, %v8785
  %v8820 = vsub.f32 %v8616, %v8789
  %v8821 = vsub.f32 %v8617, %v8789
  %v8822 = vsub.f32 %v8618, %v8793
  %v8823 = vsub.f32 %v8619, %v8793
  %v8824 = vsub.f32 %v8620, %v8797
  %v8825 = vsub.f32 %v8621, %v8797
  %v8826 = vsub.f32 %v8622, %v8801
  %v8827 = vsub.f32 %v8623, %v8801
  %v8828 = vsub.f32 %v8624, %v8805
  %v8829 = vsub.f32 %v8625, %v8805
  %v8830 = vmul.f32 %v8814, 1.442695
  %v8831 = vpow.pop %v8830
  %v8832 = vmul.f32 %v8815, 1.442695
  %v8833 = vpow.pop %v8832
  %v8834 = vmul.f32 %v8816, 1.442695
  %v8835 = vpow.pop %v8834
  %v8836 = vmul.f32 %v8817, 1.442695
  %v8837 = vpow.pop %v8836
  %v8838 = vmul.f32 %v8818, 1.442695
  %v8839 = vpow.pop %v8838
  %v8840 = vmul.f32 %v8819, 1.442695
  %v8841 = vpow.pop %v8840
  %v8842 = vmul.f32 %v8820, 1.442695
  %v8843 = vpow.pop %v8842
  %v8844 = vmul.f32 %v8821, 1.442695
  %v8845 = vpow.pop %v8844
  %v8846 = vmul.f32 %v8822, 1.442695
  %v8847 = vpow.pop %v8846
  %v8848 = vmul.f32 %v8823, 1.442695
  %v8849 = vpow.pop %v8848
  %v8850 = vmul.f32 %v8824, 1.442695
  %v8851 = vpow.pop %v8850
  %v8852 = vmul.f32 %v8825, 1.442695
  %v8853 = vpow.pop %v8852
  %v8854 = vmul.f32 %v8826, 1.442695
  %v8855 = vpow.pop %v8854
  %v8856 = vmul.f32 %v8827, 1.442695
  %v8857 = vpow.pop %v8856
  %v8858 = vmul.f32 %v8828, 1.442695
  %v8859 = vpow.pop %v8858
  %v8860 = vmul.f32 %v8829, 1.442695
  %v8861 = vpow.pop %v8860
  %8878 = vset.pattern.permute.xlu0 0
  %8879 = vperm.xlu0 %8878, %v8831
  %v8880 = vpop.permute.xlu0 %8879
  %8881 = vset.pattern.permute.xlu0 0
  %8882 = vperm.xlu0 %8881, %v8833
  %v8883 = vpop.permute.xlu0 %8882
  %8884 = vset.pattern.permute.xlu0 0
  %8885 = vperm.xlu0 %8884, %v8835
  %v8886 = vpop.permute.xlu0 %8885
  %8887 = vset.pattern.permute.xlu0 0
  %8888 = vperm.xlu0 %8887, %v8837
  %v8889 = vpop.permute.xlu0 %8888
  %8890 = vset.pattern.permute.xlu0 0
  %8891 = vperm.xlu0 %8890, %v8839
  %v8892 = vpop.permute.xlu0 %8891
  %8893 = vset.pattern.permute.xlu0 0
  %8894 = vperm.xlu0 %8893, %v8841
  %v8895 = vpop.permute.xlu0 %8894
  %8896 = vset.pattern.permute.xlu0 0
  %8897 = vperm.xlu0 %8896, %v8843
  %v8898 = vpop.permute.xlu0 %8897
  %8899 = vset.pattern.permute.xlu0 0
  %8900 = vperm.xlu0 %8899, %v8845
  %v8901 = vpop.permute.xlu0 %8900
  %8902 = vset.pattern.permute.xlu0 0
  %8903 = vperm.xlu0 %8902, %v8847
  %v8904 = vpop.permute.xlu0 %8903
  %8905 = vset.pattern.permute.xlu0 0
  %8906 = vperm.xlu0 %8905, %v8849
  %v8907 = vpop.permute.xlu0 %8906
  %8908 = vset.pattern.permute.xlu0 0
  %8909 = vperm.xlu0 %8908, %v8851
  %v8910 = vpop.permute.xlu0 %8909
  %8911 = vset.pattern.permute.xlu0 0
  %8912 = vperm.xlu0 %8911, %v8853
  %v8913 = vpop.permute.xlu0 %8912
  %8914 = vset.pattern.permute.xlu0 0
  %8915 = vperm.xlu0 %8914, %v8855
  %v8916 = vpop.permute.xlu0 %8915
  %8917 = vset.pattern.permute.xlu0 0
  %8918 = vperm.xlu0 %8917, %v8857
  %v8919 = vpop.permute.xlu0 %8918
  %8920 = vset.pattern.permute.xlu0 0
  %8921 = vperm.xlu0 %8920, %v8859
  %v8922 = vpop.permute.xlu0 %8921
  %8923 = vset.pattern.permute.xlu0 0
  %8924 = vperm.xlu0 %8923, %v8861
  %v8925 = vpop.permute.xlu0 %8924
  %v8926 = vlaneseq
  %v8927 = vshrl.u32 %v8926, 7
  %v8928 = vsub.s32 %v58, %v8927
  %v8929 = vrot.slane %v8880, %v8928
  %v8930 = vlaneseq
  %v8931 = vshrl.u32 %v8930, 7
  %v8932 = vsub.s32 %v2027, %v8931
  %v8933 = vrot.slane %v8883, %v8932
  %v8934 = vsel %vm2032, %v8933, %v8929
  %v8935 = vlaneseq
  %v8936 = vshrl.u32 %v8935, 7
  %v8937 = vsub.s32 %v58, %v8936
  %v8938 = vrot.slane %v8886, %v8937
  %v8939 = vlaneseq
  %v8940 = vshrl.u32 %v8939, 7
  %v8941 = vsub.s32 %v2027, %v8940
  %v8942 = vrot.slane %v8889, %v8941
  %v8943 = vsel %vm2032, %v8942, %v8938
  %v8944 = vlaneseq
  %v8945 = vshrl.u32 %v8944, 7
  %v8946 = vsub.s32 %v58, %v8945
  %v8947 = vrot.slane %v8892, %v8946
  %v8948 = vlaneseq
  %v8949 = vshrl.u32 %v8948, 7
  %v8950 = vsub.s32 %v2027, %v8949
  %v8951 = vrot.slane %v8895, %v8950
  %v8952 = vsel %vm2032, %v8951, %v8947
  %v8953 = vlaneseq
  %v8954 = vshrl.u32 %v8953, 7
  %v8955 = vsub.s32 %v58, %v8954
  %v8956 = vrot.slane %v8898, %v8955
  %v8957 = vlaneseq
  %v8958 = vshrl.u32 %v8957, 7
  %v8959 = vsub.s32 %v2027, %v8958
  %v8960 = vrot.slane %v8901, %v8959
  %v8961 = vsel %vm2032, %v8960, %v8956
  %v8962 = vlaneseq
  %v8963 = vshrl.u32 %v8962, 7
  %v8964 = vsub.s32 %v58, %v8963
  %v8965 = vrot.slane %v8904, %v8964
  %v8966 = vlaneseq
  %v8967 = vshrl.u32 %v8966, 7
  %v8968 = vsub.s32 %v2027, %v8967
  %v8969 = vrot.slane %v8907, %v8968
  %v8970 = vsel %vm2032, %v8969, %v8965
  %v8971 = vlaneseq
  %v8972 = vshrl.u32 %v8971, 7
  %v8973 = vsub.s32 %v58, %v8972
  %v8974 = vrot.slane %v8910, %v8973
  %v8975 = vlaneseq
  %v8976 = vshrl.u32 %v8975, 7
  %v8977 = vsub.s32 %v2027, %v8976
  %v8978 = vrot.slane %v8913, %v8977
  %v8979 = vsel %vm2032, %v8978, %v8974
  %v8980 = vlaneseq
  %v8981 = vshrl.u32 %v8980, 7
  %v8982 = vsub.s32 %v58, %v8981
  %v8983 = vrot.slane %v8916, %v8982
  %v8984 = vlaneseq
  %v8985 = vshrl.u32 %v8984, 7
  %v8986 = vsub.s32 %v2027, %v8985
  %v8987 = vrot.slane %v8919, %v8986
  %v8988 = vsel %vm2032, %v8987, %v8983
  %v8989 = vlaneseq
  %v8990 = vshrl.u32 %v8989, 7
  %v8991 = vsub.s32 %v58, %v8990
  %v8992 = vrot.slane %v8922, %v8991
  %v8993 = vlaneseq
  %v8994 = vshrl.u32 %v8993, 7
  %v8995 = vsub.s32 %v2027, %v8994
  %v8996 = vrot.slane %v8925, %v8995
  %v8997 = vsel %vm2032, %v8996, %v8992
  %v8998 = vsel %vm2097, %v8943, %v8934
  %v8999 = vsel %vm2099, %v8952, %v8998
  %v9000 = vsel %vm2101, %v8961, %v8999
  %v9001 = vsel %vm2103, %v8970, %v9000
  %v9002 = vsel %vm2105, %v8979, %v9001
  %v9003 = vsel %vm2107, %v8988, %v9002
  %v9004 = vsel %vm2109, %v8997, %v9003
  %v9006 = vsel %vm2112, %v9004, 0.0
  %9007 = vadd.xlane.f32.xlu0 %v9006
  %v9008 = vpop.xlane.xlu0 %9007
  %v9009 = vrcp.pop %v9008
  %v9011 = vlaneseq
  %v9012 = vshrl.u32 %v9011, 7
  %v9013 = vsub.s32 0, %v9012
  %v9014 = vrot.slane %v9009, %v9013
  %v9015 = vlaneseq
  %v9016 = vshrl.u32 %v9015, 7
  %v9017 = vsub.s32 1, %v9016
  %v9018 = vrot.slane %v9009, %v9017
  %v9019 = vlaneseq
  %v9020 = vshrl.u32 %v9019, 7
  %v9021 = vsub.s32 2, %v9020
  %v9022 = vrot.slane %v9009, %v9021
  %v9023 = vlaneseq
  %v9024 = vshrl.u32 %v9023, 7
  %v9025 = vsub.s32 3, %v9024
  %v9026 = vrot.slane %v9009, %v9025
  %v9027 = vlaneseq
  %v9028 = vshrl.u32 %v9027, 7
  %v9029 = vsub.s32 4, %v9028
  %v9030 = vrot.slane %v9009, %v9029
  %v9031 = vlaneseq
  %v9032 = vshrl.u32 %v9031, 7
  %v9033 = vsub.s32 5, %v9032
  %v9034 = vrot.slane %v9009, %v9033
  %v9035 = vlaneseq
  %v9036 = vshrl.u32 %v9035, 7
  %v9037 = vsub.s32 6, %v9036
  %v9038 = vrot.slane %v9009, %v9037
  %v9039 = vlaneseq
  %v9040 = vshrl.u32 %v9039, 7
  %v9041 = vsub.s32 7, %v9040
  %v9042 = vrot.slane %v9009, %v9041
  %v9051 = vmul.f32 %v8831, %v9014
  %v9052 = vmul.f32 %v8833, %v9014
  %v9053 = vmul.f32 %v8835, %v9018
  %v9054 = vmul.f32 %v8837, %v9018
  %v9055 = vmul.f32 %v8839, %v9022
  %v9056 = vmul.f32 %v8841, %v9022
  %v9057 = vmul.f32 %v8843, %v9026
  %v9058 = vmul.f32 %v8845, %v9026
  %v9059 = vmul.f32 %v8847, %v9030
  %v9060 = vmul.f32 %v8849, %v9030
  %v9061 = vmul.f32 %v8851, %v9034
  %v9062 = vmul.f32 %v8853, %v9034
  %v9063 = vmul.f32 %v8855, %v9038
  %v9064 = vmul.f32 %v8857, %v9038
  %v9065 = vmul.f32 %v8859, %v9042
  %v9066 = vmul.f32 %v8861, %v9042
  %9068 = vset.pattern.permute.xlu0 0
  %9069 = vperm.xlu0 %9068, %v9051
  %v9070 = vpop.permute.xlu0 %9069
  %9073 = vset.pattern.permute.xlu0 0
  %9074 = vperm.xlu0 %9073, %v9052
  %v9075 = vpop.permute.xlu0 %9074
  %9078 = vset.pattern.permute.xlu0 0
  %9079 = vperm.xlu0 %9078, %v9053
  %v9080 = vpop.permute.xlu0 %9079
  %9083 = vset.pattern.permute.xlu0 0
  %9084 = vperm.xlu0 %9083, %v9054
  %v9085 = vpop.permute.xlu0 %9084
  %9088 = vset.pattern.permute.xlu0 0
  %9089 = vperm.xlu0 %9088, %v9055
  %v9090 = vpop.permute.xlu0 %9089
  %9093 = vset.pattern.permute.xlu0 0
  %9094 = vperm.xlu0 %9093, %v9056
  %v9095 = vpop.permute.xlu0 %9094
  %9098 = vset.pattern.permute.xlu0 0
  %9099 = vperm.xlu0 %9098, %v9057
  %v9100 = vpop.permute.xlu0 %9099
  %9103 = vset.pattern.permute.xlu0 0
  %9104 = vperm.xlu0 %9103, %v9058
  %v9105 = vpop.permute.xlu0 %9104
  %9108 = vset.pattern.permute.xlu0 0
  %9109 = vperm.xlu0 %9108, %v9059
  %v9110 = vpop.permute.xlu0 %9109
  %9113 = vset.pattern.permute.xlu0 0
  %9114 = vperm.xlu0 %9113, %v9060
  %v9115 = vpop.permute.xlu0 %9114
  %9118 = vset.pattern.permute.xlu0 0
  %9119 = vperm.xlu0 %9118, %v9061
  %v9120 = vpop.permute.xlu0 %9119
  %9123 = vset.pattern.permute.xlu0 0
  %9124 = vperm.xlu0 %9123, %v9062
  %v9125 = vpop.permute.xlu0 %9124
  %9128 = vset.pattern.permute.xlu0 0
  %9129 = vperm.xlu0 %9128, %v9063
  %v9130 = vpop.permute.xlu0 %9129
  %9133 = vset.pattern.permute.xlu0 0
  %9134 = vperm.xlu0 %9133, %v9064
  %v9135 = vpop.permute.xlu0 %9134
  %9138 = vset.pattern.permute.xlu0 0
  %9139 = vperm.xlu0 %9138, %v9065
  %v9140 = vpop.permute.xlu0 %9139
  %9143 = vset.pattern.permute.xlu0 0
  %9144 = vperm.xlu0 %9143, %v9066
  %v9145 = vpop.permute.xlu0 %9144
  %v9147 = vmul.f32 %v9070, %v1549
  %v9148 = vmul.f32 %v9075, %v1554
  %v9149 = vmul.f32 %v9080, %v1559
  %v9150 = vmul.f32 %v9085, %v1564
  %v9151 = vmul.f32 %v9090, %v1569
  %v9152 = vmul.f32 %v9095, %v1574
  %v9153 = vmul.f32 %v9100, %v1579
  %v9154 = vmul.f32 %v9105, %v1584
  %v9155 = vmul.f32 %v9110, %v1589
  %v9156 = vmul.f32 %v9115, %v1594
  %v9157 = vmul.f32 %v9120, %v1599
  %v9158 = vmul.f32 %v9125, %v1604
  %v9159 = vmul.f32 %v9130, %v1609
  %v9160 = vmul.f32 %v9135, %v1614
  %v9161 = vmul.f32 %v9140, %v1619
  %v9162 = vmul.f32 %v9145, %v1624
  %v9163 = vsel %vm79, %v9147, 0.0
  %v9164 = vsel %vm79, %v9148, 0.0
  %v9165 = vadd.f32 %v9163, %v9164
  %v9166 = vrot.slane %v9165, 4
  %v9167 = vadd.f32 %v9165, %v9166
  %v9168 = vrot.slane %v9167, 2
  %v9169 = vadd.f32 %v9167, %v9168
  %v9170 = vrot.slane %v9169, 1
  %v9171 = vadd.f32 %v9169, %v9170
  %v9172 = vsel %vm79, %v9149, 0.0
  %v9173 = vsel %vm79, %v9150, 0.0
  %v9174 = vadd.f32 %v9172, %v9173
  %v9175 = vrot.slane %v9174, 4
  %v9176 = vadd.f32 %v9174, %v9175
  %v9177 = vrot.slane %v9176, 2
  %v9178 = vadd.f32 %v9176, %v9177
  %v9179 = vrot.slane %v9178, 1
  %v9180 = vadd.f32 %v9178, %v9179
  %v9181 = vsel %vm79, %v9151, 0.0
  %v9182 = vsel %vm79, %v9152, 0.0
  %v9183 = vadd.f32 %v9181, %v9182
  %v9184 = vrot.slane %v9183, 4
  %v9185 = vadd.f32 %v9183, %v9184
  %v9186 = vrot.slane %v9185, 2
  %v9187 = vadd.f32 %v9185, %v9186
  %v9188 = vrot.slane %v9187, 1
  %v9189 = vadd.f32 %v9187, %v9188
  %v9190 = vsel %vm79, %v9153, 0.0
  %v9191 = vsel %vm79, %v9154, 0.0
  %v9192 = vadd.f32 %v9190, %v9191
  %v9193 = vrot.slane %v9192, 4
  %v9194 = vadd.f32 %v9192, %v9193
  %v9195 = vrot.slane %v9194, 2
  %v9196 = vadd.f32 %v9194, %v9195
  %v9197 = vrot.slane %v9196, 1
  %v9198 = vadd.f32 %v9196, %v9197
  %v9199 = vsel %vm79, %v9155, 0.0
  %v9200 = vsel %vm79, %v9156, 0.0
  %v9201 = vadd.f32 %v9199, %v9200
  %v9202 = vrot.slane %v9201, 4
  %v9203 = vadd.f32 %v9201, %v9202
  %v9204 = vrot.slane %v9203, 2
  %v9205 = vadd.f32 %v9203, %v9204
  %v9206 = vrot.slane %v9205, 1
  %v9207 = vadd.f32 %v9205, %v9206
  %v9208 = vsel %vm79, %v9157, 0.0
  %v9209 = vsel %vm79, %v9158, 0.0
  %v9210 = vadd.f32 %v9208, %v9209
  %v9211 = vrot.slane %v9210, 4
  %v9212 = vadd.f32 %v9210, %v9211
  %v9213 = vrot.slane %v9212, 2
  %v9214 = vadd.f32 %v9212, %v9213
  %v9215 = vrot.slane %v9214, 1
  %v9216 = vadd.f32 %v9214, %v9215
  %v9217 = vsel %vm79, %v9159, 0.0
  %v9218 = vsel %vm79, %v9160, 0.0
  %v9219 = vadd.f32 %v9217, %v9218
  %v9220 = vrot.slane %v9219, 4
  %v9221 = vadd.f32 %v9219, %v9220
  %v9222 = vrot.slane %v9221, 2
  %v9223 = vadd.f32 %v9221, %v9222
  %v9224 = vrot.slane %v9223, 1
  %v9225 = vadd.f32 %v9223, %v9224
  %v9226 = vsel %vm79, %v9161, 0.0
  %v9227 = vsel %vm79, %v9162, 0.0
  %v9228 = vadd.f32 %v9226, %v9227
  %v9229 = vrot.slane %v9228, 4
  %v9230 = vadd.f32 %v9228, %v9229
  %v9231 = vrot.slane %v9230, 2
  %v9232 = vadd.f32 %v9230, %v9231
  %v9233 = vrot.slane %v9232, 1
  %v9234 = vadd.f32 %v9232, %v9233
  %v9243 = vsel %vm2097, %v9180, %v9171
  %v9244 = vsel %vm2099, %v9189, %v9243
  %v9245 = vsel %vm2101, %v9198, %v9244
  %v9246 = vsel %vm2103, %v9207, %v9245
  %v9247 = vsel %vm2105, %v9216, %v9246
  %v9248 = vsel %vm2107, %v9225, %v9247
  %v9249 = vsel %vm2109, %v9234, %v9248
  %9251 = vst.msk [vmem:[#allocation3 + $0x38] sm:$0xff] %vm79, %v9249
  %v9252 = vld [vmem:[#allocation3] sm:$0xff]
  %v9253 = vld [vmem:[#allocation3 + $0x8] sm:$0xff]
  %v9254 = vld [vmem:[#allocation3 + $0x10] sm:$0xff]
  %v9255 = vld [vmem:[#allocation3 + $0x18] sm:$0xff]
  %v9256 = vld [vmem:[#allocation3 + $0x20] sm:$0xff]
  %v9257 = vld [vmem:[#allocation3 + $0x28] sm:$0xff]
  %v9258 = vld [vmem:[#allocation3 + $0x30] sm:$0xff]
  %v9259 = vld [vmem:[#allocation3 + $0x38] sm:$0xff]
  %v9260 = vld [vmem:[%s5 + $0x6] sm:$0x1]
  %v9261 = vld [vmem:[%s11] sm:$0xff]
  %v9262 = vld [vmem:[%s11 + $0x8] sm:$0xff]
  %v9263 = vld [vmem:[%s11 + $0x10] sm:$0xff]
  %v9264 = vld [vmem:[%s11 + $0x18] sm:$0xff]
  %v9265 = vld [vmem:[%s12] sm:$0xff]
  %v9266 = vld [vmem:[%s12 + $0x8] sm:$0xff]
  %v9267 = vld [vmem:[%s12 + $0x10] sm:$0xff]
  %v9268 = vld [vmem:[%s12 + $0x18] sm:$0xff]
  %v9270 = vsel %vm79, %v9252, 0
  %v9273 = vsel %vm79, %v9253, 0
  %v9276 = vsel %vm79, %v9254, 0
  %v9279 = vsel %vm79, %v9255, 0
  %v9282 = vsel %vm79, %v9256, 0
  %v9285 = vsel %vm79, %v9257, 0
  %v9288 = vsel %vm79, %v9258, 0
  %v9291 = vsel %vm79, %v9259, 0
  %9293 = vmatprep.subr.mxu0 0.0
  %9294 = vmatpush1.msra.mxu0 %v9265
  %9295 = vmatprep.subr.mxu0 0.0
  %9296 = vmatpush1.msra.mxu0 %v9266
  %9297 = vmatprep.subr.mxu0 0.0
  %9298 = vmatpush1.msra.mxu0 %v9267
  %9299 = vmatprep.subr.mxu0 0.0
  %9300 = vmatpush1.msra.mxu0 %v9268
  %9301 = vmatprep.subr.mxu0 0.0
  %9302 = vmatpush1.msra.mxu0 0.0
  %9303 = vmatprep.subr.mxu0 0.0
  %9304 = vmatpush1.msra.mxu0 0.0
  %9305 = vmatprep.subr.mxu0 0.0
  %9306 = vmatpush1.msra.mxu0 0.0
  %9307 = vmatprep.subr.mxu0 0.0
  %9308 = vmatpush1.msra.mxu0 0.0
  %9309 = vmatprep.subr.mxu0 0.0
  %9310 = vmatpush1.msra.mxu0 0.0
  %9311 = vmatprep.subr.mxu0 0.0
  %9312 = vmatpush1.msra.mxu0 0.0
  %9313 = vmatprep.subr.mxu0 0.0
  %9314 = vmatpush1.msra.mxu0 0.0
  %9315 = vmatprep.subr.mxu0 0.0
  %9316 = vmatpush1.msra.mxu0 0.0
  %9317 = vmatprep.subr.mxu0 0.0
  %9318 = vmatpush1.msra.mxu0 0.0
  %9319 = vmatprep.subr.mxu0 0.0
  %9320 = vmatpush1.msra.mxu0 0.0
  %9321 = vmatprep.subr.mxu0 0.0
  %9322 = vmatpush1.msra.mxu0 0.0
  %9323 = vmatprep.subr.mxu0 0.0
  %9324 = vmatpush1.msra.mxu0 0.0
  %9325 = vmatprep.subr.mxu0 0.0
  %9326 = vmatpush1.msra.mxu0 0.0
  %9327 = vmatprep.subr.mxu0 0.0
  %9328 = vmatpush1.msra.mxu0 0.0
  %9329 = vmatprep.subr.mxu0 0.0
  %9330 = vmatpush1.msra.mxu0 0.0
  %9331 = vmatprep.subr.mxu0 0.0
  %9332 = vmatpush1.msra.mxu0 0.0
  %9333 = vmatprep.subr.mxu0 0.0
  %9334 = vmatpush1.msra.mxu0 0.0
  %9335 = vmatprep.subr.mxu0 0.0
  %9336 = vmatpush1.msra.mxu0 0.0
  %9337 = vmatprep.subr.mxu0 0.0
  %9338 = vmatpush1.msra.mxu0 0.0
  %9339 = vmatprep.subr.mxu0 0.0
  %9340 = vmatpush1.msra.mxu0 0.0
  %9341 = vmatprep.subr.mxu0 0.0
  %9342 = vmatpush1.msra.mxu0 0.0
  %9343 = vmatprep.subr.mxu0 0.0
  %9344 = vmatpush1.msra.mxu0 0.0
  %9345 = vmatprep.subr.mxu0 0.0
  %9346 = vmatpush1.msra.mxu0 0.0
  %9347 = vmatprep.subr.mxu0 0.0
  %9348 = vmatpush1.msra.mxu0 0.0
  %9349 = vmatprep.subr.mxu0 0.0
  %9350 = vmatpush1.msra.mxu0 0.0
  %9351 = vmatprep.subr.mxu0 0.0
  %9352 = vmatpush1.msra.mxu0 0.0
  %9353 = vmatprep.subr.mxu0 0.0
  %9354 = vmatpush1.msra.mxu0 0.0
  %9355 = vmatprep.subr.mxu0 0.0
  %9356 = vmatpush1.msra.mxu0 0.0
  %9357 = vmatprep.mubr.f32.mxu0 0.0
  %9358 = vmatmul.mubr.f32.gmra.mrb[0].mxu0 %v9270
  %v9359 = vpop.f32.mrb[0].mxu0
  %v9360 = vadd.f32 0.0, %v9359
  %v9361 = vpop.f32.mrb[0].mxu0
  %9362 = vmatprep.mubr.f32.mxu0 0.0
  %9363 = vmatmul.mubr.f32.gmra.mrb[0].mxu0 %v9273
  %v9364 = vpop.f32.mrb[0].mxu0
  %v9365 = vadd.f32 0.0, %v9364
  %v9366 = vpop.f32.mrb[0].mxu0
  %9367 = vmatprep.mubr.f32.mxu0 0.0
  %9368 = vmatmul.mubr.f32.gmra.mrb[0].mxu0 %v9276
  %v9369 = vpop.f32.mrb[0].mxu0
  %v9370 = vadd.f32 0.0, %v9369
  %v9371 = vpop.f32.mrb[0].mxu0
  %9372 = vmatprep.mubr.f32.mxu0 0.0
  %9373 = vmatmul.mubr.f32.gmra.mrb[0].mxu0 %v9279
  %v9374 = vpop.f32.mrb[0].mxu0
  %v9375 = vadd.f32 0.0, %v9374
  %v9376 = vpop.f32.mrb[0].mxu0
  %9377 = vmatprep.mubr.f32.mxu0 0.0
  %9378 = vmatmul.mubr.f32.gmra.mrb[0].mxu0 %v9282
  %v9379 = vpop.f32.mrb[0].mxu0
  %v9380 = vadd.f32 0.0, %v9379
  %v9381 = vpop.f32.mrb[0].mxu0
  %9382 = vmatprep.mubr.f32.mxu0 0.0
  %9383 = vmatmul.mubr.f32.gmra.mrb[0].mxu0 %v9285
  %v9384 = vpop.f32.mrb[0].mxu0
  %v9385 = vadd.f32 0.0, %v9384
  %v9386 = vpop.f32.mrb[0].mxu0
  %9387 = vmatprep.mubr.f32.mxu0 0.0
  %9388 = vmatmul.mubr.f32.gmra.mrb[0].mxu0 %v9288
  %v9389 = vpop.f32.mrb[0].mxu0
  %v9390 = vadd.f32 0.0, %v9389
  %v9391 = vpop.f32.mrb[0].mxu0
  %9392 = vmatprep.mubr.f32.mxu0 0.0
  %9393 = vmatmul.mubr.f32.gmra.mrb[0].mxu0 %v9291
  %v9394 = vpop.f32.mrb[0].mxu0
  %v9395 = vadd.f32 0.0, %v9394
  %v9396 = vpop.f32.mrb[0].mxu0
  %9397 = vdwg.mxu0
  %9398 = vmatprep.subr.mxu0 0.0
  %9399 = vmatpush1.msra.mxu0 %v9261
  %9400 = vmatprep.subr.mxu0 0.0
  %9401 = vmatpush1.msra.mxu0 %v9262
  %9402 = vmatprep.subr.mxu0 0.0
  %9403 = vmatpush1.msra.mxu0 %v9263
  %9404 = vmatprep.subr.mxu0 0.0
  %9405 = vmatpush1.msra.mxu0 %v9264
  %9406 = vmatprep.subr.mxu0 0.0
  %9407 = vmatpush1.msra.mxu0 0.0
  %9408 = vmatprep.subr.mxu0 0.0
  %9409 = vmatpush1.msra.mxu0 0.0
  %9410 = vmatprep.subr.mxu0 0.0
  %9411 = vmatpush1.msra.mxu0 0.0
  %9412 = vmatprep.subr.mxu0 0.0
  %9413 = vmatpush1.msra.mxu0 0.0
  %9414 = vmatprep.subr.mxu0 0.0
  %9415 = vmatpush1.msra.mxu0 0.0
  %9416 = vmatprep.subr.mxu0 0.0
  %9417 = vmatpush1.msra.mxu0 0.0
  %9418 = vmatprep.subr.mxu0 0.0
  %9419 = vmatpush1.msra.mxu0 0.0
  %9420 = vmatprep.subr.mxu0 0.0
  %9421 = vmatpush1.msra.mxu0 0.0
  %9422 = vmatprep.subr.mxu0 0.0
  %9423 = vmatpush1.msra.mxu0 0.0
  %9424 = vmatprep.subr.mxu0 0.0
  %9425 = vmatpush1.msra.mxu0 0.0
  %9426 = vmatprep.subr.mxu0 0.0
  %9427 = vmatpush1.msra.mxu0 0.0
  %9428 = vmatprep.subr.mxu0 0.0
  %9429 = vmatpush1.msra.mxu0 0.0
  %9430 = vmatprep.subr.mxu0 0.0
  %9431 = vmatpush1.msra.mxu0 0.0
  %9432 = vmatprep.subr.mxu0 0.0
  %9433 = vmatpush1.msra.mxu0 0.0
  %9434 = vmatprep.subr.mxu0 0.0
  %9435 = vmatpush1.msra.mxu0 0.0
  %9436 = vmatprep.subr.mxu0 0.0
  %9437 = vmatpush1.msra.mxu0 0.0
  %9438 = vmatprep.subr.mxu0 0.0
  %9439 = vmatpush1.msra.mxu0 0.0
  %9440 = vmatprep.subr.mxu0 0.0
  %9441 = vmatpush1.msra.mxu0 0.0
  %9442 = vmatprep.subr.mxu0 0.0
  %9443 = vmatpush1.msra.mxu0 0.0
  %9444 = vmatprep.subr.mxu0 0.0
  %9445 = vmatpush1.msra.mxu0 0.0
  %9446 = vmatprep.subr.mxu0 0.0
  %9447 = vmatpush1.msra.mxu0 0.0
  %9448 = vmatprep.subr.mxu0 0.0
  %9449 = vmatpush1.msra.mxu0 0.0
  %9450 = vmatprep.subr.mxu0 0.0
  %9451 = vmatpush1.msra.mxu0 0.0
  %9452 = vmatprep.subr.mxu0 0.0
  %9453 = vmatpush1.msra.mxu0 0.0
  %9454 = vmatprep.subr.mxu0 0.0
  %9455 = vmatpush1.msra.mxu0 0.0
  %9456 = vmatprep.subr.mxu0 0.0
  %9457 = vmatpush1.msra.mxu0 0.0
  %9458 = vmatprep.subr.mxu0 0.0
  %9459 = vmatpush1.msra.mxu0 0.0
  %9460 = vmatprep.subr.mxu0 0.0
  %9461 = vmatpush1.msra.mxu0 0.0
  %9462 = vmatprep.mubr.f32.mxu0 0.0
  %9463 = vmatmul.mubr.f32.gmra.mrb[0].mxu0 %v1129
  %v9464 = vpop.f32.mrb[0].mxu0
  %v9465 = vadd.f32 %v9360, %v9464
  %v9466 = vpop.f32.mrb[0].mxu0
  %9467 = vmatprep.mubr.f32.mxu0 0.0
  %9468 = vmatmul.mubr.f32.gmra.mrb[0].mxu0 %v1132
  %v9469 = vpop.f32.mrb[0].mxu0
  %v9470 = vadd.f32 %v9365, %v9469
  %v9471 = vpop.f32.mrb[0].mxu0
  %9472 = vmatprep.mubr.f32.mxu0 0.0
  %9473 = vmatmul.mubr.f32.gmra.mrb[0].mxu0 %v1135
  %v9474 = vpop.f32.mrb[0].mxu0
  %v9475 = vadd.f32 %v9370, %v9474
  %v9476 = vpop.f32.mrb[0].mxu0
  %9477 = vmatprep.mubr.f32.mxu0 0.0
  %9478 = vmatmul.mubr.f32.gmra.mrb[0].mxu0 %v1138
  %v9479 = vpop.f32.mrb[0].mxu0
  %v9480 = vadd.f32 %v9375, %v9479
  %v9481 = vpop.f32.mrb[0].mxu0
  %9482 = vmatprep.mubr.f32.mxu0 0.0
  %9483 = vmatmul.mubr.f32.gmra.mrb[0].mxu0 %v1141
  %v9484 = vpop.f32.mrb[0].mxu0
  %v9485 = vadd.f32 %v9380, %v9484
  %v9486 = vpop.f32.mrb[0].mxu0
  %9487 = vmatprep.mubr.f32.mxu0 0.0
  %9488 = vmatmul.mubr.f32.gmra.mrb[0].mxu0 %v1144
  %v9489 = vpop.f32.mrb[0].mxu0
  %v9490 = vadd.f32 %v9385, %v9489
  %v9491 = vpop.f32.mrb[0].mxu0
  %9492 = vmatprep.mubr.f32.mxu0 0.0
  %9493 = vmatmul.mubr.f32.gmra.mrb[0].mxu0 %v1147
  %v9494 = vpop.f32.mrb[0].mxu0
  %v9495 = vadd.f32 %v9390, %v9494
  %v9496 = vpop.f32.mrb[0].mxu0
  %9497 = vmatprep.mubr.f32.mxu0 0.0
  %9498 = vmatmul.mubr.f32.gmra.mrb[0].mxu0 %v1150
  %v9499 = vpop.f32.mrb[0].mxu0
  %v9500 = vadd.f32 %v9395, %v9499
  %v9501 = vpop.f32.mrb[0].mxu0
  %9502 = vdwg.mxu0
  %v9503 = vlaneseq
  %v9504 = vshrl.u32 %v9503, 7
  %v9505 = vsub.s32 0, %v9504
  %v9506 = vrot.slane %v9260, %v9505
  %v9507 = vadd.f32 %v9465, %v9506
  %v9508 = vadd.f32 %v9470, %v9506
  %v9509 = vadd.f32 %v9475, %v9506
  %v9510 = vadd.f32 %v9480, %v9506
  %v9511 = vadd.f32 %v9485, %v9506
  %v9512 = vadd.f32 %v9490, %v9506
  %v9513 = vadd.f32 %v9495, %v9506
  %v9514 = vadd.f32 %v9500, %v9506
  %v9515 = vld [vmem:[%s13] sm:$0xff]
  %v9516 = vld [vmem:[%s13 + $0x8] sm:$0xff]
  %v9517 = vld [vmem:[%s13 + $0x10] sm:$0xff]
  %v9518 = vld [vmem:[%s13 + $0x18] sm:$0xff]
  %s9519 = scalar_lea.vmem %s3, 8
  %v9520 = vld [vmem:[%s9519] sm:$0xff]
  %s9521 = scalar_lea.vmem %s4, 8
  %v9522 = vld [vmem:[%s9521] sm:$0xff]
  %v9524 = vsel %vm79, %v9520, 0
  %9526 = vmatprep.subr.mxu0 0.0
  %9527 = vmatpush1.msra.mxu0 %v9515
  %9528 = vmatprep.subr.mxu0 0.0
  %9529 = vmatpush1.msra.mxu0 %v9516
  %9530 = vmatprep.subr.mxu0 0.0
  %9531 = vmatpush1.msra.mxu0 %v9517
  %9532 = vmatprep.subr.mxu0 0.0
  %9533 = vmatpush1.msra.mxu0 %v9518
  %9534 = vmatprep.subr.mxu0 0.0
  %9535 = vmatpush1.msra.mxu0 0.0
  %9536 = vmatprep.subr.mxu0 0.0
  %9537 = vmatpush1.msra.mxu0 0.0
  %9538 = vmatprep.subr.mxu0 0.0
  %9539 = vmatpush1.msra.mxu0 0.0
  %9540 = vmatprep.subr.mxu0 0.0
  %9541 = vmatpush1.msra.mxu0 0.0
  %9542 = vmatprep.subr.mxu0 0.0
  %9543 = vmatpush1.msra.mxu0 0.0
  %9544 = vmatprep.subr.mxu0 0.0
  %9545 = vmatpush1.msra.mxu0 0.0
  %9546 = vmatprep.subr.mxu0 0.0
  %9547 = vmatpush1.msra.mxu0 0.0
  %9548 = vmatprep.subr.mxu0 0.0
  %9549 = vmatpush1.msra.mxu0 0.0
  %9550 = vmatprep.subr.mxu0 0.0
  %9551 = vmatpush1.msra.mxu0 0.0
  %9552 = vmatprep.subr.mxu0 0.0
  %9553 = vmatpush1.msra.mxu0 0.0
  %9554 = vmatprep.subr.mxu0 0.0
  %9555 = vmatpush1.msra.mxu0 0.0
  %9556 = vmatprep.subr.mxu0 0.0
  %9557 = vmatpush1.msra.mxu0 0.0
  %9558 = vmatprep.subr.mxu0 0.0
  %9559 = vmatpush1.msra.mxu0 0.0
  %9560 = vmatprep.subr.mxu0 0.0
  %9561 = vmatpush1.msra.mxu0 0.0
  %9562 = vmatprep.subr.mxu0 0.0
  %9563 = vmatpush1.msra.mxu0 0.0
  %9564 = vmatprep.subr.mxu0 0.0
  %9565 = vmatpush1.msra.mxu0 0.0
  %9566 = vmatprep.subr.mxu0 0.0
  %9567 = vmatpush1.msra.mxu0 0.0
  %9568 = vmatprep.subr.mxu0 0.0
  %9569 = vmatpush1.msra.mxu0 0.0
  %9570 = vmatprep.subr.mxu0 0.0
  %9571 = vmatpush1.msra.mxu0 0.0
  %9572 = vmatprep.subr.mxu0 0.0
  %9573 = vmatpush1.msra.mxu0 0.0
  %9574 = vmatprep.subr.mxu0 0.0
  %9575 = vmatpush1.msra.mxu0 0.0
  %9576 = vmatprep.subr.mxu0 0.0
  %9577 = vmatpush1.msra.mxu0 0.0
  %9578 = vmatprep.subr.mxu0 0.0
  %9579 = vmatpush1.msra.mxu0 0.0
  %9580 = vmatprep.subr.mxu0 0.0
  %9581 = vmatpush1.msra.mxu0 0.0
  %9582 = vmatprep.subr.mxu0 0.0
  %9583 = vmatpush1.msra.mxu0 0.0
  %9584 = vmatprep.subr.mxu0 0.0
  %9585 = vmatpush1.msra.mxu0 0.0
  %9586 = vmatprep.subr.mxu0 0.0
  %9587 = vmatpush1.msra.mxu0 0.0
  %9588 = vmatprep.subr.mxu0 0.0
  %9589 = vmatpush1.msra.mxu0 0.0
  %9590 = vmatprep.mubr.f32.mxu0 0.0
  %9591 = vmatmul.mubr.f32.gmra.mrb[0].mxu0 %v9524
  %v9592 = vpop.f32.mrb[0].mxu0
  %v9593 = vadd.f32 0.0, %v9592
  %v9594 = vpop.f32.mrb[0].mxu0
  %9595 = vdwg.mxu0
  %v9596 = vadd.f32 %v9507, %v9593
  %v9597 = vtanh.pop %v9596
  %v9598 = vxor.u32 %v9596, 2147483648
  %v9599 = vmul.f32 %v9598, 1.442695
  %v9600 = vpow.pop %v9599
  %v9601 = vadd.f32 %v9600, 1.0
  %v9602 = vrcp.pop %v9601
  %v9603 = vmul.f32 1.0, %v9602
  %v9604 = vsel %vm61, %v9597, %v9603
  %9606 = vrot.lane.b32.xlu0 %v9522, 32
  %v9607 = vpop.permute.xlu0 %9606
  %v9609 = vmul.f32 %v9604, %v9607
  %9611 = vrot.lane.b32.xlu0 %v9604, 64
  %v9612 = vpop.permute.xlu0 %9611
  %v9614 = vmul.f32 %v9604, %v9612
  %9616 = vrot.lane.b32.xlu0 %v9614, 32
  %v9617 = vpop.permute.xlu0 %9616
  %v9619 = vadd.f32 %v9609, %v9617
  %v9620 = vtanh.pop %v9619
  %9622 = vrot.lane.b32.xlu0 %v9620, 64
  %v9623 = vpop.permute.xlu0 %9622
  %v9625 = vmul.f32 %v9604, %v9623
  %9627 = vrot.lane.b32.xlu0 %v9625, 32
  %v9628 = vpop.permute.xlu0 %9627
  %s9630 = scalar_lea.vmem [#allocation2], 64
  %9631 = vst.msk [vmem:[%s9630] sm:$0xff] %vm79, %v9628
  %v9632 = vsel %vm79, %v9628, 0
  %9634 = vmatprep.subr.mxu0 0.0
  %9635 = vmatpush1.msra.mxu0 %v9515
  %9636 = vmatprep.subr.mxu0 0.0
  %9637 = vmatpush1.msra.mxu0 %v9516
  %9638 = vmatprep.subr.mxu0 0.0
  %9639 = vmatpush1.msra.mxu0 %v9517
  %9640 = vmatprep.subr.mxu0 0.0
  %9641 = vmatpush1.msra.mxu0 %v9518
  %9642 = vmatprep.subr.mxu0 0.0
  %9643 = vmatpush1.msra.mxu0 0.0
  %9644 = vmatprep.subr.mxu0 0.0
  %9645 = vmatpush1.msra.mxu0 0.0
  %9646 = vmatprep.subr.mxu0 0.0
  %9647 = vmatpush1.msra.mxu0 0.0
  %9648 = vmatprep.subr.mxu0 0.0
  %9649 = vmatpush1.msra.mxu0 0.0
  %9650 = vmatprep.subr.mxu0 0.0
  %9651 = vmatpush1.msra.mxu0 0.0
  %9652 = vmatprep.subr.mxu0 0.0
  %9653 = vmatpush1.msra.mxu0 0.0
  %9654 = vmatprep.subr.mxu0 0.0
  %9655 = vmatpush1.msra.mxu0 0.0
  %9656 = vmatprep.subr.mxu0 0.0
  %9657 = vmatpush1.msra.mxu0 0.0
  %9658 = vmatprep.subr.mxu0 0.0
  %9659 = vmatpush1.msra.mxu0 0.0
  %9660 = vmatprep.subr.mxu0 0.0
  %9661 = vmatpush1.msra.mxu0 0.0
  %9662 = vmatprep.subr.mxu0 0.0
  %9663 = vmatpush1.msra.mxu0 0.0
  %9664 = vmatprep.subr.mxu0 0.0
  %9665 = vmatpush1.msra.mxu0 0.0
  %9666 = vmatprep.subr.mxu0 0.0
  %9667 = vmatpush1.msra.mxu0 0.0
  %9668 = vmatprep.subr.mxu0 0.0
  %9669 = vmatpush1.msra.mxu0 0.0
  %9670 = vmatprep.subr.mxu0 0.0
  %9671 = vmatpush1.msra.mxu0 0.0
  %9672 = vmatprep.subr.mxu0 0.0
  %9673 = vmatpush1.msra.mxu0 0.0
  %9674 = vmatprep.subr.mxu0 0.0
  %9675 = vmatpush1.msra.mxu0 0.0
  %9676 = vmatprep.subr.mxu0 0.0
  %9677 = vmatpush1.msra.mxu0 0.0
  %9678 = vmatprep.subr.mxu0 0.0
  %9679 = vmatpush1.msra.mxu0 0.0
  %9680 = vmatprep.subr.mxu0 0.0
  %9681 = vmatpush1.msra.mxu0 0.0
  %9682 = vmatprep.subr.mxu0 0.0
  %9683 = vmatpush1.msra.mxu0 0.0
  %9684 = vmatprep.subr.mxu0 0.0
  %9685 = vmatpush1.msra.mxu0 0.0
  %9686 = vmatprep.subr.mxu0 0.0
  %9687 = vmatpush1.msra.mxu0 0.0
  %9688 = vmatprep.subr.mxu0 0.0
  %9689 = vmatpush1.msra.mxu0 0.0
  %9690 = vmatprep.subr.mxu0 0.0
  %9691 = vmatpush1.msra.mxu0 0.0
  %9692 = vmatprep.subr.mxu0 0.0
  %9693 = vmatpush1.msra.mxu0 0.0
  %9694 = vmatprep.subr.mxu0 0.0
  %9695 = vmatpush1.msra.mxu0 0.0
  %9696 = vmatprep.subr.mxu0 0.0
  %9697 = vmatpush1.msra.mxu0 0.0
  %9698 = vmatprep.mubr.f32.mxu0 0.0
  %9699 = vmatmul.mubr.f32.gmra.mrb[0].mxu0 %v9632
  %v9700 = vpop.f32.mrb[0].mxu0
  %v9701 = vadd.f32 0.0, %v9700
  %v9702 = vpop.f32.mrb[0].mxu0
  %9703 = vdwg.mxu0
  %v9704 = vadd.f32 %v9508, %v9701
  %v9705 = vtanh.pop %v9704
  %v9706 = vxor.u32 %v9704, 2147483648
  %v9707 = vmul.f32 %v9706, 1.442695
  %v9708 = vpow.pop %v9707
  %v9709 = vadd.f32 %v9708, 1.0
  %v9710 = vrcp.pop %v9709
  %v9711 = vmul.f32 1.0, %v9710
  %v9712 = vsel %vm61, %v9705, %v9711
  %v9713 = vmul.f32 %v9712, %v9619
  %9715 = vrot.lane.b32.xlu0 %v9712, 64
  %v9716 = vpop.permute.xlu0 %9715
  %v9718 = vmul.f32 %v9712, %v9716
  %9720 = vrot.lane.b32.xlu0 %v9718, 32
  %v9721 = vpop.permute.xlu0 %9720
  %v9723 = vadd.f32 %v9713, %v9721
  %v9724 = vtanh.pop %v9723
  %9726 = vrot.lane.b32.xlu0 %v9724, 64
  %v9727 = vpop.permute.xlu0 %9726
  %v9729 = vmul.f32 %v9712, %v9727
  %9731 = vrot.lane.b32.xlu0 %v9729, 32
  %v9732 = vpop.permute.xlu0 %9731
  %9734 = vst.msk [vmem:[%s9630 + $0x8] sm:$0xff] %vm79, %v9732
  %v9735 = vsel %vm79, %v9732, 0
  %9737 = vmatprep.subr.mxu0 0.0
  %9738 = vmatpush1.msra.mxu0 %v9515
  %9739 = vmatprep.subr.mxu0 0.0
  %9740 = vmatpush1.msra.mxu0 %v9516
  %9741 = vmatprep.subr.mxu0 0.0
  %9742 = vmatpush1.msra.mxu0 %v9517
  %9743 = vmatprep.subr.mxu0 0.0
  %9744 = vmatpush1.msra.mxu0 %v9518
  %9745 = vmatprep.subr.mxu0 0.0
  %9746 = vmatpush1.msra.mxu0 0.0
  %9747 = vmatprep.subr.mxu0 0.0
  %9748 = vmatpush1.msra.mxu0 0.0
  %9749 = vmatprep.subr.mxu0 0.0
  %9750 = vmatpush1.msra.mxu0 0.0
  %9751 = vmatprep.subr.mxu0 0.0
  %9752 = vmatpush1.msra.mxu0 0.0
  %9753 = vmatprep.subr.mxu0 0.0
  %9754 = vmatpush1.msra.mxu0 0.0
  %9755 = vmatprep.subr.mxu0 0.0
  %9756 = vmatpush1.msra.mxu0 0.0
  %9757 = vmatprep.subr.mxu0 0.0
  %9758 = vmatpush1.msra.mxu0 0.0
  %9759 = vmatprep.subr.mxu0 0.0
  %9760 = vmatpush1.msra.mxu0 0.0
  %9761 = vmatprep.subr.mxu0 0.0
  %9762 = vmatpush1.msra.mxu0 0.0
  %9763 = vmatprep.subr.mxu0 0.0
  %9764 = vmatpush1.msra.mxu0 0.0
  %9765 = vmatprep.subr.mxu0 0.0
  %9766 = vmatpush1.msra.mxu0 0.0
  %9767 = vmatprep.subr.mxu0 0.0
  %9768 = vmatpush1.msra.mxu0 0.0
  %9769 = vmatprep.subr.mxu0 0.0
  %9770 = vmatpush1.msra.mxu0 0.0
  %9771 = vmatprep.subr.mxu0 0.0
  %9772 = vmatpush1.msra.mxu0 0.0
  %9773 = vmatprep.subr.mxu0 0.0
  %9774 = vmatpush1.msra.mxu0 0.0
  %9775 = vmatprep.subr.mxu0 0.0
  %9776 = vmatpush1.msra.mxu0 0.0
  %9777 = vmatprep.subr.mxu0 0.0
  %9778 = vmatpush1.msra.mxu0 0.0
  %9779 = vmatprep.subr.mxu0 0.0
  %9780 = vmatpush1.msra.mxu0 0.0
  %9781 = vmatprep.subr.mxu0 0.0
  %9782 = vmatpush1.msra.mxu0 0.0
  %9783 = vmatprep.subr.mxu0 0.0
  %9784 = vmatpush1.msra.mxu0 0.0
  %9785 = vmatprep.subr.mxu0 0.0
  %9786 = vmatpush1.msra.mxu0 0.0
  %9787 = vmatprep.subr.mxu0 0.0
  %9788 = vmatpush1.msra.mxu0 0.0
  %9789 = vmatprep.subr.mxu0 0.0
  %9790 = vmatpush1.msra.mxu0 0.0
  %9791 = vmatprep.subr.mxu0 0.0
  %9792 = vmatpush1.msra.mxu0 0.0
  %9793 = vmatprep.subr.mxu0 0.0
  %9794 = vmatpush1.msra.mxu0 0.0
  %9795 = vmatprep.subr.mxu0 0.0
  %9796 = vmatpush1.msra.mxu0 0.0
  %9797 = vmatprep.subr.mxu0 0.0
  %9798 = vmatpush1.msra.mxu0 0.0
  %9799 = vmatprep.subr.mxu0 0.0
  %9800 = vmatpush1.msra.mxu0 0.0
  %9801 = vmatprep.mubr.f32.mxu0 0.0
  %9802 = vmatmul.mubr.f32.gmra.mrb[0].mxu0 %v9735
  %v9803 = vpop.f32.mrb[0].mxu0
  %v9804 = vadd.f32 0.0, %v9803
  %v9805 = vpop.f32.mrb[0].mxu0
  %9806 = vdwg.mxu0
  %v9807 = vadd.f32 %v9509, %v9804
  %v9808 = vtanh.pop %v9807
  %v9809 = vxor.u32 %v9807, 2147483648
  %v9810 = vmul.f32 %v9809, 1.442695
  %v9811 = vpow.pop %v9810
  %v9812 = vadd.f32 %v9811, 1.0
  %v9813 = vrcp.pop %v9812
  %v9814 = vmul.f32 1.0, %v9813
  %v9815 = vsel %vm61, %v9808, %v9814
  %v9816 = vmul.f32 %v9815, %v9723
  %9818 = vrot.lane.b32.xlu0 %v9815, 64
  %v9819 = vpop.permute.xlu0 %9818
  %v9821 = vmul.f32 %v9815, %v9819
  %9823 = vrot.lane.b32.xlu0 %v9821, 32
  %v9824 = vpop.permute.xlu0 %9823
  %v9826 = vadd.f32 %v9816, %v9824
  %v9827 = vtanh.pop %v9826
  %9829 = vrot.lane.b32.xlu0 %v9827, 64
  %v9830 = vpop.permute.xlu0 %9829
  %v9832 = vmul.f32 %v9815, %v9830
  %9834 = vrot.lane.b32.xlu0 %v9832, 32
  %v9835 = vpop.permute.xlu0 %9834
  %9837 = vst.msk [vmem:[%s9630 + $0x10] sm:$0xff] %vm79, %v9835
  %v9838 = vsel %vm79, %v9835, 0
  %9840 = vmatprep.subr.mxu0 0.0
  %9841 = vmatpush1.msra.mxu0 %v9515
  %9842 = vmatprep.subr.mxu0 0.0
  %9843 = vmatpush1.msra.mxu0 %v9516
  %9844 = vmatprep.subr.mxu0 0.0
  %9845 = vmatpush1.msra.mxu0 %v9517
  %9846 = vmatprep.subr.mxu0 0.0
  %9847 = vmatpush1.msra.mxu0 %v9518
  %9848 = vmatprep.subr.mxu0 0.0
  %9849 = vmatpush1.msra.mxu0 0.0
  %9850 = vmatprep.subr.mxu0 0.0
  %9851 = vmatpush1.msra.mxu0 0.0
  %9852 = vmatprep.subr.mxu0 0.0
  %9853 = vmatpush1.msra.mxu0 0.0
  %9854 = vmatprep.subr.mxu0 0.0
  %9855 = vmatpush1.msra.mxu0 0.0
  %9856 = vmatprep.subr.mxu0 0.0
  %9857 = vmatpush1.msra.mxu0 0.0
  %9858 = vmatprep.subr.mxu0 0.0
  %9859 = vmatpush1.msra.mxu0 0.0
  %9860 = vmatprep.subr.mxu0 0.0
  %9861 = vmatpush1.msra.mxu0 0.0
  %9862 = vmatprep.subr.mxu0 0.0
  %9863 = vmatpush1.msra.mxu0 0.0
  %9864 = vmatprep.subr.mxu0 0.0
  %9865 = vmatpush1.msra.mxu0 0.0
  %9866 = vmatprep.subr.mxu0 0.0
  %9867 = vmatpush1.msra.mxu0 0.0
  %9868 = vmatprep.subr.mxu0 0.0
  %9869 = vmatpush1.msra.mxu0 0.0
  %9870 = vmatprep.subr.mxu0 0.0
  %9871 = vmatpush1.msra.mxu0 0.0
  %9872 = vmatprep.subr.mxu0 0.0
  %9873 = vmatpush1.msra.mxu0 0.0
  %9874 = vmatprep.subr.mxu0 0.0
  %9875 = vmatpush1.msra.mxu0 0.0
  %9876 = vmatprep.subr.mxu0 0.0
  %9877 = vmatpush1.msra.mxu0 0.0
  %9878 = vmatprep.subr.mxu0 0.0
  %9879 = vmatpush1.msra.mxu0 0.0
  %9880 = vmatprep.subr.mxu0 0.0
  %9881 = vmatpush1.msra.mxu0 0.0
  %9882 = vmatprep.subr.mxu0 0.0
  %9883 = vmatpush1.msra.mxu0 0.0
  %9884 = vmatprep.subr.mxu0 0.0
  %9885 = vmatpush1.msra.mxu0 0.0
  %9886 = vmatprep.subr.mxu0 0.0
  %9887 = vmatpush1.msra.mxu0 0.0
  %9888 = vmatprep.subr.mxu0 0.0
  %9889 = vmatpush1.msra.mxu0 0.0
  %9890 = vmatprep.subr.mxu0 0.0
  %9891 = vmatpush1.msra.mxu0 0.0
  %9892 = vmatprep.subr.mxu0 0.0
  %9893 = vmatpush1.msra.mxu0 0.0
  %9894 = vmatprep.subr.mxu0 0.0
  %9895 = vmatpush1.msra.mxu0 0.0
  %9896 = vmatprep.subr.mxu0 0.0
  %9897 = vmatpush1.msra.mxu0 0.0
  %9898 = vmatprep.subr.mxu0 0.0
  %9899 = vmatpush1.msra.mxu0 0.0
  %9900 = vmatprep.subr.mxu0 0.0
  %9901 = vmatpush1.msra.mxu0 0.0
  %9902 = vmatprep.subr.mxu0 0.0
  %9903 = vmatpush1.msra.mxu0 0.0
  %9904 = vmatprep.mubr.f32.mxu0 0.0
  %9905 = vmatmul.mubr.f32.gmra.mrb[0].mxu0 %v9838
  %v9906 = vpop.f32.mrb[0].mxu0
  %v9907 = vadd.f32 0.0, %v9906
  %v9908 = vpop.f32.mrb[0].mxu0
  %9909 = vdwg.mxu0
  %v9910 = vadd.f32 %v9510, %v9907
  %v9911 = vtanh.pop %v9910
  %v9912 = vxor.u32 %v9910, 2147483648
  %v9913 = vmul.f32 %v9912, 1.442695
  %v9914 = vpow.pop %v9913
  %v9915 = vadd.f32 %v9914, 1.0
  %v9916 = vrcp.pop %v9915
  %v9917 = vmul.f32 1.0, %v9916
  %v9918 = vsel %vm61, %v9911, %v9917
  %v9919 = vmul.f32 %v9918, %v9826
  %9921 = vrot.lane.b32.xlu0 %v9918, 64
  %v9922 = vpop.permute.xlu0 %9921
  %v9924 = vmul.f32 %v9918, %v9922
  %9926 = vrot.lane.b32.xlu0 %v9924, 32
  %v9927 = vpop.permute.xlu0 %9926
  %v9929 = vadd.f32 %v9919, %v9927
  %v9930 = vtanh.pop %v9929
  %9932 = vrot.lane.b32.xlu0 %v9930, 64
  %v9933 = vpop.permute.xlu0 %9932
  %v9935 = vmul.f32 %v9918, %v9933
  %9937 = vrot.lane.b32.xlu0 %v9935, 32
  %v9938 = vpop.permute.xlu0 %9937
  %9940 = vst.msk [vmem:[%s9630 + $0x18] sm:$0xff] %vm79, %v9938
  %v9941 = vsel %vm79, %v9938, 0
  %9943 = vmatprep.subr.mxu0 0.0
  %9944 = vmatpush1.msra.mxu0 %v9515
  %9945 = vmatprep.subr.mxu0 0.0
  %9946 = vmatpush1.msra.mxu0 %v9516
  %9947 = vmatprep.subr.mxu0 0.0
  %9948 = vmatpush1.msra.mxu0 %v9517
  %9949 = vmatprep.subr.mxu0 0.0
  %9950 = vmatpush1.msra.mxu0 %v9518
  %9951 = vmatprep.subr.mxu0 0.0
  %9952 = vmatpush1.msra.mxu0 0.0
  %9953 = vmatprep.subr.mxu0 0.0
  %9954 = vmatpush1.msra.mxu0 0.0
  %9955 = vmatprep.subr.mxu0 0.0
  %9956 = vmatpush1.msra.mxu0 0.0
  %9957 = vmatprep.subr.mxu0 0.0
  %9958 = vmatpush1.msra.mxu0 0.0
  %9959 = vmatprep.subr.mxu0 0.0
  %9960 = vmatpush1.msra.mxu0 0.0
  %9961 = vmatprep.subr.mxu0 0.0
  %9962 = vmatpush1.msra.mxu0 0.0
  %9963 = vmatprep.subr.mxu0 0.0
  %9964 = vmatpush1.msra.mxu0 0.0
  %9965 = vmatprep.subr.mxu0 0.0
  %9966 = vmatpush1.msra.mxu0 0.0
  %9967 = vmatprep.subr.mxu0 0.0
  %9968 = vmatpush1.msra.mxu0 0.0
  %9969 = vmatprep.subr.mxu0 0.0
  %9970 = vmatpush1.msra.mxu0 0.0
  %9971 = vmatprep.subr.mxu0 0.0
  %9972 = vmatpush1.msra.mxu0 0.0
  %9973 = vmatprep.subr.mxu0 0.0
  %9974 = vmatpush1.msra.mxu0 0.0
  %9975 = vmatprep.subr.mxu0 0.0
  %9976 = vmatpush1.msra.mxu0 0.0
  %9977 = vmatprep.subr.mxu0 0.0
  %9978 = vmatpush1.msra.mxu0 0.0
  %9979 = vmatprep.subr.mxu0 0.0
  %9980 = vmatpush1.msra.mxu0 0.0
  %9981 = vmatprep.subr.mxu0 0.0
  %9982 = vmatpush1.msra.mxu0 0.0
  %9983 = vmatprep.subr.mxu0 0.0
  %9984 = vmatpush1.msra.mxu0 0.0
  %9985 = vmatprep.subr.mxu0 0.0
  %9986 = vmatpush1.msra.mxu0 0.0
  %9987 = vmatprep.subr.mxu0 0.0
  %9988 = vmatpush1.msra.mxu0 0.0
  %9989 = vmatprep.subr.mxu0 0.0
  %9990 = vmatpush1.msra.mxu0 0.0
  %9991 = vmatprep.subr.mxu0 0.0
  %9992 = vmatpush1.msra.mxu0 0.0
  %9993 = vmatprep.subr.mxu0 0.0
  %9994 = vmatpush1.msra.mxu0 0.0
  %9995 = vmatprep.subr.mxu0 0.0
  %9996 = vmatpush1.msra.mxu0 0.0
  %9997 = vmatprep.subr.mxu0 0.0
  %9998 = vmatpush1.msra.mxu0 0.0
  %9999 = vmatprep.subr.mxu0 0.0
  %10000 = vmatpush1.msra.mxu0 0.0
  %10001 = vmatprep.subr.mxu0 0.0
  %10002 = vmatpush1.msra.mxu0 0.0
  %10003 = vmatprep.subr.mxu0 0.0
  %10004 = vmatpush1.msra.mxu0 0.0
  %10005 = vmatprep.subr.mxu0 0.0
  %10006 = vmatpush1.msra.mxu0 0.0
  %10007 = vmatprep.mubr.f32.mxu0 0.0
  %10008 = vmatmul.mubr.f32.gmra.mrb[0].mxu0 %v9941
  %v10009 = vpop.f32.mrb[0].mxu0
  %v10010 = vadd.f32 0.0, %v10009
  %v10011 = vpop.f32.mrb[0].mxu0
  %10012 = vdwg.mxu0
  %v10013 = vadd.f32 %v9511, %v10010
  %v10014 = vtanh.pop %v10013
  %v10015 = vxor.u32 %v10013, 2147483648
  %v10016 = vmul.f32 %v10015, 1.442695
  %v10017 = vpow.pop %v10016
  %v10018 = vadd.f32 %v10017, 1.0
  %v10019 = vrcp.pop %v10018
  %v10020 = vmul.f32 1.0, %v10019
  %v10021 = vsel %vm61, %v10014, %v10020
  %v10022 = vmul.f32 %v10021, %v9929
  %10024 = vrot.lane.b32.xlu0 %v10021, 64
  %v10025 = vpop.permute.xlu0 %10024
  %v10027 = vmul.f32 %v10021, %v10025
  %10029 = vrot.lane.b32.xlu0 %v10027, 32
  %v10030 = vpop.permute.xlu0 %10029
  %v10032 = vadd.f32 %v10022, %v10030
  %v10033 = vtanh.pop %v10032
  %10035 = vrot.lane.b32.xlu0 %v10033, 64
  %v10036 = vpop.permute.xlu0 %10035
  %v10038 = vmul.f32 %v10021, %v10036
  %10040 = vrot.lane.b32.xlu0 %v10038, 32
  %v10041 = vpop.permute.xlu0 %10040
  %10043 = vst.msk [vmem:[%s9630 + $0x20] sm:$0xff] %vm79, %v10041
  %v10044 = vsel %vm79, %v10041, 0
  %10046 = vmatprep.subr.mxu0 0.0
  %10047 = vmatpush1.msra.mxu0 %v9515
  %10048 = vmatprep.subr.mxu0 0.0
  %10049 = vmatpush1.msra.mxu0 %v9516
  %10050 = vmatprep.subr.mxu0 0.0
  %10051 = vmatpush1.msra.mxu0 %v9517
  %10052 = vmatprep.subr.mxu0 0.0
  %10053 = vmatpush1.msra.mxu0 %v9518
  %10054 = vmatprep.subr.mxu0 0.0
  %10055 = vmatpush1.msra.mxu0 0.0
  %10056 = vmatprep.subr.mxu0 0.0
  %10057 = vmatpush1.msra.mxu0 0.0
  %10058 = vmatprep.subr.mxu0 0.0
  %10059 = vmatpush1.msra.mxu0 0.0
  %10060 = vmatprep.subr.mxu0 0.0
  %10061 = vmatpush1.msra.mxu0 0.0
  %10062 = vmatprep.subr.mxu0 0.0
  %10063 = vmatpush1.msra.mxu0 0.0
  %10064 = vmatprep.subr.mxu0 0.0
  %10065 = vmatpush1.msra.mxu0 0.0
  %10066 = vmatprep.subr.mxu0 0.0
  %10067 = vmatpush1.msra.mxu0 0.0
  %10068 = vmatprep.subr.mxu0 0.0
  %10069 = vmatpush1.msra.mxu0 0.0
  %10070 = vmatprep.subr.mxu0 0.0
  %10071 = vmatpush1.msra.mxu0 0.0
  %10072 = vmatprep.subr.mxu0 0.0
  %10073 = vmatpush1.msra.mxu0 0.0
  %10074 = vmatprep.subr.mxu0 0.0
  %10075 = vmatpush1.msra.mxu0 0.0
  %10076 = vmatprep.subr.mxu0 0.0
  %10077 = vmatpush1.msra.mxu0 0.0
  %10078 = vmatprep.subr.mxu0 0.0
  %10079 = vmatpush1.msra.mxu0 0.0
  %10080 = vmatprep.subr.mxu0 0.0
  %10081 = vmatpush1.msra.mxu0 0.0
  %10082 = vmatprep.subr.mxu0 0.0
  %10083 = vmatpush1.msra.mxu0 0.0
  %10084 = vmatprep.subr.mxu0 0.0
  %10085 = vmatpush1.msra.mxu0 0.0
  %10086 = vmatprep.subr.mxu0 0.0
  %10087 = vmatpush1.msra.mxu0 0.0
  %10088 = vmatprep.subr.mxu0 0.0
  %10089 = vmatpush1.msra.mxu0 0.0
  %10090 = vmatprep.subr.mxu0 0.0
  %10091 = vmatpush1.msra.mxu0 0.0
  %10092 = vmatprep.subr.mxu0 0.0
  %10093 = vmatpush1.msra.mxu0 0.0
  %10094 = vmatprep.subr.mxu0 0.0
  %10095 = vmatpush1.msra.mxu0 0.0
  %10096 = vmatprep.subr.mxu0 0.0
  %10097 = vmatpush1.msra.mxu0 0.0
  %10098 = vmatprep.subr.mxu0 0.0
  %10099 = vmatpush1.msra.mxu0 0.0
  %10100 = vmatprep.subr.mxu0 0.0
  %10101 = vmatpush1.msra.mxu0 0.0
  %10102 = vmatprep.subr.mxu0 0.0
  %10103 = vmatpush1.msra.mxu0 0.0
  %10104 = vmatprep.subr.mxu0 0.0
  %10105 = vmatpush1.msra.mxu0 0.0
  %10106 = vmatprep.subr.mxu0 0.0
  %10107 = vmatpush1.msra.mxu0 0.0
  %10108 = vmatprep.subr.mxu0 0.0
  %10109 = vmatpush1.msra.mxu0 0.0
  %10110 = vmatprep.mubr.f32.mxu0 0.0
  %10111 = vmatmul.mubr.f32.gmra.mrb[0].mxu0 %v10044
  %v10112 = vpop.f32.mrb[0].mxu0
  %v10113 = vadd.f32 0.0, %v10112
  %v10114 = vpop.f32.mrb[0].mxu0
  %10115 = vdwg.mxu0
  %v10116 = vadd.f32 %v9512, %v10113
  %v10117 = vtanh.pop %v10116
  %v10118 = vxor.u32 %v10116, 2147483648
  %v10119 = vmul.f32 %v10118, 1.442695
  %v10120 = vpow.pop %v10119
  %v10121 = vadd.f32 %v10120, 1.0
  %v10122 = vrcp.pop %v10121
  %v10123 = vmul.f32 1.0, %v10122
  %v10124 = vsel %vm61, %v10117, %v10123
  %v10125 = vmul.f32 %v10124, %v10032
  %10127 = vrot.lane.b32.xlu0 %v10124, 64
  %v10128 = vpop.permute.xlu0 %10127
  %v10130 = vmul.f32 %v10124, %v10128
  %10132 = vrot.lane.b32.xlu0 %v10130, 32
  %v10133 = vpop.permute.xlu0 %10132
  %v10135 = vadd.f32 %v10125, %v10133
  %v10136 = vtanh.pop %v10135
  %10138 = vrot.lane.b32.xlu0 %v10136, 64
  %v10139 = vpop.permute.xlu0 %10138
  %v10141 = vmul.f32 %v10124, %v10139
  %10143 = vrot.lane.b32.xlu0 %v10141, 32
  %v10144 = vpop.permute.xlu0 %10143
  %10146 = vst.msk [vmem:[%s9630 + $0x28] sm:$0xff] %vm79, %v10144
  %v10147 = vsel %vm79, %v10144, 0
  %10149 = vmatprep.subr.mxu0 0.0
  %10150 = vmatpush1.msra.mxu0 %v9515
  %10151 = vmatprep.subr.mxu0 0.0
  %10152 = vmatpush1.msra.mxu0 %v9516
  %10153 = vmatprep.subr.mxu0 0.0
  %10154 = vmatpush1.msra.mxu0 %v9517
  %10155 = vmatprep.subr.mxu0 0.0
  %10156 = vmatpush1.msra.mxu0 %v9518
  %10157 = vmatprep.subr.mxu0 0.0
  %10158 = vmatpush1.msra.mxu0 0.0
  %10159 = vmatprep.subr.mxu0 0.0
  %10160 = vmatpush1.msra.mxu0 0.0
  %10161 = vmatprep.subr.mxu0 0.0
  %10162 = vmatpush1.msra.mxu0 0.0
  %10163 = vmatprep.subr.mxu0 0.0
  %10164 = vmatpush1.msra.mxu0 0.0
  %10165 = vmatprep.subr.mxu0 0.0
  %10166 = vmatpush1.msra.mxu0 0.0
  %10167 = vmatprep.subr.mxu0 0.0
  %10168 = vmatpush1.msra.mxu0 0.0
  %10169 = vmatprep.subr.mxu0 0.0
  %10170 = vmatpush1.msra.mxu0 0.0
  %10171 = vmatprep.subr.mxu0 0.0
  %10172 = vmatpush1.msra.mxu0 0.0
  %10173 = vmatprep.subr.mxu0 0.0
  %10174 = vmatpush1.msra.mxu0 0.0
  %10175 = vmatprep.subr.mxu0 0.0
  %10176 = vmatpush1.msra.mxu0 0.0
  %10177 = vmatprep.subr.mxu0 0.0
  %10178 = vmatpush1.msra.mxu0 0.0
  %10179 = vmatprep.subr.mxu0 0.0
  %10180 = vmatpush1.msra.mxu0 0.0
  %10181 = vmatprep.subr.mxu0 0.0
  %10182 = vmatpush1.msra.mxu0 0.0
  %10183 = vmatprep.subr.mxu0 0.0
  %10184 = vmatpush1.msra.mxu0 0.0
  %10185 = vmatprep.subr.mxu0 0.0
  %10186 = vmatpush1.msra.mxu0 0.0
  %10187 = vmatprep.subr.mxu0 0.0
  %10188 = vmatpush1.msra.mxu0 0.0
  %10189 = vmatprep.subr.mxu0 0.0
  %10190 = vmatpush1.msra.mxu0 0.0
  %10191 = vmatprep.subr.mxu0 0.0
  %10192 = vmatpush1.msra.mxu0 0.0
  %10193 = vmatprep.subr.mxu0 0.0
  %10194 = vmatpush1.msra.mxu0 0.0
  %10195 = vmatprep.subr.mxu0 0.0
  %10196 = vmatpush1.msra.mxu0 0.0
  %10197 = vmatprep.subr.mxu0 0.0
  %10198 = vmatpush1.msra.mxu0 0.0
  %10199 = vmatprep.subr.mxu0 0.0
  %10200 = vmatpush1.msra.mxu0 0.0
  %10201 = vmatprep.subr.mxu0 0.0
  %10202 = vmatpush1.msra.mxu0 0.0
  %10203 = vmatprep.subr.mxu0 0.0
  %10204 = vmatpush1.msra.mxu0 0.0
  %10205 = vmatprep.subr.mxu0 0.0
  %10206 = vmatpush1.msra.mxu0 0.0
  %10207 = vmatprep.subr.mxu0 0.0
  %10208 = vmatpush1.msra.mxu0 0.0
  %10209 = vmatprep.subr.mxu0 0.0
  %10210 = vmatpush1.msra.mxu0 0.0
  %10211 = vmatprep.subr.mxu0 0.0
  %10212 = vmatpush1.msra.mxu0 0.0
  %10213 = vmatprep.mubr.f32.mxu0 0.0
  %10214 = vmatmul.mubr.f32.gmra.mrb[0].mxu0 %v10147
  %v10215 = vpop.f32.mrb[0].mxu0
  %v10216 = vadd.f32 0.0, %v10215
  %v10217 = vpop.f32.mrb[0].mxu0
  %10218 = vdwg.mxu0
  %v10219 = vadd.f32 %v9513, %v10216
  %v10220 = vtanh.pop %v10219
  %v10221 = vxor.u32 %v10219, 2147483648
  %v10222 = vmul.f32 %v10221, 1.442695
  %v10223 = vpow.pop %v10222
  %v10224 = vadd.f32 %v10223, 1.0
  %v10225 = vrcp.pop %v10224
  %v10226 = vmul.f32 1.0, %v10225
  %v10227 = vsel %vm61, %v10220, %v10226
  %v10228 = vmul.f32 %v10227, %v10135
  %10230 = vrot.lane.b32.xlu0 %v10227, 64
  %v10231 = vpop.permute.xlu0 %10230
  %v10233 = vmul.f32 %v10227, %v10231
  %10235 = vrot.lane.b32.xlu0 %v10233, 32
  %v10236 = vpop.permute.xlu0 %10235
  %v10238 = vadd.f32 %v10228, %v10236
  %v10239 = vtanh.pop %v10238
  %10241 = vrot.lane.b32.xlu0 %v10239, 64
  %v10242 = vpop.permute.xlu0 %10241
  %v10244 = vmul.f32 %v10227, %v10242
  %10246 = vrot.lane.b32.xlu0 %v10244, 32
  %v10247 = vpop.permute.xlu0 %10246
  %10249 = vst.msk [vmem:[%s9630 + $0x30] sm:$0xff] %vm79, %v10247
  %v10250 = vsel %vm79, %v10247, 0
  %10252 = vmatprep.subr.mxu0 0.0
  %10253 = vmatpush1.msra.mxu0 %v9515
  %10254 = vmatprep.subr.mxu0 0.0
  %10255 = vmatpush1.msra.mxu0 %v9516
  %10256 = vmatprep.subr.mxu0 0.0
  %10257 = vmatpush1.msra.mxu0 %v9517
  %10258 = vmatprep.subr.mxu0 0.0
  %10259 = vmatpush1.msra.mxu0 %v9518
  %10260 = vmatprep.subr.mxu0 0.0
  %10261 = vmatpush1.msra.mxu0 0.0
  %10262 = vmatprep.subr.mxu0 0.0
  %10263 = vmatpush1.msra.mxu0 0.0
  %10264 = vmatprep.subr.mxu0 0.0
  %10265 = vmatpush1.msra.mxu0 0.0
  %10266 = vmatprep.subr.mxu0 0.0
  %10267 = vmatpush1.msra.mxu0 0.0
  %10268 = vmatprep.subr.mxu0 0.0
  %10269 = vmatpush1.msra.mxu0 0.0
  %10270 = vmatprep.subr.mxu0 0.0
  %10271 = vmatpush1.msra.mxu0 0.0
  %10272 = vmatprep.subr.mxu0 0.0
  %10273 = vmatpush1.msra.mxu0 0.0
  %10274 = vmatprep.subr.mxu0 0.0
  %10275 = vmatpush1.msra.mxu0 0.0
  %10276 = vmatprep.subr.mxu0 0.0
  %10277 = vmatpush1.msra.mxu0 0.0
  %10278 = vmatprep.subr.mxu0 0.0
  %10279 = vmatpush1.msra.mxu0 0.0
  %10280 = vmatprep.subr.mxu0 0.0
  %10281 = vmatpush1.msra.mxu0 0.0
  %10282 = vmatprep.subr.mxu0 0.0
  %10283 = vmatpush1.msra.mxu0 0.0
  %10284 = vmatprep.subr.mxu0 0.0
  %10285 = vmatpush1.msra.mxu0 0.0
  %10286 = vmatprep.subr.mxu0 0.0
  %10287 = vmatpush1.msra.mxu0 0.0
  %10288 = vmatprep.subr.mxu0 0.0
  %10289 = vmatpush1.msra.mxu0 0.0
  %10290 = vmatprep.subr.mxu0 0.0
  %10291 = vmatpush1.msra.mxu0 0.0
  %10292 = vmatprep.subr.mxu0 0.0
  %10293 = vmatpush1.msra.mxu0 0.0
  %10294 = vmatprep.subr.mxu0 0.0
  %10295 = vmatpush1.msra.mxu0 0.0
  %10296 = vmatprep.subr.mxu0 0.0
  %10297 = vmatpush1.msra.mxu0 0.0
  %10298 = vmatprep.subr.mxu0 0.0
  %10299 = vmatpush1.msra.mxu0 0.0
  %10300 = vmatprep.subr.mxu0 0.0
  %10301 = vmatpush1.msra.mxu0 0.0
  %10302 = vmatprep.subr.mxu0 0.0
  %10303 = vmatpush1.msra.mxu0 0.0
  %10304 = vmatprep.subr.mxu0 0.0
  %10305 = vmatpush1.msra.mxu0 0.0
  %10306 = vmatprep.subr.mxu0 0.0
  %10307 = vmatpush1.msra.mxu0 0.0
  %10308 = vmatprep.subr.mxu0 0.0
  %10309 = vmatpush1.msra.mxu0 0.0
  %10310 = vmatprep.subr.mxu0 0.0
  %10311 = vmatpush1.msra.mxu0 0.0
  %10312 = vmatprep.subr.mxu0 0.0
  %10313 = vmatpush1.msra.mxu0 0.0
  %10314 = vmatprep.subr.mxu0 0.0
  %10315 = vmatpush1.msra.mxu0 0.0
  %10316 = vmatprep.mubr.f32.mxu0 0.0
  %10317 = vmatmul.mubr.f32.gmra.mrb[0].mxu0 %v10250
  %v10318 = vpop.f32.mrb[0].mxu0
  %v10319 = vadd.f32 0.0, %v10318
  %v10320 = vpop.f32.mrb[0].mxu0
  %10321 = vdwg.mxu0
  %v10322 = vadd.f32 %v9514, %v10319
  %v10323 = vtanh.pop %v10322
  %v10324 = vxor.u32 %v10322, 2147483648
  %v10325 = vmul.f32 %v10324, 1.442695
  %v10326 = vpow.pop %v10325
  %v10327 = vadd.f32 %v10326, 1.0
  %v10328 = vrcp.pop %v10327
  %v10329 = vmul.f32 1.0, %v10328
  %v10330 = vsel %vm61, %v10323, %v10329
  %v10331 = vmul.f32 %v10330, %v10238
  %10333 = vrot.lane.b32.xlu0 %v10330, 64
  %v10334 = vpop.permute.xlu0 %10333
  %v10336 = vmul.f32 %v10330, %v10334
  %10338 = vrot.lane.b32.xlu0 %v10336, 32
  %v10339 = vpop.permute.xlu0 %10338
  %v10341 = vadd.f32 %v10331, %v10339
  %v10342 = vtanh.pop %v10341
  %10344 = vrot.lane.b32.xlu0 %v10342, 64
  %v10345 = vpop.permute.xlu0 %10344
  %v10347 = vmul.f32 %v10330, %v10345
  %10349 = vrot.lane.b32.xlu0 %v10347, 32
  %v10350 = vpop.permute.xlu0 %10349
  %10352 = vst.msk [vmem:[%s9630 + $0x38] sm:$0xff] %vm79, %v10350
  %s10353 = scalar_lea.vmem %s17, 8
  %10354 = vst.msk [vmem:[%s10353] sm:$0xff] %vm79, %v10350
  %10356 = vrot.lane.b32.xlu0 %v10341, 96
  %v10357 = vpop.permute.xlu0 %10356
  %s10359 = scalar_lea.vmem %s18, 8
  %10360 = vst.msk [vmem:[%s10359] sm:$0xff] %vm79, %v10357
  %v10361 = vld [vmem:[%s9630] sm:$0xff]
  %v10362 = vld [vmem:[%s9630 + $0x8] sm:$0xff]
  %v10363 = vld [vmem:[%s9630 + $0x10] sm:$0xff]
  %v10364 = vld [vmem:[%s9630 + $0x18] sm:$0xff]
  %v10365 = vld [vmem:[%s9630 + $0x20] sm:$0xff]
  %v10366 = vld [vmem:[%s9630 + $0x28] sm:$0xff]
  %v10367 = vld [vmem:[%s9630 + $0x30] sm:$0xff]
  %v10368 = vld [vmem:[%s9630 + $0x38] sm:$0xff]
  %v10369 = vpack.c.bf16 %v10362, %v10361
  %v10370 = vpack.c.bf16 %v10364, %v10363
  %v10371 = vpack.c.bf16 %v10366, %v10365
  %v10372 = vpack.c.bf16 %v10368, %v10367
  %v10373 = vld [vmem:[%s14] sm:$0xf]
  %v10374 = vld [vmem:[%s14 + $0x4] sm:$0xf]
  %v10375 = vld [vmem:[%s14 + $0x8] sm:$0xf]
  %v10376 = vld [vmem:[%s14 + $0xc] sm:$0xf]
  %v10377 = vld [vmem:[%s15] sm:$0x1]
  %v10379 = vlaneseq
  %v10380 = vshrl.u32 %v10379, 7
  %v10381 = vsub.s32 0, %v10380
  %v10382 = vrot.slane %v10377, %v10381
  %v10388 = vunpack.c.l.b16 %v10373
  %v10389 = vunpack.c.l.b16 %v10374
  %v10390 = vunpack.c.l.b16 %v10375
  %v10391 = vunpack.c.l.b16 %v10376
  %v10392 = vpack.c.b16 %v10389, %v10388
  %v10393 = vpack.c.b16 %v10391, %v10390
  %v10397 = vsel %vm79, %v10369, 0
  %v10400 = vsel %vm79, %v10370, 0
  %v10403 = vsel %vm79, %v10371, 0
  %v10406 = vsel %vm79, %v10372, 0
  %10408 = vmatprep.subr.bf16.mxu0 0
  %10409 = vmatpush1.bf16.msra.mxu0 %v10392
  %10410 = vmatprep.subr.bf16.mxu0 0
  %10411 = vmatpush1.bf16.msra.mxu0 %v10393
  %10412 = vmatprep.subr.bf16.mxu0 0
  %10413 = vmatpush1.bf16.msra.mxu0 0
  %10414 = vmatprep.subr.bf16.mxu0 0
  %10415 = vmatpush1.bf16.msra.mxu0 0
  %10416 = vmatprep.subr.bf16.mxu0 0
  %10417 = vmatpush1.bf16.msra.mxu0 0
  %10418 = vmatprep.subr.bf16.mxu0 0
  %10419 = vmatpush1.bf16.msra.mxu0 0
  %10420 = vmatprep.subr.bf16.mxu0 0
  %10421 = vmatpush1.bf16.msra.mxu0 0
  %10422 = vmatprep.subr.bf16.mxu0 0
  %10423 = vmatpush1.bf16.msra.mxu0 0
  %10424 = vmatprep.subr.bf16.mxu0 0
  %10425 = vmatpush1.bf16.msra.mxu0 0
  %10426 = vmatprep.subr.bf16.mxu0 0
  %10427 = vmatpush1.bf16.msra.mxu0 0
  %10428 = vmatprep.subr.bf16.mxu0 0
  %10429 = vmatpush1.bf16.msra.mxu0 0
  %10430 = vmatprep.subr.bf16.mxu0 0
  %10431 = vmatpush1.bf16.msra.mxu0 0
  %10432 = vmatprep.subr.bf16.mxu0 0
  %10433 = vmatpush1.bf16.msra.mxu0 0
  %10434 = vmatprep.subr.bf16.mxu0 0
  %10435 = vmatpush1.bf16.msra.mxu0 0
  %10436 = vmatprep.subr.bf16.mxu0 0
  %10437 = vmatpush1.bf16.msra.mxu0 0
  %10438 = vmatprep.subr.bf16.mxu0 0
  %10439 = vmatpush1.bf16.msra.mxu0 0
  %10440 = vmatprep.mubr.bf16.mxu0 0
  %10441 = vmatmul.mubr.bf16.gmra.mrb[0].mxu0 %v10397
  %v10442 = vpop.f32.mrb[0].mxu0
  %v10443 = vadd.f32 %v10382, %v10442
  %v10444 = vpop.f32.mrb[0].mxu0
  %v10445 = vpop.f32.mrb[0].mxu0
  %v10446 = vadd.f32 %v10382, %v10445
  %v10447 = vpop.f32.mrb[0].mxu0
  %10448 = vmatprep.mubr.bf16.mxu0 0
  %10449 = vmatmul.mubr.bf16.gmra.mrb[0].mxu0 %v10400
  %v10450 = vpop.f32.mrb[0].mxu0
  %v10451 = vadd.f32 %v10382, %v10450
  %v10452 = vpop.f32.mrb[0].mxu0
  %v10453 = vpop.f32.mrb[0].mxu0
  %v10454 = vadd.f32 %v10382, %v10453
  %v10455 = vpop.f32.mrb[0].mxu0
  %10456 = vmatprep.mubr.bf16.mxu0 0
  %10457 = vmatmul.mubr.bf16.gmra.mrb[0].mxu0 %v10403
  %v10458 = vpop.f32.mrb[0].mxu0
  %v10459 = vadd.f32 %v10382, %v10458
  %v10460 = vpop.f32.mrb[0].mxu0
  %v10461 = vpop.f32.mrb[0].mxu0
  %v10462 = vadd.f32 %v10382, %v10461
  %v10463 = vpop.f32.mrb[0].mxu0
  %10464 = vmatprep.mubr.bf16.mxu0 0
  %10465 = vmatmul.mubr.bf16.gmra.mrb[0].mxu0 %v10406
  %v10466 = vpop.f32.mrb[0].mxu0
  %v10467 = vadd.f32 %v10382, %v10466
  %v10468 = vpop.f32.mrb[0].mxu0
  %v10469 = vpop.f32.mrb[0].mxu0
  %v10470 = vadd.f32 %v10382, %v10469
  %v10471 = vpop.f32.mrb[0].mxu0
  %10472 = vdwg.mxu0
  %10473 = vst [vmem:[%s16] sm:$0xff] %v10443
  %10474 = vst [vmem:[%s16 + $0x8] sm:$0xff] %v10446
  %10475 = vst [vmem:[%s16 + $0x10] sm:$0xff] %v10451
  %10476 = vst [vmem:[%s16 + $0x18] sm:$0xff] %v10454
  %10477 = vst [vmem:[%s16 + $0x20] sm:$0xff] %v10459
  %10478 = vst [vmem:[%s16 + $0x28] sm:$0xff] %v10462
  %10479 = vst [vmem:[%s16 + $0x30] sm:$0xff] %v10467
  %10480 = vst [vmem:[%s16 + $0x38] sm:$0xff] %v10470
  // Predicated region
  $region66: #{decoder_forward.1} parent=0 // pred_check
    _
  $region67: #{decoder_forward.1} parent=0 // pred_check_branch
    %10482 = sbr.rel (0) target = $region69
  $region68: #{decoder_forward.1} parent=0 // pred_region
    _
  $region69: #{decoder_forward.1} parent=0 // pred_fallthru
    _
  // Predicated region
  $region70: #{decoder_forward.1} parent=0 // pred_check
    _
  $region71: #{decoder_forward.1} parent=0 // pred_check_branch
    %10484 = sbr.rel (0) target = $region73
  $region72: #{decoder_forward.1} parent=0 // pred_region
    _
  $region73: #{decoder_forward.1} parent=0 // pred_fallthru
    _
  // Predicated region
  $region74: #{decoder_forward.1} parent=0 // pred_check
    _
  $region75: #{decoder_forward.1} parent=0 // pred_check_branch
    %10486 = sbr.rel (0) target = $region77
  $region76: #{decoder_forward.1} parent=0 // pred_region
    _
  $region77: #{decoder_forward.1} parent=0 // pred_fallthru
    _
  // Predicated region
  $region78: #{decoder_forward.1} parent=0 // pred_check
    _
  $region79: #{decoder_forward.1} parent=0 // pred_check_branch
    %10488 = sbr.rel (0) target = $region81
  $region80: #{decoder_forward.1} parent=0 // pred_region
    _
  $region81: #{decoder_forward.1} parent=0 // pred_fallthru
    _
  // Predicated region
  $region82: #{decoder_forward.1} parent=0 // pred_check
    _
  $region83: #{decoder_forward.1} parent=0 // pred_check_branch
    %10490 = sbr.rel (0) target = $region85
  $region84: #{decoder_forward.1} parent=0 // pred_region
    _
  $region85: #{decoder_forward.1} parent=0 // pred_fallthru
    _
  // Predicated region
  $region86: #{decoder_forward.1} parent=0 // pred_check
    _
  $region87: #{decoder_forward.1} parent=0 // pred_check_branch
    %10492 = sbr.rel (0) target = $region89
  $region88: #{decoder_forward.1} parent=0 // pred_region
    _
  $region89: #{decoder_forward.1} parent=0 // pred_fallthru
    _

</llo_original>
